<compile_context>
chip_gen: v7x
topology: tpu7x:2x2x1
jax: 0.10.0
libtpu: 0.0.40
codegen_flags: <defaults>
</compile_context>

<pallas_src>
import numpy as np
import jax
import jax.numpy as jnp
from jax.experimental import pallas as pl
from jax.experimental.pallas import tpu as pltpu

# ---------------- configuration (small synthetic sizes) ----------------
CONFIG = {
    "use_meta_node": False,
    "map": {"num_filters": 32, "num_blocks": 2},
    "game_state_model": {"input_dim": 16, "hidden_dim": 32, "output_dim": 16},
    "embedding_size": 32,
    "policy": {"hidden_size_1": 64, "hidden_size_2": 64,
               "hidden_size_3": 32, "output_size": 12},
}
MAP_CHANNELS = 30
CIN_PAD = 32                                    # pad 30 -> 32 for aligned K
LOGITS_PAD = 128                                # lane-dense head output
MASK_VALUE = float(np.finfo(np.float32).min)    # torch.finfo(float32).min


# ---------------- generic pallas helpers ----------------
def _full_spec(shape):
    n = len(shape)
    return pl.BlockSpec(shape, lambda i, _n=n: (0,) * _n)


def _run_full(kernel, out_shape, *args):
    """Run a kernel on whole-array VMEM blocks (tiny shapes -> single tile)."""
    return pl.pallas_call(
        kernel,
        grid=(1,),
        in_specs=[_full_spec(a.shape) for a in args],
        out_specs=_full_spec(out_shape.shape),
        out_shape=out_shape,
        compiler_params=pltpu.CompilerParams(dimension_semantics=("arbitrary",)),
    )(*args)


def _elu(x):
    # PyTorch ELU(alpha=1): x if x > 0 else exp(x) - 1
    return jnp.where(x > 0.0, x, jnp.exp(jnp.minimum(x, 0.0)) - 1.0)


# ---------------- fused Representation kernel ----------------
def _make_representation_kernel(B, H, W, C, num_blocks):
    """conv3x3+BN+ReLU -> num_blocks residual blocks -> spatial max, all in VMEM.

    Activations are (M, C) = (B*H*W, C); each conv tap is a row-shift
    (pltpu.roll) + boundary mask + bf16 matmul accumulated in f32.
    """
    M = B * H * W
    HW = H * W

    def kernel(x_ref, mask_ref, w0_ref, s0_ref, b0_ref,
               wb_ref, sb_ref, bb_ref, out_ref):
        masks = mask_ref[...]                                  # (M, 16) f32
        # Hoist the 9 tap-validity lane-broadcasts (used by every conv layer).
        bmask = {}
        for cin in {CIN_PAD, C}:
            bmask[cin] = [jnp.broadcast_to(masks[:, t:t + 1], (M, cin))
                          for t in range(9)]

        def conv_bn(act, w2d, scale, shift, cin, residual=None):
            acc = jnp.zeros((M, C), jnp.float32)
            for t in range(9):
                dy, dx = divmod(t, 3)
                row_shift = (dy - 1) * W + (dx - 1)
                if row_shift == 0:
                    xs = act                                   # center tap: no
                else:                                          # roll, no mask
                    xs = pltpu.roll(act, shift=(-row_shift) % M, axis=0)
                    # Zero taps falling outside the HxW window (also kills
                    # cross-image wraparound rows), then feed MXU in bf16.
                    xs = xs * bmask[cin][t]
                wt = w2d[t * cin:(t + 1) * cin, :]             # (cin, C) bf16
                acc = acc + jnp.dot(xs.astype(jnp.bfloat16), wt,
                                    preferred_element_type=jnp.float32)
            h = acc * scale + shift                            # folded BN (f32)
            if residual is not None:
                h = h + residual                               # ResidualBlock
            return jnp.maximum(h, 0.0)                         # ReLU

        h = conv_bn(x_ref[...], w0_ref[...], s0_ref[...], b0_ref[...], CIN_PAD)
        for k in range(num_blocks):
            h = conv_bn(h, wb_ref[k], sb_ref[k], bb_ref[k], C, residual=h)

        # spatial max per sample (XLU reduce on VMEM-resident activations)
        for b in range(B):
            out_ref[b:b + 1, :] = jnp.max(h[b * HW:(b + 1) * HW, :],
                                          axis=0, keepdims=True)

    return kernel


def _tap_masks(B, H, W):
    """Validity mask per flattened row r=(b,y,x) and conv tap t=(dy,dx)."""
    yy = np.repeat(np.arange(H), W)
    xx = np.tile(np.arange(W), H)
    m = np.zeros((H * W, 16), np.float32)       # 9 taps, padded to 16 cols
    for t in range(9):
        dy, dx = divmod(t, 3)
        ok = ((yy + dy - 1 >= 0) & (yy + dy - 1 < H)
              & (xx + dx - 1 >= 0) & (xx + dx - 1 < W))
        m[:, t] = ok.astype(np.float32)
    return np.tile(m, (B, 1))                   # (B*H*W, 16)


def representation_forward(p, g_map):
    """Representation over one group of equal-sized maps (B, H, W, 30) NHWC."""
    B, H, W, cin = g_map.shape
    C = p["w0"].shape[1]
    nb = p["wb"].shape[0]
    x = jnp.pad(g_map, ((0, 0), (0, 0), (0, 0), (0, CIN_PAD - cin)))
    x2 = x.reshape(B * H * W, CIN_PAD).astype(jnp.float32)
    masks = jnp.asarray(_tap_masks(B, H, W))
    kernel = _make_representation_kernel(B, H, W, C, nb)
    out_shape = jax.ShapeDtypeStruct((B, C), jnp.float32)
    return _run_full(kernel, out_shape, x2, masks,
                     p["w0"], p["s0"], p["b0"], p["wb"], p["sb"], p["bb"])


# ---------------- fused MLP head kernel ----------------
def _head_kernel(gstrat_ref, gstate_ref,
                 gw1_ref, gb1_ref, gw2_ref, gb2_ref,
                 fwm_ref, fwg_ref, fb_ref,
                 pw1_ref, pb1_ref, pw2_ref, pb2_ref, pw3_ref, pb3_ref,
                 lw_ref, lb_ref, mask_ref, out_ref):
    def dot(a, w_ref):
        return jnp.dot(a.astype(jnp.bfloat16), w_ref[...],
                       preferred_element_type=jnp.float32)

    # game_state_model: Linear -> ELU -> Linear
    h = _elu(dot(gstate_ref[...], gw1_ref) + gb1_ref[...])
    game_strategy = dot(h, gw2_ref) + gb2_ref[...]
    # feature_model: Linear over concat([global_strategy, game_strategy], dim=1)
    feat = (dot(gstrat_ref[...], fwm_ref)
            + dot(game_strategy, fwg_ref) + fb_ref[...])
    # policy_branch: Linear -> ELU -> Linear -> ELU -> Linear
    h = _elu(dot(feat, pw1_ref) + pb1_ref[...])
    h = _elu(dot(h, pw2_ref) + pb2_ref[...])
    h = dot(h, pw3_ref) + pb3_ref[...]
    # logits_head (no activation, lane-padded to 128) + action masking
    logits = dot(h, lw_ref) + lb_ref[...]
    inf_mask = jnp.maximum(jnp.log(mask_ref[...]), MASK_VALUE)
    out_ref[...] = logits + inf_mask


def head_forward(p, global_strategy, game_state, action_mask_padded):
    B = global_strategy.shape[0]
    out_shape = jax.ShapeDtypeStruct((B, LOGITS_PAD), jnp.float32)
    return _run_full(_head_kernel, out_shape,
                     global_strategy, game_state,
                     p["gw1"], p["gb1"], p["gw2"], p["gb2"],
                     p["fwm"], p["fwg"], p["fb"],
                     p["pw1"], p["pb1"], p["pw2"], p["pb2"], p["pw3"], p["pb3"],
                     p["lw"], p["lb"], action_mask_padded)


# ---------------- forward ----------------
def worker_model_v3_forward(params, obs):
    """Mirrors WorkerModelV3.forward: returns masked action logits."""
    # --- unpad maps according to map_size (python control flow, like torch) ---
    map_sizes = np.asarray(obs["map_size"])[:, 0]
    maps = obs["map"]                                    # (B, Hpad, Wpad, 30) HWC
    unpadded = []
    for i, ms in enumerate(map_sizes.tolist()):
        if ms == 0:
            ms = 20
        pad = int((maps.shape[1] - ms) // 2)
        if pad > 0:
            unpadded.append(maps[i][pad:-pad, pad:-pad, :])
        else:  # pad <= 0 (map_size >= padded size): keep full map
            unpadded.append(maps[i])

    # --- embed_different_sized_maps: group consecutive equal-sized maps ---
    break_indices = [0]
    for i in range(1, len(unpadded)):
        if unpadded[i].shape[0] != unpadded[i - 1].shape[0]:
            break_indices.append(i)
    break_indices.append(len(unpadded))
    strategies = []
    for j in range(1, len(break_indices)):
        g_map = jnp.stack(unpadded[break_indices[j - 1]:break_indices[j]], axis=0)
        strategies.append(representation_forward(params["map"], g_map))
    global_strategy = jnp.concatenate(strategies, axis=0)   # (B, num_filters)

    # --- fused game_state MLP + feature linear + policy + logits + mask ---
    out_size = CONFIG["policy"]["output_size"]
    action_mask = obs["action_mask"].astype(jnp.int32)[:, :out_size].astype(jnp.float32)
    # pad mask with ones (log 1 = 0) so the head output stays lane-dense
    action_mask = jnp.pad(action_mask, ((0, 0), (0, LOGITS_PAD - out_size)),
                          constant_values=1.0)
    masked = head_forward(params["head"], global_strategy, obs["game_state"],
                          action_mask)
    return masked[:, :out_size]


# ---------------- deterministic parameter init ----------------
def init_params(key):
    cfg = CONFIG
    nf = cfg["map"]["num_filters"]
    gs = cfg["game_state_model"]
    emb = cfg["embedding_size"]
    pol = cfg["policy"]
    keys = iter(jax.random.split(key, 64))

    def dense(i, o, bias_scale=0.01):
        w = (jax.random.normal(next(keys), (i, o), jnp.float32)
             / np.sqrt(i)).astype(jnp.bfloat16)             # bf16 matmul weight
        b = jax.random.normal(next(keys), (1, o), jnp.float32) * bias_scale
        return w, b

    def conv_bn(cin, cout, cin_pad):
        # w[(dy*3+dx)*cin_pad + c, f] == W_torch[f, c, dy, dx]
        w = jax.random.normal(next(keys), (3, 3, cin, cout), jnp.float32) / np.sqrt(9 * cin)
        if cin_pad > cin:
            w = jnp.pad(w, ((0, 0), (0, 0), (0, cin_pad - cin), (0, 0)))
        w = w.reshape(9 * cin_pad, cout).astype(jnp.bfloat16)
        gamma = 1.0 + 0.1 * jax.random.normal(next(keys), (cout,), jnp.float32)
        beta = 0.1 * jax.random.normal(next(keys), (cout,), jnp.float32)
        mean = 0.05 * jax.random.normal(next(keys), (cout,), jnp.float32)
        var = jax.random.uniform(next(keys), (cout,), jnp.float32, minval=0.5, maxval=1.5)
        scale = (gamma / jnp.sqrt(var + 1e-5)).reshape(1, cout)
        shift = beta.reshape(1, cout) - mean.reshape(1, cout) * scale
        return w, scale, shift

    # Representation
    w0, s0, b0 = conv_bn(MAP_CHANNELS, nf, CIN_PAD)
    wbs, sbs, bbs = [], [], []
    for _ in range(cfg["map"]["num_blocks"]):
        w, s, b = conv_bn(nf, nf, nf)
        wbs.append(w); sbs.append(s); bbs.append(b)
    map_p = {"w0": w0, "s0": s0, "b0": b0,
             "wb": jnp.stack(wbs), "sb": jnp.stack(sbs), "bb": jnp.stack(bbs)}

    # game_state MLP
    gw1, gb1 = dense(gs["input_dim"], gs["hidden_dim"])
    gw2, gb2 = dense(gs["hidden_dim"], gs["output_dim"])
    # feature model over concat([global_strategy, game_strategy])
    fw, fb = dense(nf + gs["output_dim"], emb)
    # policy branch + logits head (logits padded to 128 lanes for dense stores)
    pw1, pb1 = dense(emb, pol["hidden_size_1"])
    pw2, pb2 = dense(pol["hidden_size_1"], pol["hidden_size_2"])
    pw3, pb3 = dense(pol["hidden_size_2"], pol["hidden_size_3"])
    lw, lb = dense(pol["hidden_size_3"], pol["output_size"])
    lw = jnp.pad(lw, ((0, 0), (0, LOGITS_PAD - pol["output_size"])))
    lb = jnp.pad(lb, ((0, 0), (0, LOGITS_PAD - pol["output_size"])))

    head_p = {"gw1": gw1, "gb1": gb1, "gw2": gw2, "gb2": gb2,
              "fwm": fw[:nf, :], "fwg": fw[nf:, :], "fb": fb,
              "pw1": pw1, "pb1": pb1, "pw2": pw2, "pb2": pb2,
              "pw3": pw3, "pb3": pb3, "lw": lw, "lb": lb}

    return {"map": map_p, "head": head_p}


# ---------------- main ----------------
if __name__ == "__main__":
    key = jax.random.PRNGKey(0)
    k_par, k_map, k_gs, k_mask = jax.random.split(key, 4)
    params = init_params(k_par)

    B = 2
    H_PAD = 16          # padded obs map; map_size=12 -> pad=2 -> unpadded 12x12
    obs = {
        "map": jax.random.normal(k_map, (B, H_PAD, H_PAD, MAP_CHANNELS), jnp.float32),
        "map_size": jnp.full((B, 1), 12, dtype=jnp.int32),
        "game_state": jax.random.normal(
            k_gs, (B, CONFIG["game_state_model"]["input_dim"]), jnp.float32),
        "action_mask": (jax.random.uniform(k_mask, (B, 16)) > 0.3).astype(jnp.int32),
    }

    masked_logits = worker_model_v3_forward(params, obs)
    jax.block_until_ready(masked_logits)
    assert masked_logits.shape == (B, CONFIG["policy"]["output_size"])
    assert bool(jnp.all(jnp.isfinite(masked_logits) | (masked_logits <= MASK_VALUE / 2)))
    print("KERNEL_OK")
</pallas_src>

<mosaic_0001>
module attributes {stable_mosaic.version = 11 : i64} {
  func.func @kernel(%arg0: i32, %arg1: memref<288x32xf32, #tpu.memory_space<vmem>>, %arg2: memref<288x16xf32, #tpu.memory_space<vmem>>, %arg3: memref<288x32xbf16, #tpu.memory_space<vmem>>, %arg4: memref<1x32xf32, #tpu.memory_space<vmem>>, %arg5: memref<1x32xf32, #tpu.memory_space<vmem>>, %arg6: memref<2x288x32xbf16, #tpu.memory_space<vmem>>, %arg7: memref<2x1x32xf32, #tpu.memory_space<vmem>>, %arg8: memref<2x1x32xf32, #tpu.memory_space<vmem>>, %arg9: memref<2x32xf32, #tpu.memory_space<vmem>>) attributes {dimension_semantics = [#tpu.dimension_semantics<arbitrary>], iteration_bounds = array<i64: 1>, scalar_prefetch = 0 : i64, scratch_operands = 0 : i64, tpu.core_type = #tpu.core_type<tc>, window_params = [{pipeline_mode = #tpu.pipeline_mode<synchronous>, transform_indices = @transform_0, window_bounds = array<i64: 288, 32>}, {pipeline_mode = #tpu.pipeline_mode<synchronous>, transform_indices = @transform_1, window_bounds = array<i64: 288, 16>}, {pipeline_mode = #tpu.pipeline_mode<synchronous>, transform_indices = @transform_2, window_bounds = array<i64: 288, 32>}, {pipeline_mode = #tpu.pipeline_mode<synchronous>, transform_indices = @transform_3, window_bounds = array<i64: 1, 32>}, {pipeline_mode = #tpu.pipeline_mode<synchronous>, transform_indices = @transform_4, window_bounds = array<i64: 1, 32>}, {pipeline_mode = #tpu.pipeline_mode<synchronous>, transform_indices = @transform_5, window_bounds = array<i64: 2, 288, 32>}, {pipeline_mode = #tpu.pipeline_mode<synchronous>, transform_indices = @transform_6, window_bounds = array<i64: 2, 1, 32>}, {pipeline_mode = #tpu.pipeline_mode<synchronous>, transform_indices = @transform_7, window_bounds = array<i64: 2, 1, 32>}, {pipeline_mode = #tpu.pipeline_mode<synchronous>, transform_indices = @transform_8, window_bounds = array<i64: 2, 32>}]} {
    %c0 = arith.constant 0 : index
    %c0_0 = arith.constant 0 : index
    %0 = vector.load %arg2[%c0, %c0_0] : memref<288x16xf32, #tpu.memory_space<vmem>>, vector<288x16xf32>
    %1 = vector.extract_strided_slice %0 {offsets = [0, 0], sizes = [288, 1], strides = [1, 1]} : vector<288x16xf32> to vector<288x1xf32>
    %2 = vector.shape_cast %1 : vector<288x1xf32> to vector<288x1xf32>
    %3 = vector.broadcast %2 : vector<288x1xf32> to vector<288x32xf32>
    %4 = vector.extract_strided_slice %0 {offsets = [0, 1], sizes = [288, 1], strides = [1, 1]} : vector<288x16xf32> to vector<288x1xf32>
    %5 = vector.shape_cast %4 : vector<288x1xf32> to vector<288x1xf32>
    %6 = vector.broadcast %5 : vector<288x1xf32> to vector<288x32xf32>
    %7 = vector.extract_strided_slice %0 {offsets = [0, 2], sizes = [288, 1], strides = [1, 1]} : vector<288x16xf32> to vector<288x1xf32>
    %8 = vector.shape_cast %7 : vector<288x1xf32> to vector<288x1xf32>
    %9 = vector.broadcast %8 : vector<288x1xf32> to vector<288x32xf32>
    %10 = vector.extract_strided_slice %0 {offsets = [0, 3], sizes = [288, 1], strides = [1, 1]} : vector<288x16xf32> to vector<288x1xf32>
    %11 = vector.shape_cast %10 : vector<288x1xf32> to vector<288x1xf32>
    %12 = vector.broadcast %11 : vector<288x1xf32> to vector<288x32xf32>
    %13 = vector.extract_strided_slice %0 {offsets = [0, 5], sizes = [288, 1], strides = [1, 1]} : vector<288x16xf32> to vector<288x1xf32>
    %14 = vector.shape_cast %13 : vector<288x1xf32> to vector<288x1xf32>
    %15 = vector.broadcast %14 : vector<288x1xf32> to vector<288x32xf32>
    %16 = vector.extract_strided_slice %0 {offsets = [0, 6], sizes = [288, 1], strides = [1, 1]} : vector<288x16xf32> to vector<288x1xf32>
    %17 = vector.shape_cast %16 : vector<288x1xf32> to vector<288x1xf32>
    %18 = vector.broadcast %17 : vector<288x1xf32> to vector<288x32xf32>
    %19 = vector.extract_strided_slice %0 {offsets = [0, 7], sizes = [288, 1], strides = [1, 1]} : vector<288x16xf32> to vector<288x1xf32>
    %20 = vector.shape_cast %19 : vector<288x1xf32> to vector<288x1xf32>
    %21 = vector.broadcast %20 : vector<288x1xf32> to vector<288x32xf32>
    %22 = vector.extract_strided_slice %0 {offsets = [0, 8], sizes = [288, 1], strides = [1, 1]} : vector<288x16xf32> to vector<288x1xf32>
    %23 = vector.shape_cast %22 : vector<288x1xf32> to vector<288x1xf32>
    %24 = vector.broadcast %23 : vector<288x1xf32> to vector<288x32xf32>
    %c0_1 = arith.constant 0 : index
    %c0_2 = arith.constant 0 : index
    %25 = vector.load %arg1[%c0_1, %c0_2] : memref<288x32xf32, #tpu.memory_space<vmem>>, vector<288x32xf32>
    %c0_3 = arith.constant 0 : index
    %c0_4 = arith.constant 0 : index
    %26 = vector.load %arg3[%c0_3, %c0_4] : memref<288x32xbf16, #tpu.memory_space<vmem>>, vector<288x32xbf16>
    %c0_5 = arith.constant 0 : index
    %c0_6 = arith.constant 0 : index
    %27 = vector.load %arg4[%c0_5, %c0_6] : memref<1x32xf32, #tpu.memory_space<vmem>>, vector<1x32xf32>
    %c0_7 = arith.constant 0 : index
    %c0_8 = arith.constant 0 : index
    %28 = vector.load %arg5[%c0_7, %c0_8] : memref<1x32xf32, #tpu.memory_space<vmem>>, vector<1x32xf32>
    %cst = arith.constant 0.000000e+00 : f32
    %29 = vector.broadcast %cst : f32 to vector<288x32xf32>
    %c13_i32 = arith.constant 13 : i32
    %30 = tpu.dynamic_rotate %25 by %c13_i32 dim 0 : vector<288x32xf32>, i32 -> vector<288x32xf32>
    %31 = arith.mulf %30, %3 : vector<288x32xf32>
    %32 = vector.extract_strided_slice %26 {offsets = [0, 0], sizes = [32, 32], strides = [1, 1]} : vector<288x32xbf16> to vector<32x32xbf16>
    %33 = arith.truncf %31 : vector<288x32xf32> to vector<288x32xbf16>
    %cst_9 = arith.constant dense<0.000000e+00> : vector<288x32xf32>
    %34 = tpu.matmul %33, %32, %cst_9 {dimension_numbers = #tpu.dot_dimension_numbers<[1], [0], [0], [1], [0, 0, 1, 1], [], []>} : vector<288x32xbf16>, vector<32x32xbf16>, vector<288x32xf32> -> vector<288x32xf32>
    %35 = arith.addf %29, %34 : vector<288x32xf32>
    %c12_i32 = arith.constant 12 : i32
    %36 = tpu.dynamic_rotate %25 by %c12_i32 dim 0 : vector<288x32xf32>, i32 -> vector<288x32xf32>
    %37 = arith.mulf %36, %6 : vector<288x32xf32>
    %38 = vector.extract_strided_slice %26 {offsets = [32, 0], sizes = [32, 32], strides = [1, 1]} : vector<288x32xbf16> to vector<32x32xbf16>
    %39 = arith.truncf %37 : vector<288x32xf32> to vector<288x32xbf16>
    %cst_10 = arith.constant dense<0.000000e+00> : vector<288x32xf32>
    %40 = tpu.matmul %39, %38, %cst_10 {dimension_numbers = #tpu.dot_dimension_numbers<[1], [0], [0], [1], [0, 0, 1, 1], [], []>} : vector<288x32xbf16>, vector<32x32xbf16>, vector<288x32xf32> -> vector<288x32xf32>
    %41 = arith.addf %35, %40 : vector<288x32xf32>
    %c11_i32 = arith.constant 11 : i32
    %42 = tpu.dynamic_rotate %25 by %c11_i32 dim 0 : vector<288x32xf32>, i32 -> vector<288x32xf32>
    %43 = arith.mulf %42, %9 : vector<288x32xf32>
    %44 = vector.extract_strided_slice %26 {offsets = [64, 0], sizes = [32, 32], strides = [1, 1]} : vector<288x32xbf16> to vector<32x32xbf16>
    %45 = arith.truncf %43 : vector<288x32xf32> to vector<288x32xbf16>
    %cst_11 = arith.constant dense<0.000000e+00> : vector<288x32xf32>
    %46 = tpu.matmul %45, %44, %cst_11 {dimension_numbers = #tpu.dot_dimension_numbers<[1], [0], [0], [1], [0, 0, 1, 1], [], []>} : vector<288x32xbf16>, vector<32x32xbf16>, vector<288x32xf32> -> vector<288x32xf32>
    %47 = arith.addf %41, %46 : vector<288x32xf32>
    %c1_i32 = arith.constant 1 : i32
    %48 = tpu.dynamic_rotate %25 by %c1_i32 dim 0 : vector<288x32xf32>, i32 -> vector<288x32xf32>
    %49 = arith.mulf %48, %12 : vector<288x32xf32>
    %50 = vector.extract_strided_slice %26 {offsets = [96, 0], sizes = [32, 32], strides = [1, 1]} : vector<288x32xbf16> to vector<32x32xbf16>
    %51 = arith.truncf %49 : vector<288x32xf32> to vector<288x32xbf16>
    %cst_12 = arith.constant dense<0.000000e+00> : vector<288x32xf32>
    %52 = tpu.matmul %51, %50, %cst_12 {dimension_numbers = #tpu.dot_dimension_numbers<[1], [0], [0], [1], [0, 0, 1, 1], [], []>} : vector<288x32xbf16>, vector<32x32xbf16>, vector<288x32xf32> -> vector<288x32xf32>
    %53 = arith.addf %47, %52 : vector<288x32xf32>
    %54 = vector.extract_strided_slice %26 {offsets = [128, 0], sizes = [32, 32], strides = [1, 1]} : vector<288x32xbf16> to vector<32x32xbf16>
    %55 = arith.truncf %25 : vector<288x32xf32> to vector<288x32xbf16>
    %cst_13 = arith.constant dense<0.000000e+00> : vector<288x32xf32>
    %56 = tpu.matmul %55, %54, %cst_13 {dimension_numbers = #tpu.dot_dimension_numbers<[1], [0], [0], [1], [0, 0, 1, 1], [], []>} : vector<288x32xbf16>, vector<32x32xbf16>, vector<288x32xf32> -> vector<288x32xf32>
    %57 = arith.addf %53, %56 : vector<288x32xf32>
    %c287_i32 = arith.constant 287 : i32
    %58 = tpu.dynamic_rotate %25 by %c287_i32 dim 0 : vector<288x32xf32>, i32 -> vector<288x32xf32>
    %59 = arith.mulf %58, %15 : vector<288x32xf32>
    %60 = vector.extract_strided_slice %26 {offsets = [160, 0], sizes = [32, 32], strides = [1, 1]} : vector<288x32xbf16> to vector<32x32xbf16>
    %61 = arith.truncf %59 : vector<288x32xf32> to vector<288x32xbf16>
    %cst_14 = arith.constant dense<0.000000e+00> : vector<288x32xf32>
    %62 = tpu.matmul %61, %60, %cst_14 {dimension_numbers = #tpu.dot_dimension_numbers<[1], [0], [0], [1], [0, 0, 1, 1], [], []>} : vector<288x32xbf16>, vector<32x32xbf16>, vector<288x32xf32> -> vector<288x32xf32>
    %63 = arith.addf %57, %62 : vector<288x32xf32>
    %c277_i32 = arith.constant 277 : i32
    %64 = tpu.dynamic_rotate %25 by %c277_i32 dim 0 : vector<288x32xf32>, i32 -> vector<288x32xf32>
    %65 = arith.mulf %64, %18 : vector<288x32xf32>
    %66 = vector.extract_strided_slice %26 {offsets = [192, 0], sizes = [32, 32], strides = [1, 1]} : vector<288x32xbf16> to vector<32x32xbf16>
    %67 = arith.truncf %65 : vector<288x32xf32> to vector<288x32xbf16>
    %cst_15 = arith.constant dense<0.000000e+00> : vector<288x32xf32>
    %68 = tpu.matmul %67, %66, %cst_15 {dimension_numbers = #tpu.dot_dimension_numbers<[1], [0], [0], [1], [0, 0, 1, 1], [], []>} : vector<288x32xbf16>, vector<32x32xbf16>, vector<288x32xf32> -> vector<288x32xf32>
    %69 = arith.addf %63, %68 : vector<288x32xf32>
    %c276_i32 = arith.constant 276 : i32
    %70 = tpu.dynamic_rotate %25 by %c276_i32 dim 0 : vector<288x32xf32>, i32 -> vector<288x32xf32>
    %71 = arith.mulf %70, %21 : vector<288x32xf32>
    %72 = vector.extract_strided_slice %26 {offsets = [224, 0], sizes = [32, 32], strides = [1, 1]} : vector<288x32xbf16> to vector<32x32xbf16>
    %73 = arith.truncf %71 : vector<288x32xf32> to vector<288x32xbf16>
    %cst_16 = arith.constant dense<0.000000e+00> : vector<288x32xf32>
    %74 = tpu.matmul %73, %72, %cst_16 {dimension_numbers = #tpu.dot_dimension_numbers<[1], [0], [0], [1], [0, 0, 1, 1], [], []>} : vector<288x32xbf16>, vector<32x32xbf16>, vector<288x32xf32> -> vector<288x32xf32>
    %75 = arith.addf %69, %74 : vector<288x32xf32>
    %c275_i32 = arith.constant 275 : i32
    %76 = tpu.dynamic_rotate %25 by %c275_i32 dim 0 : vector<288x32xf32>, i32 -> vector<288x32xf32>
    %77 = arith.mulf %76, %24 : vector<288x32xf32>
    %78 = vector.extract_strided_slice %26 {offsets = [256, 0], sizes = [32, 32], strides = [1, 1]} : vector<288x32xbf16> to vector<32x32xbf16>
    %79 = arith.truncf %77 : vector<288x32xf32> to vector<288x32xbf16>
    %cst_17 = arith.constant dense<0.000000e+00> : vector<288x32xf32>
    %80 = tpu.matmul %79, %78, %cst_17 {dimension_numbers = #tpu.dot_dimension_numbers<[1], [0], [0], [1], [0, 0, 1, 1], [], []>} : vector<288x32xbf16>, vector<32x32xbf16>, vector<288x32xf32> -> vector<288x32xf32>
    %81 = arith.addf %75, %80 : vector<288x32xf32>
    %82 = vector.broadcast %27 : vector<1x32xf32> to vector<288x32xf32>
    %83 = arith.mulf %81, %82 : vector<288x32xf32>
    %84 = vector.broadcast %28 : vector<1x32xf32> to vector<288x32xf32>
    %85 = arith.addf %83, %84 : vector<288x32xf32>
    %cst_18 = arith.constant 0.000000e+00 : f32
    %86 = vector.broadcast %cst_18 : f32 to vector<288x32xf32>
    %87 = arith.maximumf %85, %86 : vector<288x32xf32>
    %c0_19 = arith.constant 0 : index
    %c0_20 = arith.constant 0 : index
    %c0_21 = arith.constant 0 : index
    %88 = vector.load %arg6[%c0_19, %c0_20, %c0_21] : memref<2x288x32xbf16, #tpu.memory_space<vmem>>, vector<1x288x32xbf16>
    %89 = vector.shape_cast %88 : vector<1x288x32xbf16> to vector<288x32xbf16>
    %c0_22 = arith.constant 0 : index
    %c0_23 = arith.constant 0 : index
    %c0_24 = arith.constant 0 : index
    %90 = vector.load %arg7[%c0_22, %c0_23, %c0_24] : memref<2x1x32xf32, #tpu.memory_space<vmem>>, vector<1x1x32xf32>
    %91 = vector.shape_cast %90 : vector<1x1x32xf32> to vector<1x32xf32>
    %c0_25 = arith.constant 0 : index
    %c0_26 = arith.constant 0 : index
    %c0_27 = arith.constant 0 : index
    %92 = vector.load %arg8[%c0_25, %c0_26, %c0_27] : memref<2x1x32xf32, #tpu.memory_space<vmem>>, vector<1x1x32xf32>
    %93 = vector.shape_cast %92 : vector<1x1x32xf32> to vector<1x32xf32>
    %cst_28 = arith.constant 0.000000e+00 : f32
    %94 = vector.broadcast %cst_28 : f32 to vector<288x32xf32>
    %c13_i32_29 = arith.constant 13 : i32
    %95 = tpu.dynamic_rotate %87 by %c13_i32_29 dim 0 : vector<288x32xf32>, i32 -> vector<288x32xf32>
    %96 = arith.mulf %95, %3 : vector<288x32xf32>
    %97 = vector.extract_strided_slice %89 {offsets = [0, 0], sizes = [32, 32], strides = [1, 1]} : vector<288x32xbf16> to vector<32x32xbf16>
    %98 = arith.truncf %96 : vector<288x32xf32> to vector<288x32xbf16>
    %cst_30 = arith.constant dense<0.000000e+00> : vector<288x32xf32>
    %99 = tpu.matmul %98, %97, %cst_30 {dimension_numbers = #tpu.dot_dimension_numbers<[1], [0], [0], [1], [0, 0, 1, 1], [], []>} : vector<288x32xbf16>, vector<32x32xbf16>, vector<288x32xf32> -> vector<288x32xf32>
    %100 = arith.addf %94, %99 : vector<288x32xf32>
    %c12_i32_31 = arith.constant 12 : i32
    %101 = tpu.dynamic_rotate %87 by %c12_i32_31 dim 0 : vector<288x32xf32>, i32 -> vector<288x32xf32>
    %102 = arith.mulf %101, %6 : vector<288x32xf32>
    %103 = vector.extract_strided_slice %89 {offsets = [32, 0], sizes = [32, 32], strides = [1, 1]} : vector<288x32xbf16> to vector<32x32xbf16>
    %104 = arith.truncf %102 : vector<288x32xf32> to vector<288x32xbf16>
    %cst_32 = arith.constant dense<0.000000e+00> : vector<288x32xf32>
    %105 = tpu.matmul %104, %103, %cst_32 {dimension_numbers = #tpu.dot_dimension_numbers<[1], [0], [0], [1], [0, 0, 1, 1], [], []>} : vector<288x32xbf16>, vector<32x32xbf16>, vector<288x32xf32> -> vector<288x32xf32>
    %106 = arith.addf %100, %105 : vector<288x32xf32>
    %c11_i32_33 = arith.constant 11 : i32
    %107 = tpu.dynamic_rotate %87 by %c11_i32_33 dim 0 : vector<288x32xf32>, i32 -> vector<288x32xf32>
    %108 = arith.mulf %107, %9 : vector<288x32xf32>
    %109 = vector.extract_strided_slice %89 {offsets = [64, 0], sizes = [32, 32], strides = [1, 1]} : vector<288x32xbf16> to vector<32x32xbf16>
    %110 = arith.truncf %108 : vector<288x32xf32> to vector<288x32xbf16>
    %cst_34 = arith.constant dense<0.000000e+00> : vector<288x32xf32>
    %111 = tpu.matmul %110, %109, %cst_34 {dimension_numbers = #tpu.dot_dimension_numbers<[1], [0], [0], [1], [0, 0, 1, 1], [], []>} : vector<288x32xbf16>, vector<32x32xbf16>, vector<288x32xf32> -> vector<288x32xf32>
    %112 = arith.addf %106, %111 : vector<288x32xf32>
    %c1_i32_35 = arith.constant 1 : i32
    %113 = tpu.dynamic_rotate %87 by %c1_i32_35 dim 0 : vector<288x32xf32>, i32 -> vector<288x32xf32>
    %114 = arith.mulf %113, %12 : vector<288x32xf32>
    %115 = vector.extract_strided_slice %89 {offsets = [96, 0], sizes = [32, 32], strides = [1, 1]} : vector<288x32xbf16> to vector<32x32xbf16>
    %116 = arith.truncf %114 : vector<288x32xf32> to vector<288x32xbf16>
    %cst_36 = arith.constant dense<0.000000e+00> : vector<288x32xf32>
    %117 = tpu.matmul %116, %115, %cst_36 {dimension_numbers = #tpu.dot_dimension_numbers<[1], [0], [0], [1], [0, 0, 1, 1], [], []>} : vector<288x32xbf16>, vector<32x32xbf16>, vector<288x32xf32> -> vector<288x32xf32>
    %118 = arith.addf %112, %117 : vector<288x32xf32>
    %119 = vector.extract_strided_slice %89 {offsets = [128, 0], sizes = [32, 32], strides = [1, 1]} : vector<288x32xbf16> to vector<32x32xbf16>
    %120 = arith.truncf %87 : vector<288x32xf32> to vector<288x32xbf16>
    %cst_37 = arith.constant dense<0.000000e+00> : vector<288x32xf32>
    %121 = tpu.matmul %120, %119, %cst_37 {dimension_numbers = #tpu.dot_dimension_numbers<[1], [0], [0], [1], [0, 0, 1, 1], [], []>} : vector<288x32xbf16>, vector<32x32xbf16>, vector<288x32xf32> -> vector<288x32xf32>
    %122 = arith.addf %118, %121 : vector<288x32xf32>
    %c287_i32_38 = arith.constant 287 : i32
    %123 = tpu.dynamic_rotate %87 by %c287_i32_38 dim 0 : vector<288x32xf32>, i32 -> vector<288x32xf32>
    %124 = arith.mulf %123, %15 : vector<288x32xf32>
    %125 = vector.extract_strided_slice %89 {offsets = [160, 0], sizes = [32, 32], strides = [1, 1]} : vector<288x32xbf16> to vector<32x32xbf16>
    %126 = arith.truncf %124 : vector<288x32xf32> to vector<288x32xbf16>
    %cst_39 = arith.constant dense<0.000000e+00> : vector<288x32xf32>
    %127 = tpu.matmul %126, %125, %cst_39 {dimension_numbers = #tpu.dot_dimension_numbers<[1], [0], [0], [1], [0, 0, 1, 1], [], []>} : vector<288x32xbf16>, vector<32x32xbf16>, vector<288x32xf32> -> vector<288x32xf32>
    %128 = arith.addf %122, %127 : vector<288x32xf32>
    %c277_i32_40 = arith.constant 277 : i32
    %129 = tpu.dynamic_rotate %87 by %c277_i32_40 dim 0 : vector<288x32xf32>, i32 -> vector<288x32xf32>
    %130 = arith.mulf %129, %18 : vector<288x32xf32>
    %131 = vector.extract_strided_slice %89 {offsets = [192, 0], sizes = [32, 32], strides = [1, 1]} : vector<288x32xbf16> to vector<32x32xbf16>
    %132 = arith.truncf %130 : vector<288x32xf32> to vector<288x32xbf16>
    %cst_41 = arith.constant dense<0.000000e+00> : vector<288x32xf32>
    %133 = tpu.matmul %132, %131, %cst_41 {dimension_numbers = #tpu.dot_dimension_numbers<[1], [0], [0], [1], [0, 0, 1, 1], [], []>} : vector<288x32xbf16>, vector<32x32xbf16>, vector<288x32xf32> -> vector<288x32xf32>
    %134 = arith.addf %128, %133 : vector<288x32xf32>
    %c276_i32_42 = arith.constant 276 : i32
    %135 = tpu.dynamic_rotate %87 by %c276_i32_42 dim 0 : vector<288x32xf32>, i32 -> vector<288x32xf32>
    %136 = arith.mulf %135, %21 : vector<288x32xf32>
    %137 = vector.extract_strided_slice %89 {offsets = [224, 0], sizes = [32, 32], strides = [1, 1]} : vector<288x32xbf16> to vector<32x32xbf16>
    %138 = arith.truncf %136 : vector<288x32xf32> to vector<288x32xbf16>
    %cst_43 = arith.constant dense<0.000000e+00> : vector<288x32xf32>
    %139 = tpu.matmul %138, %137, %cst_43 {dimension_numbers = #tpu.dot_dimension_numbers<[1], [0], [0], [1], [0, 0, 1, 1], [], []>} : vector<288x32xbf16>, vector<32x32xbf16>, vector<288x32xf32> -> vector<288x32xf32>
    %140 = arith.addf %134, %139 : vector<288x32xf32>
    %c275_i32_44 = arith.constant 275 : i32
    %141 = tpu.dynamic_rotate %87 by %c275_i32_44 dim 0 : vector<288x32xf32>, i32 -> vector<288x32xf32>
    %142 = arith.mulf %141, %24 : vector<288x32xf32>
    %143 = vector.extract_strided_slice %89 {offsets = [256, 0], sizes = [32, 32], strides = [1, 1]} : vector<288x32xbf16> to vector<32x32xbf16>
    %144 = arith.truncf %142 : vector<288x32xf32> to vector<288x32xbf16>
    %cst_45 = arith.constant dense<0.000000e+00> : vector<288x32xf32>
    %145 = tpu.matmul %144, %143, %cst_45 {dimension_numbers = #tpu.dot_dimension_numbers<[1], [0], [0], [1], [0, 0, 1, 1], [], []>} : vector<288x32xbf16>, vector<32x32xbf16>, vector<288x32xf32> -> vector<288x32xf32>
    %146 = arith.addf %140, %145 : vector<288x32xf32>
    %147 = vector.broadcast %91 : vector<1x32xf32> to vector<288x32xf32>
    %148 = arith.mulf %146, %147 : vector<288x32xf32>
    %149 = vector.broadcast %93 : vector<1x32xf32> to vector<288x32xf32>
    %150 = arith.addf %148, %149 : vector<288x32xf32>
    %151 = arith.addf %150, %87 : vector<288x32xf32>
    %cst_46 = arith.constant 0.000000e+00 : f32
    %152 = vector.broadcast %cst_46 : f32 to vector<288x32xf32>
    %153 = arith.maximumf %151, %152 : vector<288x32xf32>
    %c1 = arith.constant 1 : index
    %c0_47 = arith.constant 0 : index
    %c0_48 = arith.constant 0 : index
    %154 = vector.load %arg6[%c1, %c0_47, %c0_48] : memref<2x288x32xbf16, #tpu.memory_space<vmem>>, vector<1x288x32xbf16>
    %155 = vector.shape_cast %154 : vector<1x288x32xbf16> to vector<288x32xbf16>
    %c1_49 = arith.constant 1 : index
    %c0_50 = arith.constant 0 : index
    %c0_51 = arith.constant 0 : index
    %156 = vector.load %arg7[%c1_49, %c0_50, %c0_51] : memref<2x1x32xf32, #tpu.memory_space<vmem>>, vector<1x1x32xf32>
    %157 = vector.shape_cast %156 : vector<1x1x32xf32> to vector<1x32xf32>
    %c1_52 = arith.constant 1 : index
    %c0_53 = arith.constant 0 : index
    %c0_54 = arith.constant 0 : index
    %158 = vector.load %arg8[%c1_52, %c0_53, %c0_54] : memref<2x1x32xf32, #tpu.memory_space<vmem>>, vector<1x1x32xf32>
    %159 = vector.shape_cast %158 : vector<1x1x32xf32> to vector<1x32xf32>
    %cst_55 = arith.constant 0.000000e+00 : f32
    %160 = vector.broadcast %cst_55 : f32 to vector<288x32xf32>
    %c13_i32_56 = arith.constant 13 : i32
    %161 = tpu.dynamic_rotate %153 by %c13_i32_56 dim 0 : vector<288x32xf32>, i32 -> vector<288x32xf32>
    %162 = arith.mulf %161, %3 : vector<288x32xf32>
    %163 = vector.extract_strided_slice %155 {offsets = [0, 0], sizes = [32, 32], strides = [1, 1]} : vector<288x32xbf16> to vector<32x32xbf16>
    %164 = arith.truncf %162 : vector<288x32xf32> to vector<288x32xbf16>
    %cst_57 = arith.constant dense<0.000000e+00> : vector<288x32xf32>
    %165 = tpu.matmul %164, %163, %cst_57 {dimension_numbers = #tpu.dot_dimension_numbers<[1], [0], [0], [1], [0, 0, 1, 1], [], []>} : vector<288x32xbf16>, vector<32x32xbf16>, vector<288x32xf32> -> vector<288x32xf32>
    %166 = arith.addf %160, %165 : vector<288x32xf32>
    %c12_i32_58 = arith.constant 12 : i32
    %167 = tpu.dynamic_rotate %153 by %c12_i32_58 dim 0 : vector<288x32xf32>, i32 -> vector<288x32xf32>
    %168 = arith.mulf %167, %6 : vector<288x32xf32>
    %169 = vector.extract_strided_slice %155 {offsets = [32, 0], sizes = [32, 32], strides = [1, 1]} : vector<288x32xbf16> to vector<32x32xbf16>
    %170 = arith.truncf %168 : vector<288x32xf32> to vector<288x32xbf16>
    %cst_59 = arith.constant dense<0.000000e+00> : vector<288x32xf32>
    %171 = tpu.matmul %170, %169, %cst_59 {dimension_numbers = #tpu.dot_dimension_numbers<[1], [0], [0], [1], [0, 0, 1, 1], [], []>} : vector<288x32xbf16>, vector<32x32xbf16>, vector<288x32xf32> -> vector<288x32xf32>
    %172 = arith.addf %166, %171 : vector<288x32xf32>
    %c11_i32_60 = arith.constant 11 : i32
    %173 = tpu.dynamic_rotate %153 by %c11_i32_60 dim 0 : vector<288x32xf32>, i32 -> vector<288x32xf32>
    %174 = arith.mulf %173, %9 : vector<288x32xf32>
    %175 = vector.extract_strided_slice %155 {offsets = [64, 0], sizes = [32, 32], strides = [1, 1]} : vector<288x32xbf16> to vector<32x32xbf16>
    %176 = arith.truncf %174 : vector<288x32xf32> to vector<288x32xbf16>
    %cst_61 = arith.constant dense<0.000000e+00> : vector<288x32xf32>
    %177 = tpu.matmul %176, %175, %cst_61 {dimension_numbers = #tpu.dot_dimension_numbers<[1], [0], [0], [1], [0, 0, 1, 1], [], []>} : vector<288x32xbf16>, vector<32x32xbf16>, vector<288x32xf32> -> vector<288x32xf32>
    %178 = arith.addf %172, %177 : vector<288x32xf32>
    %c1_i32_62 = arith.constant 1 : i32
    %179 = tpu.dynamic_rotate %153 by %c1_i32_62 dim 0 : vector<288x32xf32>, i32 -> vector<288x32xf32>
    %180 = arith.mulf %179, %12 : vector<288x32xf32>
    %181 = vector.extract_strided_slice %155 {offsets = [96, 0], sizes = [32, 32], strides = [1, 1]} : vector<288x32xbf16> to vector<32x32xbf16>
    %182 = arith.truncf %180 : vector<288x32xf32> to vector<288x32xbf16>
    %cst_63 = arith.constant dense<0.000000e+00> : vector<288x32xf32>
    %183 = tpu.matmul %182, %181, %cst_63 {dimension_numbers = #tpu.dot_dimension_numbers<[1], [0], [0], [1], [0, 0, 1, 1], [], []>} : vector<288x32xbf16>, vector<32x32xbf16>, vector<288x32xf32> -> vector<288x32xf32>
    %184 = arith.addf %178, %183 : vector<288x32xf32>
    %185 = vector.extract_strided_slice %155 {offsets = [128, 0], sizes = [32, 32], strides = [1, 1]} : vector<288x32xbf16> to vector<32x32xbf16>
    %186 = arith.truncf %153 : vector<288x32xf32> to vector<288x32xbf16>
    %cst_64 = arith.constant dense<0.000000e+00> : vector<288x32xf32>
    %187 = tpu.matmul %186, %185, %cst_64 {dimension_numbers = #tpu.dot_dimension_numbers<[1], [0], [0], [1], [0, 0, 1, 1], [], []>} : vector<288x32xbf16>, vector<32x32xbf16>, vector<288x32xf32> -> vector<288x32xf32>
    %188 = arith.addf %184, %187 : vector<288x32xf32>
    %c287_i32_65 = arith.constant 287 : i32
    %189 = tpu.dynamic_rotate %153 by %c287_i32_65 dim 0 : vector<288x32xf32>, i32 -> vector<288x32xf32>
    %190 = arith.mulf %189, %15 : vector<288x32xf32>
    %191 = vector.extract_strided_slice %155 {offsets = [160, 0], sizes = [32, 32], strides = [1, 1]} : vector<288x32xbf16> to vector<32x32xbf16>
    %192 = arith.truncf %190 : vector<288x32xf32> to vector<288x32xbf16>
    %cst_66 = arith.constant dense<0.000000e+00> : vector<288x32xf32>
    %193 = tpu.matmul %192, %191, %cst_66 {dimension_numbers = #tpu.dot_dimension_numbers<[1], [0], [0], [1], [0, 0, 1, 1], [], []>} : vector<288x32xbf16>, vector<32x32xbf16>, vector<288x32xf32> -> vector<288x32xf32>
    %194 = arith.addf %188, %193 : vector<288x32xf32>
    %c277_i32_67 = arith.constant 277 : i32
    %195 = tpu.dynamic_rotate %153 by %c277_i32_67 dim 0 : vector<288x32xf32>, i32 -> vector<288x32xf32>
    %196 = arith.mulf %195, %18 : vector<288x32xf32>
    %197 = vector.extract_strided_slice %155 {offsets = [192, 0], sizes = [32, 32], strides = [1, 1]} : vector<288x32xbf16> to vector<32x32xbf16>
    %198 = arith.truncf %196 : vector<288x32xf32> to vector<288x32xbf16>
    %cst_68 = arith.constant dense<0.000000e+00> : vector<288x32xf32>
    %199 = tpu.matmul %198, %197, %cst_68 {dimension_numbers = #tpu.dot_dimension_numbers<[1], [0], [0], [1], [0, 0, 1, 1], [], []>} : vector<288x32xbf16>, vector<32x32xbf16>, vector<288x32xf32> -> vector<288x32xf32>
    %200 = arith.addf %194, %199 : vector<288x32xf32>
    %c276_i32_69 = arith.constant 276 : i32
    %201 = tpu.dynamic_rotate %153 by %c276_i32_69 dim 0 : vector<288x32xf32>, i32 -> vector<288x32xf32>
    %202 = arith.mulf %201, %21 : vector<288x32xf32>
    %203 = vector.extract_strided_slice %155 {offsets = [224, 0], sizes = [32, 32], strides = [1, 1]} : vector<288x32xbf16> to vector<32x32xbf16>
    %204 = arith.truncf %202 : vector<288x32xf32> to vector<288x32xbf16>
    %cst_70 = arith.constant dense<0.000000e+00> : vector<288x32xf32>
    %205 = tpu.matmul %204, %203, %cst_70 {dimension_numbers = #tpu.dot_dimension_numbers<[1], [0], [0], [1], [0, 0, 1, 1], [], []>} : vector<288x32xbf16>, vector<32x32xbf16>, vector<288x32xf32> -> vector<288x32xf32>
    %206 = arith.addf %200, %205 : vector<288x32xf32>
    %c275_i32_71 = arith.constant 275 : i32
    %207 = tpu.dynamic_rotate %153 by %c275_i32_71 dim 0 : vector<288x32xf32>, i32 -> vector<288x32xf32>
    %208 = arith.mulf %207, %24 : vector<288x32xf32>
    %209 = vector.extract_strided_slice %155 {offsets = [256, 0], sizes = [32, 32], strides = [1, 1]} : vector<288x32xbf16> to vector<32x32xbf16>
    %210 = arith.truncf %208 : vector<288x32xf32> to vector<288x32xbf16>
    %cst_72 = arith.constant dense<0.000000e+00> : vector<288x32xf32>
    %211 = tpu.matmul %210, %209, %cst_72 {dimension_numbers = #tpu.dot_dimension_numbers<[1], [0], [0], [1], [0, 0, 1, 1], [], []>} : vector<288x32xbf16>, vector<32x32xbf16>, vector<288x32xf32> -> vector<288x32xf32>
    %212 = arith.addf %206, %211 : vector<288x32xf32>
    %213 = vector.broadcast %157 : vector<1x32xf32> to vector<288x32xf32>
    %214 = arith.mulf %212, %213 : vector<288x32xf32>
    %215 = vector.broadcast %159 : vector<1x32xf32> to vector<288x32xf32>
    %216 = arith.addf %214, %215 : vector<288x32xf32>
    %217 = arith.addf %216, %153 : vector<288x32xf32>
    %cst_73 = arith.constant 0.000000e+00 : f32
    %218 = vector.broadcast %cst_73 : f32 to vector<288x32xf32>
    %219 = arith.maximumf %217, %218 : vector<288x32xf32>
    %220 = vector.extract_strided_slice %219 {offsets = [0, 0], sizes = [144, 32], strides = [1, 1]} : vector<288x32xf32> to vector<144x32xf32>
    %cst_74 = arith.constant dense<0xFF800000> : vector<32xf32>
    %221 = vector.multi_reduction <maximumf>, %220, %cst_74 [0] : vector<144x32xf32> to vector<32xf32>
    %222 = vector.shape_cast %221 : vector<32xf32> to vector<1x32xf32>
    %c0_75 = arith.constant 0 : index
    %c0_76 = arith.constant 0 : index
    %223 = vector.load %arg9[%c0_75, %c0_76] : memref<2x32xf32, #tpu.memory_space<vmem>>, vector<1x32xf32>
    tpu.vector_store %arg9[%c0_75, %c0_76], %222 {strides = array<i32>} : memref<2x32xf32, #tpu.memory_space<vmem>>, vector<1x32xf32>,
    %224 = vector.extract_strided_slice %219 {offsets = [144, 0], sizes = [144, 32], strides = [1, 1]} : vector<288x32xf32> to vector<144x32xf32>
    %cst_77 = arith.constant dense<0xFF800000> : vector<32xf32>
    %225 = vector.multi_reduction <maximumf>, %224, %cst_77 [0] : vector<144x32xf32> to vector<32xf32>
    %226 = vector.shape_cast %225 : vector<32xf32> to vector<1x32xf32>
    %c1_78 = arith.constant 1 : index
    %c0_79 = arith.constant 0 : index
    %227 = vector.load %arg9[%c1_78, %c0_79] : memref<2x32xf32, #tpu.memory_space<vmem>>, vector<1x32xf32>
    tpu.vector_store %arg9[%c1_78, %c0_79], %226 {strides = array<i32>} : memref<2x32xf32, #tpu.memory_space<vmem>>, vector<1x32xf32>,
    return
  }
  func.func @transform_0(%arg0: i32) -> (i32, i32) {
    %c0_i32 = arith.constant 0 : i32
    %c0_i32_0 = arith.constant 0 : i32
    %c0_i32_1 = arith.constant 0 : i32
    return %c0_i32, %c0_i32_0 : i32, i32
  }
  func.func @transform_1(%arg0: i32) -> (i32, i32) {
    %c0_i32 = arith.constant 0 : i32
    %c0_i32_0 = arith.constant 0 : i32
    %c0_i32_1 = arith.constant 0 : i32
    return %c0_i32, %c0_i32_0 : i32, i32
  }
  func.func @transform_2(%arg0: i32) -> (i32, i32) {
    %c0_i32 = arith.constant 0 : i32
    %c0_i32_0 = arith.constant 0 : i32
    %c0_i32_1 = arith.constant 0 : i32
    return %c0_i32, %c0_i32_0 : i32, i32
  }
  func.func @transform_3(%arg0: i32) -> (i32, i32) {
    %c0_i32 = arith.constant 0 : i32
    %c0_i32_0 = arith.constant 0 : i32
    %c0_i32_1 = arith.constant 0 : i32
    return %c0_i32, %c0_i32_0 : i32, i32
  }
  func.func @transform_4(%arg0: i32) -> (i32, i32) {
    %c0_i32 = arith.constant 0 : i32
    %c0_i32_0 = arith.constant 0 : i32
    %c0_i32_1 = arith.constant 0 : i32
    return %c0_i32, %c0_i32_0 : i32, i32
  }
  func.func @transform_5(%arg0: i32) -> (i32, i32, i32) {
    %c0_i32 = arith.constant 0 : i32
    %c0_i32_0 = arith.constant 0 : i32
    %c0_i32_1 = arith.constant 0 : i32
    %c0_i32_2 = arith.constant 0 : i32
    return %c0_i32, %c0_i32_0, %c0_i32_1 : i32, i32, i32
  }
  func.func @transform_6(%arg0: i32) -> (i32, i32, i32) {
    %c0_i32 = arith.constant 0 : i32
    %c0_i32_0 = arith.constant 0 : i32
    %c0_i32_1 = arith.constant 0 : i32
    %c0_i32_2 = arith.constant 0 : i32
    return %c0_i32, %c0_i32_0, %c0_i32_1 : i32, i32, i32
  }
  func.func @transform_7(%arg0: i32) -> (i32, i32, i32) {
    %c0_i32 = arith.constant 0 : i32
    %c0_i32_0 = arith.constant 0 : i32
    %c0_i32_1 = arith.constant 0 : i32
    %c0_i32_2 = arith.constant 0 : i32
    return %c0_i32, %c0_i32_0, %c0_i32_1 : i32, i32, i32
  }
  func.func @transform_8(%arg0: i32) -> (i32, i32) {
    %c0_i32 = arith.constant 0 : i32
    %c0_i32_0 = arith.constant 0 : i32
    %c0_i32_1 = arith.constant 0 : i32
    return %c0_i32, %c0_i32_0 : i32, i32
  }
}

</mosaic_0001>

<llo_original>
// kernel: tpu_custom_call.1
$region0: #{tpu_custom_call.1}
  #allocation0 [shape = 'u32[]', space=smem, size = 0x4, offset = 0x4, fixed_abs, tag = 'smem constant byte address 0x4 - core index']
  #allocation1 [shape = 'u32[144,128]{1,0:T(1,128)}', space=vmem, size = 0x12000, scoped, tag = 'internal scratch']
  %s0 = inlined_call_operand.vmem [shape: f32[288,32], index: 0, kind: input, shape index: {}]
  %s1 = inlined_call_operand.vmem [shape: f32[288,16], index: 1, kind: input, shape index: {}]
  %s2 = inlined_call_operand.vmem [shape: bf16[288,32], index: 2, kind: input, shape index: {}]
  %s3 = inlined_call_operand.vmem [shape: f32[1,32], index: 3, kind: input, shape index: {}]
  %s4 = inlined_call_operand.vmem [shape: f32[1,32], index: 4, kind: input, shape index: {}]
  %s5 = inlined_call_operand.vmem [shape: bf16[2,288,32], index: 5, kind: input, shape index: {}]
  %s6 = inlined_call_operand.vmem [shape: f32[2,1,32], index: 6, kind: input, shape index: {}]
  %s7 = inlined_call_operand.vmem [shape: f32[2,1,32], index: 7, kind: input, shape index: {}]
  %s8 = inlined_call_operand.hbm [shape: f32[2,32], index: 8, kind: output, shape index: {}]
  %s9 = sld [smem:[#allocation0]]
  $region42: #{tpu_custom_call.1} parent=0
    _
  %s11 = ssub.s32 1, %s9
  %s12 = scalar_select 0, %s11, %s9
  $region1: #{tpu_custom_call.1} parent=0
    #allocation2 [shape = 'u8[1024]{0}', space=vmem, size = 0x400, scoped, tag = 'output window, operand 0, single buffered']
    #allocation3 [shape = 's32[1]{0}', space=sflag, size = 0x4, scoped, tag = 'scoped memory for tpu_custom_call.1']
    %13 = vsyncpa [#allocation3], 0
    // Predicated region
    $region2: #{tpu_custom_call.1} parent=1 // pred_check
      _
    $region3: #{tpu_custom_call.1} parent=1 // pred_check_branch
      %15 = sbr.rel (0) target = $region5
    $region4: #{tpu_custom_call.1} parent=1 // pred_region
      _
    $region5: #{tpu_custom_call.1} parent=1 // pred_fallthru
      _
    // Predicated region
    $region6: #{tpu_custom_call.1} parent=1 // pred_check
      _
    $region7: #{tpu_custom_call.1} parent=1 // pred_check_branch
      %17 = sbr.rel (0) target = $region9
    $region8: #{tpu_custom_call.1} parent=1 // pred_region
      _
    $region9: #{tpu_custom_call.1} parent=1 // pred_fallthru
      _
    // Predicated region
    $region10: #{tpu_custom_call.1} parent=1 // pred_check
      _
    $region11: #{tpu_custom_call.1} parent=1 // pred_check_branch
      %19 = sbr.rel (0) target = $region13
    $region12: #{tpu_custom_call.1} parent=1 // pred_region
      _
    $region13: #{tpu_custom_call.1} parent=1 // pred_fallthru
      _
    // Predicated region
    $region14: #{tpu_custom_call.1} parent=1 // pred_check
      _
    $region15: #{tpu_custom_call.1} parent=1 // pred_check_branch
      %21 = sbr.rel (0) target = $region17
    $region16: #{tpu_custom_call.1} parent=1 // pred_region
      _
    $region17: #{tpu_custom_call.1} parent=1 // pred_fallthru
      _
    // Predicated region
    $region18: #{tpu_custom_call.1} parent=1 // pred_check
      _
    $region19: #{tpu_custom_call.1} parent=1 // pred_check_branch
      %23 = sbr.rel (0) target = $region21
    $region20: #{tpu_custom_call.1} parent=1 // pred_region
      _
    $region21: #{tpu_custom_call.1} parent=1 // pred_fallthru
      _
    // Predicated region
    $region22: #{tpu_custom_call.1} parent=1 // pred_check
      _
    $region23: #{tpu_custom_call.1} parent=1 // pred_check_branch
      %25 = sbr.rel (0) target = $region25
    $region24: #{tpu_custom_call.1} parent=1 // pred_region
      _
    $region25: #{tpu_custom_call.1} parent=1 // pred_fallthru
      _
    // Predicated region
    $region26: #{tpu_custom_call.1} parent=1 // pred_check
      _
    $region27: #{tpu_custom_call.1} parent=1 // pred_check_branch
      %27 = sbr.rel (0) target = $region29
    $region28: #{tpu_custom_call.1} parent=1 // pred_region
      _
    $region29: #{tpu_custom_call.1} parent=1 // pred_fallthru
      _
    // Predicated region
    $region30: #{tpu_custom_call.1} parent=1 // pred_check
      _
    $region31: #{tpu_custom_call.1} parent=1 // pred_check_branch
      %29 = sbr.rel (0) target = $region33
    $region32: #{tpu_custom_call.1} parent=1 // pred_region
      _
    $region33: #{tpu_custom_call.1} parent=1 // pred_fallthru
      _
    %v31 = vld [vmem:[%s1] sm:$0xff]
    %v32 = vld [vmem:[%s1 + $0x8] sm:$0xff]
    %v33 = vld [vmem:[%s1 + $0x10] sm:$0xff]
    %v34 = vld [vmem:[%s1 + $0x18] sm:$0xff]
    %v35 = vld [vmem:[%s1 + $0x20] sm:$0xff]
    %v36 = vld [vmem:[%s1 + $0x28] sm:$0xff]
    %v37 = vld [vmem:[%s1 + $0x30] sm:$0xff]
    %v38 = vld [vmem:[%s1 + $0x38] sm:$0xff]
    %v39 = vld [vmem:[%s1 + $0x40] sm:$0xff]
    %v40 = vld [vmem:[%s1 + $0x48] sm:$0xff]
    %v41 = vld [vmem:[%s1 + $0x50] sm:$0xff]
    %v42 = vld [vmem:[%s1 + $0x58] sm:$0xff]
    %v43 = vld [vmem:[%s1 + $0x60] sm:$0xff]
    %v44 = vld [vmem:[%s1 + $0x68] sm:$0xff]
    %v45 = vld [vmem:[%s1 + $0x70] sm:$0xff]
    %v46 = vld [vmem:[%s1 + $0x78] sm:$0xff]
    %v47 = vld [vmem:[%s1 + $0x80] sm:$0xff]
    %v48 = vld [vmem:[%s1 + $0x88] sm:$0xff]
    %v49 = vld [vmem:[%s1 + $0x90] sm:$0xff]
    %v50 = vld [vmem:[%s1 + $0x98] sm:$0xff]
    %v51 = vld [vmem:[%s1 + $0xa0] sm:$0xff]
    %v52 = vld [vmem:[%s1 + $0xa8] sm:$0xff]
    %v53 = vld [vmem:[%s1 + $0xb0] sm:$0xff]
    %v54 = vld [vmem:[%s1 + $0xb8] sm:$0xff]
    %v55 = vld [vmem:[%s1 + $0xc0] sm:$0xff]
    %v56 = vld [vmem:[%s1 + $0xc8] sm:$0xff]
    %v57 = vld [vmem:[%s1 + $0xd0] sm:$0xff]
    %v58 = vld [vmem:[%s1 + $0xd8] sm:$0xff]
    %v59 = vld [vmem:[%s1 + $0xe0] sm:$0xff]
    %v60 = vld [vmem:[%s1 + $0xe8] sm:$0xff]
    %v61 = vld [vmem:[%s1 + $0xf0] sm:$0xff]
    %v62 = vld [vmem:[%s1 + $0xf8] sm:$0xff]
    %v63 = vld [vmem:[%s1 + $0x100] sm:$0xff]
    %v64 = vld [vmem:[%s1 + $0x108] sm:$0xff]
    %v65 = vld [vmem:[%s1 + $0x110] sm:$0xff]
    %v66 = vld [vmem:[%s1 + $0x118] sm:$0xff]
    %68 = vset.pattern.permute.xlu0 0
    %69 = vperm.xlu0 %68, %v31
    %v70 = vpop.permute.xlu0 %69
    %73 = vset.pattern.permute.xlu0 0
    %74 = vperm.xlu0 %73, %v32
    %v75 = vpop.permute.xlu0 %74
    %78 = vset.pattern.permute.xlu0 0
    %79 = vperm.xlu0 %78, %v33
    %v80 = vpop.permute.xlu0 %79
    %83 = vset.pattern.permute.xlu0 0
    %84 = vperm.xlu0 %83, %v34
    %v85 = vpop.permute.xlu0 %84
    %88 = vset.pattern.permute.xlu0 0
    %89 = vperm.xlu0 %88, %v35
    %v90 = vpop.permute.xlu0 %89
    %93 = vset.pattern.permute.xlu0 0
    %94 = vperm.xlu0 %93, %v36
    %v95 = vpop.permute.xlu0 %94
    %98 = vset.pattern.permute.xlu0 0
    %99 = vperm.xlu0 %98, %v37
    %v100 = vpop.permute.xlu0 %99
    %103 = vset.pattern.permute.xlu0 0
    %104 = vperm.xlu0 %103, %v38
    %v105 = vpop.permute.xlu0 %104
    %108 = vset.pattern.permute.xlu0 0
    %109 = vperm.xlu0 %108, %v39
    %v110 = vpop.permute.xlu0 %109
    %113 = vset.pattern.permute.xlu0 0
    %114 = vperm.xlu0 %113, %v40
    %v115 = vpop.permute.xlu0 %114
    %118 = vset.pattern.permute.xlu0 0
    %119 = vperm.xlu0 %118, %v41
    %v120 = vpop.permute.xlu0 %119
    %123 = vset.pattern.permute.xlu0 0
    %124 = vperm.xlu0 %123, %v42
    %v125 = vpop.permute.xlu0 %124
    %128 = vset.pattern.permute.xlu0 0
    %129 = vperm.xlu0 %128, %v43
    %v130 = vpop.permute.xlu0 %129
    %133 = vset.pattern.permute.xlu0 0
    %134 = vperm.xlu0 %133, %v44
    %v135 = vpop.permute.xlu0 %134
    %138 = vset.pattern.permute.xlu0 0
    %139 = vperm.xlu0 %138, %v45
    %v140 = vpop.permute.xlu0 %139
    %143 = vset.pattern.permute.xlu0 0
    %144 = vperm.xlu0 %143, %v46
    %v145 = vpop.permute.xlu0 %144
    %148 = vset.pattern.permute.xlu0 0
    %149 = vperm.xlu0 %148, %v47
    %v150 = vpop.permute.xlu0 %149
    %153 = vset.pattern.permute.xlu0 0
    %154 = vperm.xlu0 %153, %v48
    %v155 = vpop.permute.xlu0 %154
    %158 = vset.pattern.permute.xlu0 0
    %159 = vperm.xlu0 %158, %v49
    %v160 = vpop.permute.xlu0 %159
    %163 = vset.pattern.permute.xlu0 0
    %164 = vperm.xlu0 %163, %v50
    %v165 = vpop.permute.xlu0 %164
    %168 = vset.pattern.permute.xlu0 0
    %169 = vperm.xlu0 %168, %v51
    %v170 = vpop.permute.xlu0 %169
    %173 = vset.pattern.permute.xlu0 0
    %174 = vperm.xlu0 %173, %v52
    %v175 = vpop.permute.xlu0 %174
    %178 = vset.pattern.permute.xlu0 0
    %179 = vperm.xlu0 %178, %v53
    %v180 = vpop.permute.xlu0 %179
    %183 = vset.pattern.permute.xlu0 0
    %184 = vperm.xlu0 %183, %v54
    %v185 = vpop.permute.xlu0 %184
    %188 = vset.pattern.permute.xlu0 0
    %189 = vperm.xlu0 %188, %v55
    %v190 = vpop.permute.xlu0 %189
    %193 = vset.pattern.permute.xlu0 0
    %194 = vperm.xlu0 %193, %v56
    %v195 = vpop.permute.xlu0 %194
    %198 = vset.pattern.permute.xlu0 0
    %199 = vperm.xlu0 %198, %v57
    %v200 = vpop.permute.xlu0 %199
    %203 = vset.pattern.permute.xlu0 0
    %204 = vperm.xlu0 %203, %v58
    %v205 = vpop.permute.xlu0 %204
    %208 = vset.pattern.permute.xlu0 0
    %209 = vperm.xlu0 %208, %v59
    %v210 = vpop.permute.xlu0 %209
    %213 = vset.pattern.permute.xlu0 0
    %214 = vperm.xlu0 %213, %v60
    %v215 = vpop.permute.xlu0 %214
    %218 = vset.pattern.permute.xlu0 0
    %219 = vperm.xlu0 %218, %v61
    %v220 = vpop.permute.xlu0 %219
    %223 = vset.pattern.permute.xlu0 0
    %224 = vperm.xlu0 %223, %v62
    %v225 = vpop.permute.xlu0 %224
    %228 = vset.pattern.permute.xlu0 0
    %229 = vperm.xlu0 %228, %v63
    %v230 = vpop.permute.xlu0 %229
    %233 = vset.pattern.permute.xlu0 0
    %234 = vperm.xlu0 %233, %v64
    %v235 = vpop.permute.xlu0 %234
    %238 = vset.pattern.permute.xlu0 0
    %239 = vperm.xlu0 %238, %v65
    %v240 = vpop.permute.xlu0 %239
    %243 = vset.pattern.permute.xlu0 0
    %244 = vperm.xlu0 %243, %v66
    %v245 = vpop.permute.xlu0 %244
    %247 = vset.pattern.permute.xlu0 1
    %248 = vperm.xlu0 %247, %v31
    %v249 = vpop.permute.xlu0 %248
    %251 = vset.pattern.permute.xlu0 1
    %252 = vperm.xlu0 %251, %v32
    %v253 = vpop.permute.xlu0 %252
    %255 = vset.pattern.permute.xlu0 1
    %256 = vperm.xlu0 %255, %v33
    %v257 = vpop.permute.xlu0 %256
    %259 = vset.pattern.permute.xlu0 1
    %260 = vperm.xlu0 %259, %v34
    %v261 = vpop.permute.xlu0 %260
    %263 = vset.pattern.permute.xlu0 1
    %264 = vperm.xlu0 %263, %v35
    %v265 = vpop.permute.xlu0 %264
    %267 = vset.pattern.permute.xlu0 1
    %268 = vperm.xlu0 %267, %v36
    %v269 = vpop.permute.xlu0 %268
    %271 = vset.pattern.permute.xlu0 1
    %272 = vperm.xlu0 %271, %v37
    %v273 = vpop.permute.xlu0 %272
    %275 = vset.pattern.permute.xlu0 1
    %276 = vperm.xlu0 %275, %v38
    %v277 = vpop.permute.xlu0 %276
    %279 = vset.pattern.permute.xlu0 1
    %280 = vperm.xlu0 %279, %v39
    %v281 = vpop.permute.xlu0 %280
    %283 = vset.pattern.permute.xlu0 1
    %284 = vperm.xlu0 %283, %v40
    %v285 = vpop.permute.xlu0 %284
    %287 = vset.pattern.permute.xlu0 1
    %288 = vperm.xlu0 %287, %v41
    %v289 = vpop.permute.xlu0 %288
    %291 = vset.pattern.permute.xlu0 1
    %292 = vperm.xlu0 %291, %v42
    %v293 = vpop.permute.xlu0 %292
    %295 = vset.pattern.permute.xlu0 1
    %296 = vperm.xlu0 %295, %v43
    %v297 = vpop.permute.xlu0 %296
    %299 = vset.pattern.permute.xlu0 1
    %300 = vperm.xlu0 %299, %v44
    %v301 = vpop.permute.xlu0 %300
    %303 = vset.pattern.permute.xlu0 1
    %304 = vperm.xlu0 %303, %v45
    %v305 = vpop.permute.xlu0 %304
    %307 = vset.pattern.permute.xlu0 1
    %308 = vperm.xlu0 %307, %v46
    %v309 = vpop.permute.xlu0 %308
    %311 = vset.pattern.permute.xlu0 1
    %312 = vperm.xlu0 %311, %v47
    %v313 = vpop.permute.xlu0 %312
    %315 = vset.pattern.permute.xlu0 1
    %316 = vperm.xlu0 %315, %v48
    %v317 = vpop.permute.xlu0 %316
    %319 = vset.pattern.permute.xlu0 1
    %320 = vperm.xlu0 %319, %v49
    %v321 = vpop.permute.xlu0 %320
    %323 = vset.pattern.permute.xlu0 1
    %324 = vperm.xlu0 %323, %v50
    %v325 = vpop.permute.xlu0 %324
    %327 = vset.pattern.permute.xlu0 1
    %328 = vperm.xlu0 %327, %v51
    %v329 = vpop.permute.xlu0 %328
    %331 = vset.pattern.permute.xlu0 1
    %332 = vperm.xlu0 %331, %v52
    %v333 = vpop.permute.xlu0 %332
    %335 = vset.pattern.permute.xlu0 1
    %336 = vperm.xlu0 %335, %v53
    %v337 = vpop.permute.xlu0 %336
    %339 = vset.pattern.permute.xlu0 1
    %340 = vperm.xlu0 %339, %v54
    %v341 = vpop.permute.xlu0 %340
    %343 = vset.pattern.permute.xlu0 1
    %344 = vperm.xlu0 %343, %v55
    %v345 = vpop.permute.xlu0 %344
    %347 = vset.pattern.permute.xlu0 1
    %348 = vperm.xlu0 %347, %v56
    %v349 = vpop.permute.xlu0 %348
    %351 = vset.pattern.permute.xlu0 1
    %352 = vperm.xlu0 %351, %v57
    %v353 = vpop.permute.xlu0 %352
    %355 = vset.pattern.permute.xlu0 1
    %356 = vperm.xlu0 %355, %v58
    %v357 = vpop.permute.xlu0 %356
    %359 = vset.pattern.permute.xlu0 1
    %360 = vperm.xlu0 %359, %v59
    %v361 = vpop.permute.xlu0 %360
    %363 = vset.pattern.permute.xlu0 1
    %364 = vperm.xlu0 %363, %v60
    %v365 = vpop.permute.xlu0 %364
    %367 = vset.pattern.permute.xlu0 1
    %368 = vperm.xlu0 %367, %v61
    %v369 = vpop.permute.xlu0 %368
    %371 = vset.pattern.permute.xlu0 1
    %372 = vperm.xlu0 %371, %v62
    %v373 = vpop.permute.xlu0 %372
    %375 = vset.pattern.permute.xlu0 1
    %376 = vperm.xlu0 %375, %v63
    %v377 = vpop.permute.xlu0 %376
    %379 = vset.pattern.permute.xlu0 1
    %380 = vperm.xlu0 %379, %v64
    %v381 = vpop.permute.xlu0 %380
    %383 = vset.pattern.permute.xlu0 1
    %384 = vperm.xlu0 %383, %v65
    %v385 = vpop.permute.xlu0 %384
    %387 = vset.pattern.permute.xlu0 1
    %388 = vperm.xlu0 %387, %v66
    %v389 = vpop.permute.xlu0 %388
    %391 = vset.pattern.permute.xlu0 2
    %392 = vperm.xlu0 %391, %v31
    %v393 = vpop.permute.xlu0 %392
    %395 = vset.pattern.permute.xlu0 2
    %396 = vperm.xlu0 %395, %v32
    %v397 = vpop.permute.xlu0 %396
    %399 = vset.pattern.permute.xlu0 2
    %400 = vperm.xlu0 %399, %v33
    %v401 = vpop.permute.xlu0 %400
    %403 = vset.pattern.permute.xlu0 2
    %404 = vperm.xlu0 %403, %v34
    %v405 = vpop.permute.xlu0 %404
    %407 = vset.pattern.permute.xlu0 2
    %408 = vperm.xlu0 %407, %v35
    %v409 = vpop.permute.xlu0 %408
    %411 = vset.pattern.permute.xlu0 2
    %412 = vperm.xlu0 %411, %v36
    %v413 = vpop.permute.xlu0 %412
    %415 = vset.pattern.permute.xlu0 2
    %416 = vperm.xlu0 %415, %v37
    %v417 = vpop.permute.xlu0 %416
    %419 = vset.pattern.permute.xlu0 2
    %420 = vperm.xlu0 %419, %v38
    %v421 = vpop.permute.xlu0 %420
    %423 = vset.pattern.permute.xlu0 2
    %424 = vperm.xlu0 %423, %v39
    %v425 = vpop.permute.xlu0 %424
    %427 = vset.pattern.permute.xlu0 2
    %428 = vperm.xlu0 %427, %v40
    %v429 = vpop.permute.xlu0 %428
    %431 = vset.pattern.permute.xlu0 2
    %432 = vperm.xlu0 %431, %v41
    %v433 = vpop.permute.xlu0 %432
    %435 = vset.pattern.permute.xlu0 2
    %436 = vperm.xlu0 %435, %v42
    %v437 = vpop.permute.xlu0 %436
    %439 = vset.pattern.permute.xlu0 2
    %440 = vperm.xlu0 %439, %v43
    %v441 = vpop.permute.xlu0 %440
    %443 = vset.pattern.permute.xlu0 2
    %444 = vperm.xlu0 %443, %v44
    %v445 = vpop.permute.xlu0 %444
    %447 = vset.pattern.permute.xlu0 2
    %448 = vperm.xlu0 %447, %v45
    %v449 = vpop.permute.xlu0 %448
    %451 = vset.pattern.permute.xlu0 2
    %452 = vperm.xlu0 %451, %v46
    %v453 = vpop.permute.xlu0 %452
    %455 = vset.pattern.permute.xlu0 2
    %456 = vperm.xlu0 %455, %v47
    %v457 = vpop.permute.xlu0 %456
    %459 = vset.pattern.permute.xlu0 2
    %460 = vperm.xlu0 %459, %v48
    %v461 = vpop.permute.xlu0 %460
    %463 = vset.pattern.permute.xlu0 2
    %464 = vperm.xlu0 %463, %v49
    %v465 = vpop.permute.xlu0 %464
    %467 = vset.pattern.permute.xlu0 2
    %468 = vperm.xlu0 %467, %v50
    %v469 = vpop.permute.xlu0 %468
    %471 = vset.pattern.permute.xlu0 2
    %472 = vperm.xlu0 %471, %v51
    %v473 = vpop.permute.xlu0 %472
    %475 = vset.pattern.permute.xlu0 2
    %476 = vperm.xlu0 %475, %v52
    %v477 = vpop.permute.xlu0 %476
    %479 = vset.pattern.permute.xlu0 2
    %480 = vperm.xlu0 %479, %v53
    %v481 = vpop.permute.xlu0 %480
    %483 = vset.pattern.permute.xlu0 2
    %484 = vperm.xlu0 %483, %v54
    %v485 = vpop.permute.xlu0 %484
    %487 = vset.pattern.permute.xlu0 2
    %488 = vperm.xlu0 %487, %v55
    %v489 = vpop.permute.xlu0 %488
    %491 = vset.pattern.permute.xlu0 2
    %492 = vperm.xlu0 %491, %v56
    %v493 = vpop.permute.xlu0 %492
    %495 = vset.pattern.permute.xlu0 2
    %496 = vperm.xlu0 %495, %v57
    %v497 = vpop.permute.xlu0 %496
    %499 = vset.pattern.permute.xlu0 2
    %500 = vperm.xlu0 %499, %v58
    %v501 = vpop.permute.xlu0 %500
    %503 = vset.pattern.permute.xlu0 2
    %504 = vperm.xlu0 %503, %v59
    %v505 = vpop.permute.xlu0 %504
    %507 = vset.pattern.permute.xlu0 2
    %508 = vperm.xlu0 %507, %v60
    %v509 = vpop.permute.xlu0 %508
    %511 = vset.pattern.permute.xlu0 2
    %512 = vperm.xlu0 %511, %v61
    %v513 = vpop.permute.xlu0 %512
    %515 = vset.pattern.permute.xlu0 2
    %516 = vperm.xlu0 %515, %v62
    %v517 = vpop.permute.xlu0 %516
    %519 = vset.pattern.permute.xlu0 2
    %520 = vperm.xlu0 %519, %v63
    %v521 = vpop.permute.xlu0 %520
    %523 = vset.pattern.permute.xlu0 2
    %524 = vperm.xlu0 %523, %v64
    %v525 = vpop.permute.xlu0 %524
    %527 = vset.pattern.permute.xlu0 2
    %528 = vperm.xlu0 %527, %v65
    %v529 = vpop.permute.xlu0 %528
    %531 = vset.pattern.permute.xlu0 2
    %532 = vperm.xlu0 %531, %v66
    %v533 = vpop.permute.xlu0 %532
    %535 = vset.pattern.permute.xlu0 3
    %536 = vperm.xlu0 %535, %v31
    %v537 = vpop.permute.xlu0 %536
    %539 = vset.pattern.permute.xlu0 3
    %540 = vperm.xlu0 %539, %v32
    %v541 = vpop.permute.xlu0 %540
    %543 = vset.pattern.permute.xlu0 3
    %544 = vperm.xlu0 %543, %v33
    %v545 = vpop.permute.xlu0 %544
    %547 = vset.pattern.permute.xlu0 3
    %548 = vperm.xlu0 %547, %v34
    %v549 = vpop.permute.xlu0 %548
    %551 = vset.pattern.permute.xlu0 3
    %552 = vperm.xlu0 %551, %v35
    %v553 = vpop.permute.xlu0 %552
    %555 = vset.pattern.permute.xlu0 3
    %556 = vperm.xlu0 %555, %v36
    %v557 = vpop.permute.xlu0 %556
    %559 = vset.pattern.permute.xlu0 3
    %560 = vperm.xlu0 %559, %v37
    %v561 = vpop.permute.xlu0 %560
    %563 = vset.pattern.permute.xlu0 3
    %564 = vperm.xlu0 %563, %v38
    %v565 = vpop.permute.xlu0 %564
    %567 = vset.pattern.permute.xlu0 3
    %568 = vperm.xlu0 %567, %v39
    %v569 = vpop.permute.xlu0 %568
    %571 = vset.pattern.permute.xlu0 3
    %572 = vperm.xlu0 %571, %v40
    %v573 = vpop.permute.xlu0 %572
    %575 = vset.pattern.permute.xlu0 3
    %576 = vperm.xlu0 %575, %v41
    %v577 = vpop.permute.xlu0 %576
    %579 = vset.pattern.permute.xlu0 3
    %580 = vperm.xlu0 %579, %v42
    %v581 = vpop.permute.xlu0 %580
    %583 = vset.pattern.permute.xlu0 3
    %584 = vperm.xlu0 %583, %v43
    %v585 = vpop.permute.xlu0 %584
    %587 = vset.pattern.permute.xlu0 3
    %588 = vperm.xlu0 %587, %v44
    %v589 = vpop.permute.xlu0 %588
    %591 = vset.pattern.permute.xlu0 3
    %592 = vperm.xlu0 %591, %v45
    %v593 = vpop.permute.xlu0 %592
    %595 = vset.pattern.permute.xlu0 3
    %596 = vperm.xlu0 %595, %v46
    %v597 = vpop.permute.xlu0 %596
    %599 = vset.pattern.permute.xlu0 3
    %600 = vperm.xlu0 %599, %v47
    %v601 = vpop.permute.xlu0 %600
    %603 = vset.pattern.permute.xlu0 3
    %604 = vperm.xlu0 %603, %v48
    %v605 = vpop.permute.xlu0 %604
    %607 = vset.pattern.permute.xlu0 3
    %608 = vperm.xlu0 %607, %v49
    %v609 = vpop.permute.xlu0 %608
    %611 = vset.pattern.permute.xlu0 3
    %612 = vperm.xlu0 %611, %v50
    %v613 = vpop.permute.xlu0 %612
    %615 = vset.pattern.permute.xlu0 3
    %616 = vperm.xlu0 %615, %v51
    %v617 = vpop.permute.xlu0 %616
    %619 = vset.pattern.permute.xlu0 3
    %620 = vperm.xlu0 %619, %v52
    %v621 = vpop.permute.xlu0 %620
    %623 = vset.pattern.permute.xlu0 3
    %624 = vperm.xlu0 %623, %v53
    %v625 = vpop.permute.xlu0 %624
    %627 = vset.pattern.permute.xlu0 3
    %628 = vperm.xlu0 %627, %v54
    %v629 = vpop.permute.xlu0 %628
    %631 = vset.pattern.permute.xlu0 3
    %632 = vperm.xlu0 %631, %v55
    %v633 = vpop.permute.xlu0 %632
    %635 = vset.pattern.permute.xlu0 3
    %636 = vperm.xlu0 %635, %v56
    %v637 = vpop.permute.xlu0 %636
    %639 = vset.pattern.permute.xlu0 3
    %640 = vperm.xlu0 %639, %v57
    %v641 = vpop.permute.xlu0 %640
    %643 = vset.pattern.permute.xlu0 3
    %644 = vperm.xlu0 %643, %v58
    %v645 = vpop.permute.xlu0 %644
    %647 = vset.pattern.permute.xlu0 3
    %648 = vperm.xlu0 %647, %v59
    %v649 = vpop.permute.xlu0 %648
    %651 = vset.pattern.permute.xlu0 3
    %652 = vperm.xlu0 %651, %v60
    %v653 = vpop.permute.xlu0 %652
    %655 = vset.pattern.permute.xlu0 3
    %656 = vperm.xlu0 %655, %v61
    %v657 = vpop.permute.xlu0 %656
    %659 = vset.pattern.permute.xlu0 3
    %660 = vperm.xlu0 %659, %v62
    %v661 = vpop.permute.xlu0 %660
    %663 = vset.pattern.permute.xlu0 3
    %664 = vperm.xlu0 %663, %v63
    %v665 = vpop.permute.xlu0 %664
    %667 = vset.pattern.permute.xlu0 3
    %668 = vperm.xlu0 %667, %v64
    %v669 = vpop.permute.xlu0 %668
    %671 = vset.pattern.permute.xlu0 3
    %672 = vperm.xlu0 %671, %v65
    %v673 = vpop.permute.xlu0 %672
    %675 = vset.pattern.permute.xlu0 3
    %676 = vperm.xlu0 %675, %v66
    %v677 = vpop.permute.xlu0 %676
    %679 = vset.pattern.permute.xlu0 5
    %680 = vperm.xlu0 %679, %v31
    %v681 = vpop.permute.xlu0 %680
    %683 = vset.pattern.permute.xlu0 5
    %684 = vperm.xlu0 %683, %v32
    %v685 = vpop.permute.xlu0 %684
    %687 = vset.pattern.permute.xlu0 5
    %688 = vperm.xlu0 %687, %v33
    %v689 = vpop.permute.xlu0 %688
    %691 = vset.pattern.permute.xlu0 5
    %692 = vperm.xlu0 %691, %v34
    %v693 = vpop.permute.xlu0 %692
    %695 = vset.pattern.permute.xlu0 5
    %696 = vperm.xlu0 %695, %v35
    %v697 = vpop.permute.xlu0 %696
    %699 = vset.pattern.permute.xlu0 5
    %700 = vperm.xlu0 %699, %v36
    %v701 = vpop.permute.xlu0 %700
    %703 = vset.pattern.permute.xlu0 5
    %704 = vperm.xlu0 %703, %v37
    %v705 = vpop.permute.xlu0 %704
    %707 = vset.pattern.permute.xlu0 5
    %708 = vperm.xlu0 %707, %v38
    %v709 = vpop.permute.xlu0 %708
    %711 = vset.pattern.permute.xlu0 5
    %712 = vperm.xlu0 %711, %v39
    %v713 = vpop.permute.xlu0 %712
    %715 = vset.pattern.permute.xlu0 5
    %716 = vperm.xlu0 %715, %v40
    %v717 = vpop.permute.xlu0 %716
    %719 = vset.pattern.permute.xlu0 5
    %720 = vperm.xlu0 %719, %v41
    %v721 = vpop.permute.xlu0 %720
    %723 = vset.pattern.permute.xlu0 5
    %724 = vperm.xlu0 %723, %v42
    %v725 = vpop.permute.xlu0 %724
    %727 = vset.pattern.permute.xlu0 5
    %728 = vperm.xlu0 %727, %v43
    %v729 = vpop.permute.xlu0 %728
    %731 = vset.pattern.permute.xlu0 5
    %732 = vperm.xlu0 %731, %v44
    %v733 = vpop.permute.xlu0 %732
    %735 = vset.pattern.permute.xlu0 5
    %736 = vperm.xlu0 %735, %v45
    %v737 = vpop.permute.xlu0 %736
    %739 = vset.pattern.permute.xlu0 5
    %740 = vperm.xlu0 %739, %v46
    %v741 = vpop.permute.xlu0 %740
    %743 = vset.pattern.permute.xlu0 5
    %744 = vperm.xlu0 %743, %v47
    %v745 = vpop.permute.xlu0 %744
    %747 = vset.pattern.permute.xlu0 5
    %748 = vperm.xlu0 %747, %v48
    %v749 = vpop.permute.xlu0 %748
    %751 = vset.pattern.permute.xlu0 5
    %752 = vperm.xlu0 %751, %v49
    %v753 = vpop.permute.xlu0 %752
    %755 = vset.pattern.permute.xlu0 5
    %756 = vperm.xlu0 %755, %v50
    %v757 = vpop.permute.xlu0 %756
    %759 = vset.pattern.permute.xlu0 5
    %760 = vperm.xlu0 %759, %v51
    %v761 = vpop.permute.xlu0 %760
    %763 = vset.pattern.permute.xlu0 5
    %764 = vperm.xlu0 %763, %v52
    %v765 = vpop.permute.xlu0 %764
    %767 = vset.pattern.permute.xlu0 5
    %768 = vperm.xlu0 %767, %v53
    %v769 = vpop.permute.xlu0 %768
    %771 = vset.pattern.permute.xlu0 5
    %772 = vperm.xlu0 %771, %v54
    %v773 = vpop.permute.xlu0 %772
    %775 = vset.pattern.permute.xlu0 5
    %776 = vperm.xlu0 %775, %v55
    %v777 = vpop.permute.xlu0 %776
    %779 = vset.pattern.permute.xlu0 5
    %780 = vperm.xlu0 %779, %v56
    %v781 = vpop.permute.xlu0 %780
    %783 = vset.pattern.permute.xlu0 5
    %784 = vperm.xlu0 %783, %v57
    %v785 = vpop.permute.xlu0 %784
    %787 = vset.pattern.permute.xlu0 5
    %788 = vperm.xlu0 %787, %v58
    %v789 = vpop.permute.xlu0 %788
    %791 = vset.pattern.permute.xlu0 5
    %792 = vperm.xlu0 %791, %v59
    %v793 = vpop.permute.xlu0 %792
    %795 = vset.pattern.permute.xlu0 5
    %796 = vperm.xlu0 %795, %v60
    %v797 = vpop.permute.xlu0 %796
    %799 = vset.pattern.permute.xlu0 5
    %800 = vperm.xlu0 %799, %v61
    %v801 = vpop.permute.xlu0 %800
    %803 = vset.pattern.permute.xlu0 5
    %804 = vperm.xlu0 %803, %v62
    %v805 = vpop.permute.xlu0 %804
    %807 = vset.pattern.permute.xlu0 5
    %808 = vperm.xlu0 %807, %v63
    %v809 = vpop.permute.xlu0 %808
    %811 = vset.pattern.permute.xlu0 5
    %812 = vperm.xlu0 %811, %v64
    %v813 = vpop.permute.xlu0 %812
    %815 = vset.pattern.permute.xlu0 5
    %816 = vperm.xlu0 %815, %v65
    %v817 = vpop.permute.xlu0 %816
    %819 = vset.pattern.permute.xlu0 5
    %820 = vperm.xlu0 %819, %v66
    %v821 = vpop.permute.xlu0 %820
    %823 = vset.pattern.permute.xlu0 6
    %824 = vperm.xlu0 %823, %v31
    %v825 = vpop.permute.xlu0 %824
    %827 = vset.pattern.permute.xlu0 6
    %828 = vperm.xlu0 %827, %v32
    %v829 = vpop.permute.xlu0 %828
    %831 = vset.pattern.permute.xlu0 6
    %832 = vperm.xlu0 %831, %v33
    %v833 = vpop.permute.xlu0 %832
    %835 = vset.pattern.permute.xlu0 6
    %836 = vperm.xlu0 %835, %v34
    %v837 = vpop.permute.xlu0 %836
    %839 = vset.pattern.permute.xlu0 6
    %840 = vperm.xlu0 %839, %v35
    %v841 = vpop.permute.xlu0 %840
    %843 = vset.pattern.permute.xlu0 6
    %844 = vperm.xlu0 %843, %v36
    %v845 = vpop.permute.xlu0 %844
    %847 = vset.pattern.permute.xlu0 6
    %848 = vperm.xlu0 %847, %v37
    %v849 = vpop.permute.xlu0 %848
    %851 = vset.pattern.permute.xlu0 6
    %852 = vperm.xlu0 %851, %v38
    %v853 = vpop.permute.xlu0 %852
    %855 = vset.pattern.permute.xlu0 6
    %856 = vperm.xlu0 %855, %v39
    %v857 = vpop.permute.xlu0 %856
    %859 = vset.pattern.permute.xlu0 6
    %860 = vperm.xlu0 %859, %v40
    %v861 = vpop.permute.xlu0 %860
    %863 = vset.pattern.permute.xlu0 6
    %864 = vperm.xlu0 %863, %v41
    %v865 = vpop.permute.xlu0 %864
    %867 = vset.pattern.permute.xlu0 6
    %868 = vperm.xlu0 %867, %v42
    %v869 = vpop.permute.xlu0 %868
    %871 = vset.pattern.permute.xlu0 6
    %872 = vperm.xlu0 %871, %v43
    %v873 = vpop.permute.xlu0 %872
    %875 = vset.pattern.permute.xlu0 6
    %876 = vperm.xlu0 %875, %v44
    %v877 = vpop.permute.xlu0 %876
    %879 = vset.pattern.permute.xlu0 6
    %880 = vperm.xlu0 %879, %v45
    %v881 = vpop.permute.xlu0 %880
    %883 = vset.pattern.permute.xlu0 6
    %884 = vperm.xlu0 %883, %v46
    %v885 = vpop.permute.xlu0 %884
    %887 = vset.pattern.permute.xlu0 6
    %888 = vperm.xlu0 %887, %v47
    %v889 = vpop.permute.xlu0 %888
    %891 = vset.pattern.permute.xlu0 6
    %892 = vperm.xlu0 %891, %v48
    %v893 = vpop.permute.xlu0 %892
    %895 = vset.pattern.permute.xlu0 6
    %896 = vperm.xlu0 %895, %v49
    %v897 = vpop.permute.xlu0 %896
    %899 = vset.pattern.permute.xlu0 6
    %900 = vperm.xlu0 %899, %v50
    %v901 = vpop.permute.xlu0 %900
    %903 = vset.pattern.permute.xlu0 6
    %904 = vperm.xlu0 %903, %v51
    %v905 = vpop.permute.xlu0 %904
    %907 = vset.pattern.permute.xlu0 6
    %908 = vperm.xlu0 %907, %v52
    %v909 = vpop.permute.xlu0 %908
    %911 = vset.pattern.permute.xlu0 6
    %912 = vperm.xlu0 %911, %v53
    %v913 = vpop.permute.xlu0 %912
    %915 = vset.pattern.permute.xlu0 6
    %916 = vperm.xlu0 %915, %v54
    %v917 = vpop.permute.xlu0 %916
    %919 = vset.pattern.permute.xlu0 6
    %920 = vperm.xlu0 %919, %v55
    %v921 = vpop.permute.xlu0 %920
    %923 = vset.pattern.permute.xlu0 6
    %924 = vperm.xlu0 %923, %v56
    %v925 = vpop.permute.xlu0 %924
    %927 = vset.pattern.permute.xlu0 6
    %928 = vperm.xlu0 %927, %v57
    %v929 = vpop.permute.xlu0 %928
    %931 = vset.pattern.permute.xlu0 6
    %932 = vperm.xlu0 %931, %v58
    %v933 = vpop.permute.xlu0 %932
    %935 = vset.pattern.permute.xlu0 6
    %936 = vperm.xlu0 %935, %v59
    %v937 = vpop.permute.xlu0 %936
    %939 = vset.pattern.permute.xlu0 6
    %940 = vperm.xlu0 %939, %v60
    %v941 = vpop.permute.xlu0 %940
    %943 = vset.pattern.permute.xlu0 6
    %944 = vperm.xlu0 %943, %v61
    %v945 = vpop.permute.xlu0 %944
    %947 = vset.pattern.permute.xlu0 6
    %948 = vperm.xlu0 %947, %v62
    %v949 = vpop.permute.xlu0 %948
    %951 = vset.pattern.permute.xlu0 6
    %952 = vperm.xlu0 %951, %v63
    %v953 = vpop.permute.xlu0 %952
    %955 = vset.pattern.permute.xlu0 6
    %956 = vperm.xlu0 %955, %v64
    %v957 = vpop.permute.xlu0 %956
    %959 = vset.pattern.permute.xlu0 6
    %960 = vperm.xlu0 %959, %v65
    %v961 = vpop.permute.xlu0 %960
    %963 = vset.pattern.permute.xlu0 6
    %964 = vperm.xlu0 %963, %v66
    %v965 = vpop.permute.xlu0 %964
    %967 = vset.pattern.permute.xlu0 7
    %968 = vperm.xlu0 %967, %v31
    %v969 = vpop.permute.xlu0 %968
    %971 = vset.pattern.permute.xlu0 7
    %972 = vperm.xlu0 %971, %v32
    %v973 = vpop.permute.xlu0 %972
    %975 = vset.pattern.permute.xlu0 7
    %976 = vperm.xlu0 %975, %v33
    %v977 = vpop.permute.xlu0 %976
    %979 = vset.pattern.permute.xlu0 7
    %980 = vperm.xlu0 %979, %v34
    %v981 = vpop.permute.xlu0 %980
    %983 = vset.pattern.permute.xlu0 7
    %984 = vperm.xlu0 %983, %v35
    %v985 = vpop.permute.xlu0 %984
    %987 = vset.pattern.permute.xlu0 7
    %988 = vperm.xlu0 %987, %v36
    %v989 = vpop.permute.xlu0 %988
    %991 = vset.pattern.permute.xlu0 7
    %992 = vperm.xlu0 %991, %v37
    %v993 = vpop.permute.xlu0 %992
    %995 = vset.pattern.permute.xlu0 7
    %996 = vperm.xlu0 %995, %v38
    %v997 = vpop.permute.xlu0 %996
    %999 = vset.pattern.permute.xlu0 7
    %1000 = vperm.xlu0 %999, %v39
    %v1001 = vpop.permute.xlu0 %1000
    %1003 = vset.pattern.permute.xlu0 7
    %1004 = vperm.xlu0 %1003, %v40
    %v1005 = vpop.permute.xlu0 %1004
    %1007 = vset.pattern.permute.xlu0 7
    %1008 = vperm.xlu0 %1007, %v41
    %v1009 = vpop.permute.xlu0 %1008
    %1011 = vset.pattern.permute.xlu0 7
    %1012 = vperm.xlu0 %1011, %v42
    %v1013 = vpop.permute.xlu0 %1012
    %1015 = vset.pattern.permute.xlu0 7
    %1016 = vperm.xlu0 %1015, %v43
    %v1017 = vpop.permute.xlu0 %1016
    %1019 = vset.pattern.permute.xlu0 7
    %1020 = vperm.xlu0 %1019, %v44
    %v1021 = vpop.permute.xlu0 %1020
    %1023 = vset.pattern.permute.xlu0 7
    %1024 = vperm.xlu0 %1023, %v45
    %v1025 = vpop.permute.xlu0 %1024
    %1027 = vset.pattern.permute.xlu0 7
    %1028 = vperm.xlu0 %1027, %v46
    %v1029 = vpop.permute.xlu0 %1028
    %1031 = vset.pattern.permute.xlu0 7
    %1032 = vperm.xlu0 %1031, %v47
    %v1033 = vpop.permute.xlu0 %1032
    %1035 = vset.pattern.permute.xlu0 7
    %1036 = vperm.xlu0 %1035, %v48
    %v1037 = vpop.permute.xlu0 %1036
    %1039 = vset.pattern.permute.xlu0 7
    %1040 = vperm.xlu0 %1039, %v49
    %v1041 = vpop.permute.xlu0 %1040
    %1043 = vset.pattern.permute.xlu0 7
    %1044 = vperm.xlu0 %1043, %v50
    %v1045 = vpop.permute.xlu0 %1044
    %1047 = vset.pattern.permute.xlu0 7
    %1048 = vperm.xlu0 %1047, %v51
    %v1049 = vpop.permute.xlu0 %1048
    %1051 = vset.pattern.permute.xlu0 7
    %1052 = vperm.xlu0 %1051, %v52
    %v1053 = vpop.permute.xlu0 %1052
    %1055 = vset.pattern.permute.xlu0 7
    %1056 = vperm.xlu0 %1055, %v53
    %v1057 = vpop.permute.xlu0 %1056
    %1059 = vset.pattern.permute.xlu0 7
    %1060 = vperm.xlu0 %1059, %v54
    %v1061 = vpop.permute.xlu0 %1060
    %1063 = vset.pattern.permute.xlu0 7
    %1064 = vperm.xlu0 %1063, %v55
    %v1065 = vpop.permute.xlu0 %1064
    %1067 = vset.pattern.permute.xlu0 7
    %1068 = vperm.xlu0 %1067, %v56
    %v1069 = vpop.permute.xlu0 %1068
    %1071 = vset.pattern.permute.xlu0 7
    %1072 = vperm.xlu0 %1071, %v57
    %v1073 = vpop.permute.xlu0 %1072
    %1075 = vset.pattern.permute.xlu0 7
    %1076 = vperm.xlu0 %1075, %v58
    %v1077 = vpop.permute.xlu0 %1076
    %1079 = vset.pattern.permute.xlu0 7
    %1080 = vperm.xlu0 %1079, %v59
    %v1081 = vpop.permute.xlu0 %1080
    %1083 = vset.pattern.permute.xlu0 7
    %1084 = vperm.xlu0 %1083, %v60
    %v1085 = vpop.permute.xlu0 %1084
    %1087 = vset.pattern.permute.xlu0 7
    %1088 = vperm.xlu0 %1087, %v61
    %v1089 = vpop.permute.xlu0 %1088
    %1091 = vset.pattern.permute.xlu0 7
    %1092 = vperm.xlu0 %1091, %v62
    %v1093 = vpop.permute.xlu0 %1092
    %1095 = vset.pattern.permute.xlu0 7
    %1096 = vperm.xlu0 %1095, %v63
    %v1097 = vpop.permute.xlu0 %1096
    %1099 = vset.pattern.permute.xlu0 7
    %1100 = vperm.xlu0 %1099, %v64
    %v1101 = vpop.permute.xlu0 %1100
    %1103 = vset.pattern.permute.xlu0 7
    %1104 = vperm.xlu0 %1103, %v65
    %v1105 = vpop.permute.xlu0 %1104
    %1107 = vset.pattern.permute.xlu0 7
    %1108 = vperm.xlu0 %1107, %v66
    %v1109 = vpop.permute.xlu0 %1108
    %1111 = vset.pattern.permute.xlu0 8
    %1112 = vperm.xlu0 %1111, %v31
    %v1113 = vpop.permute.xlu0 %1112
    %1115 = vset.pattern.permute.xlu0 8
    %1116 = vperm.xlu0 %1115, %v32
    %v1117 = vpop.permute.xlu0 %1116
    %1119 = vset.pattern.permute.xlu0 8
    %1120 = vperm.xlu0 %1119, %v33
    %v1121 = vpop.permute.xlu0 %1120
    %1123 = vset.pattern.permute.xlu0 8
    %1124 = vperm.xlu0 %1123, %v34
    %v1125 = vpop.permute.xlu0 %1124
    %1127 = vset.pattern.permute.xlu0 8
    %1128 = vperm.xlu0 %1127, %v35
    %v1129 = vpop.permute.xlu0 %1128
    %1131 = vset.pattern.permute.xlu0 8
    %1132 = vperm.xlu0 %1131, %v36
    %v1133 = vpop.permute.xlu0 %1132
    %1135 = vset.pattern.permute.xlu0 8
    %1136 = vperm.xlu0 %1135, %v37
    %v1137 = vpop.permute.xlu0 %1136
    %1139 = vset.pattern.permute.xlu0 8
    %1140 = vperm.xlu0 %1139, %v38
    %v1141 = vpop.permute.xlu0 %1140
    %1143 = vset.pattern.permute.xlu0 8
    %1144 = vperm.xlu0 %1143, %v39
    %v1145 = vpop.permute.xlu0 %1144
    %1147 = vset.pattern.permute.xlu0 8
    %1148 = vperm.xlu0 %1147, %v40
    %v1149 = vpop.permute.xlu0 %1148
    %1151 = vset.pattern.permute.xlu0 8
    %1152 = vperm.xlu0 %1151, %v41
    %v1153 = vpop.permute.xlu0 %1152
    %1155 = vset.pattern.permute.xlu0 8
    %1156 = vperm.xlu0 %1155, %v42
    %v1157 = vpop.permute.xlu0 %1156
    %1159 = vset.pattern.permute.xlu0 8
    %1160 = vperm.xlu0 %1159, %v43
    %v1161 = vpop.permute.xlu0 %1160
    %1163 = vset.pattern.permute.xlu0 8
    %1164 = vperm.xlu0 %1163, %v44
    %v1165 = vpop.permute.xlu0 %1164
    %1167 = vset.pattern.permute.xlu0 8
    %1168 = vperm.xlu0 %1167, %v45
    %v1169 = vpop.permute.xlu0 %1168
    %1171 = vset.pattern.permute.xlu0 8
    %1172 = vperm.xlu0 %1171, %v46
    %v1173 = vpop.permute.xlu0 %1172
    %1175 = vset.pattern.permute.xlu0 8
    %1176 = vperm.xlu0 %1175, %v47
    %v1177 = vpop.permute.xlu0 %1176
    %1179 = vset.pattern.permute.xlu0 8
    %1180 = vperm.xlu0 %1179, %v48
    %v1181 = vpop.permute.xlu0 %1180
    %1183 = vset.pattern.permute.xlu0 8
    %1184 = vperm.xlu0 %1183, %v49
    %v1185 = vpop.permute.xlu0 %1184
    %1187 = vset.pattern.permute.xlu0 8
    %1188 = vperm.xlu0 %1187, %v50
    %v1189 = vpop.permute.xlu0 %1188
    %1191 = vset.pattern.permute.xlu0 8
    %1192 = vperm.xlu0 %1191, %v51
    %v1193 = vpop.permute.xlu0 %1192
    %1195 = vset.pattern.permute.xlu0 8
    %1196 = vperm.xlu0 %1195, %v52
    %v1197 = vpop.permute.xlu0 %1196
    %1199 = vset.pattern.permute.xlu0 8
    %1200 = vperm.xlu0 %1199, %v53
    %v1201 = vpop.permute.xlu0 %1200
    %1203 = vset.pattern.permute.xlu0 8
    %1204 = vperm.xlu0 %1203, %v54
    %v1205 = vpop.permute.xlu0 %1204
    %1207 = vset.pattern.permute.xlu0 8
    %1208 = vperm.xlu0 %1207, %v55
    %v1209 = vpop.permute.xlu0 %1208
    %1211 = vset.pattern.permute.xlu0 8
    %1212 = vperm.xlu0 %1211, %v56
    %v1213 = vpop.permute.xlu0 %1212
    %1215 = vset.pattern.permute.xlu0 8
    %1216 = vperm.xlu0 %1215, %v57
    %v1217 = vpop.permute.xlu0 %1216
    %1219 = vset.pattern.permute.xlu0 8
    %1220 = vperm.xlu0 %1219, %v58
    %v1221 = vpop.permute.xlu0 %1220
    %1223 = vset.pattern.permute.xlu0 8
    %1224 = vperm.xlu0 %1223, %v59
    %v1225 = vpop.permute.xlu0 %1224
    %1227 = vset.pattern.permute.xlu0 8
    %1228 = vperm.xlu0 %1227, %v60
    %v1229 = vpop.permute.xlu0 %1228
    %1231 = vset.pattern.permute.xlu0 8
    %1232 = vperm.xlu0 %1231, %v61
    %v1233 = vpop.permute.xlu0 %1232
    %1235 = vset.pattern.permute.xlu0 8
    %1236 = vperm.xlu0 %1235, %v62
    %v1237 = vpop.permute.xlu0 %1236
    %1239 = vset.pattern.permute.xlu0 8
    %1240 = vperm.xlu0 %1239, %v63
    %v1241 = vpop.permute.xlu0 %1240
    %1243 = vset.pattern.permute.xlu0 8
    %1244 = vperm.xlu0 %1243, %v64
    %v1245 = vpop.permute.xlu0 %1244
    %1247 = vset.pattern.permute.xlu0 8
    %1248 = vperm.xlu0 %1247, %v65
    %v1249 = vpop.permute.xlu0 %1248
    %1251 = vset.pattern.permute.xlu0 8
    %1252 = vperm.xlu0 %1251, %v66
    %v1253 = vpop.permute.xlu0 %1252
    %v1255 = vld [vmem:[%s0] sm:$0xff]
    %v1256 = vld [vmem:[%s0 + $0x8] sm:$0xff]
    %v1257 = vld [vmem:[%s0 + $0x10] sm:$0xff]
    %v1258 = vld [vmem:[%s0 + $0x18] sm:$0xff]
    %v1259 = vld [vmem:[%s0 + $0x20] sm:$0xff]
    %v1260 = vld [vmem:[%s0 + $0x28] sm:$0xff]
    %v1261 = vld [vmem:[%s0 + $0x30] sm:$0xff]
    %v1262 = vld [vmem:[%s0 + $0x38] sm:$0xff]
    %v1263 = vld [vmem:[%s0 + $0x40] sm:$0xff]
    %v1264 = vld [vmem:[%s0 + $0x48] sm:$0xff]
    %v1265 = vld [vmem:[%s0 + $0x50] sm:$0xff]
    %v1266 = vld [vmem:[%s0 + $0x58] sm:$0xff]
    %v1267 = vld [vmem:[%s0 + $0x60] sm:$0xff]
    %v1268 = vld [vmem:[%s0 + $0x68] sm:$0xff]
    %v1269 = vld [vmem:[%s0 + $0x70] sm:$0xff]
    %v1270 = vld [vmem:[%s0 + $0x78] sm:$0xff]
    %v1271 = vld [vmem:[%s0 + $0x80] sm:$0xff]
    %v1272 = vld [vmem:[%s0 + $0x88] sm:$0xff]
    %v1273 = vld [vmem:[%s0 + $0x90] sm:$0xff]
    %v1274 = vld [vmem:[%s0 + $0x98] sm:$0xff]
    %v1275 = vld [vmem:[%s0 + $0xa0] sm:$0xff]
    %v1276 = vld [vmem:[%s0 + $0xa8] sm:$0xff]
    %v1277 = vld [vmem:[%s0 + $0xb0] sm:$0xff]
    %v1278 = vld [vmem:[%s0 + $0xb8] sm:$0xff]
    %v1279 = vld [vmem:[%s0 + $0xc0] sm:$0xff]
    %v1280 = vld [vmem:[%s0 + $0xc8] sm:$0xff]
    %v1281 = vld [vmem:[%s0 + $0xd0] sm:$0xff]
    %v1282 = vld [vmem:[%s0 + $0xd8] sm:$0xff]
    %v1283 = vld [vmem:[%s0 + $0xe0] sm:$0xff]
    %v1284 = vld [vmem:[%s0 + $0xe8] sm:$0xff]
    %v1285 = vld [vmem:[%s0 + $0xf0] sm:$0xff]
    %v1286 = vld [vmem:[%s0 + $0xf8] sm:$0xff]
    %v1287 = vld [vmem:[%s0 + $0x100] sm:$0xff]
    %v1288 = vld [vmem:[%s0 + $0x108] sm:$0xff]
    %v1289 = vld [vmem:[%s0 + $0x110] sm:$0xff]
    %v1290 = vld [vmem:[%s0 + $0x118] sm:$0xff]
    %v1291 = vld [vmem:[%s2] sm:$0xf]
    %v1292 = vld [vmem:[%s2 + $0x4] sm:$0xf]
    %v1293 = vld [vmem:[%s2 + $0x8] sm:$0xf]
    %v1294 = vld [vmem:[%s2 + $0xc] sm:$0xf]
    %v1295 = vld [vmem:[%s2 + $0x10] sm:$0xf]
    %v1296 = vld [vmem:[%s2 + $0x14] sm:$0xf]
    %v1297 = vld [vmem:[%s2 + $0x18] sm:$0xf]
    %v1298 = vld [vmem:[%s2 + $0x1c] sm:$0xf]
    %v1299 = vld [vmem:[%s2 + $0x20] sm:$0xf]
    %v1300 = vld [vmem:[%s2 + $0x24] sm:$0xf]
    %v1301 = vld [vmem:[%s2 + $0x28] sm:$0xf]
    %v1302 = vld [vmem:[%s2 + $0x2c] sm:$0xf]
    %v1303 = vld [vmem:[%s2 + $0x30] sm:$0xf]
    %v1304 = vld [vmem:[%s2 + $0x34] sm:$0xf]
    %v1305 = vld [vmem:[%s2 + $0x38] sm:$0xf]
    %v1306 = vld [vmem:[%s2 + $0x3c] sm:$0xf]
    %v1307 = vld [vmem:[%s2 + $0x40] sm:$0xf]
    %v1308 = vld [vmem:[%s2 + $0x44] sm:$0xf]
    %v1309 = vld [vmem:[%s2 + $0x48] sm:$0xf]
    %v1310 = vld [vmem:[%s2 + $0x4c] sm:$0xf]
    %v1311 = vld [vmem:[%s2 + $0x50] sm:$0xf]
    %v1312 = vld [vmem:[%s2 + $0x54] sm:$0xf]
    %v1313 = vld [vmem:[%s2 + $0x58] sm:$0xf]
    %v1314 = vld [vmem:[%s2 + $0x5c] sm:$0xf]
    %v1315 = vld [vmem:[%s2 + $0x60] sm:$0xf]
    %v1316 = vld [vmem:[%s2 + $0x64] sm:$0xf]
    %v1317 = vld [vmem:[%s2 + $0x68] sm:$0xf]
    %v1318 = vld [vmem:[%s2 + $0x6c] sm:$0xf]
    %v1319 = vld [vmem:[%s2 + $0x70] sm:$0xf]
    %v1320 = vld [vmem:[%s2 + $0x74] sm:$0xf]
    %v1321 = vld [vmem:[%s2 + $0x78] sm:$0xf]
    %v1322 = vld [vmem:[%s2 + $0x7c] sm:$0xf]
    %v1323 = vld [vmem:[%s2 + $0x80] sm:$0xf]
    %v1324 = vld [vmem:[%s2 + $0x84] sm:$0xf]
    %v1325 = vld [vmem:[%s2 + $0x88] sm:$0xf]
    %v1326 = vld [vmem:[%s2 + $0x8c] sm:$0xf]
    %v1327 = vld [vmem:[%s3] sm:$0x1]
    %v1328 = vld [vmem:[%s4] sm:$0x1]
    %v1329 = vrot.slane %v1255, 3
    %v1330 = vrot.slane %v1256, 3
    %v1331 = vrot.slane %v1257, 3
    %v1332 = vrot.slane %v1258, 3
    %v1333 = vrot.slane %v1259, 3
    %v1334 = vrot.slane %v1260, 3
    %v1335 = vrot.slane %v1261, 3
    %v1336 = vrot.slane %v1262, 3
    %v1337 = vrot.slane %v1263, 3
    %v1338 = vrot.slane %v1264, 3
    %v1339 = vrot.slane %v1265, 3
    %v1340 = vrot.slane %v1266, 3
    %v1341 = vrot.slane %v1267, 3
    %v1342 = vrot.slane %v1268, 3
    %v1343 = vrot.slane %v1269, 3
    %v1344 = vrot.slane %v1270, 3
    %v1345 = vrot.slane %v1271, 3
    %v1346 = vrot.slane %v1272, 3
    %v1347 = vrot.slane %v1273, 3
    %v1348 = vrot.slane %v1274, 3
    %v1349 = vrot.slane %v1275, 3
    %v1350 = vrot.slane %v1276, 3
    %v1351 = vrot.slane %v1277, 3
    %v1352 = vrot.slane %v1278, 3
    %v1353 = vrot.slane %v1279, 3
    %v1354 = vrot.slane %v1280, 3
    %v1355 = vrot.slane %v1281, 3
    %v1356 = vrot.slane %v1282, 3
    %v1357 = vrot.slane %v1283, 3
    %v1358 = vrot.slane %v1284, 3
    %v1359 = vrot.slane %v1285, 3
    %v1360 = vrot.slane %v1286, 3
    %v1361 = vrot.slane %v1287, 3
    %v1362 = vrot.slane %v1288, 3
    %v1363 = vrot.slane %v1289, 3
    %v1364 = vrot.slane %v1290, 3
    %v1365 = vlaneseq
    %v1366 = vshrl.u32 %v1365, 7
    %vm1367 = vcmp.lt.s32.totalorder %v1366, 5
    %v1368 = vsel %vm1367, %v1363, %v1364
    %v1369 = vsel %vm1367, %v1362, %v1363
    %v1370 = vsel %vm1367, %v1361, %v1362
    %v1371 = vsel %vm1367, %v1360, %v1361
    %v1372 = vsel %vm1367, %v1359, %v1360
    %v1373 = vsel %vm1367, %v1358, %v1359
    %v1374 = vsel %vm1367, %v1357, %v1358
    %v1375 = vsel %vm1367, %v1356, %v1357
    %v1376 = vsel %vm1367, %v1355, %v1356
    %v1377 = vsel %vm1367, %v1354, %v1355
    %v1378 = vsel %vm1367, %v1353, %v1354
    %v1379 = vsel %vm1367, %v1352, %v1353
    %v1380 = vsel %vm1367, %v1351, %v1352
    %v1381 = vsel %vm1367, %v1350, %v1351
    %v1382 = vsel %vm1367, %v1349, %v1350
    %v1383 = vsel %vm1367, %v1348, %v1349
    %v1384 = vsel %vm1367, %v1347, %v1348
    %v1385 = vsel %vm1367, %v1346, %v1347
    %v1386 = vsel %vm1367, %v1345, %v1346
    %v1387 = vsel %vm1367, %v1344, %v1345
    %v1388 = vsel %vm1367, %v1343, %v1344
    %v1389 = vsel %vm1367, %v1342, %v1343
    %v1390 = vsel %vm1367, %v1341, %v1342
    %v1391 = vsel %vm1367, %v1340, %v1341
    %v1392 = vsel %vm1367, %v1339, %v1340
    %v1393 = vsel %vm1367, %v1338, %v1339
    %v1394 = vsel %vm1367, %v1337, %v1338
    %v1395 = vsel %vm1367, %v1336, %v1337
    %v1396 = vsel %vm1367, %v1335, %v1336
    %v1397 = vsel %vm1367, %v1334, %v1335
    %v1398 = vsel %vm1367, %v1333, %v1334
    %v1399 = vsel %vm1367, %v1332, %v1333
    %v1400 = vsel %vm1367, %v1331, %v1332
    %v1401 = vsel %vm1367, %v1330, %v1331
    %v1402 = vsel %vm1367, %v1329, %v1330
    %v1403 = vsel %vm1367, %v1364, %v1329
    %v1404 = vmul.f32 %v1368, %v70
    %v1405 = vmul.f32 %v1403, %v75
    %v1406 = vmul.f32 %v1402, %v80
    %v1407 = vmul.f32 %v1401, %v85
    %v1408 = vmul.f32 %v1400, %v90
    %v1409 = vmul.f32 %v1399, %v95
    %v1410 = vmul.f32 %v1398, %v100
    %v1411 = vmul.f32 %v1397, %v105
    %v1412 = vmul.f32 %v1396, %v110
    %v1413 = vmul.f32 %v1395, %v115
    %v1414 = vmul.f32 %v1394, %v120
    %v1415 = vmul.f32 %v1393, %v125
    %v1416 = vmul.f32 %v1392, %v130
    %v1417 = vmul.f32 %v1391, %v135
    %v1418 = vmul.f32 %v1390, %v140
    %v1419 = vmul.f32 %v1389, %v145
    %v1420 = vmul.f32 %v1388, %v150
    %v1421 = vmul.f32 %v1387, %v155
    %v1422 = vmul.f32 %v1386, %v160
    %v1423 = vmul.f32 %v1385, %v165
    %v1424 = vmul.f32 %v1384, %v170
    %v1425 = vmul.f32 %v1383, %v175
    %v1426 = vmul.f32 %v1382, %v180
    %v1427 = vmul.f32 %v1381, %v185
    %v1428 = vmul.f32 %v1380, %v190
    %v1429 = vmul.f32 %v1379, %v195
    %v1430 = vmul.f32 %v1378, %v200
    %v1431 = vmul.f32 %v1377, %v205
    %v1432 = vmul.f32 %v1376, %v210
    %v1433 = vmul.f32 %v1375, %v215
    %v1434 = vmul.f32 %v1374, %v220
    %v1435 = vmul.f32 %v1373, %v225
    %v1436 = vmul.f32 %v1372, %v230
    %v1437 = vmul.f32 %v1371, %v235
    %v1438 = vmul.f32 %v1370, %v240
    %v1439 = vmul.f32 %v1369, %v245
    %v1440 = vpack.c.bf16 %v1405, %v1404
    %v1441 = vpack.c.bf16 %v1407, %v1406
    %v1442 = vpack.c.bf16 %v1409, %v1408
    %v1443 = vpack.c.bf16 %v1411, %v1410
    %v1444 = vpack.c.bf16 %v1413, %v1412
    %v1445 = vpack.c.bf16 %v1415, %v1414
    %v1446 = vpack.c.bf16 %v1417, %v1416
    %v1447 = vpack.c.bf16 %v1419, %v1418
    %v1448 = vpack.c.bf16 %v1421, %v1420
    %v1449 = vpack.c.bf16 %v1423, %v1422
    %v1450 = vpack.c.bf16 %v1425, %v1424
    %v1451 = vpack.c.bf16 %v1427, %v1426
    %v1452 = vpack.c.bf16 %v1429, %v1428
    %v1453 = vpack.c.bf16 %v1431, %v1430
    %v1454 = vpack.c.bf16 %v1433, %v1432
    %v1455 = vpack.c.bf16 %v1435, %v1434
    %v1456 = vpack.c.bf16 %v1437, %v1436
    %v1457 = vpack.c.bf16 %v1439, %v1438
    %v1458 = vrot.slane %v1255, 4
    %v1459 = vrot.slane %v1256, 4
    %v1460 = vrot.slane %v1257, 4
    %v1461 = vrot.slane %v1258, 4
    %v1462 = vrot.slane %v1259, 4
    %v1463 = vrot.slane %v1260, 4
    %v1464 = vrot.slane %v1261, 4
    %v1465 = vrot.slane %v1262, 4
    %v1466 = vrot.slane %v1263, 4
    %v1467 = vrot.slane %v1264, 4
    %v1468 = vrot.slane %v1265, 4
    %v1469 = vrot.slane %v1266, 4
    %v1470 = vrot.slane %v1267, 4
    %v1471 = vrot.slane %v1268, 4
    %v1472 = vrot.slane %v1269, 4
    %v1473 = vrot.slane %v1270, 4
    %v1474 = vrot.slane %v1271, 4
    %v1475 = vrot.slane %v1272, 4
    %v1476 = vrot.slane %v1273, 4
    %v1477 = vrot.slane %v1274, 4
    %v1478 = vrot.slane %v1275, 4
    %v1479 = vrot.slane %v1276, 4
    %v1480 = vrot.slane %v1277, 4
    %v1481 = vrot.slane %v1278, 4
    %v1482 = vrot.slane %v1279, 4
    %v1483 = vrot.slane %v1280, 4
    %v1484 = vrot.slane %v1281, 4
    %v1485 = vrot.slane %v1282, 4
    %v1486 = vrot.slane %v1283, 4
    %v1487 = vrot.slane %v1284, 4
    %v1488 = vrot.slane %v1285, 4
    %v1489 = vrot.slane %v1286, 4
    %v1490 = vrot.slane %v1287, 4
    %v1491 = vrot.slane %v1288, 4
    %v1492 = vrot.slane %v1289, 4
    %v1493 = vrot.slane %v1290, 4
    %vm1494 = vcmp.lt.s32.totalorder %v1366, 4
    %v1495 = vsel %vm1494, %v1492, %v1493
    %v1496 = vsel %vm1494, %v1491, %v1492
    %v1497 = vsel %vm1494, %v1490, %v1491
    %v1498 = vsel %vm1494, %v1489, %v1490
    %v1499 = vsel %vm1494, %v1488, %v1489
    %v1500 = vsel %vm1494, %v1487, %v1488
    %v1501 = vsel %vm1494, %v1486, %v1487
    %v1502 = vsel %vm1494, %v1485, %v1486
    %v1503 = vsel %vm1494, %v1484, %v1485
    %v1504 = vsel %vm1494, %v1483, %v1484
    %v1505 = vsel %vm1494, %v1482, %v1483
    %v1506 = vsel %vm1494, %v1481, %v1482
    %v1507 = vsel %vm1494, %v1480, %v1481
    %v1508 = vsel %vm1494, %v1479, %v1480
    %v1509 = vsel %vm1494, %v1478, %v1479
    %v1510 = vsel %vm1494, %v1477, %v1478
    %v1511 = vsel %vm1494, %v1476, %v1477
    %v1512 = vsel %vm1494, %v1475, %v1476
    %v1513 = vsel %vm1494, %v1474, %v1475
    %v1514 = vsel %vm1494, %v1473, %v1474
    %v1515 = vsel %vm1494, %v1472, %v1473
    %v1516 = vsel %vm1494, %v1471, %v1472
    %v1517 = vsel %vm1494, %v1470, %v1471
    %v1518 = vsel %vm1494, %v1469, %v1470
    %v1519 = vsel %vm1494, %v1468, %v1469
    %v1520 = vsel %vm1494, %v1467, %v1468
    %v1521 = vsel %vm1494, %v1466, %v1467
    %v1522 = vsel %vm1494, %v1465, %v1466
    %v1523 = vsel %vm1494, %v1464, %v1465
    %v1524 = vsel %vm1494, %v1463, %v1464
    %v1525 = vsel %vm1494, %v1462, %v1463
    %v1526 = vsel %vm1494, %v1461, %v1462
    %v1527 = vsel %vm1494, %v1460, %v1461
    %v1528 = vsel %vm1494, %v1459, %v1460
    %v1529 = vsel %vm1494, %v1458, %v1459
    %v1530 = vsel %vm1494, %v1493, %v1458
    %v1531 = vmul.f32 %v1495, %v249
    %v1532 = vmul.f32 %v1530, %v253
    %v1533 = vmul.f32 %v1529, %v257
    %v1534 = vmul.f32 %v1528, %v261
    %v1535 = vmul.f32 %v1527, %v265
    %v1536 = vmul.f32 %v1526, %v269
    %v1537 = vmul.f32 %v1525, %v273
    %v1538 = vmul.f32 %v1524, %v277
    %v1539 = vmul.f32 %v1523, %v281
    %v1540 = vmul.f32 %v1522, %v285
    %v1541 = vmul.f32 %v1521, %v289
    %v1542 = vmul.f32 %v1520, %v293
    %v1543 = vmul.f32 %v1519, %v297
    %v1544 = vmul.f32 %v1518, %v301
    %v1545 = vmul.f32 %v1517, %v305
    %v1546 = vmul.f32 %v1516, %v309
    %v1547 = vmul.f32 %v1515, %v313
    %v1548 = vmul.f32 %v1514, %v317
    %v1549 = vmul.f32 %v1513, %v321
    %v1550 = vmul.f32 %v1512, %v325
    %v1551 = vmul.f32 %v1511, %v329
    %v1552 = vmul.f32 %v1510, %v333
    %v1553 = vmul.f32 %v1509, %v337
    %v1554 = vmul.f32 %v1508, %v341
    %v1555 = vmul.f32 %v1507, %v345
    %v1556 = vmul.f32 %v1506, %v349
    %v1557 = vmul.f32 %v1505, %v353
    %v1558 = vmul.f32 %v1504, %v357
    %v1559 = vmul.f32 %v1503, %v361
    %v1560 = vmul.f32 %v1502, %v365
    %v1561 = vmul.f32 %v1501, %v369
    %v1562 = vmul.f32 %v1500, %v373
    %v1563 = vmul.f32 %v1499, %v377
    %v1564 = vmul.f32 %v1498, %v381
    %v1565 = vmul.f32 %v1497, %v385
    %v1566 = vmul.f32 %v1496, %v389
    %v1567 = vpack.c.bf16 %v1532, %v1531
    %v1568 = vpack.c.bf16 %v1534, %v1533
    %v1569 = vpack.c.bf16 %v1536, %v1535
    %v1570 = vpack.c.bf16 %v1538, %v1537
    %v1571 = vpack.c.bf16 %v1540, %v1539
    %v1572 = vpack.c.bf16 %v1542, %v1541
    %v1573 = vpack.c.bf16 %v1544, %v1543
    %v1574 = vpack.c.bf16 %v1546, %v1545
    %v1575 = vpack.c.bf16 %v1548, %v1547
    %v1576 = vpack.c.bf16 %v1550, %v1549
    %v1577 = vpack.c.bf16 %v1552, %v1551
    %v1578 = vpack.c.bf16 %v1554, %v1553
    %v1579 = vpack.c.bf16 %v1556, %v1555
    %v1580 = vpack.c.bf16 %v1558, %v1557
    %v1581 = vpack.c.bf16 %v1560, %v1559
    %v1582 = vpack.c.bf16 %v1562, %v1561
    %v1583 = vpack.c.bf16 %v1564, %v1563
    %v1584 = vpack.c.bf16 %v1566, %v1565
    %v1589 = vunpack.c.l.b16 %v1295
    %v1590 = vunpack.c.l.b16 %v1296
    %v1591 = vunpack.c.l.b16 %v1297
    %v1592 = vunpack.c.l.b16 %v1298
    %v1593 = vpack.c.b16 %v1590, %v1589
    %v1594 = vpack.c.b16 %v1592, %v1591
    %vm1597 = vcmask 261120
    %v1599 = vsel %vm1597, %v1567, 0
    %v1602 = vsel %vm1597, %v1568, 0
    %v1605 = vsel %vm1597, %v1569, 0
    %v1608 = vsel %vm1597, %v1570, 0
    %v1611 = vsel %vm1597, %v1571, 0
    %v1614 = vsel %vm1597, %v1572, 0
    %v1617 = vsel %vm1597, %v1573, 0
    %v1620 = vsel %vm1597, %v1574, 0
    %v1623 = vsel %vm1597, %v1575, 0
    %v1626 = vsel %vm1597, %v1576, 0
    %v1629 = vsel %vm1597, %v1577, 0
    %v1632 = vsel %vm1597, %v1578, 0
    %v1635 = vsel %vm1597, %v1579, 0
    %v1638 = vsel %vm1597, %v1580, 0
    %v1641 = vsel %vm1597, %v1581, 0
    %v1644 = vsel %vm1597, %v1582, 0
    %v1647 = vsel %vm1597, %v1583, 0
    %v1650 = vsel %vm1597, %v1584, 0
    %1652 = vmatprep.subr.bf16.mxu0 0
    %1653 = vmatpush1.bf16.msra.mxu0 %v1593
    %1654 = vmatprep.subr.bf16.mxu0 0
    %1655 = vmatpush1.bf16.msra.mxu0 %v1594
    %1656 = vmatprep.subr.bf16.mxu0 0
    %1657 = vmatpush1.bf16.msra.mxu0 0
    %1658 = vmatprep.subr.bf16.mxu0 0
    %1659 = vmatpush1.bf16.msra.mxu0 0
    %1660 = vmatprep.subr.bf16.mxu0 0
    %1661 = vmatpush1.bf16.msra.mxu0 0
    %1662 = vmatprep.subr.bf16.mxu0 0
    %1663 = vmatpush1.bf16.msra.mxu0 0
    %1664 = vmatprep.subr.bf16.mxu0 0
    %1665 = vmatpush1.bf16.msra.mxu0 0
    %1666 = vmatprep.subr.bf16.mxu0 0
    %1667 = vmatpush1.bf16.msra.mxu0 0
    %1668 = vmatprep.subr.bf16.mxu0 0
    %1669 = vmatpush1.bf16.msra.mxu0 0
    %1670 = vmatprep.subr.bf16.mxu0 0
    %1671 = vmatpush1.bf16.msra.mxu0 0
    %1672 = vmatprep.subr.bf16.mxu0 0
    %1673 = vmatpush1.bf16.msra.mxu0 0
    %1674 = vmatprep.subr.bf16.mxu0 0
    %1675 = vmatpush1.bf16.msra.mxu0 0
    %1676 = vmatprep.subr.bf16.mxu0 0
    %1677 = vmatpush1.bf16.msra.mxu0 0
    %1678 = vmatprep.subr.bf16.mxu0 0
    %1679 = vmatpush1.bf16.msra.mxu0 0
    %1680 = vmatprep.subr.bf16.mxu0 0
    %1681 = vmatpush1.bf16.msra.mxu0 0
    %1682 = vmatprep.subr.bf16.mxu0 0
    %1683 = vmatpush1.bf16.msra.mxu0 0
    %1684 = vmatprep.mubr.bf16.mxu0 0
    %1685 = vmatmul.mubr.bf16.gmra.mrb[0].mxu0 %v1599
    %v1686 = vpop.f32.mrb[0].mxu0
    %v1687 = vadd.f32 0.0, %v1686
    %v1688 = vpop.f32.mrb[0].mxu0
    %v1689 = vpop.f32.mrb[0].mxu0
    %v1690 = vadd.f32 0.0, %v1689
    %v1691 = vpop.f32.mrb[0].mxu0
    %1692 = vmatprep.mubr.bf16.mxu0 0
    %1693 = vmatmul.mubr.bf16.gmra.mrb[0].mxu0 %v1602
    %v1694 = vpop.f32.mrb[0].mxu0
    %v1695 = vadd.f32 0.0, %v1694
    %v1696 = vpop.f32.mrb[0].mxu0
    %v1697 = vpop.f32.mrb[0].mxu0
    %v1698 = vadd.f32 0.0, %v1697
    %v1699 = vpop.f32.mrb[0].mxu0
    %1700 = vmatprep.mubr.bf16.mxu0 0
    %1701 = vmatmul.mubr.bf16.gmra.mrb[0].mxu0 %v1605
    %v1702 = vpop.f32.mrb[0].mxu0
    %v1703 = vadd.f32 0.0, %v1702
    %v1704 = vpop.f32.mrb[0].mxu0
    %v1705 = vpop.f32.mrb[0].mxu0
    %v1706 = vadd.f32 0.0, %v1705
    %v1707 = vpop.f32.mrb[0].mxu0
    %1708 = vmatprep.mubr.bf16.mxu0 0
    %1709 = vmatmul.mubr.bf16.gmra.mrb[0].mxu0 %v1608
    %v1710 = vpop.f32.mrb[0].mxu0
    %v1711 = vadd.f32 0.0, %v1710
    %v1712 = vpop.f32.mrb[0].mxu0
    %v1713 = vpop.f32.mrb[0].mxu0
    %v1714 = vadd.f32 0.0, %v1713
    %v1715 = vpop.f32.mrb[0].mxu0
    %1716 = vmatprep.mubr.bf16.mxu0 0
    %1717 = vmatmul.mubr.bf16.gmra.mrb[0].mxu0 %v1611
    %v1718 = vpop.f32.mrb[0].mxu0
    %v1719 = vadd.f32 0.0, %v1718
    %v1720 = vpop.f32.mrb[0].mxu0
    %v1721 = vpop.f32.mrb[0].mxu0
    %v1722 = vadd.f32 0.0, %v1721
    %v1723 = vpop.f32.mrb[0].mxu0
    %1724 = vmatprep.mubr.bf16.mxu0 0
    %1725 = vmatmul.mubr.bf16.gmra.mrb[0].mxu0 %v1614
    %v1726 = vpop.f32.mrb[0].mxu0
    %v1727 = vadd.f32 0.0, %v1726
    %v1728 = vpop.f32.mrb[0].mxu0
    %v1729 = vpop.f32.mrb[0].mxu0
    %v1730 = vadd.f32 0.0, %v1729
    %v1731 = vpop.f32.mrb[0].mxu0
    %1732 = vmatprep.mubr.bf16.mxu0 0
    %1733 = vmatmul.mubr.bf16.gmra.mrb[0].mxu0 %v1617
    %v1734 = vpop.f32.mrb[0].mxu0
    %v1735 = vadd.f32 0.0, %v1734
    %v1736 = vpop.f32.mrb[0].mxu0
    %v1737 = vpop.f32.mrb[0].mxu0
    %v1738 = vadd.f32 0.0, %v1737
    %v1739 = vpop.f32.mrb[0].mxu0
    %1740 = vmatprep.mubr.bf16.mxu0 0
    %1741 = vmatmul.mubr.bf16.gmra.mrb[0].mxu0 %v1620
    %v1742 = vpop.f32.mrb[0].mxu0
    %v1743 = vadd.f32 0.0, %v1742
    %v1744 = vpop.f32.mrb[0].mxu0
    %v1745 = vpop.f32.mrb[0].mxu0
    %v1746 = vadd.f32 0.0, %v1745
    %v1747 = vpop.f32.mrb[0].mxu0
    %1748 = vmatprep.mubr.bf16.mxu0 0
    %1749 = vmatmul.mubr.bf16.gmra.mrb[0].mxu0 %v1623
    %v1750 = vpop.f32.mrb[0].mxu0
    %v1751 = vadd.f32 0.0, %v1750
    %v1752 = vpop.f32.mrb[0].mxu0
    %v1753 = vpop.f32.mrb[0].mxu0
    %v1754 = vadd.f32 0.0, %v1753
    %v1755 = vpop.f32.mrb[0].mxu0
    %1756 = vmatprep.mubr.bf16.mxu0 0
    %1757 = vmatmul.mubr.bf16.gmra.mrb[0].mxu0 %v1626
    %v1758 = vpop.f32.mrb[0].mxu0
    %v1759 = vadd.f32 0.0, %v1758
    %v1760 = vpop.f32.mrb[0].mxu0
    %v1761 = vpop.f32.mrb[0].mxu0
    %v1762 = vadd.f32 0.0, %v1761
    %v1763 = vpop.f32.mrb[0].mxu0
    %1764 = vmatprep.mubr.bf16.mxu0 0
    %1765 = vmatmul.mubr.bf16.gmra.mrb[0].mxu0 %v1629
    %v1766 = vpop.f32.mrb[0].mxu0
    %v1767 = vadd.f32 0.0, %v1766
    %v1768 = vpop.f32.mrb[0].mxu0
    %v1769 = vpop.f32.mrb[0].mxu0
    %v1770 = vadd.f32 0.0, %v1769
    %v1771 = vpop.f32.mrb[0].mxu0
    %1772 = vmatprep.mubr.bf16.mxu0 0
    %1773 = vmatmul.mubr.bf16.gmra.mrb[0].mxu0 %v1632
    %v1774 = vpop.f32.mrb[0].mxu0
    %v1775 = vadd.f32 0.0, %v1774
    %v1776 = vpop.f32.mrb[0].mxu0
    %v1777 = vpop.f32.mrb[0].mxu0
    %v1778 = vadd.f32 0.0, %v1777
    %v1779 = vpop.f32.mrb[0].mxu0
    %1780 = vmatprep.mubr.bf16.mxu0 0
    %1781 = vmatmul.mubr.bf16.gmra.mrb[0].mxu0 %v1635
    %v1782 = vpop.f32.mrb[0].mxu0
    %v1783 = vadd.f32 0.0, %v1782
    %v1784 = vpop.f32.mrb[0].mxu0
    %v1785 = vpop.f32.mrb[0].mxu0
    %v1786 = vadd.f32 0.0, %v1785
    %v1787 = vpop.f32.mrb[0].mxu0
    %1788 = vmatprep.mubr.bf16.mxu0 0
    %1789 = vmatmul.mubr.bf16.gmra.mrb[0].mxu0 %v1638
    %v1790 = vpop.f32.mrb[0].mxu0
    %v1791 = vadd.f32 0.0, %v1790
    %v1792 = vpop.f32.mrb[0].mxu0
    %v1793 = vpop.f32.mrb[0].mxu0
    %v1794 = vadd.f32 0.0, %v1793
    %v1795 = vpop.f32.mrb[0].mxu0
    %1796 = vmatprep.mubr.bf16.mxu0 0
    %1797 = vmatmul.mubr.bf16.gmra.mrb[0].mxu0 %v1641
    %v1798 = vpop.f32.mrb[0].mxu0
    %v1799 = vadd.f32 0.0, %v1798
    %v1800 = vpop.f32.mrb[0].mxu0
    %v1801 = vpop.f32.mrb[0].mxu0
    %v1802 = vadd.f32 0.0, %v1801
    %v1803 = vpop.f32.mrb[0].mxu0
    %1804 = vmatprep.mubr.bf16.mxu0 0
    %1805 = vmatmul.mubr.bf16.gmra.mrb[0].mxu0 %v1644
    %v1806 = vpop.f32.mrb[0].mxu0
    %v1807 = vadd.f32 0.0, %v1806
    %v1808 = vpop.f32.mrb[0].mxu0
    %v1809 = vpop.f32.mrb[0].mxu0
    %v1810 = vadd.f32 0.0, %v1809
    %v1811 = vpop.f32.mrb[0].mxu0
    %1812 = vmatprep.mubr.bf16.mxu0 0
    %1813 = vmatmul.mubr.bf16.gmra.mrb[0].mxu0 %v1647
    %v1814 = vpop.f32.mrb[0].mxu0
    %v1815 = vadd.f32 0.0, %v1814
    %v1816 = vpop.f32.mrb[0].mxu0
    %v1817 = vpop.f32.mrb[0].mxu0
    %v1818 = vadd.f32 0.0, %v1817
    %v1819 = vpop.f32.mrb[0].mxu0
    %1820 = vmatprep.mubr.bf16.mxu0 0
    %1821 = vmatmul.mubr.bf16.gmra.mrb[0].mxu0 %v1650
    %v1822 = vpop.f32.mrb[0].mxu0
    %v1823 = vadd.f32 0.0, %v1822
    %v1824 = vpop.f32.mrb[0].mxu0
    %v1825 = vpop.f32.mrb[0].mxu0
    %v1826 = vadd.f32 0.0, %v1825
    %v1827 = vpop.f32.mrb[0].mxu0
    %1828 = vdwg.mxu0
    %v1833 = vunpack.c.l.b16 %v1291
    %v1834 = vunpack.c.l.b16 %v1292
    %v1835 = vunpack.c.l.b16 %v1293
    %v1836 = vunpack.c.l.b16 %v1294
    %v1837 = vpack.c.b16 %v1834, %v1833
    %v1838 = vpack.c.b16 %v1836, %v1835
    %v1842 = vsel %vm1597, %v1440, 0
    %v1845 = vsel %vm1597, %v1441, 0
    %v1848 = vsel %vm1597, %v1442, 0
    %v1851 = vsel %vm1597, %v1443, 0
    %v1854 = vsel %vm1597, %v1444, 0
    %v1857 = vsel %vm1597, %v1445, 0
    %v1860 = vsel %vm1597, %v1446, 0
    %v1863 = vsel %vm1597, %v1447, 0
    %v1866 = vsel %vm1597, %v1448, 0
    %v1869 = vsel %vm1597, %v1449, 0
    %v1872 = vsel %vm1597, %v1450, 0
    %v1875 = vsel %vm1597, %v1451, 0
    %v1878 = vsel %vm1597, %v1452, 0
    %v1881 = vsel %vm1597, %v1453, 0
    %v1884 = vsel %vm1597, %v1454, 0
    %v1887 = vsel %vm1597, %v1455, 0
    %v1890 = vsel %vm1597, %v1456, 0
    %v1893 = vsel %vm1597, %v1457, 0
    %1895 = vmatprep.subr.bf16.mxu0 0
    %1896 = vmatpush1.bf16.msra.mxu0 %v1837
    %1897 = vmatprep.subr.bf16.mxu0 0
    %1898 = vmatpush1.bf16.msra.mxu0 %v1838
    %1899 = vmatprep.subr.bf16.mxu0 0
    %1900 = vmatpush1.bf16.msra.mxu0 0
    %1901 = vmatprep.subr.bf16.mxu0 0
    %1902 = vmatpush1.bf16.msra.mxu0 0
    %1903 = vmatprep.subr.bf16.mxu0 0
    %1904 = vmatpush1.bf16.msra.mxu0 0
    %1905 = vmatprep.subr.bf16.mxu0 0
    %1906 = vmatpush1.bf16.msra.mxu0 0
    %1907 = vmatprep.subr.bf16.mxu0 0
    %1908 = vmatpush1.bf16.msra.mxu0 0
    %1909 = vmatprep.subr.bf16.mxu0 0
    %1910 = vmatpush1.bf16.msra.mxu0 0
    %1911 = vmatprep.subr.bf16.mxu0 0
    %1912 = vmatpush1.bf16.msra.mxu0 0
    %1913 = vmatprep.subr.bf16.mxu0 0
    %1914 = vmatpush1.bf16.msra.mxu0 0
    %1915 = vmatprep.subr.bf16.mxu0 0
    %1916 = vmatpush1.bf16.msra.mxu0 0
    %1917 = vmatprep.subr.bf16.mxu0 0
    %1918 = vmatpush1.bf16.msra.mxu0 0
    %1919 = vmatprep.subr.bf16.mxu0 0
    %1920 = vmatpush1.bf16.msra.mxu0 0
    %1921 = vmatprep.subr.bf16.mxu0 0
    %1922 = vmatpush1.bf16.msra.mxu0 0
    %1923 = vmatprep.subr.bf16.mxu0 0
    %1924 = vmatpush1.bf16.msra.mxu0 0
    %1925 = vmatprep.subr.bf16.mxu0 0
    %1926 = vmatpush1.bf16.msra.mxu0 0
    %1927 = vmatprep.mubr.bf16.mxu0 0
    %1928 = vmatmul.mubr.bf16.gmra.mrb[0].mxu0 %v1842
    %v1929 = vpop.f32.mrb[0].mxu0
    %v1930 = vadd.f32 %v1687, %v1929
    %v1931 = vpop.f32.mrb[0].mxu0
    %v1932 = vpop.f32.mrb[0].mxu0
    %v1933 = vadd.f32 %v1690, %v1932
    %v1934 = vpop.f32.mrb[0].mxu0
    %1935 = vmatprep.mubr.bf16.mxu0 0
    %1936 = vmatmul.mubr.bf16.gmra.mrb[0].mxu0 %v1845
    %v1937 = vpop.f32.mrb[0].mxu0
    %v1938 = vadd.f32 %v1695, %v1937
    %v1939 = vpop.f32.mrb[0].mxu0
    %v1940 = vpop.f32.mrb[0].mxu0
    %v1941 = vadd.f32 %v1698, %v1940
    %v1942 = vpop.f32.mrb[0].mxu0
    %1943 = vmatprep.mubr.bf16.mxu0 0
    %1944 = vmatmul.mubr.bf16.gmra.mrb[0].mxu0 %v1848
    %v1945 = vpop.f32.mrb[0].mxu0
    %v1946 = vadd.f32 %v1703, %v1945
    %v1947 = vpop.f32.mrb[0].mxu0
    %v1948 = vpop.f32.mrb[0].mxu0
    %v1949 = vadd.f32 %v1706, %v1948
    %v1950 = vpop.f32.mrb[0].mxu0
    %1951 = vmatprep.mubr.bf16.mxu0 0
    %1952 = vmatmul.mubr.bf16.gmra.mrb[0].mxu0 %v1851
    %v1953 = vpop.f32.mrb[0].mxu0
    %v1954 = vadd.f32 %v1711, %v1953
    %v1955 = vpop.f32.mrb[0].mxu0
    %v1956 = vpop.f32.mrb[0].mxu0
    %v1957 = vadd.f32 %v1714, %v1956
    %v1958 = vpop.f32.mrb[0].mxu0
    %1959 = vmatprep.mubr.bf16.mxu0 0
    %1960 = vmatmul.mubr.bf16.gmra.mrb[0].mxu0 %v1854
    %v1961 = vpop.f32.mrb[0].mxu0
    %v1962 = vadd.f32 %v1719, %v1961
    %v1963 = vpop.f32.mrb[0].mxu0
    %v1964 = vpop.f32.mrb[0].mxu0
    %v1965 = vadd.f32 %v1722, %v1964
    %v1966 = vpop.f32.mrb[0].mxu0
    %1967 = vmatprep.mubr.bf16.mxu0 0
    %1968 = vmatmul.mubr.bf16.gmra.mrb[0].mxu0 %v1857
    %v1969 = vpop.f32.mrb[0].mxu0
    %v1970 = vadd.f32 %v1727, %v1969
    %v1971 = vpop.f32.mrb[0].mxu0
    %v1972 = vpop.f32.mrb[0].mxu0
    %v1973 = vadd.f32 %v1730, %v1972
    %v1974 = vpop.f32.mrb[0].mxu0
    %1975 = vmatprep.mubr.bf16.mxu0 0
    %1976 = vmatmul.mubr.bf16.gmra.mrb[0].mxu0 %v1860
    %v1977 = vpop.f32.mrb[0].mxu0
    %v1978 = vadd.f32 %v1735, %v1977
    %v1979 = vpop.f32.mrb[0].mxu0
    %v1980 = vpop.f32.mrb[0].mxu0
    %v1981 = vadd.f32 %v1738, %v1980
    %v1982 = vpop.f32.mrb[0].mxu0
    %1983 = vmatprep.mubr.bf16.mxu0 0
    %1984 = vmatmul.mubr.bf16.gmra.mrb[0].mxu0 %v1863
    %v1985 = vpop.f32.mrb[0].mxu0
    %v1986 = vadd.f32 %v1743, %v1985
    %v1987 = vpop.f32.mrb[0].mxu0
    %v1988 = vpop.f32.mrb[0].mxu0
    %v1989 = vadd.f32 %v1746, %v1988
    %v1990 = vpop.f32.mrb[0].mxu0
    %1991 = vmatprep.mubr.bf16.mxu0 0
    %1992 = vmatmul.mubr.bf16.gmra.mrb[0].mxu0 %v1866
    %v1993 = vpop.f32.mrb[0].mxu0
    %v1994 = vadd.f32 %v1751, %v1993
    %v1995 = vpop.f32.mrb[0].mxu0
    %v1996 = vpop.f32.mrb[0].mxu0
    %v1997 = vadd.f32 %v1754, %v1996
    %v1998 = vpop.f32.mrb[0].mxu0
    %1999 = vmatprep.mubr.bf16.mxu0 0
    %2000 = vmatmul.mubr.bf16.gmra.mrb[0].mxu0 %v1869
    %v2001 = vpop.f32.mrb[0].mxu0
    %v2002 = vadd.f32 %v1759, %v2001
    %v2003 = vpop.f32.mrb[0].mxu0
    %v2004 = vpop.f32.mrb[0].mxu0
    %v2005 = vadd.f32 %v1762, %v2004
    %v2006 = vpop.f32.mrb[0].mxu0
    %2007 = vmatprep.mubr.bf16.mxu0 0
    %2008 = vmatmul.mubr.bf16.gmra.mrb[0].mxu0 %v1872
    %v2009 = vpop.f32.mrb[0].mxu0
    %v2010 = vadd.f32 %v1767, %v2009
    %v2011 = vpop.f32.mrb[0].mxu0
    %v2012 = vpop.f32.mrb[0].mxu0
    %v2013 = vadd.f32 %v1770, %v2012
    %v2014 = vpop.f32.mrb[0].mxu0
    %2015 = vmatprep.mubr.bf16.mxu0 0
    %2016 = vmatmul.mubr.bf16.gmra.mrb[0].mxu0 %v1875
    %v2017 = vpop.f32.mrb[0].mxu0
    %v2018 = vadd.f32 %v1775, %v2017
    %v2019 = vpop.f32.mrb[0].mxu0
    %v2020 = vpop.f32.mrb[0].mxu0
    %v2021 = vadd.f32 %v1778, %v2020
    %v2022 = vpop.f32.mrb[0].mxu0
    %2023 = vmatprep.mubr.bf16.mxu0 0
    %2024 = vmatmul.mubr.bf16.gmra.mrb[0].mxu0 %v1878
    %v2025 = vpop.f32.mrb[0].mxu0
    %v2026 = vadd.f32 %v1783, %v2025
    %v2027 = vpop.f32.mrb[0].mxu0
    %v2028 = vpop.f32.mrb[0].mxu0
    %v2029 = vadd.f32 %v1786, %v2028
    %v2030 = vpop.f32.mrb[0].mxu0
    %2031 = vmatprep.mubr.bf16.mxu0 0
    %2032 = vmatmul.mubr.bf16.gmra.mrb[0].mxu0 %v1881
    %v2033 = vpop.f32.mrb[0].mxu0
    %v2034 = vadd.f32 %v1791, %v2033
    %v2035 = vpop.f32.mrb[0].mxu0
    %v2036 = vpop.f32.mrb[0].mxu0
    %v2037 = vadd.f32 %v1794, %v2036
    %v2038 = vpop.f32.mrb[0].mxu0
    %2039 = vmatprep.mubr.bf16.mxu0 0
    %2040 = vmatmul.mubr.bf16.gmra.mrb[0].mxu0 %v1884
    %v2041 = vpop.f32.mrb[0].mxu0
    %v2042 = vadd.f32 %v1799, %v2041
    %v2043 = vpop.f32.mrb[0].mxu0
    %v2044 = vpop.f32.mrb[0].mxu0
    %v2045 = vadd.f32 %v1802, %v2044
    %v2046 = vpop.f32.mrb[0].mxu0
    %2047 = vmatprep.mubr.bf16.mxu0 0
    %2048 = vmatmul.mubr.bf16.gmra.mrb[0].mxu0 %v1887
    %v2049 = vpop.f32.mrb[0].mxu0
    %v2050 = vadd.f32 %v1807, %v2049
    %v2051 = vpop.f32.mrb[0].mxu0
    %v2052 = vpop.f32.mrb[0].mxu0
    %v2053 = vadd.f32 %v1810, %v2052
    %v2054 = vpop.f32.mrb[0].mxu0
    %2055 = vmatprep.mubr.bf16.mxu0 0
    %2056 = vmatmul.mubr.bf16.gmra.mrb[0].mxu0 %v1890
    %v2057 = vpop.f32.mrb[0].mxu0
    %v2058 = vadd.f32 %v1815, %v2057
    %v2059 = vpop.f32.mrb[0].mxu0
    %v2060 = vpop.f32.mrb[0].mxu0
    %v2061 = vadd.f32 %v1818, %v2060
    %v2062 = vpop.f32.mrb[0].mxu0
    %2063 = vmatprep.mubr.bf16.mxu0 0
    %2064 = vmatmul.mubr.bf16.gmra.mrb[0].mxu0 %v1893
    %v2065 = vpop.f32.mrb[0].mxu0
    %v2066 = vadd.f32 %v1823, %v2065
    %v2067 = vpop.f32.mrb[0].mxu0
    %v2068 = vpop.f32.mrb[0].mxu0
    %v2069 = vadd.f32 %v1826, %v2068
    %v2070 = vpop.f32.mrb[0].mxu0
    %2071 = vdwg.mxu0
    %v2072 = vrot.slane %v1255, 5
    %v2073 = vrot.slane %v1256, 5
    %v2074 = vrot.slane %v1257, 5
    %v2075 = vrot.slane %v1258, 5
    %v2076 = vrot.slane %v1259, 5
    %v2077 = vrot.slane %v1260, 5
    %v2078 = vrot.slane %v1261, 5
    %v2079 = vrot.slane %v1262, 5
    %v2080 = vrot.slane %v1263, 5
    %v2081 = vrot.slane %v1264, 5
    %v2082 = vrot.slane %v1265, 5
    %v2083 = vrot.slane %v1266, 5
    %v2084 = vrot.slane %v1267, 5
    %v2085 = vrot.slane %v1268, 5
    %v2086 = vrot.slane %v1269, 5
    %v2087 = vrot.slane %v1270, 5
    %v2088 = vrot.slane %v1271, 5
    %v2089 = vrot.slane %v1272, 5
    %v2090 = vrot.slane %v1273, 5
    %v2091 = vrot.slane %v1274, 5
    %v2092 = vrot.slane %v1275, 5
    %v2093 = vrot.slane %v1276, 5
    %v2094 = vrot.slane %v1277, 5
    %v2095 = vrot.slane %v1278, 5
    %v2096 = vrot.slane %v1279, 5
    %v2097 = vrot.slane %v1280, 5
    %v2098 = vrot.slane %v1281, 5
    %v2099 = vrot.slane %v1282, 5
    %v2100 = vrot.slane %v1283, 5
    %v2101 = vrot.slane %v1284, 5
    %v2102 = vrot.slane %v1285, 5
    %v2103 = vrot.slane %v1286, 5
    %v2104 = vrot.slane %v1287, 5
    %v2105 = vrot.slane %v1288, 5
    %v2106 = vrot.slane %v1289, 5
    %v2107 = vrot.slane %v1290, 5
    %vm2108 = vcmp.lt.s32.totalorder %v1366, 3
    %v2109 = vsel %vm2108, %v2106, %v2107
    %v2110 = vsel %vm2108, %v2105, %v2106
    %v2111 = vsel %vm2108, %v2104, %v2105
    %v2112 = vsel %vm2108, %v2103, %v2104
    %v2113 = vsel %vm2108, %v2102, %v2103
    %v2114 = vsel %vm2108, %v2101, %v2102
    %v2115 = vsel %vm2108, %v2100, %v2101
    %v2116 = vsel %vm2108, %v2099, %v2100
    %v2117 = vsel %vm2108, %v2098, %v2099
    %v2118 = vsel %vm2108, %v2097, %v2098
    %v2119 = vsel %vm2108, %v2096, %v2097
    %v2120 = vsel %vm2108, %v2095, %v2096
    %v2121 = vsel %vm2108, %v2094, %v2095
    %v2122 = vsel %vm2108, %v2093, %v2094
    %v2123 = vsel %vm2108, %v2092, %v2093
    %v2124 = vsel %vm2108, %v2091, %v2092
    %v2125 = vsel %vm2108, %v2090, %v2091
    %v2126 = vsel %vm2108, %v2089, %v2090
    %v2127 = vsel %vm2108, %v2088, %v2089
    %v2128 = vsel %vm2108, %v2087, %v2088
    %v2129 = vsel %vm2108, %v2086, %v2087
    %v2130 = vsel %vm2108, %v2085, %v2086
    %v2131 = vsel %vm2108, %v2084, %v2085
    %v2132 = vsel %vm2108, %v2083, %v2084
    %v2133 = vsel %vm2108, %v2082, %v2083
    %v2134 = vsel %vm2108, %v2081, %v2082
    %v2135 = vsel %vm2108, %v2080, %v2081
    %v2136 = vsel %vm2108, %v2079, %v2080
    %v2137 = vsel %vm2108, %v2078, %v2079
    %v2138 = vsel %vm2108, %v2077, %v2078
    %v2139 = vsel %vm2108, %v2076, %v2077
    %v2140 = vsel %vm2108, %v2075, %v2076
    %v2141 = vsel %vm2108, %v2074, %v2075
    %v2142 = vsel %vm2108, %v2073, %v2074
    %v2143 = vsel %vm2108, %v2072, %v2073
    %v2144 = vsel %vm2108, %v2107, %v2072
    %v2145 = vmul.f32 %v2109, %v393
    %v2146 = vmul.f32 %v2144, %v397
    %v2147 = vmul.f32 %v2143, %v401
    %v2148 = vmul.f32 %v2142, %v405
    %v2149 = vmul.f32 %v2141, %v409
    %v2150 = vmul.f32 %v2140, %v413
    %v2151 = vmul.f32 %v2139, %v417
    %v2152 = vmul.f32 %v2138, %v421
    %v2153 = vmul.f32 %v2137, %v425
    %v2154 = vmul.f32 %v2136, %v429
    %v2155 = vmul.f32 %v2135, %v433
    %v2156 = vmul.f32 %v2134, %v437
    %v2157 = vmul.f32 %v2133, %v441
    %v2158 = vmul.f32 %v2132, %v445
    %v2159 = vmul.f32 %v2131, %v449
    %v2160 = vmul.f32 %v2130, %v453
    %v2161 = vmul.f32 %v2129, %v457
    %v2162 = vmul.f32 %v2128, %v461
    %v2163 = vmul.f32 %v2127, %v465
    %v2164 = vmul.f32 %v2126, %v469
    %v2165 = vmul.f32 %v2125, %v473
    %v2166 = vmul.f32 %v2124, %v477
    %v2167 = vmul.f32 %v2123, %v481
    %v2168 = vmul.f32 %v2122, %v485
    %v2169 = vmul.f32 %v2121, %v489
    %v2170 = vmul.f32 %v2120, %v493
    %v2171 = vmul.f32 %v2119, %v497
    %v2172 = vmul.f32 %v2118, %v501
    %v2173 = vmul.f32 %v2117, %v505
    %v2174 = vmul.f32 %v2116, %v509
    %v2175 = vmul.f32 %v2115, %v513
    %v2176 = vmul.f32 %v2114, %v517
    %v2177 = vmul.f32 %v2113, %v521
    %v2178 = vmul.f32 %v2112, %v525
    %v2179 = vmul.f32 %v2111, %v529
    %v2180 = vmul.f32 %v2110, %v533
    %v2181 = vpack.c.bf16 %v2146, %v2145
    %v2182 = vpack.c.bf16 %v2148, %v2147
    %v2183 = vpack.c.bf16 %v2150, %v2149
    %v2184 = vpack.c.bf16 %v2152, %v2151
    %v2185 = vpack.c.bf16 %v2154, %v2153
    %v2186 = vpack.c.bf16 %v2156, %v2155
    %v2187 = vpack.c.bf16 %v2158, %v2157
    %v2188 = vpack.c.bf16 %v2160, %v2159
    %v2189 = vpack.c.bf16 %v2162, %v2161
    %v2190 = vpack.c.bf16 %v2164, %v2163
    %v2191 = vpack.c.bf16 %v2166, %v2165
    %v2192 = vpack.c.bf16 %v2168, %v2167
    %v2193 = vpack.c.bf16 %v2170, %v2169
    %v2194 = vpack.c.bf16 %v2172, %v2171
    %v2195 = vpack.c.bf16 %v2174, %v2173
    %v2196 = vpack.c.bf16 %v2176, %v2175
    %v2197 = vpack.c.bf16 %v2178, %v2177
    %v2198 = vpack.c.bf16 %v2180, %v2179
    %v2203 = vunpack.c.l.b16 %v1299
    %v2204 = vunpack.c.l.b16 %v1300
    %v2205 = vunpack.c.l.b16 %v1301
    %v2206 = vunpack.c.l.b16 %v1302
    %v2207 = vpack.c.b16 %v2204, %v2203
    %v2208 = vpack.c.b16 %v2206, %v2205
    %v2212 = vsel %vm1597, %v2181, 0
    %v2215 = vsel %vm1597, %v2182, 0
    %v2218 = vsel %vm1597, %v2183, 0
    %v2221 = vsel %vm1597, %v2184, 0
    %v2224 = vsel %vm1597, %v2185, 0
    %v2227 = vsel %vm1597, %v2186, 0
    %v2230 = vsel %vm1597, %v2187, 0
    %v2233 = vsel %vm1597, %v2188, 0
    %v2236 = vsel %vm1597, %v2189, 0
    %v2239 = vsel %vm1597, %v2190, 0
    %v2242 = vsel %vm1597, %v2191, 0
    %v2245 = vsel %vm1597, %v2192, 0
    %v2248 = vsel %vm1597, %v2193, 0
    %v2251 = vsel %vm1597, %v2194, 0
    %v2254 = vsel %vm1597, %v2195, 0
    %v2257 = vsel %vm1597, %v2196, 0
    %v2260 = vsel %vm1597, %v2197, 0
    %v2263 = vsel %vm1597, %v2198, 0
    %2265 = vmatprep.subr.bf16.mxu0 0
    %2266 = vmatpush1.bf16.msra.mxu0 %v2207
    %2267 = vmatprep.subr.bf16.mxu0 0
    %2268 = vmatpush1.bf16.msra.mxu0 %v2208
    %2269 = vmatprep.subr.bf16.mxu0 0
    %2270 = vmatpush1.bf16.msra.mxu0 0
    %2271 = vmatprep.subr.bf16.mxu0 0
    %2272 = vmatpush1.bf16.msra.mxu0 0
    %2273 = vmatprep.subr.bf16.mxu0 0
    %2274 = vmatpush1.bf16.msra.mxu0 0
    %2275 = vmatprep.subr.bf16.mxu0 0
    %2276 = vmatpush1.bf16.msra.mxu0 0
    %2277 = vmatprep.subr.bf16.mxu0 0
    %2278 = vmatpush1.bf16.msra.mxu0 0
    %2279 = vmatprep.subr.bf16.mxu0 0
    %2280 = vmatpush1.bf16.msra.mxu0 0
    %2281 = vmatprep.subr.bf16.mxu0 0
    %2282 = vmatpush1.bf16.msra.mxu0 0
    %2283 = vmatprep.subr.bf16.mxu0 0
    %2284 = vmatpush1.bf16.msra.mxu0 0
    %2285 = vmatprep.subr.bf16.mxu0 0
    %2286 = vmatpush1.bf16.msra.mxu0 0
    %2287 = vmatprep.subr.bf16.mxu0 0
    %2288 = vmatpush1.bf16.msra.mxu0 0
    %2289 = vmatprep.subr.bf16.mxu0 0
    %2290 = vmatpush1.bf16.msra.mxu0 0
    %2291 = vmatprep.subr.bf16.mxu0 0
    %2292 = vmatpush1.bf16.msra.mxu0 0
    %2293 = vmatprep.subr.bf16.mxu0 0
    %2294 = vmatpush1.bf16.msra.mxu0 0
    %2295 = vmatprep.subr.bf16.mxu0 0
    %2296 = vmatpush1.bf16.msra.mxu0 0
    %2297 = vmatprep.mubr.bf16.mxu0 0
    %2298 = vmatmul.mubr.bf16.gmra.mrb[0].mxu0 %v2212
    %v2299 = vpop.f32.mrb[0].mxu0
    %v2300 = vadd.f32 0.0, %v2299
    %v2301 = vpop.f32.mrb[0].mxu0
    %v2302 = vpop.f32.mrb[0].mxu0
    %v2303 = vadd.f32 0.0, %v2302
    %v2304 = vpop.f32.mrb[0].mxu0
    %2305 = vmatprep.mubr.bf16.mxu0 0
    %2306 = vmatmul.mubr.bf16.gmra.mrb[0].mxu0 %v2215
    %v2307 = vpop.f32.mrb[0].mxu0
    %v2308 = vadd.f32 0.0, %v2307
    %v2309 = vpop.f32.mrb[0].mxu0
    %v2310 = vpop.f32.mrb[0].mxu0
    %v2311 = vadd.f32 0.0, %v2310
    %v2312 = vpop.f32.mrb[0].mxu0
    %2313 = vmatprep.mubr.bf16.mxu0 0
    %2314 = vmatmul.mubr.bf16.gmra.mrb[0].mxu0 %v2218
    %v2315 = vpop.f32.mrb[0].mxu0
    %v2316 = vadd.f32 0.0, %v2315
    %v2317 = vpop.f32.mrb[0].mxu0
    %v2318 = vpop.f32.mrb[0].mxu0
    %v2319 = vadd.f32 0.0, %v2318
    %v2320 = vpop.f32.mrb[0].mxu0
    %2321 = vmatprep.mubr.bf16.mxu0 0
    %2322 = vmatmul.mubr.bf16.gmra.mrb[0].mxu0 %v2221
    %v2323 = vpop.f32.mrb[0].mxu0
    %v2324 = vadd.f32 0.0, %v2323
    %v2325 = vpop.f32.mrb[0].mxu0
    %v2326 = vpop.f32.mrb[0].mxu0
    %v2327 = vadd.f32 0.0, %v2326
    %v2328 = vpop.f32.mrb[0].mxu0
    %2329 = vmatprep.mubr.bf16.mxu0 0
    %2330 = vmatmul.mubr.bf16.gmra.mrb[0].mxu0 %v2224
    %v2331 = vpop.f32.mrb[0].mxu0
    %v2332 = vadd.f32 0.0, %v2331
    %v2333 = vpop.f32.mrb[0].mxu0
    %v2334 = vpop.f32.mrb[0].mxu0
    %v2335 = vadd.f32 0.0, %v2334
    %v2336 = vpop.f32.mrb[0].mxu0
    %2337 = vmatprep.mubr.bf16.mxu0 0
    %2338 = vmatmul.mubr.bf16.gmra.mrb[0].mxu0 %v2227
    %v2339 = vpop.f32.mrb[0].mxu0
    %v2340 = vadd.f32 0.0, %v2339
    %v2341 = vpop.f32.mrb[0].mxu0
    %v2342 = vpop.f32.mrb[0].mxu0
    %v2343 = vadd.f32 0.0, %v2342
    %v2344 = vpop.f32.mrb[0].mxu0
    %2345 = vmatprep.mubr.bf16.mxu0 0
    %2346 = vmatmul.mubr.bf16.gmra.mrb[0].mxu0 %v2230
    %v2347 = vpop.f32.mrb[0].mxu0
    %v2348 = vadd.f32 0.0, %v2347
    %v2349 = vpop.f32.mrb[0].mxu0
    %v2350 = vpop.f32.mrb[0].mxu0
    %v2351 = vadd.f32 0.0, %v2350
    %v2352 = vpop.f32.mrb[0].mxu0
    %2353 = vmatprep.mubr.bf16.mxu0 0
    %2354 = vmatmul.mubr.bf16.gmra.mrb[0].mxu0 %v2233
    %v2355 = vpop.f32.mrb[0].mxu0
    %v2356 = vadd.f32 0.0, %v2355
    %v2357 = vpop.f32.mrb[0].mxu0
    %v2358 = vpop.f32.mrb[0].mxu0
    %v2359 = vadd.f32 0.0, %v2358
    %v2360 = vpop.f32.mrb[0].mxu0
    %2361 = vmatprep.mubr.bf16.mxu0 0
    %2362 = vmatmul.mubr.bf16.gmra.mrb[0].mxu0 %v2236
    %v2363 = vpop.f32.mrb[0].mxu0
    %v2364 = vadd.f32 0.0, %v2363
    %v2365 = vpop.f32.mrb[0].mxu0
    %v2366 = vpop.f32.mrb[0].mxu0
    %v2367 = vadd.f32 0.0, %v2366
    %v2368 = vpop.f32.mrb[0].mxu0
    %2369 = vmatprep.mubr.bf16.mxu0 0
    %2370 = vmatmul.mubr.bf16.gmra.mrb[0].mxu0 %v2239
    %v2371 = vpop.f32.mrb[0].mxu0
    %v2372 = vadd.f32 0.0, %v2371
    %v2373 = vpop.f32.mrb[0].mxu0
    %v2374 = vpop.f32.mrb[0].mxu0
    %v2375 = vadd.f32 0.0, %v2374
    %v2376 = vpop.f32.mrb[0].mxu0
    %2377 = vmatprep.mubr.bf16.mxu0 0
    %2378 = vmatmul.mubr.bf16.gmra.mrb[0].mxu0 %v2242
    %v2379 = vpop.f32.mrb[0].mxu0
    %v2380 = vadd.f32 0.0, %v2379
    %v2381 = vpop.f32.mrb[0].mxu0
    %v2382 = vpop.f32.mrb[0].mxu0
    %v2383 = vadd.f32 0.0, %v2382
    %v2384 = vpop.f32.mrb[0].mxu0
    %2385 = vmatprep.mubr.bf16.mxu0 0
    %2386 = vmatmul.mubr.bf16.gmra.mrb[0].mxu0 %v2245
    %v2387 = vpop.f32.mrb[0].mxu0
    %v2388 = vadd.f32 0.0, %v2387
    %v2389 = vpop.f32.mrb[0].mxu0
    %v2390 = vpop.f32.mrb[0].mxu0
    %v2391 = vadd.f32 0.0, %v2390
    %v2392 = vpop.f32.mrb[0].mxu0
    %2393 = vmatprep.mubr.bf16.mxu0 0
    %2394 = vmatmul.mubr.bf16.gmra.mrb[0].mxu0 %v2248
    %v2395 = vpop.f32.mrb[0].mxu0
    %v2396 = vadd.f32 0.0, %v2395
    %v2397 = vpop.f32.mrb[0].mxu0
    %v2398 = vpop.f32.mrb[0].mxu0
    %v2399 = vadd.f32 0.0, %v2398
    %v2400 = vpop.f32.mrb[0].mxu0
    %2401 = vmatprep.mubr.bf16.mxu0 0
    %2402 = vmatmul.mubr.bf16.gmra.mrb[0].mxu0 %v2251
    %v2403 = vpop.f32.mrb[0].mxu0
    %v2404 = vadd.f32 0.0, %v2403
    %v2405 = vpop.f32.mrb[0].mxu0
    %v2406 = vpop.f32.mrb[0].mxu0
    %v2407 = vadd.f32 0.0, %v2406
    %v2408 = vpop.f32.mrb[0].mxu0
    %2409 = vmatprep.mubr.bf16.mxu0 0
    %2410 = vmatmul.mubr.bf16.gmra.mrb[0].mxu0 %v2254
    %v2411 = vpop.f32.mrb[0].mxu0
    %v2412 = vadd.f32 0.0, %v2411
    %v2413 = vpop.f32.mrb[0].mxu0
    %v2414 = vpop.f32.mrb[0].mxu0
    %v2415 = vadd.f32 0.0, %v2414
    %v2416 = vpop.f32.mrb[0].mxu0
    %2417 = vmatprep.mubr.bf16.mxu0 0
    %2418 = vmatmul.mubr.bf16.gmra.mrb[0].mxu0 %v2257
    %v2419 = vpop.f32.mrb[0].mxu0
    %v2420 = vadd.f32 0.0, %v2419
    %v2421 = vpop.f32.mrb[0].mxu0
    %v2422 = vpop.f32.mrb[0].mxu0
    %v2423 = vadd.f32 0.0, %v2422
    %v2424 = vpop.f32.mrb[0].mxu0
    %2425 = vmatprep.mubr.bf16.mxu0 0
    %2426 = vmatmul.mubr.bf16.gmra.mrb[0].mxu0 %v2260
    %v2427 = vpop.f32.mrb[0].mxu0
    %v2428 = vadd.f32 0.0, %v2427
    %v2429 = vpop.f32.mrb[0].mxu0
    %v2430 = vpop.f32.mrb[0].mxu0
    %v2431 = vadd.f32 0.0, %v2430
    %v2432 = vpop.f32.mrb[0].mxu0
    %2433 = vmatprep.mubr.bf16.mxu0 0
    %2434 = vmatmul.mubr.bf16.gmra.mrb[0].mxu0 %v2263
    %v2435 = vpop.f32.mrb[0].mxu0
    %v2436 = vadd.f32 0.0, %v2435
    %v2437 = vpop.f32.mrb[0].mxu0
    %v2438 = vpop.f32.mrb[0].mxu0
    %v2439 = vadd.f32 0.0, %v2438
    %v2440 = vpop.f32.mrb[0].mxu0
    %2441 = vdwg.mxu0
    %v2442 = vadd.f32 %v1930, %v2300
    %v2443 = vadd.f32 %v1933, %v2303
    %v2444 = vadd.f32 %v1938, %v2308
    %v2445 = vadd.f32 %v1941, %v2311
    %v2446 = vadd.f32 %v1946, %v2316
    %v2447 = vadd.f32 %v1949, %v2319
    %v2448 = vadd.f32 %v1954, %v2324
    %v2449 = vadd.f32 %v1957, %v2327
    %v2450 = vadd.f32 %v1962, %v2332
    %v2451 = vadd.f32 %v1965, %v2335
    %v2452 = vadd.f32 %v1970, %v2340
    %v2453 = vadd.f32 %v1973, %v2343
    %v2454 = vadd.f32 %v1978, %v2348
    %v2455 = vadd.f32 %v1981, %v2351
    %v2456 = vadd.f32 %v1986, %v2356
    %v2457 = vadd.f32 %v1989, %v2359
    %v2458 = vadd.f32 %v1994, %v2364
    %v2459 = vadd.f32 %v1997, %v2367
    %v2460 = vadd.f32 %v2002, %v2372
    %v2461 = vadd.f32 %v2005, %v2375
    %v2462 = vadd.f32 %v2010, %v2380
    %v2463 = vadd.f32 %v2013, %v2383
    %v2464 = vadd.f32 %v2018, %v2388
    %v2465 = vadd.f32 %v2021, %v2391
    %v2466 = vadd.f32 %v2026, %v2396
    %v2467 = vadd.f32 %v2029, %v2399
    %v2468 = vadd.f32 %v2034, %v2404
    %v2469 = vadd.f32 %v2037, %v2407
    %v2470 = vadd.f32 %v2042, %v2412
    %v2471 = vadd.f32 %v2045, %v2415
    %v2472 = vadd.f32 %v2050, %v2420
    %v2473 = vadd.f32 %v2053, %v2423
    %v2474 = vadd.f32 %v2058, %v2428
    %v2475 = vadd.f32 %v2061, %v2431
    %v2476 = vadd.f32 %v2066, %v2436
    %v2477 = vadd.f32 %v2069, %v2439
    %v2478 = vrot.slane %v1255, 7
    %v2479 = vrot.slane %v1256, 7
    %v2480 = vrot.slane %v1257, 7
    %v2481 = vrot.slane %v1258, 7
    %v2482 = vrot.slane %v1259, 7
    %v2483 = vrot.slane %v1260, 7
    %v2484 = vrot.slane %v1261, 7
    %v2485 = vrot.slane %v1262, 7
    %v2486 = vrot.slane %v1263, 7
    %v2487 = vrot.slane %v1264, 7
    %v2488 = vrot.slane %v1265, 7
    %v2489 = vrot.slane %v1266, 7
    %v2490 = vrot.slane %v1267, 7
    %v2491 = vrot.slane %v1268, 7
    %v2492 = vrot.slane %v1269, 7
    %v2493 = vrot.slane %v1270, 7
    %v2494 = vrot.slane %v1271, 7
    %v2495 = vrot.slane %v1272, 7
    %v2496 = vrot.slane %v1273, 7
    %v2497 = vrot.slane %v1274, 7
    %v2498 = vrot.slane %v1275, 7
    %v2499 = vrot.slane %v1276, 7
    %v2500 = vrot.slane %v1277, 7
    %v2501 = vrot.slane %v1278, 7
    %v2502 = vrot.slane %v1279, 7
    %v2503 = vrot.slane %v1280, 7
    %v2504 = vrot.slane %v1281, 7
    %v2505 = vrot.slane %v1282, 7
    %v2506 = vrot.slane %v1283, 7
    %v2507 = vrot.slane %v1284, 7
    %v2508 = vrot.slane %v1285, 7
    %v2509 = vrot.slane %v1286, 7
    %v2510 = vrot.slane %v1287, 7
    %v2511 = vrot.slane %v1288, 7
    %v2512 = vrot.slane %v1289, 7
    %v2513 = vrot.slane %v1290, 7
    %vm2514 = vcmp.lt.s32.totalorder %v1366, 1
    %v2515 = vsel %vm2514, %v2512, %v2513
    %v2516 = vsel %vm2514, %v2511, %v2512
    %v2517 = vsel %vm2514, %v2510, %v2511
    %v2518 = vsel %vm2514, %v2509, %v2510
    %v2519 = vsel %vm2514, %v2508, %v2509
    %v2520 = vsel %vm2514, %v2507, %v2508
    %v2521 = vsel %vm2514, %v2506, %v2507
    %v2522 = vsel %vm2514, %v2505, %v2506
    %v2523 = vsel %vm2514, %v2504, %v2505
    %v2524 = vsel %vm2514, %v2503, %v2504
    %v2525 = vsel %vm2514, %v2502, %v2503
    %v2526 = vsel %vm2514, %v2501, %v2502
    %v2527 = vsel %vm2514, %v2500, %v2501
    %v2528 = vsel %vm2514, %v2499, %v2500
    %v2529 = vsel %vm2514, %v2498, %v2499
    %v2530 = vsel %vm2514, %v2497, %v2498
    %v2531 = vsel %vm2514, %v2496, %v2497
    %v2532 = vsel %vm2514, %v2495, %v2496
    %v2533 = vsel %vm2514, %v2494, %v2495
    %v2534 = vsel %vm2514, %v2493, %v2494
    %v2535 = vsel %vm2514, %v2492, %v2493
    %v2536 = vsel %vm2514, %v2491, %v2492
    %v2537 = vsel %vm2514, %v2490, %v2491
    %v2538 = vsel %vm2514, %v2489, %v2490
    %v2539 = vsel %vm2514, %v2488, %v2489
    %v2540 = vsel %vm2514, %v2487, %v2488
    %v2541 = vsel %vm2514, %v2486, %v2487
    %v2542 = vsel %vm2514, %v2485, %v2486
    %v2543 = vsel %vm2514, %v2484, %v2485
    %v2544 = vsel %vm2514, %v2483, %v2484
    %v2545 = vsel %vm2514, %v2482, %v2483
    %v2546 = vsel %vm2514, %v2481, %v2482
    %v2547 = vsel %vm2514, %v2480, %v2481
    %v2548 = vsel %vm2514, %v2479, %v2480
    %v2549 = vsel %vm2514, %v2478, %v2479
    %v2550 = vsel %vm2514, %v2513, %v2478
    %v2551 = vmul.f32 %v2550, %v537
    %v2552 = vmul.f32 %v2549, %v541
    %v2553 = vmul.f32 %v2548, %v545
    %v2554 = vmul.f32 %v2547, %v549
    %v2555 = vmul.f32 %v2546, %v553
    %v2556 = vmul.f32 %v2545, %v557
    %v2557 = vmul.f32 %v2544, %v561
    %v2558 = vmul.f32 %v2543, %v565
    %v2559 = vmul.f32 %v2542, %v569
    %v2560 = vmul.f32 %v2541, %v573
    %v2561 = vmul.f32 %v2540, %v577
    %v2562 = vmul.f32 %v2539, %v581
    %v2563 = vmul.f32 %v2538, %v585
    %v2564 = vmul.f32 %v2537, %v589
    %v2565 = vmul.f32 %v2536, %v593
    %v2566 = vmul.f32 %v2535, %v597
    %v2567 = vmul.f32 %v2534, %v601
    %v2568 = vmul.f32 %v2533, %v605
    %v2569 = vmul.f32 %v2532, %v609
    %v2570 = vmul.f32 %v2531, %v613
    %v2571 = vmul.f32 %v2530, %v617
    %v2572 = vmul.f32 %v2529, %v621
    %v2573 = vmul.f32 %v2528, %v625
    %v2574 = vmul.f32 %v2527, %v629
    %v2575 = vmul.f32 %v2526, %v633
    %v2576 = vmul.f32 %v2525, %v637
    %v2577 = vmul.f32 %v2524, %v641
    %v2578 = vmul.f32 %v2523, %v645
    %v2579 = vmul.f32 %v2522, %v649
    %v2580 = vmul.f32 %v2521, %v653
    %v2581 = vmul.f32 %v2520, %v657
    %v2582 = vmul.f32 %v2519, %v661
    %v2583 = vmul.f32 %v2518, %v665
    %v2584 = vmul.f32 %v2517, %v669
    %v2585 = vmul.f32 %v2516, %v673
    %v2586 = vmul.f32 %v2515, %v677
    %v2587 = vpack.c.bf16 %v2552, %v2551
    %v2588 = vpack.c.bf16 %v2554, %v2553
    %v2589 = vpack.c.bf16 %v2556, %v2555
    %v2590 = vpack.c.bf16 %v2558, %v2557
    %v2591 = vpack.c.bf16 %v2560, %v2559
    %v2592 = vpack.c.bf16 %v2562, %v2561
    %v2593 = vpack.c.bf16 %v2564, %v2563
    %v2594 = vpack.c.bf16 %v2566, %v2565
    %v2595 = vpack.c.bf16 %v2568, %v2567
    %v2596 = vpack.c.bf16 %v2570, %v2569
    %v2597 = vpack.c.bf16 %v2572, %v2571
    %v2598 = vpack.c.bf16 %v2574, %v2573
    %v2599 = vpack.c.bf16 %v2576, %v2575
    %v2600 = vpack.c.bf16 %v2578, %v2577
    %v2601 = vpack.c.bf16 %v2580, %v2579
    %v2602 = vpack.c.bf16 %v2582, %v2581
    %v2603 = vpack.c.bf16 %v2584, %v2583
    %v2604 = vpack.c.bf16 %v2586, %v2585
    %v2609 = vunpack.c.l.b16 %v1303
    %v2610 = vunpack.c.l.b16 %v1304
    %v2611 = vunpack.c.l.b16 %v1305
    %v2612 = vunpack.c.l.b16 %v1306
    %v2613 = vpack.c.b16 %v2610, %v2609
    %v2614 = vpack.c.b16 %v2612, %v2611
    %v2618 = vsel %vm1597, %v2587, 0
    %v2621 = vsel %vm1597, %v2588, 0
    %v2624 = vsel %vm1597, %v2589, 0
    %v2627 = vsel %vm1597, %v2590, 0
    %v2630 = vsel %vm1597, %v2591, 0
    %v2633 = vsel %vm1597, %v2592, 0
    %v2636 = vsel %vm1597, %v2593, 0
    %v2639 = vsel %vm1597, %v2594, 0
    %v2642 = vsel %vm1597, %v2595, 0
    %v2645 = vsel %vm1597, %v2596, 0
    %v2648 = vsel %vm1597, %v2597, 0
    %v2651 = vsel %vm1597, %v2598, 0
    %v2654 = vsel %vm1597, %v2599, 0
    %v2657 = vsel %vm1597, %v2600, 0
    %v2660 = vsel %vm1597, %v2601, 0
    %v2663 = vsel %vm1597, %v2602, 0
    %v2666 = vsel %vm1597, %v2603, 0
    %v2669 = vsel %vm1597, %v2604, 0
    %2671 = vmatprep.subr.bf16.mxu0 0
    %2672 = vmatpush1.bf16.msra.mxu0 %v2613
    %2673 = vmatprep.subr.bf16.mxu0 0
    %2674 = vmatpush1.bf16.msra.mxu0 %v2614
    %2675 = vmatprep.subr.bf16.mxu0 0
    %2676 = vmatpush1.bf16.msra.mxu0 0
    %2677 = vmatprep.subr.bf16.mxu0 0
    %2678 = vmatpush1.bf16.msra.mxu0 0
    %2679 = vmatprep.subr.bf16.mxu0 0
    %2680 = vmatpush1.bf16.msra.mxu0 0
    %2681 = vmatprep.subr.bf16.mxu0 0
    %2682 = vmatpush1.bf16.msra.mxu0 0
    %2683 = vmatprep.subr.bf16.mxu0 0
    %2684 = vmatpush1.bf16.msra.mxu0 0
    %2685 = vmatprep.subr.bf16.mxu0 0
    %2686 = vmatpush1.bf16.msra.mxu0 0
    %2687 = vmatprep.subr.bf16.mxu0 0
    %2688 = vmatpush1.bf16.msra.mxu0 0
    %2689 = vmatprep.subr.bf16.mxu0 0
    %2690 = vmatpush1.bf16.msra.mxu0 0
    %2691 = vmatprep.subr.bf16.mxu0 0
    %2692 = vmatpush1.bf16.msra.mxu0 0
    %2693 = vmatprep.subr.bf16.mxu0 0
    %2694 = vmatpush1.bf16.msra.mxu0 0
    %2695 = vmatprep.subr.bf16.mxu0 0
    %2696 = vmatpush1.bf16.msra.mxu0 0
    %2697 = vmatprep.subr.bf16.mxu0 0
    %2698 = vmatpush1.bf16.msra.mxu0 0
    %2699 = vmatprep.subr.bf16.mxu0 0
    %2700 = vmatpush1.bf16.msra.mxu0 0
    %2701 = vmatprep.subr.bf16.mxu0 0
    %2702 = vmatpush1.bf16.msra.mxu0 0
    %2703 = vmatprep.mubr.bf16.mxu0 0
    %2704 = vmatmul.mubr.bf16.gmra.mrb[0].mxu0 %v2618
    %v2705 = vpop.f32.mrb[0].mxu0
    %v2706 = vadd.f32 0.0, %v2705
    %v2707 = vpop.f32.mrb[0].mxu0
    %v2708 = vpop.f32.mrb[0].mxu0
    %v2709 = vadd.f32 0.0, %v2708
    %v2710 = vpop.f32.mrb[0].mxu0
    %2711 = vmatprep.mubr.bf16.mxu0 0
    %2712 = vmatmul.mubr.bf16.gmra.mrb[0].mxu0 %v2621
    %v2713 = vpop.f32.mrb[0].mxu0
    %v2714 = vadd.f32 0.0, %v2713
    %v2715 = vpop.f32.mrb[0].mxu0
    %v2716 = vpop.f32.mrb[0].mxu0
    %v2717 = vadd.f32 0.0, %v2716
    %v2718 = vpop.f32.mrb[0].mxu0
    %2719 = vmatprep.mubr.bf16.mxu0 0
    %2720 = vmatmul.mubr.bf16.gmra.mrb[0].mxu0 %v2624
    %v2721 = vpop.f32.mrb[0].mxu0
    %v2722 = vadd.f32 0.0, %v2721
    %v2723 = vpop.f32.mrb[0].mxu0
    %v2724 = vpop.f32.mrb[0].mxu0
    %v2725 = vadd.f32 0.0, %v2724
    %v2726 = vpop.f32.mrb[0].mxu0
    %2727 = vmatprep.mubr.bf16.mxu0 0
    %2728 = vmatmul.mubr.bf16.gmra.mrb[0].mxu0 %v2627
    %v2729 = vpop.f32.mrb[0].mxu0
    %v2730 = vadd.f32 0.0, %v2729
    %v2731 = vpop.f32.mrb[0].mxu0
    %v2732 = vpop.f32.mrb[0].mxu0
    %v2733 = vadd.f32 0.0, %v2732
    %v2734 = vpop.f32.mrb[0].mxu0
    %2735 = vmatprep.mubr.bf16.mxu0 0
    %2736 = vmatmul.mubr.bf16.gmra.mrb[0].mxu0 %v2630
    %v2737 = vpop.f32.mrb[0].mxu0
    %v2738 = vadd.f32 0.0, %v2737
    %v2739 = vpop.f32.mrb[0].mxu0
    %v2740 = vpop.f32.mrb[0].mxu0
    %v2741 = vadd.f32 0.0, %v2740
    %v2742 = vpop.f32.mrb[0].mxu0
    %2743 = vmatprep.mubr.bf16.mxu0 0
    %2744 = vmatmul.mubr.bf16.gmra.mrb[0].mxu0 %v2633
    %v2745 = vpop.f32.mrb[0].mxu0
    %v2746 = vadd.f32 0.0, %v2745
    %v2747 = vpop.f32.mrb[0].mxu0
    %v2748 = vpop.f32.mrb[0].mxu0
    %v2749 = vadd.f32 0.0, %v2748
    %v2750 = vpop.f32.mrb[0].mxu0
    %2751 = vmatprep.mubr.bf16.mxu0 0
    %2752 = vmatmul.mubr.bf16.gmra.mrb[0].mxu0 %v2636
    %v2753 = vpop.f32.mrb[0].mxu0
    %v2754 = vadd.f32 0.0, %v2753
    %v2755 = vpop.f32.mrb[0].mxu0
    %v2756 = vpop.f32.mrb[0].mxu0
    %v2757 = vadd.f32 0.0, %v2756
    %v2758 = vpop.f32.mrb[0].mxu0
    %2759 = vmatprep.mubr.bf16.mxu0 0
    %2760 = vmatmul.mubr.bf16.gmra.mrb[0].mxu0 %v2639
    %v2761 = vpop.f32.mrb[0].mxu0
    %v2762 = vadd.f32 0.0, %v2761
    %v2763 = vpop.f32.mrb[0].mxu0
    %v2764 = vpop.f32.mrb[0].mxu0
    %v2765 = vadd.f32 0.0, %v2764
    %v2766 = vpop.f32.mrb[0].mxu0
    %2767 = vmatprep.mubr.bf16.mxu0 0
    %2768 = vmatmul.mubr.bf16.gmra.mrb[0].mxu0 %v2642
    %v2769 = vpop.f32.mrb[0].mxu0
    %v2770 = vadd.f32 0.0, %v2769
    %v2771 = vpop.f32.mrb[0].mxu0
    %v2772 = vpop.f32.mrb[0].mxu0
    %v2773 = vadd.f32 0.0, %v2772
    %v2774 = vpop.f32.mrb[0].mxu0
    %2775 = vmatprep.mubr.bf16.mxu0 0
    %2776 = vmatmul.mubr.bf16.gmra.mrb[0].mxu0 %v2645
    %v2777 = vpop.f32.mrb[0].mxu0
    %v2778 = vadd.f32 0.0, %v2777
    %v2779 = vpop.f32.mrb[0].mxu0
    %v2780 = vpop.f32.mrb[0].mxu0
    %v2781 = vadd.f32 0.0, %v2780
    %v2782 = vpop.f32.mrb[0].mxu0
    %2783 = vmatprep.mubr.bf16.mxu0 0
    %2784 = vmatmul.mubr.bf16.gmra.mrb[0].mxu0 %v2648
    %v2785 = vpop.f32.mrb[0].mxu0
    %v2786 = vadd.f32 0.0, %v2785
    %v2787 = vpop.f32.mrb[0].mxu0
    %v2788 = vpop.f32.mrb[0].mxu0
    %v2789 = vadd.f32 0.0, %v2788
    %v2790 = vpop.f32.mrb[0].mxu0
    %2791 = vmatprep.mubr.bf16.mxu0 0
    %2792 = vmatmul.mubr.bf16.gmra.mrb[0].mxu0 %v2651
    %v2793 = vpop.f32.mrb[0].mxu0
    %v2794 = vadd.f32 0.0, %v2793
    %v2795 = vpop.f32.mrb[0].mxu0
    %v2796 = vpop.f32.mrb[0].mxu0
    %v2797 = vadd.f32 0.0, %v2796
    %v2798 = vpop.f32.mrb[0].mxu0
    %2799 = vmatprep.mubr.bf16.mxu0 0
    %2800 = vmatmul.mubr.bf16.gmra.mrb[0].mxu0 %v2654
    %v2801 = vpop.f32.mrb[0].mxu0
    %v2802 = vadd.f32 0.0, %v2801
    %v2803 = vpop.f32.mrb[0].mxu0
    %v2804 = vpop.f32.mrb[0].mxu0
    %v2805 = vadd.f32 0.0, %v2804
    %v2806 = vpop.f32.mrb[0].mxu0
    %2807 = vmatprep.mubr.bf16.mxu0 0
    %2808 = vmatmul.mubr.bf16.gmra.mrb[0].mxu0 %v2657
    %v2809 = vpop.f32.mrb[0].mxu0
    %v2810 = vadd.f32 0.0, %v2809
    %v2811 = vpop.f32.mrb[0].mxu0
    %v2812 = vpop.f32.mrb[0].mxu0
    %v2813 = vadd.f32 0.0, %v2812
    %v2814 = vpop.f32.mrb[0].mxu0
    %2815 = vmatprep.mubr.bf16.mxu0 0
    %2816 = vmatmul.mubr.bf16.gmra.mrb[0].mxu0 %v2660
    %v2817 = vpop.f32.mrb[0].mxu0
    %v2818 = vadd.f32 0.0, %v2817
    %v2819 = vpop.f32.mrb[0].mxu0
    %v2820 = vpop.f32.mrb[0].mxu0
    %v2821 = vadd.f32 0.0, %v2820
    %v2822 = vpop.f32.mrb[0].mxu0
    %2823 = vmatprep.mubr.bf16.mxu0 0
    %2824 = vmatmul.mubr.bf16.gmra.mrb[0].mxu0 %v2663
    %v2825 = vpop.f32.mrb[0].mxu0
    %v2826 = vadd.f32 0.0, %v2825
    %v2827 = vpop.f32.mrb[0].mxu0
    %v2828 = vpop.f32.mrb[0].mxu0
    %v2829 = vadd.f32 0.0, %v2828
    %v2830 = vpop.f32.mrb[0].mxu0
    %2831 = vmatprep.mubr.bf16.mxu0 0
    %2832 = vmatmul.mubr.bf16.gmra.mrb[0].mxu0 %v2666
    %v2833 = vpop.f32.mrb[0].mxu0
    %v2834 = vadd.f32 0.0, %v2833
    %v2835 = vpop.f32.mrb[0].mxu0
    %v2836 = vpop.f32.mrb[0].mxu0
    %v2837 = vadd.f32 0.0, %v2836
    %v2838 = vpop.f32.mrb[0].mxu0
    %2839 = vmatprep.mubr.bf16.mxu0 0
    %2840 = vmatmul.mubr.bf16.gmra.mrb[0].mxu0 %v2669
    %v2841 = vpop.f32.mrb[0].mxu0
    %v2842 = vadd.f32 0.0, %v2841
    %v2843 = vpop.f32.mrb[0].mxu0
    %v2844 = vpop.f32.mrb[0].mxu0
    %v2845 = vadd.f32 0.0, %v2844
    %v2846 = vpop.f32.mrb[0].mxu0
    %2847 = vdwg.mxu0
    %v2848 = vadd.f32 %v2442, %v2706
    %v2849 = vadd.f32 %v2443, %v2709
    %v2850 = vadd.f32 %v2444, %v2714
    %v2851 = vadd.f32 %v2445, %v2717
    %v2852 = vadd.f32 %v2446, %v2722
    %v2853 = vadd.f32 %v2447, %v2725
    %v2854 = vadd.f32 %v2448, %v2730
    %v2855 = vadd.f32 %v2449, %v2733
    %v2856 = vadd.f32 %v2450, %v2738
    %v2857 = vadd.f32 %v2451, %v2741
    %v2858 = vadd.f32 %v2452, %v2746
    %v2859 = vadd.f32 %v2453, %v2749
    %v2860 = vadd.f32 %v2454, %v2754
    %v2861 = vadd.f32 %v2455, %v2757
    %v2862 = vadd.f32 %v2456, %v2762
    %v2863 = vadd.f32 %v2457, %v2765
    %v2864 = vadd.f32 %v2458, %v2770
    %v2865 = vadd.f32 %v2459, %v2773
    %v2866 = vadd.f32 %v2460, %v2778
    %v2867 = vadd.f32 %v2461, %v2781
    %v2868 = vadd.f32 %v2462, %v2786
    %v2869 = vadd.f32 %v2463, %v2789
    %v2870 = vadd.f32 %v2464, %v2794
    %v2871 = vadd.f32 %v2465, %v2797
    %v2872 = vadd.f32 %v2466, %v2802
    %v2873 = vadd.f32 %v2467, %v2805
    %v2874 = vadd.f32 %v2468, %v2810
    %v2875 = vadd.f32 %v2469, %v2813
    %v2876 = vadd.f32 %v2470, %v2818
    %v2877 = vadd.f32 %v2471, %v2821
    %v2878 = vadd.f32 %v2472, %v2826
    %v2879 = vadd.f32 %v2473, %v2829
    %v2880 = vadd.f32 %v2474, %v2834
    %v2881 = vadd.f32 %v2475, %v2837
    %v2882 = vadd.f32 %v2476, %v2842
    %v2883 = vadd.f32 %v2477, %v2845
    %v2884 = vpack.c.bf16 %v1256, %v1255
    %v2885 = vpack.c.bf16 %v1258, %v1257
    %v2886 = vpack.c.bf16 %v1260, %v1259
    %v2887 = vpack.c.bf16 %v1262, %v1261
    %v2888 = vpack.c.bf16 %v1264, %v1263
    %v2889 = vpack.c.bf16 %v1266, %v1265
    %v2890 = vpack.c.bf16 %v1268, %v1267
    %v2891 = vpack.c.bf16 %v1270, %v1269
    %v2892 = vpack.c.bf16 %v1272, %v1271
    %v2893 = vpack.c.bf16 %v1274, %v1273
    %v2894 = vpack.c.bf16 %v1276, %v1275
    %v2895 = vpack.c.bf16 %v1278, %v1277
    %v2896 = vpack.c.bf16 %v1280, %v1279
    %v2897 = vpack.c.bf16 %v1282, %v1281
    %v2898 = vpack.c.bf16 %v1284, %v1283
    %v2899 = vpack.c.bf16 %v1286, %v1285
    %v2900 = vpack.c.bf16 %v1288, %v1287
    %v2901 = vpack.c.bf16 %v1290, %v1289
    %v2906 = vunpack.c.l.b16 %v1307
    %v2907 = vunpack.c.l.b16 %v1308
    %v2908 = vunpack.c.l.b16 %v1309
    %v2909 = vunpack.c.l.b16 %v1310
    %v2910 = vpack.c.b16 %v2907, %v2906
    %v2911 = vpack.c.b16 %v2909, %v2908
    %v2915 = vsel %vm1597, %v2884, 0
    %v2918 = vsel %vm1597, %v2885, 0
    %v2921 = vsel %vm1597, %v2886, 0
    %v2924 = vsel %vm1597, %v2887, 0
    %v2927 = vsel %vm1597, %v2888, 0
    %v2930 = vsel %vm1597, %v2889, 0
    %v2933 = vsel %vm1597, %v2890, 0
    %v2936 = vsel %vm1597, %v2891, 0
    %v2939 = vsel %vm1597, %v2892, 0
    %v2942 = vsel %vm1597, %v2893, 0
    %v2945 = vsel %vm1597, %v2894, 0
    %v2948 = vsel %vm1597, %v2895, 0
    %v2951 = vsel %vm1597, %v2896, 0
    %v2954 = vsel %vm1597, %v2897, 0
    %v2957 = vsel %vm1597, %v2898, 0
    %v2960 = vsel %vm1597, %v2899, 0
    %v2963 = vsel %vm1597, %v2900, 0
    %v2966 = vsel %vm1597, %v2901, 0
    %2968 = vmatprep.subr.bf16.mxu0 0
    %2969 = vmatpush1.bf16.msra.mxu0 %v2910
    %2970 = vmatprep.subr.bf16.mxu0 0
    %2971 = vmatpush1.bf16.msra.mxu0 %v2911
    %2972 = vmatprep.subr.bf16.mxu0 0
    %2973 = vmatpush1.bf16.msra.mxu0 0
    %2974 = vmatprep.subr.bf16.mxu0 0
    %2975 = vmatpush1.bf16.msra.mxu0 0
    %2976 = vmatprep.subr.bf16.mxu0 0
    %2977 = vmatpush1.bf16.msra.mxu0 0
    %2978 = vmatprep.subr.bf16.mxu0 0
    %2979 = vmatpush1.bf16.msra.mxu0 0
    %2980 = vmatprep.subr.bf16.mxu0 0
    %2981 = vmatpush1.bf16.msra.mxu0 0
    %2982 = vmatprep.subr.bf16.mxu0 0
    %2983 = vmatpush1.bf16.msra.mxu0 0
    %2984 = vmatprep.subr.bf16.mxu0 0
    %2985 = vmatpush1.bf16.msra.mxu0 0
    %2986 = vmatprep.subr.bf16.mxu0 0
    %2987 = vmatpush1.bf16.msra.mxu0 0
    %2988 = vmatprep.subr.bf16.mxu0 0
    %2989 = vmatpush1.bf16.msra.mxu0 0
    %2990 = vmatprep.subr.bf16.mxu0 0
    %2991 = vmatpush1.bf16.msra.mxu0 0
    %2992 = vmatprep.subr.bf16.mxu0 0
    %2993 = vmatpush1.bf16.msra.mxu0 0
    %2994 = vmatprep.subr.bf16.mxu0 0
    %2995 = vmatpush1.bf16.msra.mxu0 0
    %2996 = vmatprep.subr.bf16.mxu0 0
    %2997 = vmatpush1.bf16.msra.mxu0 0
    %2998 = vmatprep.subr.bf16.mxu0 0
    %2999 = vmatpush1.bf16.msra.mxu0 0
    %3000 = vmatprep.mubr.bf16.mxu0 0
    %3001 = vmatmul.mubr.bf16.gmra.mrb[0].mxu0 %v2915
    %v3002 = vpop.f32.mrb[0].mxu0
    %v3003 = vadd.f32 0.0, %v3002
    %v3004 = vpop.f32.mrb[0].mxu0
    %v3005 = vpop.f32.mrb[0].mxu0
    %v3006 = vadd.f32 0.0, %v3005
    %v3007 = vpop.f32.mrb[0].mxu0
    %3008 = vmatprep.mubr.bf16.mxu0 0
    %3009 = vmatmul.mubr.bf16.gmra.mrb[0].mxu0 %v2918
    %v3010 = vpop.f32.mrb[0].mxu0
    %v3011 = vadd.f32 0.0, %v3010
    %v3012 = vpop.f32.mrb[0].mxu0
    %v3013 = vpop.f32.mrb[0].mxu0
    %v3014 = vadd.f32 0.0, %v3013
    %v3015 = vpop.f32.mrb[0].mxu0
    %3016 = vmatprep.mubr.bf16.mxu0 0
    %3017 = vmatmul.mubr.bf16.gmra.mrb[0].mxu0 %v2921
    %v3018 = vpop.f32.mrb[0].mxu0
    %v3019 = vadd.f32 0.0, %v3018
    %v3020 = vpop.f32.mrb[0].mxu0
    %v3021 = vpop.f32.mrb[0].mxu0
    %v3022 = vadd.f32 0.0, %v3021
    %v3023 = vpop.f32.mrb[0].mxu0
    %3024 = vmatprep.mubr.bf16.mxu0 0
    %3025 = vmatmul.mubr.bf16.gmra.mrb[0].mxu0 %v2924
    %v3026 = vpop.f32.mrb[0].mxu0
    %v3027 = vadd.f32 0.0, %v3026
    %v3028 = vpop.f32.mrb[0].mxu0
    %v3029 = vpop.f32.mrb[0].mxu0
    %v3030 = vadd.f32 0.0, %v3029
    %v3031 = vpop.f32.mrb[0].mxu0
    %3032 = vmatprep.mubr.bf16.mxu0 0
    %3033 = vmatmul.mubr.bf16.gmra.mrb[0].mxu0 %v2927
    %v3034 = vpop.f32.mrb[0].mxu0
    %v3035 = vadd.f32 0.0, %v3034
    %v3036 = vpop.f32.mrb[0].mxu0
    %v3037 = vpop.f32.mrb[0].mxu0
    %v3038 = vadd.f32 0.0, %v3037
    %v3039 = vpop.f32.mrb[0].mxu0
    %3040 = vmatprep.mubr.bf16.mxu0 0
    %3041 = vmatmul.mubr.bf16.gmra.mrb[0].mxu0 %v2930
    %v3042 = vpop.f32.mrb[0].mxu0
    %v3043 = vadd.f32 0.0, %v3042
    %v3044 = vpop.f32.mrb[0].mxu0
    %v3045 = vpop.f32.mrb[0].mxu0
    %v3046 = vadd.f32 0.0, %v3045
    %v3047 = vpop.f32.mrb[0].mxu0
    %3048 = vmatprep.mubr.bf16.mxu0 0
    %3049 = vmatmul.mubr.bf16.gmra.mrb[0].mxu0 %v2933
    %v3050 = vpop.f32.mrb[0].mxu0
    %v3051 = vadd.f32 0.0, %v3050
    %v3052 = vpop.f32.mrb[0].mxu0
    %v3053 = vpop.f32.mrb[0].mxu0
    %v3054 = vadd.f32 0.0, %v3053
    %v3055 = vpop.f32.mrb[0].mxu0
    %3056 = vmatprep.mubr.bf16.mxu0 0
    %3057 = vmatmul.mubr.bf16.gmra.mrb[0].mxu0 %v2936
    %v3058 = vpop.f32.mrb[0].mxu0
    %v3059 = vadd.f32 0.0, %v3058
    %v3060 = vpop.f32.mrb[0].mxu0
    %v3061 = vpop.f32.mrb[0].mxu0
    %v3062 = vadd.f32 0.0, %v3061
    %v3063 = vpop.f32.mrb[0].mxu0
    %3064 = vmatprep.mubr.bf16.mxu0 0
    %3065 = vmatmul.mubr.bf16.gmra.mrb[0].mxu0 %v2939
    %v3066 = vpop.f32.mrb[0].mxu0
    %v3067 = vadd.f32 0.0, %v3066
    %v3068 = vpop.f32.mrb[0].mxu0
    %v3069 = vpop.f32.mrb[0].mxu0
    %v3070 = vadd.f32 0.0, %v3069
    %v3071 = vpop.f32.mrb[0].mxu0
    %3072 = vmatprep.mubr.bf16.mxu0 0
    %3073 = vmatmul.mubr.bf16.gmra.mrb[0].mxu0 %v2942
    %v3074 = vpop.f32.mrb[0].mxu0
    %v3075 = vadd.f32 0.0, %v3074
    %v3076 = vpop.f32.mrb[0].mxu0
    %v3077 = vpop.f32.mrb[0].mxu0
    %v3078 = vadd.f32 0.0, %v3077
    %v3079 = vpop.f32.mrb[0].mxu0
    %3080 = vmatprep.mubr.bf16.mxu0 0
    %3081 = vmatmul.mubr.bf16.gmra.mrb[0].mxu0 %v2945
    %v3082 = vpop.f32.mrb[0].mxu0
    %v3083 = vadd.f32 0.0, %v3082
    %v3084 = vpop.f32.mrb[0].mxu0
    %v3085 = vpop.f32.mrb[0].mxu0
    %v3086 = vadd.f32 0.0, %v3085
    %v3087 = vpop.f32.mrb[0].mxu0
    %3088 = vmatprep.mubr.bf16.mxu0 0
    %3089 = vmatmul.mubr.bf16.gmra.mrb[0].mxu0 %v2948
    %v3090 = vpop.f32.mrb[0].mxu0
    %v3091 = vadd.f32 0.0, %v3090
    %v3092 = vpop.f32.mrb[0].mxu0
    %v3093 = vpop.f32.mrb[0].mxu0
    %v3094 = vadd.f32 0.0, %v3093
    %v3095 = vpop.f32.mrb[0].mxu0
    %3096 = vmatprep.mubr.bf16.mxu0 0
    %3097 = vmatmul.mubr.bf16.gmra.mrb[0].mxu0 %v2951
    %v3098 = vpop.f32.mrb[0].mxu0
    %v3099 = vadd.f32 0.0, %v3098
    %v3100 = vpop.f32.mrb[0].mxu0
    %v3101 = vpop.f32.mrb[0].mxu0
    %v3102 = vadd.f32 0.0, %v3101
    %v3103 = vpop.f32.mrb[0].mxu0
    %3104 = vmatprep.mubr.bf16.mxu0 0
    %3105 = vmatmul.mubr.bf16.gmra.mrb[0].mxu0 %v2954
    %v3106 = vpop.f32.mrb[0].mxu0
    %v3107 = vadd.f32 0.0, %v3106
    %v3108 = vpop.f32.mrb[0].mxu0
    %v3109 = vpop.f32.mrb[0].mxu0
    %v3110 = vadd.f32 0.0, %v3109
    %v3111 = vpop.f32.mrb[0].mxu0
    %3112 = vmatprep.mubr.bf16.mxu0 0
    %3113 = vmatmul.mubr.bf16.gmra.mrb[0].mxu0 %v2957
    %v3114 = vpop.f32.mrb[0].mxu0
    %v3115 = vadd.f32 0.0, %v3114
    %v3116 = vpop.f32.mrb[0].mxu0
    %v3117 = vpop.f32.mrb[0].mxu0
    %v3118 = vadd.f32 0.0, %v3117
    %v3119 = vpop.f32.mrb[0].mxu0
    %3120 = vmatprep.mubr.bf16.mxu0 0
    %3121 = vmatmul.mubr.bf16.gmra.mrb[0].mxu0 %v2960
    %v3122 = vpop.f32.mrb[0].mxu0
    %v3123 = vadd.f32 0.0, %v3122
    %v3124 = vpop.f32.mrb[0].mxu0
    %v3125 = vpop.f32.mrb[0].mxu0
    %v3126 = vadd.f32 0.0, %v3125
    %v3127 = vpop.f32.mrb[0].mxu0
    %3128 = vmatprep.mubr.bf16.mxu0 0
    %3129 = vmatmul.mubr.bf16.gmra.mrb[0].mxu0 %v2963
    %v3130 = vpop.f32.mrb[0].mxu0
    %v3131 = vadd.f32 0.0, %v3130
    %v3132 = vpop.f32.mrb[0].mxu0
    %v3133 = vpop.f32.mrb[0].mxu0
    %v3134 = vadd.f32 0.0, %v3133
    %v3135 = vpop.f32.mrb[0].mxu0
    %3136 = vmatprep.mubr.bf16.mxu0 0
    %3137 = vmatmul.mubr.bf16.gmra.mrb[0].mxu0 %v2966
    %v3138 = vpop.f32.mrb[0].mxu0
    %v3139 = vadd.f32 0.0, %v3138
    %v3140 = vpop.f32.mrb[0].mxu0
    %v3141 = vpop.f32.mrb[0].mxu0
    %v3142 = vadd.f32 0.0, %v3141
    %v3143 = vpop.f32.mrb[0].mxu0
    %3144 = vdwg.mxu0
    %v3145 = vadd.f32 %v2848, %v3003
    %v3146 = vadd.f32 %v2849, %v3006
    %v3147 = vadd.f32 %v2850, %v3011
    %v3148 = vadd.f32 %v2851, %v3014
    %v3149 = vadd.f32 %v2852, %v3019
    %v3150 = vadd.f32 %v2853, %v3022
    %v3151 = vadd.f32 %v2854, %v3027
    %v3152 = vadd.f32 %v2855, %v3030
    %v3153 = vadd.f32 %v2856, %v3035
    %v3154 = vadd.f32 %v2857, %v3038
    %v3155 = vadd.f32 %v2858, %v3043
    %v3156 = vadd.f32 %v2859, %v3046
    %v3157 = vadd.f32 %v2860, %v3051
    %v3158 = vadd.f32 %v2861, %v3054
    %v3159 = vadd.f32 %v2862, %v3059
    %v3160 = vadd.f32 %v2863, %v3062
    %v3161 = vadd.f32 %v2864, %v3067
    %v3162 = vadd.f32 %v2865, %v3070
    %v3163 = vadd.f32 %v2866, %v3075
    %v3164 = vadd.f32 %v2867, %v3078
    %v3165 = vadd.f32 %v2868, %v3083
    %v3166 = vadd.f32 %v2869, %v3086
    %v3167 = vadd.f32 %v2870, %v3091
    %v3168 = vadd.f32 %v2871, %v3094
    %v3169 = vadd.f32 %v2872, %v3099
    %v3170 = vadd.f32 %v2873, %v3102
    %v3171 = vadd.f32 %v2874, %v3107
    %v3172 = vadd.f32 %v2875, %v3110
    %v3173 = vadd.f32 %v2876, %v3115
    %v3174 = vadd.f32 %v2877, %v3118
    %v3175 = vadd.f32 %v2878, %v3123
    %v3176 = vadd.f32 %v2879, %v3126
    %v3177 = vadd.f32 %v2880, %v3131
    %v3178 = vadd.f32 %v2881, %v3134
    %v3179 = vadd.f32 %v2882, %v3139
    %v3180 = vadd.f32 %v2883, %v3142
    %v3181 = vrot.slane %v1255, 1
    %v3182 = vrot.slane %v1256, 1
    %v3183 = vrot.slane %v1257, 1
    %v3184 = vrot.slane %v1258, 1
    %v3185 = vrot.slane %v1259, 1
    %v3186 = vrot.slane %v1260, 1
    %v3187 = vrot.slane %v1261, 1
    %v3188 = vrot.slane %v1262, 1
    %v3189 = vrot.slane %v1263, 1
    %v3190 = vrot.slane %v1264, 1
    %v3191 = vrot.slane %v1265, 1
    %v3192 = vrot.slane %v1266, 1
    %v3193 = vrot.slane %v1267, 1
    %v3194 = vrot.slane %v1268, 1
    %v3195 = vrot.slane %v1269, 1
    %v3196 = vrot.slane %v1270, 1
    %v3197 = vrot.slane %v1271, 1
    %v3198 = vrot.slane %v1272, 1
    %v3199 = vrot.slane %v1273, 1
    %v3200 = vrot.slane %v1274, 1
    %v3201 = vrot.slane %v1275, 1
    %v3202 = vrot.slane %v1276, 1
    %v3203 = vrot.slane %v1277, 1
    %v3204 = vrot.slane %v1278, 1
    %v3205 = vrot.slane %v1279, 1
    %v3206 = vrot.slane %v1280, 1
    %v3207 = vrot.slane %v1281, 1
    %v3208 = vrot.slane %v1282, 1
    %v3209 = vrot.slane %v1283, 1
    %v3210 = vrot.slane %v1284, 1
    %v3211 = vrot.slane %v1285, 1
    %v3212 = vrot.slane %v1286, 1
    %v3213 = vrot.slane %v1287, 1
    %v3214 = vrot.slane %v1288, 1
    %v3215 = vrot.slane %v1289, 1
    %v3216 = vrot.slane %v1290, 1
    %vm3217 = vcmp.lt.s32.totalorder %v1366, 7
    %v3218 = vsel %vm3217, %v3215, %v3216
    %v3219 = vsel %vm3217, %v3214, %v3215
    %v3220 = vsel %vm3217, %v3213, %v3214
    %v3221 = vsel %vm3217, %v3212, %v3213
    %v3222 = vsel %vm3217, %v3211, %v3212
    %v3223 = vsel %vm3217, %v3210, %v3211
    %v3224 = vsel %vm3217, %v3209, %v3210
    %v3225 = vsel %vm3217, %v3208, %v3209
    %v3226 = vsel %vm3217, %v3207, %v3208
    %v3227 = vsel %vm3217, %v3206, %v3207
    %v3228 = vsel %vm3217, %v3205, %v3206
    %v3229 = vsel %vm3217, %v3204, %v3205
    %v3230 = vsel %vm3217, %v3203, %v3204
    %v3231 = vsel %vm3217, %v3202, %v3203
    %v3232 = vsel %vm3217, %v3201, %v3202
    %v3233 = vsel %vm3217, %v3200, %v3201
    %v3234 = vsel %vm3217, %v3199, %v3200
    %v3235 = vsel %vm3217, %v3198, %v3199
    %v3236 = vsel %vm3217, %v3197, %v3198
    %v3237 = vsel %vm3217, %v3196, %v3197
    %v3238 = vsel %vm3217, %v3195, %v3196
    %v3239 = vsel %vm3217, %v3194, %v3195
    %v3240 = vsel %vm3217, %v3193, %v3194
    %v3241 = vsel %vm3217, %v3192, %v3193
    %v3242 = vsel %vm3217, %v3191, %v3192
    %v3243 = vsel %vm3217, %v3190, %v3191
    %v3244 = vsel %vm3217, %v3189, %v3190
    %v3245 = vsel %vm3217, %v3188, %v3189
    %v3246 = vsel %vm3217, %v3187, %v3188
    %v3247 = vsel %vm3217, %v3186, %v3187
    %v3248 = vsel %vm3217, %v3185, %v3186
    %v3249 = vsel %vm3217, %v3184, %v3185
    %v3250 = vsel %vm3217, %v3183, %v3184
    %v3251 = vsel %vm3217, %v3182, %v3183
    %v3252 = vsel %vm3217, %v3181, %v3182
    %v3253 = vsel %vm3217, %v3216, %v3181
    %v3254 = vmul.f32 %v3252, %v681
    %v3255 = vmul.f32 %v3251, %v685
    %v3256 = vmul.f32 %v3250, %v689
    %v3257 = vmul.f32 %v3249, %v693
    %v3258 = vmul.f32 %v3248, %v697
    %v3259 = vmul.f32 %v3247, %v701
    %v3260 = vmul.f32 %v3246, %v705
    %v3261 = vmul.f32 %v3245, %v709
    %v3262 = vmul.f32 %v3244, %v713
    %v3263 = vmul.f32 %v3243, %v717
    %v3264 = vmul.f32 %v3242, %v721
    %v3265 = vmul.f32 %v3241, %v725
    %v3266 = vmul.f32 %v3240, %v729
    %v3267 = vmul.f32 %v3239, %v733
    %v3268 = vmul.f32 %v3238, %v737
    %v3269 = vmul.f32 %v3237, %v741
    %v3270 = vmul.f32 %v3236, %v745
    %v3271 = vmul.f32 %v3235, %v749
    %v3272 = vmul.f32 %v3234, %v753
    %v3273 = vmul.f32 %v3233, %v757
    %v3274 = vmul.f32 %v3232, %v761
    %v3275 = vmul.f32 %v3231, %v765
    %v3276 = vmul.f32 %v3230, %v769
    %v3277 = vmul.f32 %v3229, %v773
    %v3278 = vmul.f32 %v3228, %v777
    %v3279 = vmul.f32 %v3227, %v781
    %v3280 = vmul.f32 %v3226, %v785
    %v3281 = vmul.f32 %v3225, %v789
    %v3282 = vmul.f32 %v3224, %v793
    %v3283 = vmul.f32 %v3223, %v797
    %v3284 = vmul.f32 %v3222, %v801
    %v3285 = vmul.f32 %v3221, %v805
    %v3286 = vmul.f32 %v3220, %v809
    %v3287 = vmul.f32 %v3219, %v813
    %v3288 = vmul.f32 %v3218, %v817
    %v3289 = vmul.f32 %v3253, %v821
    %v3290 = vpack.c.bf16 %v3255, %v3254
    %v3291 = vpack.c.bf16 %v3257, %v3256
    %v3292 = vpack.c.bf16 %v3259, %v3258
    %v3293 = vpack.c.bf16 %v3261, %v3260
    %v3294 = vpack.c.bf16 %v3263, %v3262
    %v3295 = vpack.c.bf16 %v3265, %v3264
    %v3296 = vpack.c.bf16 %v3267, %v3266
    %v3297 = vpack.c.bf16 %v3269, %v3268
    %v3298 = vpack.c.bf16 %v3271, %v3270
    %v3299 = vpack.c.bf16 %v3273, %v3272
    %v3300 = vpack.c.bf16 %v3275, %v3274
    %v3301 = vpack.c.bf16 %v3277, %v3276
    %v3302 = vpack.c.bf16 %v3279, %v3278
    %v3303 = vpack.c.bf16 %v3281, %v3280
    %v3304 = vpack.c.bf16 %v3283, %v3282
    %v3305 = vpack.c.bf16 %v3285, %v3284
    %v3306 = vpack.c.bf16 %v3287, %v3286
    %v3307 = vpack.c.bf16 %v3289, %v3288
    %v3312 = vunpack.c.l.b16 %v1311
    %v3313 = vunpack.c.l.b16 %v1312
    %v3314 = vunpack.c.l.b16 %v1313
    %v3315 = vunpack.c.l.b16 %v1314
    %v3316 = vpack.c.b16 %v3313, %v3312
    %v3317 = vpack.c.b16 %v3315, %v3314
    %v3321 = vsel %vm1597, %v3290, 0
    %v3324 = vsel %vm1597, %v3291, 0
    %v3327 = vsel %vm1597, %v3292, 0
    %v3330 = vsel %vm1597, %v3293, 0
    %v3333 = vsel %vm1597, %v3294, 0
    %v3336 = vsel %vm1597, %v3295, 0
    %v3339 = vsel %vm1597, %v3296, 0
    %v3342 = vsel %vm1597, %v3297, 0
    %v3345 = vsel %vm1597, %v3298, 0
    %v3348 = vsel %vm1597, %v3299, 0
    %v3351 = vsel %vm1597, %v3300, 0
    %v3354 = vsel %vm1597, %v3301, 0
    %v3357 = vsel %vm1597, %v3302, 0
    %v3360 = vsel %vm1597, %v3303, 0
    %v3363 = vsel %vm1597, %v3304, 0
    %v3366 = vsel %vm1597, %v3305, 0
    %v3369 = vsel %vm1597, %v3306, 0
    %v3372 = vsel %vm1597, %v3307, 0
    %3374 = vmatprep.subr.bf16.mxu0 0
    %3375 = vmatpush1.bf16.msra.mxu0 %v3316
    %3376 = vmatprep.subr.bf16.mxu0 0
    %3377 = vmatpush1.bf16.msra.mxu0 %v3317
    %3378 = vmatprep.subr.bf16.mxu0 0
    %3379 = vmatpush1.bf16.msra.mxu0 0
    %3380 = vmatprep.subr.bf16.mxu0 0
    %3381 = vmatpush1.bf16.msra.mxu0 0
    %3382 = vmatprep.subr.bf16.mxu0 0
    %3383 = vmatpush1.bf16.msra.mxu0 0
    %3384 = vmatprep.subr.bf16.mxu0 0
    %3385 = vmatpush1.bf16.msra.mxu0 0
    %3386 = vmatprep.subr.bf16.mxu0 0
    %3387 = vmatpush1.bf16.msra.mxu0 0
    %3388 = vmatprep.subr.bf16.mxu0 0
    %3389 = vmatpush1.bf16.msra.mxu0 0
    %3390 = vmatprep.subr.bf16.mxu0 0
    %3391 = vmatpush1.bf16.msra.mxu0 0
    %3392 = vmatprep.subr.bf16.mxu0 0
    %3393 = vmatpush1.bf16.msra.mxu0 0
    %3394 = vmatprep.subr.bf16.mxu0 0
    %3395 = vmatpush1.bf16.msra.mxu0 0
    %3396 = vmatprep.subr.bf16.mxu0 0
    %3397 = vmatpush1.bf16.msra.mxu0 0
    %3398 = vmatprep.subr.bf16.mxu0 0
    %3399 = vmatpush1.bf16.msra.mxu0 0
    %3400 = vmatprep.subr.bf16.mxu0 0
    %3401 = vmatpush1.bf16.msra.mxu0 0
    %3402 = vmatprep.subr.bf16.mxu0 0
    %3403 = vmatpush1.bf16.msra.mxu0 0
    %3404 = vmatprep.subr.bf16.mxu0 0
    %3405 = vmatpush1.bf16.msra.mxu0 0
    %3406 = vmatprep.mubr.bf16.mxu0 0
    %3407 = vmatmul.mubr.bf16.gmra.mrb[0].mxu0 %v3321
    %v3408 = vpop.f32.mrb[0].mxu0
    %v3409 = vadd.f32 0.0, %v3408
    %v3410 = vpop.f32.mrb[0].mxu0
    %v3411 = vpop.f32.mrb[0].mxu0
    %v3412 = vadd.f32 0.0, %v3411
    %v3413 = vpop.f32.mrb[0].mxu0
    %3414 = vmatprep.mubr.bf16.mxu0 0
    %3415 = vmatmul.mubr.bf16.gmra.mrb[0].mxu0 %v3324
    %v3416 = vpop.f32.mrb[0].mxu0
    %v3417 = vadd.f32 0.0, %v3416
    %v3418 = vpop.f32.mrb[0].mxu0
    %v3419 = vpop.f32.mrb[0].mxu0
    %v3420 = vadd.f32 0.0, %v3419
    %v3421 = vpop.f32.mrb[0].mxu0
    %3422 = vmatprep.mubr.bf16.mxu0 0
    %3423 = vmatmul.mubr.bf16.gmra.mrb[0].mxu0 %v3327
    %v3424 = vpop.f32.mrb[0].mxu0
    %v3425 = vadd.f32 0.0, %v3424
    %v3426 = vpop.f32.mrb[0].mxu0
    %v3427 = vpop.f32.mrb[0].mxu0
    %v3428 = vadd.f32 0.0, %v3427
    %v3429 = vpop.f32.mrb[0].mxu0
    %3430 = vmatprep.mubr.bf16.mxu0 0
    %3431 = vmatmul.mubr.bf16.gmra.mrb[0].mxu0 %v3330
    %v3432 = vpop.f32.mrb[0].mxu0
    %v3433 = vadd.f32 0.0, %v3432
    %v3434 = vpop.f32.mrb[0].mxu0
    %v3435 = vpop.f32.mrb[0].mxu0
    %v3436 = vadd.f32 0.0, %v3435
    %v3437 = vpop.f32.mrb[0].mxu0
    %3438 = vmatprep.mubr.bf16.mxu0 0
    %3439 = vmatmul.mubr.bf16.gmra.mrb[0].mxu0 %v3333
    %v3440 = vpop.f32.mrb[0].mxu0
    %v3441 = vadd.f32 0.0, %v3440
    %v3442 = vpop.f32.mrb[0].mxu0
    %v3443 = vpop.f32.mrb[0].mxu0
    %v3444 = vadd.f32 0.0, %v3443
    %v3445 = vpop.f32.mrb[0].mxu0
    %3446 = vmatprep.mubr.bf16.mxu0 0
    %3447 = vmatmul.mubr.bf16.gmra.mrb[0].mxu0 %v3336
    %v3448 = vpop.f32.mrb[0].mxu0
    %v3449 = vadd.f32 0.0, %v3448
    %v3450 = vpop.f32.mrb[0].mxu0
    %v3451 = vpop.f32.mrb[0].mxu0
    %v3452 = vadd.f32 0.0, %v3451
    %v3453 = vpop.f32.mrb[0].mxu0
    %3454 = vmatprep.mubr.bf16.mxu0 0
    %3455 = vmatmul.mubr.bf16.gmra.mrb[0].mxu0 %v3339
    %v3456 = vpop.f32.mrb[0].mxu0
    %v3457 = vadd.f32 0.0, %v3456
    %v3458 = vpop.f32.mrb[0].mxu0
    %v3459 = vpop.f32.mrb[0].mxu0
    %v3460 = vadd.f32 0.0, %v3459
    %v3461 = vpop.f32.mrb[0].mxu0
    %3462 = vmatprep.mubr.bf16.mxu0 0
    %3463 = vmatmul.mubr.bf16.gmra.mrb[0].mxu0 %v3342
    %v3464 = vpop.f32.mrb[0].mxu0
    %v3465 = vadd.f32 0.0, %v3464
    %v3466 = vpop.f32.mrb[0].mxu0
    %v3467 = vpop.f32.mrb[0].mxu0
    %v3468 = vadd.f32 0.0, %v3467
    %v3469 = vpop.f32.mrb[0].mxu0
    %3470 = vmatprep.mubr.bf16.mxu0 0
    %3471 = vmatmul.mubr.bf16.gmra.mrb[0].mxu0 %v3345
    %v3472 = vpop.f32.mrb[0].mxu0
    %v3473 = vadd.f32 0.0, %v3472
    %v3474 = vpop.f32.mrb[0].mxu0
    %v3475 = vpop.f32.mrb[0].mxu0
    %v3476 = vadd.f32 0.0, %v3475
    %v3477 = vpop.f32.mrb[0].mxu0
    %3478 = vmatprep.mubr.bf16.mxu0 0
    %3479 = vmatmul.mubr.bf16.gmra.mrb[0].mxu0 %v3348
    %v3480 = vpop.f32.mrb[0].mxu0
    %v3481 = vadd.f32 0.0, %v3480
    %v3482 = vpop.f32.mrb[0].mxu0
    %v3483 = vpop.f32.mrb[0].mxu0
    %v3484 = vadd.f32 0.0, %v3483
    %v3485 = vpop.f32.mrb[0].mxu0
    %3486 = vmatprep.mubr.bf16.mxu0 0
    %3487 = vmatmul.mubr.bf16.gmra.mrb[0].mxu0 %v3351
    %v3488 = vpop.f32.mrb[0].mxu0
    %v3489 = vadd.f32 0.0, %v3488
    %v3490 = vpop.f32.mrb[0].mxu0
    %v3491 = vpop.f32.mrb[0].mxu0
    %v3492 = vadd.f32 0.0, %v3491
    %v3493 = vpop.f32.mrb[0].mxu0
    %3494 = vmatprep.mubr.bf16.mxu0 0
    %3495 = vmatmul.mubr.bf16.gmra.mrb[0].mxu0 %v3354
    %v3496 = vpop.f32.mrb[0].mxu0
    %v3497 = vadd.f32 0.0, %v3496
    %v3498 = vpop.f32.mrb[0].mxu0
    %v3499 = vpop.f32.mrb[0].mxu0
    %v3500 = vadd.f32 0.0, %v3499
    %v3501 = vpop.f32.mrb[0].mxu0
    %3502 = vmatprep.mubr.bf16.mxu0 0
    %3503 = vmatmul.mubr.bf16.gmra.mrb[0].mxu0 %v3357
    %v3504 = vpop.f32.mrb[0].mxu0
    %v3505 = vadd.f32 0.0, %v3504
    %v3506 = vpop.f32.mrb[0].mxu0
    %v3507 = vpop.f32.mrb[0].mxu0
    %v3508 = vadd.f32 0.0, %v3507
    %v3509 = vpop.f32.mrb[0].mxu0
    %3510 = vmatprep.mubr.bf16.mxu0 0
    %3511 = vmatmul.mubr.bf16.gmra.mrb[0].mxu0 %v3360
    %v3512 = vpop.f32.mrb[0].mxu0
    %v3513 = vadd.f32 0.0, %v3512
    %v3514 = vpop.f32.mrb[0].mxu0
    %v3515 = vpop.f32.mrb[0].mxu0
    %v3516 = vadd.f32 0.0, %v3515
    %v3517 = vpop.f32.mrb[0].mxu0
    %3518 = vmatprep.mubr.bf16.mxu0 0
    %3519 = vmatmul.mubr.bf16.gmra.mrb[0].mxu0 %v3363
    %v3520 = vpop.f32.mrb[0].mxu0
    %v3521 = vadd.f32 0.0, %v3520
    %v3522 = vpop.f32.mrb[0].mxu0
    %v3523 = vpop.f32.mrb[0].mxu0
    %v3524 = vadd.f32 0.0, %v3523
    %v3525 = vpop.f32.mrb[0].mxu0
    %3526 = vmatprep.mubr.bf16.mxu0 0
    %3527 = vmatmul.mubr.bf16.gmra.mrb[0].mxu0 %v3366
    %v3528 = vpop.f32.mrb[0].mxu0
    %v3529 = vadd.f32 0.0, %v3528
    %v3530 = vpop.f32.mrb[0].mxu0
    %v3531 = vpop.f32.mrb[0].mxu0
    %v3532 = vadd.f32 0.0, %v3531
    %v3533 = vpop.f32.mrb[0].mxu0
    %3534 = vmatprep.mubr.bf16.mxu0 0
    %3535 = vmatmul.mubr.bf16.gmra.mrb[0].mxu0 %v3369
    %v3536 = vpop.f32.mrb[0].mxu0
    %v3537 = vadd.f32 0.0, %v3536
    %v3538 = vpop.f32.mrb[0].mxu0
    %v3539 = vpop.f32.mrb[0].mxu0
    %v3540 = vadd.f32 0.0, %v3539
    %v3541 = vpop.f32.mrb[0].mxu0
    %3542 = vmatprep.mubr.bf16.mxu0 0
    %3543 = vmatmul.mubr.bf16.gmra.mrb[0].mxu0 %v3372
    %v3544 = vpop.f32.mrb[0].mxu0
    %v3545 = vadd.f32 0.0, %v3544
    %v3546 = vpop.f32.mrb[0].mxu0
    %v3547 = vpop.f32.mrb[0].mxu0
    %v3548 = vadd.f32 0.0, %v3547
    %v3549 = vpop.f32.mrb[0].mxu0
    %3550 = vdwg.mxu0
    %v3551 = vadd.f32 %v3145, %v3409
    %v3552 = vadd.f32 %v3146, %v3412
    %v3553 = vadd.f32 %v3147, %v3417
    %v3554 = vadd.f32 %v3148, %v3420
    %v3555 = vadd.f32 %v3149, %v3425
    %v3556 = vadd.f32 %v3150, %v3428
    %v3557 = vadd.f32 %v3151, %v3433
    %v3558 = vadd.f32 %v3152, %v3436
    %v3559 = vadd.f32 %v3153, %v3441
    %v3560 = vadd.f32 %v3154, %v3444
    %v3561 = vadd.f32 %v3155, %v3449
    %v3562 = vadd.f32 %v3156, %v3452
    %v3563 = vadd.f32 %v3157, %v3457
    %v3564 = vadd.f32 %v3158, %v3460
    %v3565 = vadd.f32 %v3159, %v3465
    %v3566 = vadd.f32 %v3160, %v3468
    %v3567 = vadd.f32 %v3161, %v3473
    %v3568 = vadd.f32 %v3162, %v3476
    %v3569 = vadd.f32 %v3163, %v3481
    %v3570 = vadd.f32 %v3164, %v3484
    %v3571 = vadd.f32 %v3165, %v3489
    %v3572 = vadd.f32 %v3166, %v3492
    %v3573 = vadd.f32 %v3167, %v3497
    %v3574 = vadd.f32 %v3168, %v3500
    %v3575 = vadd.f32 %v3169, %v3505
    %v3576 = vadd.f32 %v3170, %v3508
    %v3577 = vadd.f32 %v3171, %v3513
    %v3578 = vadd.f32 %v3172, %v3516
    %v3579 = vadd.f32 %v3173, %v3521
    %v3580 = vadd.f32 %v3174, %v3524
    %v3581 = vadd.f32 %v3175, %v3529
    %v3582 = vadd.f32 %v3176, %v3532
    %v3583 = vadd.f32 %v3177, %v3537
    %v3584 = vadd.f32 %v3178, %v3540
    %v3585 = vadd.f32 %v3179, %v3545
    %v3586 = vadd.f32 %v3180, %v3548
    %v3587 = vmul.f32 %v1401, %v825
    %v3588 = vmul.f32 %v1400, %v829
    %v3589 = vmul.f32 %v1399, %v833
    %v3590 = vmul.f32 %v1398, %v837
    %v3591 = vmul.f32 %v1397, %v841
    %v3592 = vmul.f32 %v1396, %v845
    %v3593 = vmul.f32 %v1395, %v849
    %v3594 = vmul.f32 %v1394, %v853
    %v3595 = vmul.f32 %v1393, %v857
    %v3596 = vmul.f32 %v1392, %v861
    %v3597 = vmul.f32 %v1391, %v865
    %v3598 = vmul.f32 %v1390, %v869
    %v3599 = vmul.f32 %v1389, %v873
    %v3600 = vmul.f32 %v1388, %v877
    %v3601 = vmul.f32 %v1387, %v881
    %v3602 = vmul.f32 %v1386, %v885
    %v3603 = vmul.f32 %v1385, %v889
    %v3604 = vmul.f32 %v1384, %v893
    %v3605 = vmul.f32 %v1383, %v897
    %v3606 = vmul.f32 %v1382, %v901
    %v3607 = vmul.f32 %v1381, %v905
    %v3608 = vmul.f32 %v1380, %v909
    %v3609 = vmul.f32 %v1379, %v913
    %v3610 = vmul.f32 %v1378, %v917
    %v3611 = vmul.f32 %v1377, %v921
    %v3612 = vmul.f32 %v1376, %v925
    %v3613 = vmul.f32 %v1375, %v929
    %v3614 = vmul.f32 %v1374, %v933
    %v3615 = vmul.f32 %v1373, %v937
    %v3616 = vmul.f32 %v1372, %v941
    %v3617 = vmul.f32 %v1371, %v945
    %v3618 = vmul.f32 %v1370, %v949
    %v3619 = vmul.f32 %v1369, %v953
    %v3620 = vmul.f32 %v1368, %v957
    %v3621 = vmul.f32 %v1403, %v961
    %v3622 = vmul.f32 %v1402, %v965
    %v3623 = vpack.c.bf16 %v3588, %v3587
    %v3624 = vpack.c.bf16 %v3590, %v3589
    %v3625 = vpack.c.bf16 %v3592, %v3591
    %v3626 = vpack.c.bf16 %v3594, %v3593
    %v3627 = vpack.c.bf16 %v3596, %v3595
    %v3628 = vpack.c.bf16 %v3598, %v3597
    %v3629 = vpack.c.bf16 %v3600, %v3599
    %v3630 = vpack.c.bf16 %v3602, %v3601
    %v3631 = vpack.c.bf16 %v3604, %v3603
    %v3632 = vpack.c.bf16 %v3606, %v3605
    %v3633 = vpack.c.bf16 %v3608, %v3607
    %v3634 = vpack.c.bf16 %v3610, %v3609
    %v3635 = vpack.c.bf16 %v3612, %v3611
    %v3636 = vpack.c.bf16 %v3614, %v3613
    %v3637 = vpack.c.bf16 %v3616, %v3615
    %v3638 = vpack.c.bf16 %v3618, %v3617
    %v3639 = vpack.c.bf16 %v3620, %v3619
    %v3640 = vpack.c.bf16 %v3622, %v3621
    %v3645 = vunpack.c.l.b16 %v1315
    %v3646 = vunpack.c.l.b16 %v1316
    %v3647 = vunpack.c.l.b16 %v1317
    %v3648 = vunpack.c.l.b16 %v1318
    %v3649 = vpack.c.b16 %v3646, %v3645
    %v3650 = vpack.c.b16 %v3648, %v3647
    %v3654 = vsel %vm1597, %v3623, 0
    %v3657 = vsel %vm1597, %v3624, 0
    %v3660 = vsel %vm1597, %v3625, 0
    %v3663 = vsel %vm1597, %v3626, 0
    %v3666 = vsel %vm1597, %v3627, 0
    %v3669 = vsel %vm1597, %v3628, 0
    %v3672 = vsel %vm1597, %v3629, 0
    %v3675 = vsel %vm1597, %v3630, 0
    %v3678 = vsel %vm1597, %v3631, 0
    %v3681 = vsel %vm1597, %v3632, 0
    %v3684 = vsel %vm1597, %v3633, 0
    %v3687 = vsel %vm1597, %v3634, 0
    %v3690 = vsel %vm1597, %v3635, 0
    %v3693 = vsel %vm1597, %v3636, 0
    %v3696 = vsel %vm1597, %v3637, 0
    %v3699 = vsel %vm1597, %v3638, 0
    %v3702 = vsel %vm1597, %v3639, 0
    %v3705 = vsel %vm1597, %v3640, 0
    %3707 = vmatprep.subr.bf16.mxu0 0
    %3708 = vmatpush1.bf16.msra.mxu0 %v3649
    %3709 = vmatprep.subr.bf16.mxu0 0
    %3710 = vmatpush1.bf16.msra.mxu0 %v3650
    %3711 = vmatprep.subr.bf16.mxu0 0
    %3712 = vmatpush1.bf16.msra.mxu0 0
    %3713 = vmatprep.subr.bf16.mxu0 0
    %3714 = vmatpush1.bf16.msra.mxu0 0
    %3715 = vmatprep.subr.bf16.mxu0 0
    %3716 = vmatpush1.bf16.msra.mxu0 0
    %3717 = vmatprep.subr.bf16.mxu0 0
    %3718 = vmatpush1.bf16.msra.mxu0 0
    %3719 = vmatprep.subr.bf16.mxu0 0
    %3720 = vmatpush1.bf16.msra.mxu0 0
    %3721 = vmatprep.subr.bf16.mxu0 0
    %3722 = vmatpush1.bf16.msra.mxu0 0
    %3723 = vmatprep.subr.bf16.mxu0 0
    %3724 = vmatpush1.bf16.msra.mxu0 0
    %3725 = vmatprep.subr.bf16.mxu0 0
    %3726 = vmatpush1.bf16.msra.mxu0 0
    %3727 = vmatprep.subr.bf16.mxu0 0
    %3728 = vmatpush1.bf16.msra.mxu0 0
    %3729 = vmatprep.subr.bf16.mxu0 0
    %3730 = vmatpush1.bf16.msra.mxu0 0
    %3731 = vmatprep.subr.bf16.mxu0 0
    %3732 = vmatpush1.bf16.msra.mxu0 0
    %3733 = vmatprep.subr.bf16.mxu0 0
    %3734 = vmatpush1.bf16.msra.mxu0 0
    %3735 = vmatprep.subr.bf16.mxu0 0
    %3736 = vmatpush1.bf16.msra.mxu0 0
    %3737 = vmatprep.subr.bf16.mxu0 0
    %3738 = vmatpush1.bf16.msra.mxu0 0
    %3739 = vmatprep.mubr.bf16.mxu0 0
    %3740 = vmatmul.mubr.bf16.gmra.mrb[0].mxu0 %v3654
    %v3741 = vpop.f32.mrb[0].mxu0
    %v3742 = vadd.f32 0.0, %v3741
    %v3743 = vpop.f32.mrb[0].mxu0
    %v3744 = vpop.f32.mrb[0].mxu0
    %v3745 = vadd.f32 0.0, %v3744
    %v3746 = vpop.f32.mrb[0].mxu0
    %3747 = vmatprep.mubr.bf16.mxu0 0
    %3748 = vmatmul.mubr.bf16.gmra.mrb[0].mxu0 %v3657
    %v3749 = vpop.f32.mrb[0].mxu0
    %v3750 = vadd.f32 0.0, %v3749
    %v3751 = vpop.f32.mrb[0].mxu0
    %v3752 = vpop.f32.mrb[0].mxu0
    %v3753 = vadd.f32 0.0, %v3752
    %v3754 = vpop.f32.mrb[0].mxu0
    %3755 = vmatprep.mubr.bf16.mxu0 0
    %3756 = vmatmul.mubr.bf16.gmra.mrb[0].mxu0 %v3660
    %v3757 = vpop.f32.mrb[0].mxu0
    %v3758 = vadd.f32 0.0, %v3757
    %v3759 = vpop.f32.mrb[0].mxu0
    %v3760 = vpop.f32.mrb[0].mxu0
    %v3761 = vadd.f32 0.0, %v3760
    %v3762 = vpop.f32.mrb[0].mxu0
    %3763 = vmatprep.mubr.bf16.mxu0 0
    %3764 = vmatmul.mubr.bf16.gmra.mrb[0].mxu0 %v3663
    %v3765 = vpop.f32.mrb[0].mxu0
    %v3766 = vadd.f32 0.0, %v3765
    %v3767 = vpop.f32.mrb[0].mxu0
    %v3768 = vpop.f32.mrb[0].mxu0
    %v3769 = vadd.f32 0.0, %v3768
    %v3770 = vpop.f32.mrb[0].mxu0
    %3771 = vmatprep.mubr.bf16.mxu0 0
    %3772 = vmatmul.mubr.bf16.gmra.mrb[0].mxu0 %v3666
    %v3773 = vpop.f32.mrb[0].mxu0
    %v3774 = vadd.f32 0.0, %v3773
    %v3775 = vpop.f32.mrb[0].mxu0
    %v3776 = vpop.f32.mrb[0].mxu0
    %v3777 = vadd.f32 0.0, %v3776
    %v3778 = vpop.f32.mrb[0].mxu0
    %3779 = vmatprep.mubr.bf16.mxu0 0
    %3780 = vmatmul.mubr.bf16.gmra.mrb[0].mxu0 %v3669
    %v3781 = vpop.f32.mrb[0].mxu0
    %v3782 = vadd.f32 0.0, %v3781
    %v3783 = vpop.f32.mrb[0].mxu0
    %v3784 = vpop.f32.mrb[0].mxu0
    %v3785 = vadd.f32 0.0, %v3784
    %v3786 = vpop.f32.mrb[0].mxu0
    %3787 = vmatprep.mubr.bf16.mxu0 0
    %3788 = vmatmul.mubr.bf16.gmra.mrb[0].mxu0 %v3672
    %v3789 = vpop.f32.mrb[0].mxu0
    %v3790 = vadd.f32 0.0, %v3789
    %v3791 = vpop.f32.mrb[0].mxu0
    %v3792 = vpop.f32.mrb[0].mxu0
    %v3793 = vadd.f32 0.0, %v3792
    %v3794 = vpop.f32.mrb[0].mxu0
    %3795 = vmatprep.mubr.bf16.mxu0 0
    %3796 = vmatmul.mubr.bf16.gmra.mrb[0].mxu0 %v3675
    %v3797 = vpop.f32.mrb[0].mxu0
    %v3798 = vadd.f32 0.0, %v3797
    %v3799 = vpop.f32.mrb[0].mxu0
    %v3800 = vpop.f32.mrb[0].mxu0
    %v3801 = vadd.f32 0.0, %v3800
    %v3802 = vpop.f32.mrb[0].mxu0
    %3803 = vmatprep.mubr.bf16.mxu0 0
    %3804 = vmatmul.mubr.bf16.gmra.mrb[0].mxu0 %v3678
    %v3805 = vpop.f32.mrb[0].mxu0
    %v3806 = vadd.f32 0.0, %v3805
    %v3807 = vpop.f32.mrb[0].mxu0
    %v3808 = vpop.f32.mrb[0].mxu0
    %v3809 = vadd.f32 0.0, %v3808
    %v3810 = vpop.f32.mrb[0].mxu0
    %3811 = vmatprep.mubr.bf16.mxu0 0
    %3812 = vmatmul.mubr.bf16.gmra.mrb[0].mxu0 %v3681
    %v3813 = vpop.f32.mrb[0].mxu0
    %v3814 = vadd.f32 0.0, %v3813
    %v3815 = vpop.f32.mrb[0].mxu0
    %v3816 = vpop.f32.mrb[0].mxu0
    %v3817 = vadd.f32 0.0, %v3816
    %v3818 = vpop.f32.mrb[0].mxu0
    %3819 = vmatprep.mubr.bf16.mxu0 0
    %3820 = vmatmul.mubr.bf16.gmra.mrb[0].mxu0 %v3684
    %v3821 = vpop.f32.mrb[0].mxu0
    %v3822 = vadd.f32 0.0, %v3821
    %v3823 = vpop.f32.mrb[0].mxu0
    %v3824 = vpop.f32.mrb[0].mxu0
    %v3825 = vadd.f32 0.0, %v3824
    %v3826 = vpop.f32.mrb[0].mxu0
    %3827 = vmatprep.mubr.bf16.mxu0 0
    %3828 = vmatmul.mubr.bf16.gmra.mrb[0].mxu0 %v3687
    %v3829 = vpop.f32.mrb[0].mxu0
    %v3830 = vadd.f32 0.0, %v3829
    %v3831 = vpop.f32.mrb[0].mxu0
    %v3832 = vpop.f32.mrb[0].mxu0
    %v3833 = vadd.f32 0.0, %v3832
    %v3834 = vpop.f32.mrb[0].mxu0
    %3835 = vmatprep.mubr.bf16.mxu0 0
    %3836 = vmatmul.mubr.bf16.gmra.mrb[0].mxu0 %v3690
    %v3837 = vpop.f32.mrb[0].mxu0
    %v3838 = vadd.f32 0.0, %v3837
    %v3839 = vpop.f32.mrb[0].mxu0
    %v3840 = vpop.f32.mrb[0].mxu0
    %v3841 = vadd.f32 0.0, %v3840
    %v3842 = vpop.f32.mrb[0].mxu0
    %3843 = vmatprep.mubr.bf16.mxu0 0
    %3844 = vmatmul.mubr.bf16.gmra.mrb[0].mxu0 %v3693
    %v3845 = vpop.f32.mrb[0].mxu0
    %v3846 = vadd.f32 0.0, %v3845
    %v3847 = vpop.f32.mrb[0].mxu0
    %v3848 = vpop.f32.mrb[0].mxu0
    %v3849 = vadd.f32 0.0, %v3848
    %v3850 = vpop.f32.mrb[0].mxu0
    %3851 = vmatprep.mubr.bf16.mxu0 0
    %3852 = vmatmul.mubr.bf16.gmra.mrb[0].mxu0 %v3696
    %v3853 = vpop.f32.mrb[0].mxu0
    %v3854 = vadd.f32 0.0, %v3853
    %v3855 = vpop.f32.mrb[0].mxu0
    %v3856 = vpop.f32.mrb[0].mxu0
    %v3857 = vadd.f32 0.0, %v3856
    %v3858 = vpop.f32.mrb[0].mxu0
    %3859 = vmatprep.mubr.bf16.mxu0 0
    %3860 = vmatmul.mubr.bf16.gmra.mrb[0].mxu0 %v3699
    %v3861 = vpop.f32.mrb[0].mxu0
    %v3862 = vadd.f32 0.0, %v3861
    %v3863 = vpop.f32.mrb[0].mxu0
    %v3864 = vpop.f32.mrb[0].mxu0
    %v3865 = vadd.f32 0.0, %v3864
    %v3866 = vpop.f32.mrb[0].mxu0
    %3867 = vmatprep.mubr.bf16.mxu0 0
    %3868 = vmatmul.mubr.bf16.gmra.mrb[0].mxu0 %v3702
    %v3869 = vpop.f32.mrb[0].mxu0
    %v3870 = vadd.f32 0.0, %v3869
    %v3871 = vpop.f32.mrb[0].mxu0
    %v3872 = vpop.f32.mrb[0].mxu0
    %v3873 = vadd.f32 0.0, %v3872
    %v3874 = vpop.f32.mrb[0].mxu0
    %3875 = vmatprep.mubr.bf16.mxu0 0
    %3876 = vmatmul.mubr.bf16.gmra.mrb[0].mxu0 %v3705
    %v3877 = vpop.f32.mrb[0].mxu0
    %v3878 = vadd.f32 0.0, %v3877
    %v3879 = vpop.f32.mrb[0].mxu0
    %v3880 = vpop.f32.mrb[0].mxu0
    %v3881 = vadd.f32 0.0, %v3880
    %v3882 = vpop.f32.mrb[0].mxu0
    %3883 = vdwg.mxu0
    %v3884 = vadd.f32 %v3551, %v3742
    %v3885 = vadd.f32 %v3552, %v3745
    %v3886 = vadd.f32 %v3553, %v3750
    %v3887 = vadd.f32 %v3554, %v3753
    %v3888 = vadd.f32 %v3555, %v3758
    %v3889 = vadd.f32 %v3556, %v3761
    %v3890 = vadd.f32 %v3557, %v3766
    %v3891 = vadd.f32 %v3558, %v3769
    %v3892 = vadd.f32 %v3559, %v3774
    %v3893 = vadd.f32 %v3560, %v3777
    %v3894 = vadd.f32 %v3561, %v3782
    %v3895 = vadd.f32 %v3562, %v3785
    %v3896 = vadd.f32 %v3563, %v3790
    %v3897 = vadd.f32 %v3564, %v3793
    %v3898 = vadd.f32 %v3565, %v3798
    %v3899 = vadd.f32 %v3566, %v3801
    %v3900 = vadd.f32 %v3567, %v3806
    %v3901 = vadd.f32 %v3568, %v3809
    %v3902 = vadd.f32 %v3569, %v3814
    %v3903 = vadd.f32 %v3570, %v3817
    %v3904 = vadd.f32 %v3571, %v3822
    %v3905 = vadd.f32 %v3572, %v3825
    %v3906 = vadd.f32 %v3573, %v3830
    %v3907 = vadd.f32 %v3574, %v3833
    %v3908 = vadd.f32 %v3575, %v3838
    %v3909 = vadd.f32 %v3576, %v3841
    %v3910 = vadd.f32 %v3577, %v3846
    %v3911 = vadd.f32 %v3578, %v3849
    %v3912 = vadd.f32 %v3579, %v3854
    %v3913 = vadd.f32 %v3580, %v3857
    %v3914 = vadd.f32 %v3581, %v3862
    %v3915 = vadd.f32 %v3582, %v3865
    %v3916 = vadd.f32 %v3583, %v3870
    %v3917 = vadd.f32 %v3584, %v3873
    %v3918 = vadd.f32 %v3585, %v3878
    %v3919 = vadd.f32 %v3586, %v3881
    %v3920 = vmul.f32 %v1528, %v969
    %v3921 = vmul.f32 %v1527, %v973
    %v3922 = vmul.f32 %v1526, %v977
    %v3923 = vmul.f32 %v1525, %v981
    %v3924 = vmul.f32 %v1524, %v985
    %v3925 = vmul.f32 %v1523, %v989
    %v3926 = vmul.f32 %v1522, %v993
    %v3927 = vmul.f32 %v1521, %v997
    %v3928 = vmul.f32 %v1520, %v1001
    %v3929 = vmul.f32 %v1519, %v1005
    %v3930 = vmul.f32 %v1518, %v1009
    %v3931 = vmul.f32 %v1517, %v1013
    %v3932 = vmul.f32 %v1516, %v1017
    %v3933 = vmul.f32 %v1515, %v1021
    %v3934 = vmul.f32 %v1514, %v1025
    %v3935 = vmul.f32 %v1513, %v1029
    %v3936 = vmul.f32 %v1512, %v1033
    %v3937 = vmul.f32 %v1511, %v1037
    %v3938 = vmul.f32 %v1510, %v1041
    %v3939 = vmul.f32 %v1509, %v1045
    %v3940 = vmul.f32 %v1508, %v1049
    %v3941 = vmul.f32 %v1507, %v1053
    %v3942 = vmul.f32 %v1506, %v1057
    %v3943 = vmul.f32 %v1505, %v1061
    %v3944 = vmul.f32 %v1504, %v1065
    %v3945 = vmul.f32 %v1503, %v1069
    %v3946 = vmul.f32 %v1502, %v1073
    %v3947 = vmul.f32 %v1501, %v1077
    %v3948 = vmul.f32 %v1500, %v1081
    %v3949 = vmul.f32 %v1499, %v1085
    %v3950 = vmul.f32 %v1498, %v1089
    %v3951 = vmul.f32 %v1497, %v1093
    %v3952 = vmul.f32 %v1496, %v1097
    %v3953 = vmul.f32 %v1495, %v1101
    %v3954 = vmul.f32 %v1530, %v1105
    %v3955 = vmul.f32 %v1529, %v1109
    %v3956 = vpack.c.bf16 %v3921, %v3920
    %v3957 = vpack.c.bf16 %v3923, %v3922
    %v3958 = vpack.c.bf16 %v3925, %v3924
    %v3959 = vpack.c.bf16 %v3927, %v3926
    %v3960 = vpack.c.bf16 %v3929, %v3928
    %v3961 = vpack.c.bf16 %v3931, %v3930
    %v3962 = vpack.c.bf16 %v3933, %v3932
    %v3963 = vpack.c.bf16 %v3935, %v3934
    %v3964 = vpack.c.bf16 %v3937, %v3936
    %v3965 = vpack.c.bf16 %v3939, %v3938
    %v3966 = vpack.c.bf16 %v3941, %v3940
    %v3967 = vpack.c.bf16 %v3943, %v3942
    %v3968 = vpack.c.bf16 %v3945, %v3944
    %v3969 = vpack.c.bf16 %v3947, %v3946
    %v3970 = vpack.c.bf16 %v3949, %v3948
    %v3971 = vpack.c.bf16 %v3951, %v3950
    %v3972 = vpack.c.bf16 %v3953, %v3952
    %v3973 = vpack.c.bf16 %v3955, %v3954
    %v3978 = vunpack.c.l.b16 %v1319
    %v3979 = vunpack.c.l.b16 %v1320
    %v3980 = vunpack.c.l.b16 %v1321
    %v3981 = vunpack.c.l.b16 %v1322
    %v3982 = vpack.c.b16 %v3979, %v3978
    %v3983 = vpack.c.b16 %v3981, %v3980
    %v3987 = vsel %vm1597, %v3956, 0
    %v3990 = vsel %vm1597, %v3957, 0
    %v3993 = vsel %vm1597, %v3958, 0
    %v3996 = vsel %vm1597, %v3959, 0
    %v3999 = vsel %vm1597, %v3960, 0
    %v4002 = vsel %vm1597, %v3961, 0
    %v4005 = vsel %vm1597, %v3962, 0
    %v4008 = vsel %vm1597, %v3963, 0
    %v4011 = vsel %vm1597, %v3964, 0
    %v4014 = vsel %vm1597, %v3965, 0
    %v4017 = vsel %vm1597, %v3966, 0
    %v4020 = vsel %vm1597, %v3967, 0
    %v4023 = vsel %vm1597, %v3968, 0
    %v4026 = vsel %vm1597, %v3969, 0
    %v4029 = vsel %vm1597, %v3970, 0
    %v4032 = vsel %vm1597, %v3971, 0
    %v4035 = vsel %vm1597, %v3972, 0
    %v4038 = vsel %vm1597, %v3973, 0
    %4040 = vmatprep.subr.bf16.mxu0 0
    %4041 = vmatpush1.bf16.msra.mxu0 %v3982
    %4042 = vmatprep.subr.bf16.mxu0 0
    %4043 = vmatpush1.bf16.msra.mxu0 %v3983
    %4044 = vmatprep.subr.bf16.mxu0 0
    %4045 = vmatpush1.bf16.msra.mxu0 0
    %4046 = vmatprep.subr.bf16.mxu0 0
    %4047 = vmatpush1.bf16.msra.mxu0 0
    %4048 = vmatprep.subr.bf16.mxu0 0
    %4049 = vmatpush1.bf16.msra.mxu0 0
    %4050 = vmatprep.subr.bf16.mxu0 0
    %4051 = vmatpush1.bf16.msra.mxu0 0
    %4052 = vmatprep.subr.bf16.mxu0 0
    %4053 = vmatpush1.bf16.msra.mxu0 0
    %4054 = vmatprep.subr.bf16.mxu0 0
    %4055 = vmatpush1.bf16.msra.mxu0 0
    %4056 = vmatprep.subr.bf16.mxu0 0
    %4057 = vmatpush1.bf16.msra.mxu0 0
    %4058 = vmatprep.subr.bf16.mxu0 0
    %4059 = vmatpush1.bf16.msra.mxu0 0
    %4060 = vmatprep.subr.bf16.mxu0 0
    %4061 = vmatpush1.bf16.msra.mxu0 0
    %4062 = vmatprep.subr.bf16.mxu0 0
    %4063 = vmatpush1.bf16.msra.mxu0 0
    %4064 = vmatprep.subr.bf16.mxu0 0
    %4065 = vmatpush1.bf16.msra.mxu0 0
    %4066 = vmatprep.subr.bf16.mxu0 0
    %4067 = vmatpush1.bf16.msra.mxu0 0
    %4068 = vmatprep.subr.bf16.mxu0 0
    %4069 = vmatpush1.bf16.msra.mxu0 0
    %4070 = vmatprep.subr.bf16.mxu0 0
    %4071 = vmatpush1.bf16.msra.mxu0 0
    %4072 = vmatprep.mubr.bf16.mxu0 0
    %4073 = vmatmul.mubr.bf16.gmra.mrb[0].mxu0 %v3987
    %v4074 = vpop.f32.mrb[0].mxu0
    %v4075 = vadd.f32 0.0, %v4074
    %v4076 = vpop.f32.mrb[0].mxu0
    %v4077 = vpop.f32.mrb[0].mxu0
    %v4078 = vadd.f32 0.0, %v4077
    %v4079 = vpop.f32.mrb[0].mxu0
    %4080 = vmatprep.mubr.bf16.mxu0 0
    %4081 = vmatmul.mubr.bf16.gmra.mrb[0].mxu0 %v3990
    %v4082 = vpop.f32.mrb[0].mxu0
    %v4083 = vadd.f32 0.0, %v4082
    %v4084 = vpop.f32.mrb[0].mxu0
    %v4085 = vpop.f32.mrb[0].mxu0
    %v4086 = vadd.f32 0.0, %v4085
    %v4087 = vpop.f32.mrb[0].mxu0
    %4088 = vmatprep.mubr.bf16.mxu0 0
    %4089 = vmatmul.mubr.bf16.gmra.mrb[0].mxu0 %v3993
    %v4090 = vpop.f32.mrb[0].mxu0
    %v4091 = vadd.f32 0.0, %v4090
    %v4092 = vpop.f32.mrb[0].mxu0
    %v4093 = vpop.f32.mrb[0].mxu0
    %v4094 = vadd.f32 0.0, %v4093
    %v4095 = vpop.f32.mrb[0].mxu0
    %4096 = vmatprep.mubr.bf16.mxu0 0
    %4097 = vmatmul.mubr.bf16.gmra.mrb[0].mxu0 %v3996
    %v4098 = vpop.f32.mrb[0].mxu0
    %v4099 = vadd.f32 0.0, %v4098
    %v4100 = vpop.f32.mrb[0].mxu0
    %v4101 = vpop.f32.mrb[0].mxu0
    %v4102 = vadd.f32 0.0, %v4101
    %v4103 = vpop.f32.mrb[0].mxu0
    %4104 = vmatprep.mubr.bf16.mxu0 0
    %4105 = vmatmul.mubr.bf16.gmra.mrb[0].mxu0 %v3999
    %v4106 = vpop.f32.mrb[0].mxu0
    %v4107 = vadd.f32 0.0, %v4106
    %v4108 = vpop.f32.mrb[0].mxu0
    %v4109 = vpop.f32.mrb[0].mxu0
    %v4110 = vadd.f32 0.0, %v4109
    %v4111 = vpop.f32.mrb[0].mxu0
    %4112 = vmatprep.mubr.bf16.mxu0 0
    %4113 = vmatmul.mubr.bf16.gmra.mrb[0].mxu0 %v4002
    %v4114 = vpop.f32.mrb[0].mxu0
    %v4115 = vadd.f32 0.0, %v4114
    %v4116 = vpop.f32.mrb[0].mxu0
    %v4117 = vpop.f32.mrb[0].mxu0
    %v4118 = vadd.f32 0.0, %v4117
    %v4119 = vpop.f32.mrb[0].mxu0
    %4120 = vmatprep.mubr.bf16.mxu0 0
    %4121 = vmatmul.mubr.bf16.gmra.mrb[0].mxu0 %v4005
    %v4122 = vpop.f32.mrb[0].mxu0
    %v4123 = vadd.f32 0.0, %v4122
    %v4124 = vpop.f32.mrb[0].mxu0
    %v4125 = vpop.f32.mrb[0].mxu0
    %v4126 = vadd.f32 0.0, %v4125
    %v4127 = vpop.f32.mrb[0].mxu0
    %4128 = vmatprep.mubr.bf16.mxu0 0
    %4129 = vmatmul.mubr.bf16.gmra.mrb[0].mxu0 %v4008
    %v4130 = vpop.f32.mrb[0].mxu0
    %v4131 = vadd.f32 0.0, %v4130
    %v4132 = vpop.f32.mrb[0].mxu0
    %v4133 = vpop.f32.mrb[0].mxu0
    %v4134 = vadd.f32 0.0, %v4133
    %v4135 = vpop.f32.mrb[0].mxu0
    %4136 = vmatprep.mubr.bf16.mxu0 0
    %4137 = vmatmul.mubr.bf16.gmra.mrb[0].mxu0 %v4011
    %v4138 = vpop.f32.mrb[0].mxu0
    %v4139 = vadd.f32 0.0, %v4138
    %v4140 = vpop.f32.mrb[0].mxu0
    %v4141 = vpop.f32.mrb[0].mxu0
    %v4142 = vadd.f32 0.0, %v4141
    %v4143 = vpop.f32.mrb[0].mxu0
    %4144 = vmatprep.mubr.bf16.mxu0 0
    %4145 = vmatmul.mubr.bf16.gmra.mrb[0].mxu0 %v4014
    %v4146 = vpop.f32.mrb[0].mxu0
    %v4147 = vadd.f32 0.0, %v4146
    %v4148 = vpop.f32.mrb[0].mxu0
    %v4149 = vpop.f32.mrb[0].mxu0
    %v4150 = vadd.f32 0.0, %v4149
    %v4151 = vpop.f32.mrb[0].mxu0
    %4152 = vmatprep.mubr.bf16.mxu0 0
    %4153 = vmatmul.mubr.bf16.gmra.mrb[0].mxu0 %v4017
    %v4154 = vpop.f32.mrb[0].mxu0
    %v4155 = vadd.f32 0.0, %v4154
    %v4156 = vpop.f32.mrb[0].mxu0
    %v4157 = vpop.f32.mrb[0].mxu0
    %v4158 = vadd.f32 0.0, %v4157
    %v4159 = vpop.f32.mrb[0].mxu0
    %4160 = vmatprep.mubr.bf16.mxu0 0
    %4161 = vmatmul.mubr.bf16.gmra.mrb[0].mxu0 %v4020
    %v4162 = vpop.f32.mrb[0].mxu0
    %v4163 = vadd.f32 0.0, %v4162
    %v4164 = vpop.f32.mrb[0].mxu0
    %v4165 = vpop.f32.mrb[0].mxu0
    %v4166 = vadd.f32 0.0, %v4165
    %v4167 = vpop.f32.mrb[0].mxu0
    %4168 = vmatprep.mubr.bf16.mxu0 0
    %4169 = vmatmul.mubr.bf16.gmra.mrb[0].mxu0 %v4023
    %v4170 = vpop.f32.mrb[0].mxu0
    %v4171 = vadd.f32 0.0, %v4170
    %v4172 = vpop.f32.mrb[0].mxu0
    %v4173 = vpop.f32.mrb[0].mxu0
    %v4174 = vadd.f32 0.0, %v4173
    %v4175 = vpop.f32.mrb[0].mxu0
    %4176 = vmatprep.mubr.bf16.mxu0 0
    %4177 = vmatmul.mubr.bf16.gmra.mrb[0].mxu0 %v4026
    %v4178 = vpop.f32.mrb[0].mxu0
    %v4179 = vadd.f32 0.0, %v4178
    %v4180 = vpop.f32.mrb[0].mxu0
    %v4181 = vpop.f32.mrb[0].mxu0
    %v4182 = vadd.f32 0.0, %v4181
    %v4183 = vpop.f32.mrb[0].mxu0
    %4184 = vmatprep.mubr.bf16.mxu0 0
    %4185 = vmatmul.mubr.bf16.gmra.mrb[0].mxu0 %v4029
    %v4186 = vpop.f32.mrb[0].mxu0
    %v4187 = vadd.f32 0.0, %v4186
    %v4188 = vpop.f32.mrb[0].mxu0
    %v4189 = vpop.f32.mrb[0].mxu0
    %v4190 = vadd.f32 0.0, %v4189
    %v4191 = vpop.f32.mrb[0].mxu0
    %4192 = vmatprep.mubr.bf16.mxu0 0
    %4193 = vmatmul.mubr.bf16.gmra.mrb[0].mxu0 %v4032
    %v4194 = vpop.f32.mrb[0].mxu0
    %v4195 = vadd.f32 0.0, %v4194
    %v4196 = vpop.f32.mrb[0].mxu0
    %v4197 = vpop.f32.mrb[0].mxu0
    %v4198 = vadd.f32 0.0, %v4197
    %v4199 = vpop.f32.mrb[0].mxu0
    %4200 = vmatprep.mubr.bf16.mxu0 0
    %4201 = vmatmul.mubr.bf16.gmra.mrb[0].mxu0 %v4035
    %v4202 = vpop.f32.mrb[0].mxu0
    %v4203 = vadd.f32 0.0, %v4202
    %v4204 = vpop.f32.mrb[0].mxu0
    %v4205 = vpop.f32.mrb[0].mxu0
    %v4206 = vadd.f32 0.0, %v4205
    %v4207 = vpop.f32.mrb[0].mxu0
    %4208 = vmatprep.mubr.bf16.mxu0 0
    %4209 = vmatmul.mubr.bf16.gmra.mrb[0].mxu0 %v4038
    %v4210 = vpop.f32.mrb[0].mxu0
    %v4211 = vadd.f32 0.0, %v4210
    %v4212 = vpop.f32.mrb[0].mxu0
    %v4213 = vpop.f32.mrb[0].mxu0
    %v4214 = vadd.f32 0.0, %v4213
    %v4215 = vpop.f32.mrb[0].mxu0
    %4216 = vdwg.mxu0
    %v4217 = vadd.f32 %v3884, %v4075
    %v4218 = vadd.f32 %v3885, %v4078
    %v4219 = vadd.f32 %v3886, %v4083
    %v4220 = vadd.f32 %v3887, %v4086
    %v4221 = vadd.f32 %v3888, %v4091
    %v4222 = vadd.f32 %v3889, %v4094
    %v4223 = vadd.f32 %v3890, %v4099
    %v4224 = vadd.f32 %v3891, %v4102
    %v4225 = vadd.f32 %v3892, %v4107
    %v4226 = vadd.f32 %v3893, %v4110
    %v4227 = vadd.f32 %v3894, %v4115
    %v4228 = vadd.f32 %v3895, %v4118
    %v4229 = vadd.f32 %v3896, %v4123
    %v4230 = vadd.f32 %v3897, %v4126
    %v4231 = vadd.f32 %v3898, %v4131
    %v4232 = vadd.f32 %v3899, %v4134
    %v4233 = vadd.f32 %v3900, %v4139
    %v4234 = vadd.f32 %v3901, %v4142
    %v4235 = vadd.f32 %v3902, %v4147
    %v4236 = vadd.f32 %v3903, %v4150
    %v4237 = vadd.f32 %v3904, %v4155
    %v4238 = vadd.f32 %v3905, %v4158
    %v4239 = vadd.f32 %v3906, %v4163
    %v4240 = vadd.f32 %v3907, %v4166
    %v4241 = vadd.f32 %v3908, %v4171
    %v4242 = vadd.f32 %v3909, %v4174
    %v4243 = vadd.f32 %v3910, %v4179
    %v4244 = vadd.f32 %v3911, %v4182
    %v4245 = vadd.f32 %v3912, %v4187
    %v4246 = vadd.f32 %v3913, %v4190
    %v4247 = vadd.f32 %v3914, %v4195
    %v4248 = vadd.f32 %v3915, %v4198
    %v4249 = vadd.f32 %v3916, %v4203
    %v4250 = vadd.f32 %v3917, %v4206
    %v4251 = vadd.f32 %v3918, %v4211
    %v4252 = vadd.f32 %v3919, %v4214
    %v4253 = vmul.f32 %v2142, %v1113
    %v4254 = vmul.f32 %v2141, %v1117
    %v4255 = vmul.f32 %v2140, %v1121
    %v4256 = vmul.f32 %v2139, %v1125
    %v4257 = vmul.f32 %v2138, %v1129
    %v4258 = vmul.f32 %v2137, %v1133
    %v4259 = vmul.f32 %v2136, %v1137
    %v4260 = vmul.f32 %v2135, %v1141
    %v4261 = vmul.f32 %v2134, %v1145
    %v4262 = vmul.f32 %v2133, %v1149
    %v4263 = vmul.f32 %v2132, %v1153
    %v4264 = vmul.f32 %v2131, %v1157
    %v4265 = vmul.f32 %v2130, %v1161
    %v4266 = vmul.f32 %v2129, %v1165
    %v4267 = vmul.f32 %v2128, %v1169
    %v4268 = vmul.f32 %v2127, %v1173
    %v4269 = vmul.f32 %v2126, %v1177
    %v4270 = vmul.f32 %v2125, %v1181
    %v4271 = vmul.f32 %v2124, %v1185
    %v4272 = vmul.f32 %v2123, %v1189
    %v4273 = vmul.f32 %v2122, %v1193
    %v4274 = vmul.f32 %v2121, %v1197
    %v4275 = vmul.f32 %v2120, %v1201
    %v4276 = vmul.f32 %v2119, %v1205
    %v4277 = vmul.f32 %v2118, %v1209
    %v4278 = vmul.f32 %v2117, %v1213
    %v4279 = vmul.f32 %v2116, %v1217
    %v4280 = vmul.f32 %v2115, %v1221
    %v4281 = vmul.f32 %v2114, %v1225
    %v4282 = vmul.f32 %v2113, %v1229
    %v4283 = vmul.f32 %v2112, %v1233
    %v4284 = vmul.f32 %v2111, %v1237
    %v4285 = vmul.f32 %v2110, %v1241
    %v4286 = vmul.f32 %v2109, %v1245
    %v4287 = vmul.f32 %v2144, %v1249
    %v4288 = vmul.f32 %v2143, %v1253
    %v4289 = vpack.c.bf16 %v4254, %v4253
    %v4290 = vpack.c.bf16 %v4256, %v4255
    %v4291 = vpack.c.bf16 %v4258, %v4257
    %v4292 = vpack.c.bf16 %v4260, %v4259
    %v4293 = vpack.c.bf16 %v4262, %v4261
    %v4294 = vpack.c.bf16 %v4264, %v4263
    %v4295 = vpack.c.bf16 %v4266, %v4265
    %v4296 = vpack.c.bf16 %v4268, %v4267
    %v4297 = vpack.c.bf16 %v4270, %v4269
    %v4298 = vpack.c.bf16 %v4272, %v4271
    %v4299 = vpack.c.bf16 %v4274, %v4273
    %v4300 = vpack.c.bf16 %v4276, %v4275
    %v4301 = vpack.c.bf16 %v4278, %v4277
    %v4302 = vpack.c.bf16 %v4280, %v4279
    %v4303 = vpack.c.bf16 %v4282, %v4281
    %v4304 = vpack.c.bf16 %v4284, %v4283
    %v4305 = vpack.c.bf16 %v4286, %v4285
    %v4306 = vpack.c.bf16 %v4288, %v4287
    %v4311 = vunpack.c.l.b16 %v1323
    %v4312 = vunpack.c.l.b16 %v1324
    %v4313 = vunpack.c.l.b16 %v1325
    %v4314 = vunpack.c.l.b16 %v1326
    %v4315 = vpack.c.b16 %v4312, %v4311
    %v4316 = vpack.c.b16 %v4314, %v4313
    %v4320 = vsel %vm1597, %v4289, 0
    %v4323 = vsel %vm1597, %v4290, 0
    %v4326 = vsel %vm1597, %v4291, 0
    %v4329 = vsel %vm1597, %v4292, 0
    %v4332 = vsel %vm1597, %v4293, 0
    %v4335 = vsel %vm1597, %v4294, 0
    %v4338 = vsel %vm1597, %v4295, 0
    %v4341 = vsel %vm1597, %v4296, 0
    %v4344 = vsel %vm1597, %v4297, 0
    %v4347 = vsel %vm1597, %v4298, 0
    %v4350 = vsel %vm1597, %v4299, 0
    %v4353 = vsel %vm1597, %v4300, 0
    %v4356 = vsel %vm1597, %v4301, 0
    %v4359 = vsel %vm1597, %v4302, 0
    %v4362 = vsel %vm1597, %v4303, 0
    %v4365 = vsel %vm1597, %v4304, 0
    %v4368 = vsel %vm1597, %v4305, 0
    %v4371 = vsel %vm1597, %v4306, 0
    %4373 = vmatprep.subr.bf16.mxu0 0
    %4374 = vmatpush1.bf16.msra.mxu0 %v4315
    %4375 = vmatprep.subr.bf16.mxu0 0
    %4376 = vmatpush1.bf16.msra.mxu0 %v4316
    %4377 = vmatprep.subr.bf16.mxu0 0
    %4378 = vmatpush1.bf16.msra.mxu0 0
    %4379 = vmatprep.subr.bf16.mxu0 0
    %4380 = vmatpush1.bf16.msra.mxu0 0
    %4381 = vmatprep.subr.bf16.mxu0 0
    %4382 = vmatpush1.bf16.msra.mxu0 0
    %4383 = vmatprep.subr.bf16.mxu0 0
    %4384 = vmatpush1.bf16.msra.mxu0 0
    %4385 = vmatprep.subr.bf16.mxu0 0
    %4386 = vmatpush1.bf16.msra.mxu0 0
    %4387 = vmatprep.subr.bf16.mxu0 0
    %4388 = vmatpush1.bf16.msra.mxu0 0
    %4389 = vmatprep.subr.bf16.mxu0 0
    %4390 = vmatpush1.bf16.msra.mxu0 0
    %4391 = vmatprep.subr.bf16.mxu0 0
    %4392 = vmatpush1.bf16.msra.mxu0 0
    %4393 = vmatprep.subr.bf16.mxu0 0
    %4394 = vmatpush1.bf16.msra.mxu0 0
    %4395 = vmatprep.subr.bf16.mxu0 0
    %4396 = vmatpush1.bf16.msra.mxu0 0
    %4397 = vmatprep.subr.bf16.mxu0 0
    %4398 = vmatpush1.bf16.msra.mxu0 0
    %4399 = vmatprep.subr.bf16.mxu0 0
    %4400 = vmatpush1.bf16.msra.mxu0 0
    %4401 = vmatprep.subr.bf16.mxu0 0
    %4402 = vmatpush1.bf16.msra.mxu0 0
    %4403 = vmatprep.subr.bf16.mxu0 0
    %4404 = vmatpush1.bf16.msra.mxu0 0
    %4405 = vmatprep.mubr.bf16.mxu0 0
    %4406 = vmatmul.mubr.bf16.gmra.mrb[0].mxu0 %v4320
    %v4407 = vpop.f32.mrb[0].mxu0
    %v4408 = vadd.f32 0.0, %v4407
    %v4409 = vpop.f32.mrb[0].mxu0
    %v4410 = vpop.f32.mrb[0].mxu0
    %v4411 = vadd.f32 0.0, %v4410
    %v4412 = vpop.f32.mrb[0].mxu0
    %4413 = vmatprep.mubr.bf16.mxu0 0
    %4414 = vmatmul.mubr.bf16.gmra.mrb[0].mxu0 %v4323
    %v4415 = vpop.f32.mrb[0].mxu0
    %v4416 = vadd.f32 0.0, %v4415
    %v4417 = vpop.f32.mrb[0].mxu0
    %v4418 = vpop.f32.mrb[0].mxu0
    %v4419 = vadd.f32 0.0, %v4418
    %v4420 = vpop.f32.mrb[0].mxu0
    %4421 = vmatprep.mubr.bf16.mxu0 0
    %4422 = vmatmul.mubr.bf16.gmra.mrb[0].mxu0 %v4326
    %v4423 = vpop.f32.mrb[0].mxu0
    %v4424 = vadd.f32 0.0, %v4423
    %v4425 = vpop.f32.mrb[0].mxu0
    %v4426 = vpop.f32.mrb[0].mxu0
    %v4427 = vadd.f32 0.0, %v4426
    %v4428 = vpop.f32.mrb[0].mxu0
    %4429 = vmatprep.mubr.bf16.mxu0 0
    %4430 = vmatmul.mubr.bf16.gmra.mrb[0].mxu0 %v4329
    %v4431 = vpop.f32.mrb[0].mxu0
    %v4432 = vadd.f32 0.0, %v4431
    %v4433 = vpop.f32.mrb[0].mxu0
    %v4434 = vpop.f32.mrb[0].mxu0
    %v4435 = vadd.f32 0.0, %v4434
    %v4436 = vpop.f32.mrb[0].mxu0
    %4437 = vmatprep.mubr.bf16.mxu0 0
    %4438 = vmatmul.mubr.bf16.gmra.mrb[0].mxu0 %v4332
    %v4439 = vpop.f32.mrb[0].mxu0
    %v4440 = vadd.f32 0.0, %v4439
    %v4441 = vpop.f32.mrb[0].mxu0
    %v4442 = vpop.f32.mrb[0].mxu0
    %v4443 = vadd.f32 0.0, %v4442
    %v4444 = vpop.f32.mrb[0].mxu0
    %4445 = vmatprep.mubr.bf16.mxu0 0
    %4446 = vmatmul.mubr.bf16.gmra.mrb[0].mxu0 %v4335
    %v4447 = vpop.f32.mrb[0].mxu0
    %v4448 = vadd.f32 0.0, %v4447
    %v4449 = vpop.f32.mrb[0].mxu0
    %v4450 = vpop.f32.mrb[0].mxu0
    %v4451 = vadd.f32 0.0, %v4450
    %v4452 = vpop.f32.mrb[0].mxu0
    %4453 = vmatprep.mubr.bf16.mxu0 0
    %4454 = vmatmul.mubr.bf16.gmra.mrb[0].mxu0 %v4338
    %v4455 = vpop.f32.mrb[0].mxu0
    %v4456 = vadd.f32 0.0, %v4455
    %v4457 = vpop.f32.mrb[0].mxu0
    %v4458 = vpop.f32.mrb[0].mxu0
    %v4459 = vadd.f32 0.0, %v4458
    %v4460 = vpop.f32.mrb[0].mxu0
    %4461 = vmatprep.mubr.bf16.mxu0 0
    %4462 = vmatmul.mubr.bf16.gmra.mrb[0].mxu0 %v4341
    %v4463 = vpop.f32.mrb[0].mxu0
    %v4464 = vadd.f32 0.0, %v4463
    %v4465 = vpop.f32.mrb[0].mxu0
    %v4466 = vpop.f32.mrb[0].mxu0
    %v4467 = vadd.f32 0.0, %v4466
    %v4468 = vpop.f32.mrb[0].mxu0
    %4469 = vmatprep.mubr.bf16.mxu0 0
    %4470 = vmatmul.mubr.bf16.gmra.mrb[0].mxu0 %v4344
    %v4471 = vpop.f32.mrb[0].mxu0
    %v4472 = vadd.f32 0.0, %v4471
    %v4473 = vpop.f32.mrb[0].mxu0
    %v4474 = vpop.f32.mrb[0].mxu0
    %v4475 = vadd.f32 0.0, %v4474
    %v4476 = vpop.f32.mrb[0].mxu0
    %4477 = vmatprep.mubr.bf16.mxu0 0
    %4478 = vmatmul.mubr.bf16.gmra.mrb[0].mxu0 %v4347
    %v4479 = vpop.f32.mrb[0].mxu0
    %v4480 = vadd.f32 0.0, %v4479
    %v4481 = vpop.f32.mrb[0].mxu0
    %v4482 = vpop.f32.mrb[0].mxu0
    %v4483 = vadd.f32 0.0, %v4482
    %v4484 = vpop.f32.mrb[0].mxu0
    %4485 = vmatprep.mubr.bf16.mxu0 0
    %4486 = vmatmul.mubr.bf16.gmra.mrb[0].mxu0 %v4350
    %v4487 = vpop.f32.mrb[0].mxu0
    %v4488 = vadd.f32 0.0, %v4487
    %v4489 = vpop.f32.mrb[0].mxu0
    %v4490 = vpop.f32.mrb[0].mxu0
    %v4491 = vadd.f32 0.0, %v4490
    %v4492 = vpop.f32.mrb[0].mxu0
    %4493 = vmatprep.mubr.bf16.mxu0 0
    %4494 = vmatmul.mubr.bf16.gmra.mrb[0].mxu0 %v4353
    %v4495 = vpop.f32.mrb[0].mxu0
    %v4496 = vadd.f32 0.0, %v4495
    %v4497 = vpop.f32.mrb[0].mxu0
    %v4498 = vpop.f32.mrb[0].mxu0
    %v4499 = vadd.f32 0.0, %v4498
    %v4500 = vpop.f32.mrb[0].mxu0
    %4501 = vmatprep.mubr.bf16.mxu0 0
    %4502 = vmatmul.mubr.bf16.gmra.mrb[0].mxu0 %v4356
    %v4503 = vpop.f32.mrb[0].mxu0
    %v4504 = vadd.f32 0.0, %v4503
    %v4505 = vpop.f32.mrb[0].mxu0
    %v4506 = vpop.f32.mrb[0].mxu0
    %v4507 = vadd.f32 0.0, %v4506
    %v4508 = vpop.f32.mrb[0].mxu0
    %4509 = vmatprep.mubr.bf16.mxu0 0
    %4510 = vmatmul.mubr.bf16.gmra.mrb[0].mxu0 %v4359
    %v4511 = vpop.f32.mrb[0].mxu0
    %v4512 = vadd.f32 0.0, %v4511
    %v4513 = vpop.f32.mrb[0].mxu0
    %v4514 = vpop.f32.mrb[0].mxu0
    %v4515 = vadd.f32 0.0, %v4514
    %v4516 = vpop.f32.mrb[0].mxu0
    %4517 = vmatprep.mubr.bf16.mxu0 0
    %4518 = vmatmul.mubr.bf16.gmra.mrb[0].mxu0 %v4362
    %v4519 = vpop.f32.mrb[0].mxu0
    %v4520 = vadd.f32 0.0, %v4519
    %v4521 = vpop.f32.mrb[0].mxu0
    %v4522 = vpop.f32.mrb[0].mxu0
    %v4523 = vadd.f32 0.0, %v4522
    %v4524 = vpop.f32.mrb[0].mxu0
    %4525 = vmatprep.mubr.bf16.mxu0 0
    %4526 = vmatmul.mubr.bf16.gmra.mrb[0].mxu0 %v4365
    %v4527 = vpop.f32.mrb[0].mxu0
    %v4528 = vadd.f32 0.0, %v4527
    %v4529 = vpop.f32.mrb[0].mxu0
    %v4530 = vpop.f32.mrb[0].mxu0
    %v4531 = vadd.f32 0.0, %v4530
    %v4532 = vpop.f32.mrb[0].mxu0
    %4533 = vmatprep.mubr.bf16.mxu0 0
    %4534 = vmatmul.mubr.bf16.gmra.mrb[0].mxu0 %v4368
    %v4535 = vpop.f32.mrb[0].mxu0
    %v4536 = vadd.f32 0.0, %v4535
    %v4537 = vpop.f32.mrb[0].mxu0
    %v4538 = vpop.f32.mrb[0].mxu0
    %v4539 = vadd.f32 0.0, %v4538
    %v4540 = vpop.f32.mrb[0].mxu0
    %4541 = vmatprep.mubr.bf16.mxu0 0
    %4542 = vmatmul.mubr.bf16.gmra.mrb[0].mxu0 %v4371
    %v4543 = vpop.f32.mrb[0].mxu0
    %v4544 = vadd.f32 0.0, %v4543
    %v4545 = vpop.f32.mrb[0].mxu0
    %v4546 = vpop.f32.mrb[0].mxu0
    %v4547 = vadd.f32 0.0, %v4546
    %v4548 = vpop.f32.mrb[0].mxu0
    %4549 = vdwg.mxu0
    %v4550 = vadd.f32 %v4217, %v4408
    %v4551 = vadd.f32 %v4218, %v4411
    %v4552 = vadd.f32 %v4219, %v4416
    %v4553 = vadd.f32 %v4220, %v4419
    %v4554 = vadd.f32 %v4221, %v4424
    %v4555 = vadd.f32 %v4222, %v4427
    %v4556 = vadd.f32 %v4223, %v4432
    %v4557 = vadd.f32 %v4224, %v4435
    %v4558 = vadd.f32 %v4225, %v4440
    %v4559 = vadd.f32 %v4226, %v4443
    %v4560 = vadd.f32 %v4227, %v4448
    %v4561 = vadd.f32 %v4228, %v4451
    %v4562 = vadd.f32 %v4229, %v4456
    %v4563 = vadd.f32 %v4230, %v4459
    %v4564 = vadd.f32 %v4231, %v4464
    %v4565 = vadd.f32 %v4232, %v4467
    %v4566 = vadd.f32 %v4233, %v4472
    %v4567 = vadd.f32 %v4234, %v4475
    %v4568 = vadd.f32 %v4235, %v4480
    %v4569 = vadd.f32 %v4236, %v4483
    %v4570 = vadd.f32 %v4237, %v4488
    %v4571 = vadd.f32 %v4238, %v4491
    %v4572 = vadd.f32 %v4239, %v4496
    %v4573 = vadd.f32 %v4240, %v4499
    %v4574 = vadd.f32 %v4241, %v4504
    %v4575 = vadd.f32 %v4242, %v4507
    %v4576 = vadd.f32 %v4243, %v4512
    %v4577 = vadd.f32 %v4244, %v4515
    %v4578 = vadd.f32 %v4245, %v4520
    %v4579 = vadd.f32 %v4246, %v4523
    %v4580 = vadd.f32 %v4247, %v4528
    %v4581 = vadd.f32 %v4248, %v4531
    %v4582 = vadd.f32 %v4249, %v4536
    %v4583 = vadd.f32 %v4250, %v4539
    %v4584 = vadd.f32 %v4251, %v4544
    %v4585 = vadd.f32 %v4252, %v4547
    %v4587 = vlaneseq
    %v4588 = vshrl.u32 %v4587, 7
    %v4589 = vsub.s32 0, %v4588
    %v4590 = vrot.slane %v1327, %v4589
    %v4592 = vmul.f32 %v4550, %v4590
    %v4593 = vmul.f32 %v4551, %v4590
    %v4594 = vmul.f32 %v4552, %v4590
    %v4595 = vmul.f32 %v4553, %v4590
    %v4596 = vmul.f32 %v4554, %v4590
    %v4597 = vmul.f32 %v4555, %v4590
    %v4598 = vmul.f32 %v4556, %v4590
    %v4599 = vmul.f32 %v4557, %v4590
    %v4600 = vmul.f32 %v4558, %v4590
    %v4601 = vmul.f32 %v4559, %v4590
    %v4602 = vmul.f32 %v4560, %v4590
    %v4603 = vmul.f32 %v4561, %v4590
    %v4604 = vmul.f32 %v4562, %v4590
    %v4605 = vmul.f32 %v4563, %v4590
    %v4606 = vmul.f32 %v4564, %v4590
    %v4607 = vmul.f32 %v4565, %v4590
    %v4608 = vmul.f32 %v4566, %v4590
    %v4609 = vmul.f32 %v4567, %v4590
    %v4610 = vmul.f32 %v4568, %v4590
    %v4611 = vmul.f32 %v4569, %v4590
    %v4612 = vmul.f32 %v4570, %v4590
    %v4613 = vmul.f32 %v4571, %v4590
    %v4614 = vmul.f32 %v4572, %v4590
    %v4615 = vmul.f32 %v4573, %v4590
    %v4616 = vmul.f32 %v4574, %v4590
    %v4617 = vmul.f32 %v4575, %v4590
    %v4618 = vmul.f32 %v4576, %v4590
    %v4619 = vmul.f32 %v4577, %v4590
    %v4620 = vmul.f32 %v4578, %v4590
    %v4621 = vmul.f32 %v4579, %v4590
    %v4622 = vmul.f32 %v4580, %v4590
    %v4623 = vmul.f32 %v4581, %v4590
    %v4624 = vmul.f32 %v4582, %v4590
    %v4625 = vmul.f32 %v4583, %v4590
    %v4626 = vmul.f32 %v4584, %v4590
    %v4627 = vmul.f32 %v4585, %v4590
    %v4629 = vlaneseq
    %v4630 = vshrl.u32 %v4629, 7
    %v4631 = vsub.s32 0, %v4630
    %v4632 = vrot.slane %v1328, %v4631
    %v4634 = vadd.f32 %v4592, %v4632
    %v4635 = vadd.f32 %v4593, %v4632
    %v4636 = vadd.f32 %v4594, %v4632
    %v4637 = vadd.f32 %v4595, %v4632
    %v4638 = vadd.f32 %v4596, %v4632
    %v4639 = vadd.f32 %v4597, %v4632
    %v4640 = vadd.f32 %v4598, %v4632
    %v4641 = vadd.f32 %v4599, %v4632
    %v4642 = vadd.f32 %v4600, %v4632
    %v4643 = vadd.f32 %v4601, %v4632
    %v4644 = vadd.f32 %v4602, %v4632
    %v4645 = vadd.f32 %v4603, %v4632
    %v4646 = vadd.f32 %v4604, %v4632
    %v4647 = vadd.f32 %v4605, %v4632
    %v4648 = vadd.f32 %v4606, %v4632
    %v4649 = vadd.f32 %v4607, %v4632
    %v4650 = vadd.f32 %v4608, %v4632
    %v4651 = vadd.f32 %v4609, %v4632
    %v4652 = vadd.f32 %v4610, %v4632
    %v4653 = vadd.f32 %v4611, %v4632
    %v4654 = vadd.f32 %v4612, %v4632
    %v4655 = vadd.f32 %v4613, %v4632
    %v4656 = vadd.f32 %v4614, %v4632
    %v4657 = vadd.f32 %v4615, %v4632
    %v4658 = vadd.f32 %v4616, %v4632
    %v4659 = vadd.f32 %v4617, %v4632
    %v4660 = vadd.f32 %v4618, %v4632
    %v4661 = vadd.f32 %v4619, %v4632
    %v4662 = vadd.f32 %v4620, %v4632
    %v4663 = vadd.f32 %v4621, %v4632
    %v4664 = vadd.f32 %v4622, %v4632
    %v4665 = vadd.f32 %v4623, %v4632
    %v4666 = vadd.f32 %v4624, %v4632
    %v4667 = vadd.f32 %v4625, %v4632
    %v4668 = vadd.f32 %v4626, %v4632
    %v4669 = vadd.f32 %v4627, %v4632
    %v4670 = vmax.f32 %v4634, 0.0
    %v4671 = vmax.f32 %v4635, 0.0
    %v4672 = vmax.f32 %v4636, 0.0
    %v4673 = vmax.f32 %v4637, 0.0
    %v4674 = vmax.f32 %v4638, 0.0
    %v4675 = vmax.f32 %v4639, 0.0
    %v4676 = vmax.f32 %v4640, 0.0
    %v4677 = vmax.f32 %v4641, 0.0
    %v4678 = vmax.f32 %v4642, 0.0
    %v4679 = vmax.f32 %v4643, 0.0
    %v4680 = vmax.f32 %v4644, 0.0
    %v4681 = vmax.f32 %v4645, 0.0
    %v4682 = vmax.f32 %v4646, 0.0
    %v4683 = vmax.f32 %v4647, 0.0
    %v4684 = vmax.f32 %v4648, 0.0
    %v4685 = vmax.f32 %v4649, 0.0
    %v4686 = vmax.f32 %v4650, 0.0
    %v4687 = vmax.f32 %v4651, 0.0
    %v4688 = vmax.f32 %v4652, 0.0
    %v4689 = vmax.f32 %v4653, 0.0
    %v4690 = vmax.f32 %v4654, 0.0
    %v4691 = vmax.f32 %v4655, 0.0
    %v4692 = vmax.f32 %v4656, 0.0
    %v4693 = vmax.f32 %v4657, 0.0
    %v4694 = vmax.f32 %v4658, 0.0
    %v4695 = vmax.f32 %v4659, 0.0
    %v4696 = vmax.f32 %v4660, 0.0
    %v4697 = vmax.f32 %v4661, 0.0
    %v4698 = vmax.f32 %v4662, 0.0
    %v4699 = vmax.f32 %v4663, 0.0
    %v4700 = vmax.f32 %v4664, 0.0
    %v4701 = vmax.f32 %v4665, 0.0
    %v4702 = vmax.f32 %v4666, 0.0
    %v4703 = vmax.f32 %v4667, 0.0
    %v4704 = vmax.f32 %v4668, 0.0
    %v4705 = vmax.f32 %v4669, 0.0
    %v4706 = vld [vmem:[%s5] sm:$0xf]
    %v4707 = vld [vmem:[%s5 + $0x4] sm:$0xf]
    %v4708 = vld [vmem:[%s5 + $0x8] sm:$0xf]
    %v4709 = vld [vmem:[%s5 + $0xc] sm:$0xf]
    %v4710 = vld [vmem:[%s5 + $0x10] sm:$0xf]
    %v4711 = vld [vmem:[%s5 + $0x14] sm:$0xf]
    %v4712 = vld [vmem:[%s5 + $0x18] sm:$0xf]
    %v4713 = vld [vmem:[%s5 + $0x1c] sm:$0xf]
    %v4714 = vld [vmem:[%s5 + $0x20] sm:$0xf]
    %v4715 = vld [vmem:[%s5 + $0x24] sm:$0xf]
    %v4716 = vld [vmem:[%s5 + $0x28] sm:$0xf]
    %v4717 = vld [vmem:[%s5 + $0x2c] sm:$0xf]
    %v4718 = vld [vmem:[%s5 + $0x30] sm:$0xf]
    %v4719 = vld [vmem:[%s5 + $0x34] sm:$0xf]
    %v4720 = vld [vmem:[%s5 + $0x38] sm:$0xf]
    %v4721 = vld [vmem:[%s5 + $0x3c] sm:$0xf]
    %v4722 = vld [vmem:[%s5 + $0x40] sm:$0xf]
    %v4723 = vld [vmem:[%s5 + $0x44] sm:$0xf]
    %v4724 = vld [vmem:[%s5 + $0x48] sm:$0xf]
    %v4725 = vld [vmem:[%s5 + $0x4c] sm:$0xf]
    %v4726 = vld [vmem:[%s5 + $0x50] sm:$0xf]
    %v4727 = vld [vmem:[%s5 + $0x54] sm:$0xf]
    %v4728 = vld [vmem:[%s5 + $0x58] sm:$0xf]
    %v4729 = vld [vmem:[%s5 + $0x5c] sm:$0xf]
    %v4730 = vld [vmem:[%s5 + $0x60] sm:$0xf]
    %v4731 = vld [vmem:[%s5 + $0x64] sm:$0xf]
    %v4732 = vld [vmem:[%s5 + $0x68] sm:$0xf]
    %v4733 = vld [vmem:[%s5 + $0x6c] sm:$0xf]
    %v4734 = vld [vmem:[%s5 + $0x70] sm:$0xf]
    %v4735 = vld [vmem:[%s5 + $0x74] sm:$0xf]
    %v4736 = vld [vmem:[%s5 + $0x78] sm:$0xf]
    %v4737 = vld [vmem:[%s5 + $0x7c] sm:$0xf]
    %v4738 = vld [vmem:[%s5 + $0x80] sm:$0xf]
    %v4739 = vld [vmem:[%s5 + $0x84] sm:$0xf]
    %v4740 = vld [vmem:[%s5 + $0x88] sm:$0xf]
    %v4741 = vld [vmem:[%s5 + $0x8c] sm:$0xf]
    %v4742 = vld [vmem:[%s6] sm:$0x1]
    %v4743 = vld [vmem:[%s7] sm:$0x1]
    %v4744 = vrot.slane %v4670, 3
    %v4745 = vrot.slane %v4671, 3
    %v4746 = vrot.slane %v4672, 3
    %v4747 = vrot.slane %v4673, 3
    %v4748 = vrot.slane %v4674, 3
    %v4749 = vrot.slane %v4675, 3
    %v4750 = vrot.slane %v4676, 3
    %v4751 = vrot.slane %v4677, 3
    %v4752 = vrot.slane %v4678, 3
    %v4753 = vrot.slane %v4679, 3
    %v4754 = vrot.slane %v4680, 3
    %v4755 = vrot.slane %v4681, 3
    %v4756 = vrot.slane %v4682, 3
    %v4757 = vrot.slane %v4683, 3
    %v4758 = vrot.slane %v4684, 3
    %v4759 = vrot.slane %v4685, 3
    %v4760 = vrot.slane %v4686, 3
    %v4761 = vrot.slane %v4687, 3
    %v4762 = vrot.slane %v4688, 3
    %v4763 = vrot.slane %v4689, 3
    %v4764 = vrot.slane %v4690, 3
    %v4765 = vrot.slane %v4691, 3
    %v4766 = vrot.slane %v4692, 3
    %v4767 = vrot.slane %v4693, 3
    %v4768 = vrot.slane %v4694, 3
    %v4769 = vrot.slane %v4695, 3
    %v4770 = vrot.slane %v4696, 3
    %v4771 = vrot.slane %v4697, 3
    %v4772 = vrot.slane %v4698, 3
    %v4773 = vrot.slane %v4699, 3
    %v4774 = vrot.slane %v4700, 3
    %v4775 = vrot.slane %v4701, 3
    %v4776 = vrot.slane %v4702, 3
    %v4777 = vrot.slane %v4703, 3
    %v4778 = vrot.slane %v4704, 3
    %v4779 = vrot.slane %v4705, 3
    %v4780 = vsel %vm1367, %v4778, %v4779
    %v4781 = vsel %vm1367, %v4777, %v4778
    %v4782 = vsel %vm1367, %v4776, %v4777
    %v4783 = vsel %vm1367, %v4775, %v4776
    %v4784 = vsel %vm1367, %v4774, %v4775
    %v4785 = vsel %vm1367, %v4773, %v4774
    %v4786 = vsel %vm1367, %v4772, %v4773
    %v4787 = vsel %vm1367, %v4771, %v4772
    %v4788 = vsel %vm1367, %v4770, %v4771
    %v4789 = vsel %vm1367, %v4769, %v4770
    %v4790 = vsel %vm1367, %v4768, %v4769
    %v4791 = vsel %vm1367, %v4767, %v4768
    %v4792 = vsel %vm1367, %v4766, %v4767
    %v4793 = vsel %vm1367, %v4765, %v4766
    %v4794 = vsel %vm1367, %v4764, %v4765
    %v4795 = vsel %vm1367, %v4763, %v4764
    %v4796 = vsel %vm1367, %v4762, %v4763
    %v4797 = vsel %vm1367, %v4761, %v4762
    %v4798 = vsel %vm1367, %v4760, %v4761
    %v4799 = vsel %vm1367, %v4759, %v4760
    %v4800 = vsel %vm1367, %v4758, %v4759
    %v4801 = vsel %vm1367, %v4757, %v4758
    %v4802 = vsel %vm1367, %v4756, %v4757
    %v4803 = vsel %vm1367, %v4755, %v4756
    %v4804 = vsel %vm1367, %v4754, %v4755
    %v4805 = vsel %vm1367, %v4753, %v4754
    %v4806 = vsel %vm1367, %v4752, %v4753
    %v4807 = vsel %vm1367, %v4751, %v4752
    %v4808 = vsel %vm1367, %v4750, %v4751
    %v4809 = vsel %vm1367, %v4749, %v4750
    %v4810 = vsel %vm1367, %v4748, %v4749
    %v4811 = vsel %vm1367, %v4747, %v4748
    %v4812 = vsel %vm1367, %v4746, %v4747
    %v4813 = vsel %vm1367, %v4745, %v4746
    %v4814 = vsel %vm1367, %v4744, %v4745
    %v4815 = vsel %vm1367, %v4779, %v4744
    %v4816 = vmul.f32 %v4780, %v70
    %v4817 = vmul.f32 %v4815, %v75
    %v4818 = vmul.f32 %v4814, %v80
    %v4819 = vmul.f32 %v4813, %v85
    %v4820 = vmul.f32 %v4812, %v90
    %v4821 = vmul.f32 %v4811, %v95
    %v4822 = vmul.f32 %v4810, %v100
    %v4823 = vmul.f32 %v4809, %v105
    %v4824 = vmul.f32 %v4808, %v110
    %v4825 = vmul.f32 %v4807, %v115
    %v4826 = vmul.f32 %v4806, %v120
    %v4827 = vmul.f32 %v4805, %v125
    %v4828 = vmul.f32 %v4804, %v130
    %v4829 = vmul.f32 %v4803, %v135
    %v4830 = vmul.f32 %v4802, %v140
    %v4831 = vmul.f32 %v4801, %v145
    %v4832 = vmul.f32 %v4800, %v150
    %v4833 = vmul.f32 %v4799, %v155
    %v4834 = vmul.f32 %v4798, %v160
    %v4835 = vmul.f32 %v4797, %v165
    %v4836 = vmul.f32 %v4796, %v170
    %v4837 = vmul.f32 %v4795, %v175
    %v4838 = vmul.f32 %v4794, %v180
    %v4839 = vmul.f32 %v4793, %v185
    %v4840 = vmul.f32 %v4792, %v190
    %v4841 = vmul.f32 %v4791, %v195
    %v4842 = vmul.f32 %v4790, %v200
    %v4843 = vmul.f32 %v4789, %v205
    %v4844 = vmul.f32 %v4788, %v210
    %v4845 = vmul.f32 %v4787, %v215
    %v4846 = vmul.f32 %v4786, %v220
    %v4847 = vmul.f32 %v4785, %v225
    %v4848 = vmul.f32 %v4784, %v230
    %v4849 = vmul.f32 %v4783, %v235
    %v4850 = vmul.f32 %v4782, %v240
    %v4851 = vmul.f32 %v4781, %v245
    %v4852 = vpack.c.bf16 %v4817, %v4816
    %v4853 = vpack.c.bf16 %v4819, %v4818
    %v4854 = vpack.c.bf16 %v4821, %v4820
    %v4855 = vpack.c.bf16 %v4823, %v4822
    %v4856 = vpack.c.bf16 %v4825, %v4824
    %v4857 = vpack.c.bf16 %v4827, %v4826
    %v4858 = vpack.c.bf16 %v4829, %v4828
    %v4859 = vpack.c.bf16 %v4831, %v4830
    %v4860 = vpack.c.bf16 %v4833, %v4832
    %v4861 = vpack.c.bf16 %v4835, %v4834
    %v4862 = vpack.c.bf16 %v4837, %v4836
    %v4863 = vpack.c.bf16 %v4839, %v4838
    %v4864 = vpack.c.bf16 %v4841, %v4840
    %v4865 = vpack.c.bf16 %v4843, %v4842
    %v4866 = vpack.c.bf16 %v4845, %v4844
    %v4867 = vpack.c.bf16 %v4847, %v4846
    %v4868 = vpack.c.bf16 %v4849, %v4848
    %v4869 = vpack.c.bf16 %v4851, %v4850
    %v4870 = vrot.slane %v4670, 4
    %v4871 = vrot.slane %v4671, 4
    %v4872 = vrot.slane %v4672, 4
    %v4873 = vrot.slane %v4673, 4
    %v4874 = vrot.slane %v4674, 4
    %v4875 = vrot.slane %v4675, 4
    %v4876 = vrot.slane %v4676, 4
    %v4877 = vrot.slane %v4677, 4
    %v4878 = vrot.slane %v4678, 4
    %v4879 = vrot.slane %v4679, 4
    %v4880 = vrot.slane %v4680, 4
    %v4881 = vrot.slane %v4681, 4
    %v4882 = vrot.slane %v4682, 4
    %v4883 = vrot.slane %v4683, 4
    %v4884 = vrot.slane %v4684, 4
    %v4885 = vrot.slane %v4685, 4
    %v4886 = vrot.slane %v4686, 4
    %v4887 = vrot.slane %v4687, 4
    %v4888 = vrot.slane %v4688, 4
    %v4889 = vrot.slane %v4689, 4
    %v4890 = vrot.slane %v4690, 4
    %v4891 = vrot.slane %v4691, 4
    %v4892 = vrot.slane %v4692, 4
    %v4893 = vrot.slane %v4693, 4
    %v4894 = vrot.slane %v4694, 4
    %v4895 = vrot.slane %v4695, 4
    %v4896 = vrot.slane %v4696, 4
    %v4897 = vrot.slane %v4697, 4
    %v4898 = vrot.slane %v4698, 4
    %v4899 = vrot.slane %v4699, 4
    %v4900 = vrot.slane %v4700, 4
    %v4901 = vrot.slane %v4701, 4
    %v4902 = vrot.slane %v4702, 4
    %v4903 = vrot.slane %v4703, 4
    %v4904 = vrot.slane %v4704, 4
    %v4905 = vrot.slane %v4705, 4
    %v4906 = vsel %vm1494, %v4904, %v4905
    %v4907 = vsel %vm1494, %v4903, %v4904
    %v4908 = vsel %vm1494, %v4902, %v4903
    %v4909 = vsel %vm1494, %v4901, %v4902
    %v4910 = vsel %vm1494, %v4900, %v4901
    %v4911 = vsel %vm1494, %v4899, %v4900
    %v4912 = vsel %vm1494, %v4898, %v4899
    %v4913 = vsel %vm1494, %v4897, %v4898
    %v4914 = vsel %vm1494, %v4896, %v4897
    %v4915 = vsel %vm1494, %v4895, %v4896
    %v4916 = vsel %vm1494, %v4894, %v4895
    %v4917 = vsel %vm1494, %v4893, %v4894
    %v4918 = vsel %vm1494, %v4892, %v4893
    %v4919 = vsel %vm1494, %v4891, %v4892
    %v4920 = vsel %vm1494, %v4890, %v4891
    %v4921 = vsel %vm1494, %v4889, %v4890
    %v4922 = vsel %vm1494, %v4888, %v4889
    %v4923 = vsel %vm1494, %v4887, %v4888
    %v4924 = vsel %vm1494, %v4886, %v4887
    %v4925 = vsel %vm1494, %v4885, %v4886
    %v4926 = vsel %vm1494, %v4884, %v4885
    %v4927 = vsel %vm1494, %v4883, %v4884
    %v4928 = vsel %vm1494, %v4882, %v4883
    %v4929 = vsel %vm1494, %v4881, %v4882
    %v4930 = vsel %vm1494, %v4880, %v4881
    %v4931 = vsel %vm1494, %v4879, %v4880
    %v4932 = vsel %vm1494, %v4878, %v4879
    %v4933 = vsel %vm1494, %v4877, %v4878
    %v4934 = vsel %vm1494, %v4876, %v4877
    %v4935 = vsel %vm1494, %v4875, %v4876
    %v4936 = vsel %vm1494, %v4874, %v4875
    %v4937 = vsel %vm1494, %v4873, %v4874
    %v4938 = vsel %vm1494, %v4872, %v4873
    %v4939 = vsel %vm1494, %v4871, %v4872
    %v4940 = vsel %vm1494, %v4870, %v4871
    %v4941 = vsel %vm1494, %v4905, %v4870
    %v4942 = vmul.f32 %v4906, %v249
    %v4943 = vmul.f32 %v4941, %v253
    %v4944 = vmul.f32 %v4940, %v257
    %v4945 = vmul.f32 %v4939, %v261
    %v4946 = vmul.f32 %v4938, %v265
    %v4947 = vmul.f32 %v4937, %v269
    %v4948 = vmul.f32 %v4936, %v273
    %v4949 = vmul.f32 %v4935, %v277
    %v4950 = vmul.f32 %v4934, %v281
    %v4951 = vmul.f32 %v4933, %v285
    %v4952 = vmul.f32 %v4932, %v289
    %v4953 = vmul.f32 %v4931, %v293
    %v4954 = vmul.f32 %v4930, %v297
    %v4955 = vmul.f32 %v4929, %v301
    %v4956 = vmul.f32 %v4928, %v305
    %v4957 = vmul.f32 %v4927, %v309
    %v4958 = vmul.f32 %v4926, %v313
    %v4959 = vmul.f32 %v4925, %v317
    %v4960 = vmul.f32 %v4924, %v321
    %v4961 = vmul.f32 %v4923, %v325
    %v4962 = vmul.f32 %v4922, %v329
    %v4963 = vmul.f32 %v4921, %v333
    %v4964 = vmul.f32 %v4920, %v337
    %v4965 = vmul.f32 %v4919, %v341
    %v4966 = vmul.f32 %v4918, %v345
    %v4967 = vmul.f32 %v4917, %v349
    %v4968 = vmul.f32 %v4916, %v353
    %v4969 = vmul.f32 %v4915, %v357
    %v4970 = vmul.f32 %v4914, %v361
    %v4971 = vmul.f32 %v4913, %v365
    %v4972 = vmul.f32 %v4912, %v369
    %v4973 = vmul.f32 %v4911, %v373
    %v4974 = vmul.f32 %v4910, %v377
    %v4975 = vmul.f32 %v4909, %v381
    %v4976 = vmul.f32 %v4908, %v385
    %v4977 = vmul.f32 %v4907, %v389
    %v4978 = vpack.c.bf16 %v4943, %v4942
    %v4979 = vpack.c.bf16 %v4945, %v4944
    %v4980 = vpack.c.bf16 %v4947, %v4946
    %v4981 = vpack.c.bf16 %v4949, %v4948
    %v4982 = vpack.c.bf16 %v4951, %v4950
    %v4983 = vpack.c.bf16 %v4953, %v4952
    %v4984 = vpack.c.bf16 %v4955, %v4954
    %v4985 = vpack.c.bf16 %v4957, %v4956
    %v4986 = vpack.c.bf16 %v4959, %v4958
    %v4987 = vpack.c.bf16 %v4961, %v4960
    %v4988 = vpack.c.bf16 %v4963, %v4962
    %v4989 = vpack.c.bf16 %v4965, %v4964
    %v4990 = vpack.c.bf16 %v4967, %v4966
    %v4991 = vpack.c.bf16 %v4969, %v4968
    %v4992 = vpack.c.bf16 %v4971, %v4970
    %v4993 = vpack.c.bf16 %v4973, %v4972
    %v4994 = vpack.c.bf16 %v4975, %v4974
    %v4995 = vpack.c.bf16 %v4977, %v4976
    %v5000 = vunpack.c.l.b16 %v4710
    %v5001 = vunpack.c.l.b16 %v4711
    %v5002 = vunpack.c.l.b16 %v4712
    %v5003 = vunpack.c.l.b16 %v4713
    %v5004 = vpack.c.b16 %v5001, %v5000
    %v5005 = vpack.c.b16 %v5003, %v5002
    %v5009 = vsel %vm1597, %v4978, 0
    %v5012 = vsel %vm1597, %v4979, 0
    %v5015 = vsel %vm1597, %v4980, 0
    %v5018 = vsel %vm1597, %v4981, 0
    %v5021 = vsel %vm1597, %v4982, 0
    %v5024 = vsel %vm1597, %v4983, 0
    %v5027 = vsel %vm1597, %v4984, 0
    %v5030 = vsel %vm1597, %v4985, 0
    %v5033 = vsel %vm1597, %v4986, 0
    %v5036 = vsel %vm1597, %v4987, 0
    %v5039 = vsel %vm1597, %v4988, 0
    %v5042 = vsel %vm1597, %v4989, 0
    %v5045 = vsel %vm1597, %v4990, 0
    %v5048 = vsel %vm1597, %v4991, 0
    %v5051 = vsel %vm1597, %v4992, 0
    %v5054 = vsel %vm1597, %v4993, 0
    %v5057 = vsel %vm1597, %v4994, 0
    %v5060 = vsel %vm1597, %v4995, 0
    %5062 = vmatprep.subr.bf16.mxu0 0
    %5063 = vmatpush1.bf16.msra.mxu0 %v5004
    %5064 = vmatprep.subr.bf16.mxu0 0
    %5065 = vmatpush1.bf16.msra.mxu0 %v5005
    %5066 = vmatprep.subr.bf16.mxu0 0
    %5067 = vmatpush1.bf16.msra.mxu0 0
    %5068 = vmatprep.subr.bf16.mxu0 0
    %5069 = vmatpush1.bf16.msra.mxu0 0
    %5070 = vmatprep.subr.bf16.mxu0 0
    %5071 = vmatpush1.bf16.msra.mxu0 0
    %5072 = vmatprep.subr.bf16.mxu0 0
    %5073 = vmatpush1.bf16.msra.mxu0 0
    %5074 = vmatprep.subr.bf16.mxu0 0
    %5075 = vmatpush1.bf16.msra.mxu0 0
    %5076 = vmatprep.subr.bf16.mxu0 0
    %5077 = vmatpush1.bf16.msra.mxu0 0
    %5078 = vmatprep.subr.bf16.mxu0 0
    %5079 = vmatpush1.bf16.msra.mxu0 0
    %5080 = vmatprep.subr.bf16.mxu0 0
    %5081 = vmatpush1.bf16.msra.mxu0 0
    %5082 = vmatprep.subr.bf16.mxu0 0
    %5083 = vmatpush1.bf16.msra.mxu0 0
    %5084 = vmatprep.subr.bf16.mxu0 0
    %5085 = vmatpush1.bf16.msra.mxu0 0
    %5086 = vmatprep.subr.bf16.mxu0 0
    %5087 = vmatpush1.bf16.msra.mxu0 0
    %5088 = vmatprep.subr.bf16.mxu0 0
    %5089 = vmatpush1.bf16.msra.mxu0 0
    %5090 = vmatprep.subr.bf16.mxu0 0
    %5091 = vmatpush1.bf16.msra.mxu0 0
    %5092 = vmatprep.subr.bf16.mxu0 0
    %5093 = vmatpush1.bf16.msra.mxu0 0
    %5094 = vmatprep.mubr.bf16.mxu0 0
    %5095 = vmatmul.mubr.bf16.gmra.mrb[0].mxu0 %v5009
    %v5096 = vpop.f32.mrb[0].mxu0
    %v5097 = vadd.f32 0.0, %v5096
    %v5098 = vpop.f32.mrb[0].mxu0
    %v5099 = vpop.f32.mrb[0].mxu0
    %v5100 = vadd.f32 0.0, %v5099
    %v5101 = vpop.f32.mrb[0].mxu0
    %5102 = vmatprep.mubr.bf16.mxu0 0
    %5103 = vmatmul.mubr.bf16.gmra.mrb[0].mxu0 %v5012
    %v5104 = vpop.f32.mrb[0].mxu0
    %v5105 = vadd.f32 0.0, %v5104
    %v5106 = vpop.f32.mrb[0].mxu0
    %v5107 = vpop.f32.mrb[0].mxu0
    %v5108 = vadd.f32 0.0, %v5107
    %v5109 = vpop.f32.mrb[0].mxu0
    %5110 = vmatprep.mubr.bf16.mxu0 0
    %5111 = vmatmul.mubr.bf16.gmra.mrb[0].mxu0 %v5015
    %v5112 = vpop.f32.mrb[0].mxu0
    %v5113 = vadd.f32 0.0, %v5112
    %v5114 = vpop.f32.mrb[0].mxu0
    %v5115 = vpop.f32.mrb[0].mxu0
    %v5116 = vadd.f32 0.0, %v5115
    %v5117 = vpop.f32.mrb[0].mxu0
    %5118 = vmatprep.mubr.bf16.mxu0 0
    %5119 = vmatmul.mubr.bf16.gmra.mrb[0].mxu0 %v5018
    %v5120 = vpop.f32.mrb[0].mxu0
    %v5121 = vadd.f32 0.0, %v5120
    %v5122 = vpop.f32.mrb[0].mxu0
    %v5123 = vpop.f32.mrb[0].mxu0
    %v5124 = vadd.f32 0.0, %v5123
    %v5125 = vpop.f32.mrb[0].mxu0
    %5126 = vmatprep.mubr.bf16.mxu0 0
    %5127 = vmatmul.mubr.bf16.gmra.mrb[0].mxu0 %v5021
    %v5128 = vpop.f32.mrb[0].mxu0
    %v5129 = vadd.f32 0.0, %v5128
    %v5130 = vpop.f32.mrb[0].mxu0
    %v5131 = vpop.f32.mrb[0].mxu0
    %v5132 = vadd.f32 0.0, %v5131
    %v5133 = vpop.f32.mrb[0].mxu0
    %5134 = vmatprep.mubr.bf16.mxu0 0
    %5135 = vmatmul.mubr.bf16.gmra.mrb[0].mxu0 %v5024
    %v5136 = vpop.f32.mrb[0].mxu0
    %v5137 = vadd.f32 0.0, %v5136
    %v5138 = vpop.f32.mrb[0].mxu0
    %v5139 = vpop.f32.mrb[0].mxu0
    %v5140 = vadd.f32 0.0, %v5139
    %v5141 = vpop.f32.mrb[0].mxu0
    %5142 = vmatprep.mubr.bf16.mxu0 0
    %5143 = vmatmul.mubr.bf16.gmra.mrb[0].mxu0 %v5027
    %v5144 = vpop.f32.mrb[0].mxu0
    %v5145 = vadd.f32 0.0, %v5144
    %v5146 = vpop.f32.mrb[0].mxu0
    %v5147 = vpop.f32.mrb[0].mxu0
    %v5148 = vadd.f32 0.0, %v5147
    %v5149 = vpop.f32.mrb[0].mxu0
    %5150 = vmatprep.mubr.bf16.mxu0 0
    %5151 = vmatmul.mubr.bf16.gmra.mrb[0].mxu0 %v5030
    %v5152 = vpop.f32.mrb[0].mxu0
    %v5153 = vadd.f32 0.0, %v5152
    %v5154 = vpop.f32.mrb[0].mxu0
    %v5155 = vpop.f32.mrb[0].mxu0
    %v5156 = vadd.f32 0.0, %v5155
    %v5157 = vpop.f32.mrb[0].mxu0
    %5158 = vmatprep.mubr.bf16.mxu0 0
    %5159 = vmatmul.mubr.bf16.gmra.mrb[0].mxu0 %v5033
    %v5160 = vpop.f32.mrb[0].mxu0
    %v5161 = vadd.f32 0.0, %v5160
    %v5162 = vpop.f32.mrb[0].mxu0
    %v5163 = vpop.f32.mrb[0].mxu0
    %v5164 = vadd.f32 0.0, %v5163
    %v5165 = vpop.f32.mrb[0].mxu0
    %5166 = vmatprep.mubr.bf16.mxu0 0
    %5167 = vmatmul.mubr.bf16.gmra.mrb[0].mxu0 %v5036
    %v5168 = vpop.f32.mrb[0].mxu0
    %v5169 = vadd.f32 0.0, %v5168
    %v5170 = vpop.f32.mrb[0].mxu0
    %v5171 = vpop.f32.mrb[0].mxu0
    %v5172 = vadd.f32 0.0, %v5171
    %v5173 = vpop.f32.mrb[0].mxu0
    %5174 = vmatprep.mubr.bf16.mxu0 0
    %5175 = vmatmul.mubr.bf16.gmra.mrb[0].mxu0 %v5039
    %v5176 = vpop.f32.mrb[0].mxu0
    %v5177 = vadd.f32 0.0, %v5176
    %v5178 = vpop.f32.mrb[0].mxu0
    %v5179 = vpop.f32.mrb[0].mxu0
    %v5180 = vadd.f32 0.0, %v5179
    %v5181 = vpop.f32.mrb[0].mxu0
    %5182 = vmatprep.mubr.bf16.mxu0 0
    %5183 = vmatmul.mubr.bf16.gmra.mrb[0].mxu0 %v5042
    %v5184 = vpop.f32.mrb[0].mxu0
    %v5185 = vadd.f32 0.0, %v5184
    %v5186 = vpop.f32.mrb[0].mxu0
    %v5187 = vpop.f32.mrb[0].mxu0
    %v5188 = vadd.f32 0.0, %v5187
    %v5189 = vpop.f32.mrb[0].mxu0
    %5190 = vmatprep.mubr.bf16.mxu0 0
    %5191 = vmatmul.mubr.bf16.gmra.mrb[0].mxu0 %v5045
    %v5192 = vpop.f32.mrb[0].mxu0
    %v5193 = vadd.f32 0.0, %v5192
    %v5194 = vpop.f32.mrb[0].mxu0
    %v5195 = vpop.f32.mrb[0].mxu0
    %v5196 = vadd.f32 0.0, %v5195
    %v5197 = vpop.f32.mrb[0].mxu0
    %5198 = vmatprep.mubr.bf16.mxu0 0
    %5199 = vmatmul.mubr.bf16.gmra.mrb[0].mxu0 %v5048
    %v5200 = vpop.f32.mrb[0].mxu0
    %v5201 = vadd.f32 0.0, %v5200
    %v5202 = vpop.f32.mrb[0].mxu0
    %v5203 = vpop.f32.mrb[0].mxu0
    %v5204 = vadd.f32 0.0, %v5203
    %v5205 = vpop.f32.mrb[0].mxu0
    %5206 = vmatprep.mubr.bf16.mxu0 0
    %5207 = vmatmul.mubr.bf16.gmra.mrb[0].mxu0 %v5051
    %v5208 = vpop.f32.mrb[0].mxu0
    %v5209 = vadd.f32 0.0, %v5208
    %v5210 = vpop.f32.mrb[0].mxu0
    %v5211 = vpop.f32.mrb[0].mxu0
    %v5212 = vadd.f32 0.0, %v5211
    %v5213 = vpop.f32.mrb[0].mxu0
    %5214 = vmatprep.mubr.bf16.mxu0 0
    %5215 = vmatmul.mubr.bf16.gmra.mrb[0].mxu0 %v5054
    %v5216 = vpop.f32.mrb[0].mxu0
    %v5217 = vadd.f32 0.0, %v5216
    %v5218 = vpop.f32.mrb[0].mxu0
    %v5219 = vpop.f32.mrb[0].mxu0
    %v5220 = vadd.f32 0.0, %v5219
    %v5221 = vpop.f32.mrb[0].mxu0
    %5222 = vmatprep.mubr.bf16.mxu0 0
    %5223 = vmatmul.mubr.bf16.gmra.mrb[0].mxu0 %v5057
    %v5224 = vpop.f32.mrb[0].mxu0
    %v5225 = vadd.f32 0.0, %v5224
    %v5226 = vpop.f32.mrb[0].mxu0
    %v5227 = vpop.f32.mrb[0].mxu0
    %v5228 = vadd.f32 0.0, %v5227
    %v5229 = vpop.f32.mrb[0].mxu0
    %5230 = vmatprep.mubr.bf16.mxu0 0
    %5231 = vmatmul.mubr.bf16.gmra.mrb[0].mxu0 %v5060
    %v5232 = vpop.f32.mrb[0].mxu0
    %v5233 = vadd.f32 0.0, %v5232
    %v5234 = vpop.f32.mrb[0].mxu0
    %v5235 = vpop.f32.mrb[0].mxu0
    %v5236 = vadd.f32 0.0, %v5235
    %v5237 = vpop.f32.mrb[0].mxu0
    %5238 = vdwg.mxu0
    %v5243 = vunpack.c.l.b16 %v4706
    %v5244 = vunpack.c.l.b16 %v4707
    %v5245 = vunpack.c.l.b16 %v4708
    %v5246 = vunpack.c.l.b16 %v4709
    %v5247 = vpack.c.b16 %v5244, %v5243
    %v5248 = vpack.c.b16 %v5246, %v5245
    %v5252 = vsel %vm1597, %v4852, 0
    %v5255 = vsel %vm1597, %v4853, 0
    %v5258 = vsel %vm1597, %v4854, 0
    %v5261 = vsel %vm1597, %v4855, 0
    %v5264 = vsel %vm1597, %v4856, 0
    %v5267 = vsel %vm1597, %v4857, 0
    %v5270 = vsel %vm1597, %v4858, 0
    %v5273 = vsel %vm1597, %v4859, 0
    %v5276 = vsel %vm1597, %v4860, 0
    %v5279 = vsel %vm1597, %v4861, 0
    %v5282 = vsel %vm1597, %v4862, 0
    %v5285 = vsel %vm1597, %v4863, 0
    %v5288 = vsel %vm1597, %v4864, 0
    %v5291 = vsel %vm1597, %v4865, 0
    %v5294 = vsel %vm1597, %v4866, 0
    %v5297 = vsel %vm1597, %v4867, 0
    %v5300 = vsel %vm1597, %v4868, 0
    %v5303 = vsel %vm1597, %v4869, 0
    %5305 = vmatprep.subr.bf16.mxu0 0
    %5306 = vmatpush1.bf16.msra.mxu0 %v5247
    %5307 = vmatprep.subr.bf16.mxu0 0
    %5308 = vmatpush1.bf16.msra.mxu0 %v5248
    %5309 = vmatprep.subr.bf16.mxu0 0
    %5310 = vmatpush1.bf16.msra.mxu0 0
    %5311 = vmatprep.subr.bf16.mxu0 0
    %5312 = vmatpush1.bf16.msra.mxu0 0
    %5313 = vmatprep.subr.bf16.mxu0 0
    %5314 = vmatpush1.bf16.msra.mxu0 0
    %5315 = vmatprep.subr.bf16.mxu0 0
    %5316 = vmatpush1.bf16.msra.mxu0 0
    %5317 = vmatprep.subr.bf16.mxu0 0
    %5318 = vmatpush1.bf16.msra.mxu0 0
    %5319 = vmatprep.subr.bf16.mxu0 0
    %5320 = vmatpush1.bf16.msra.mxu0 0
    %5321 = vmatprep.subr.bf16.mxu0 0
    %5322 = vmatpush1.bf16.msra.mxu0 0
    %5323 = vmatprep.subr.bf16.mxu0 0
    %5324 = vmatpush1.bf16.msra.mxu0 0
    %5325 = vmatprep.subr.bf16.mxu0 0
    %5326 = vmatpush1.bf16.msra.mxu0 0
    %5327 = vmatprep.subr.bf16.mxu0 0
    %5328 = vmatpush1.bf16.msra.mxu0 0
    %5329 = vmatprep.subr.bf16.mxu0 0
    %5330 = vmatpush1.bf16.msra.mxu0 0
    %5331 = vmatprep.subr.bf16.mxu0 0
    %5332 = vmatpush1.bf16.msra.mxu0 0
    %5333 = vmatprep.subr.bf16.mxu0 0
    %5334 = vmatpush1.bf16.msra.mxu0 0
    %5335 = vmatprep.subr.bf16.mxu0 0
    %5336 = vmatpush1.bf16.msra.mxu0 0
    %5337 = vmatprep.mubr.bf16.mxu0 0
    %5338 = vmatmul.mubr.bf16.gmra.mrb[0].mxu0 %v5252
    %v5339 = vpop.f32.mrb[0].mxu0
    %v5340 = vadd.f32 %v5097, %v5339
    %v5341 = vpop.f32.mrb[0].mxu0
    %v5342 = vpop.f32.mrb[0].mxu0
    %v5343 = vadd.f32 %v5100, %v5342
    %v5344 = vpop.f32.mrb[0].mxu0
    %5345 = vmatprep.mubr.bf16.mxu0 0
    %5346 = vmatmul.mubr.bf16.gmra.mrb[0].mxu0 %v5255
    %v5347 = vpop.f32.mrb[0].mxu0
    %v5348 = vadd.f32 %v5105, %v5347
    %v5349 = vpop.f32.mrb[0].mxu0
    %v5350 = vpop.f32.mrb[0].mxu0
    %v5351 = vadd.f32 %v5108, %v5350
    %v5352 = vpop.f32.mrb[0].mxu0
    %5353 = vmatprep.mubr.bf16.mxu0 0
    %5354 = vmatmul.mubr.bf16.gmra.mrb[0].mxu0 %v5258
    %v5355 = vpop.f32.mrb[0].mxu0
    %v5356 = vadd.f32 %v5113, %v5355
    %v5357 = vpop.f32.mrb[0].mxu0
    %v5358 = vpop.f32.mrb[0].mxu0
    %v5359 = vadd.f32 %v5116, %v5358
    %v5360 = vpop.f32.mrb[0].mxu0
    %5361 = vmatprep.mubr.bf16.mxu0 0
    %5362 = vmatmul.mubr.bf16.gmra.mrb[0].mxu0 %v5261
    %v5363 = vpop.f32.mrb[0].mxu0
    %v5364 = vadd.f32 %v5121, %v5363
    %v5365 = vpop.f32.mrb[0].mxu0
    %v5366 = vpop.f32.mrb[0].mxu0
    %v5367 = vadd.f32 %v5124, %v5366
    %v5368 = vpop.f32.mrb[0].mxu0
    %5369 = vmatprep.mubr.bf16.mxu0 0
    %5370 = vmatmul.mubr.bf16.gmra.mrb[0].mxu0 %v5264
    %v5371 = vpop.f32.mrb[0].mxu0
    %v5372 = vadd.f32 %v5129, %v5371
    %v5373 = vpop.f32.mrb[0].mxu0
    %v5374 = vpop.f32.mrb[0].mxu0
    %v5375 = vadd.f32 %v5132, %v5374
    %v5376 = vpop.f32.mrb[0].mxu0
    %5377 = vmatprep.mubr.bf16.mxu0 0
    %5378 = vmatmul.mubr.bf16.gmra.mrb[0].mxu0 %v5267
    %v5379 = vpop.f32.mrb[0].mxu0
    %v5380 = vadd.f32 %v5137, %v5379
    %v5381 = vpop.f32.mrb[0].mxu0
    %v5382 = vpop.f32.mrb[0].mxu0
    %v5383 = vadd.f32 %v5140, %v5382
    %v5384 = vpop.f32.mrb[0].mxu0
    %5385 = vmatprep.mubr.bf16.mxu0 0
    %5386 = vmatmul.mubr.bf16.gmra.mrb[0].mxu0 %v5270
    %v5387 = vpop.f32.mrb[0].mxu0
    %v5388 = vadd.f32 %v5145, %v5387
    %v5389 = vpop.f32.mrb[0].mxu0
    %v5390 = vpop.f32.mrb[0].mxu0
    %v5391 = vadd.f32 %v5148, %v5390
    %v5392 = vpop.f32.mrb[0].mxu0
    %5393 = vmatprep.mubr.bf16.mxu0 0
    %5394 = vmatmul.mubr.bf16.gmra.mrb[0].mxu0 %v5273
    %v5395 = vpop.f32.mrb[0].mxu0
    %v5396 = vadd.f32 %v5153, %v5395
    %v5397 = vpop.f32.mrb[0].mxu0
    %v5398 = vpop.f32.mrb[0].mxu0
    %v5399 = vadd.f32 %v5156, %v5398
    %v5400 = vpop.f32.mrb[0].mxu0
    %5401 = vmatprep.mubr.bf16.mxu0 0
    %5402 = vmatmul.mubr.bf16.gmra.mrb[0].mxu0 %v5276
    %v5403 = vpop.f32.mrb[0].mxu0
    %v5404 = vadd.f32 %v5161, %v5403
    %v5405 = vpop.f32.mrb[0].mxu0
    %v5406 = vpop.f32.mrb[0].mxu0
    %v5407 = vadd.f32 %v5164, %v5406
    %v5408 = vpop.f32.mrb[0].mxu0
    %5409 = vmatprep.mubr.bf16.mxu0 0
    %5410 = vmatmul.mubr.bf16.gmra.mrb[0].mxu0 %v5279
    %v5411 = vpop.f32.mrb[0].mxu0
    %v5412 = vadd.f32 %v5169, %v5411
    %v5413 = vpop.f32.mrb[0].mxu0
    %v5414 = vpop.f32.mrb[0].mxu0
    %v5415 = vadd.f32 %v5172, %v5414
    %v5416 = vpop.f32.mrb[0].mxu0
    %5417 = vmatprep.mubr.bf16.mxu0 0
    %5418 = vmatmul.mubr.bf16.gmra.mrb[0].mxu0 %v5282
    %v5419 = vpop.f32.mrb[0].mxu0
    %v5420 = vadd.f32 %v5177, %v5419
    %v5421 = vpop.f32.mrb[0].mxu0
    %v5422 = vpop.f32.mrb[0].mxu0
    %v5423 = vadd.f32 %v5180, %v5422
    %v5424 = vpop.f32.mrb[0].mxu0
    %5425 = vmatprep.mubr.bf16.mxu0 0
    %5426 = vmatmul.mubr.bf16.gmra.mrb[0].mxu0 %v5285
    %v5427 = vpop.f32.mrb[0].mxu0
    %v5428 = vadd.f32 %v5185, %v5427
    %v5429 = vpop.f32.mrb[0].mxu0
    %v5430 = vpop.f32.mrb[0].mxu0
    %v5431 = vadd.f32 %v5188, %v5430
    %v5432 = vpop.f32.mrb[0].mxu0
    %5433 = vmatprep.mubr.bf16.mxu0 0
    %5434 = vmatmul.mubr.bf16.gmra.mrb[0].mxu0 %v5288
    %v5435 = vpop.f32.mrb[0].mxu0
    %v5436 = vadd.f32 %v5193, %v5435
    %v5437 = vpop.f32.mrb[0].mxu0
    %v5438 = vpop.f32.mrb[0].mxu0
    %v5439 = vadd.f32 %v5196, %v5438
    %v5440 = vpop.f32.mrb[0].mxu0
    %5441 = vmatprep.mubr.bf16.mxu0 0
    %5442 = vmatmul.mubr.bf16.gmra.mrb[0].mxu0 %v5291
    %v5443 = vpop.f32.mrb[0].mxu0
    %v5444 = vadd.f32 %v5201, %v5443
    %v5445 = vpop.f32.mrb[0].mxu0
    %v5446 = vpop.f32.mrb[0].mxu0
    %v5447 = vadd.f32 %v5204, %v5446
    %v5448 = vpop.f32.mrb[0].mxu0
    %5449 = vmatprep.mubr.bf16.mxu0 0
    %5450 = vmatmul.mubr.bf16.gmra.mrb[0].mxu0 %v5294
    %v5451 = vpop.f32.mrb[0].mxu0
    %v5452 = vadd.f32 %v5209, %v5451
    %v5453 = vpop.f32.mrb[0].mxu0
    %v5454 = vpop.f32.mrb[0].mxu0
    %v5455 = vadd.f32 %v5212, %v5454
    %v5456 = vpop.f32.mrb[0].mxu0
    %5457 = vmatprep.mubr.bf16.mxu0 0
    %5458 = vmatmul.mubr.bf16.gmra.mrb[0].mxu0 %v5297
    %v5459 = vpop.f32.mrb[0].mxu0
    %v5460 = vadd.f32 %v5217, %v5459
    %v5461 = vpop.f32.mrb[0].mxu0
    %v5462 = vpop.f32.mrb[0].mxu0
    %v5463 = vadd.f32 %v5220, %v5462
    %v5464 = vpop.f32.mrb[0].mxu0
    %5465 = vmatprep.mubr.bf16.mxu0 0
    %5466 = vmatmul.mubr.bf16.gmra.mrb[0].mxu0 %v5300
    %v5467 = vpop.f32.mrb[0].mxu0
    %v5468 = vadd.f32 %v5225, %v5467
    %v5469 = vpop.f32.mrb[0].mxu0
    %v5470 = vpop.f32.mrb[0].mxu0
    %v5471 = vadd.f32 %v5228, %v5470
    %v5472 = vpop.f32.mrb[0].mxu0
    %5473 = vmatprep.mubr.bf16.mxu0 0
    %5474 = vmatmul.mubr.bf16.gmra.mrb[0].mxu0 %v5303
    %v5475 = vpop.f32.mrb[0].mxu0
    %v5476 = vadd.f32 %v5233, %v5475
    %v5477 = vpop.f32.mrb[0].mxu0
    %v5478 = vpop.f32.mrb[0].mxu0
    %v5479 = vadd.f32 %v5236, %v5478
    %v5480 = vpop.f32.mrb[0].mxu0
    %5481 = vdwg.mxu0
    %v5482 = vrot.slane %v4670, 5
    %v5483 = vrot.slane %v4671, 5
    %v5484 = vrot.slane %v4672, 5
    %v5485 = vrot.slane %v4673, 5
    %v5486 = vrot.slane %v4674, 5
    %v5487 = vrot.slane %v4675, 5
    %v5488 = vrot.slane %v4676, 5
    %v5489 = vrot.slane %v4677, 5
    %v5490 = vrot.slane %v4678, 5
    %v5491 = vrot.slane %v4679, 5
    %v5492 = vrot.slane %v4680, 5
    %v5493 = vrot.slane %v4681, 5
    %v5494 = vrot.slane %v4682, 5
    %v5495 = vrot.slane %v4683, 5
    %v5496 = vrot.slane %v4684, 5
    %v5497 = vrot.slane %v4685, 5
    %v5498 = vrot.slane %v4686, 5
    %v5499 = vrot.slane %v4687, 5
    %v5500 = vrot.slane %v4688, 5
    %v5501 = vrot.slane %v4689, 5
    %v5502 = vrot.slane %v4690, 5
    %v5503 = vrot.slane %v4691, 5
    %v5504 = vrot.slane %v4692, 5
    %v5505 = vrot.slane %v4693, 5
    %v5506 = vrot.slane %v4694, 5
    %v5507 = vrot.slane %v4695, 5
    %v5508 = vrot.slane %v4696, 5
    %v5509 = vrot.slane %v4697, 5
    %v5510 = vrot.slane %v4698, 5
    %v5511 = vrot.slane %v4699, 5
    %v5512 = vrot.slane %v4700, 5
    %v5513 = vrot.slane %v4701, 5
    %v5514 = vrot.slane %v4702, 5
    %v5515 = vrot.slane %v4703, 5
    %v5516 = vrot.slane %v4704, 5
    %v5517 = vrot.slane %v4705, 5
    %v5518 = vsel %vm2108, %v5516, %v5517
    %v5519 = vsel %vm2108, %v5515, %v5516
    %v5520 = vsel %vm2108, %v5514, %v5515
    %v5521 = vsel %vm2108, %v5513, %v5514
    %v5522 = vsel %vm2108, %v5512, %v5513
    %v5523 = vsel %vm2108, %v5511, %v5512
    %v5524 = vsel %vm2108, %v5510, %v5511
    %v5525 = vsel %vm2108, %v5509, %v5510
    %v5526 = vsel %vm2108, %v5508, %v5509
    %v5527 = vsel %vm2108, %v5507, %v5508
    %v5528 = vsel %vm2108, %v5506, %v5507
    %v5529 = vsel %vm2108, %v5505, %v5506
    %v5530 = vsel %vm2108, %v5504, %v5505
    %v5531 = vsel %vm2108, %v5503, %v5504
    %v5532 = vsel %vm2108, %v5502, %v5503
    %v5533 = vsel %vm2108, %v5501, %v5502
    %v5534 = vsel %vm2108, %v5500, %v5501
    %v5535 = vsel %vm2108, %v5499, %v5500
    %v5536 = vsel %vm2108, %v5498, %v5499
    %v5537 = vsel %vm2108, %v5497, %v5498
    %v5538 = vsel %vm2108, %v5496, %v5497
    %v5539 = vsel %vm2108, %v5495, %v5496
    %v5540 = vsel %vm2108, %v5494, %v5495
    %v5541 = vsel %vm2108, %v5493, %v5494
    %v5542 = vsel %vm2108, %v5492, %v5493
    %v5543 = vsel %vm2108, %v5491, %v5492
    %v5544 = vsel %vm2108, %v5490, %v5491
    %v5545 = vsel %vm2108, %v5489, %v5490
    %v5546 = vsel %vm2108, %v5488, %v5489
    %v5547 = vsel %vm2108, %v5487, %v5488
    %v5548 = vsel %vm2108, %v5486, %v5487
    %v5549 = vsel %vm2108, %v5485, %v5486
    %v5550 = vsel %vm2108, %v5484, %v5485
    %v5551 = vsel %vm2108, %v5483, %v5484
    %v5552 = vsel %vm2108, %v5482, %v5483
    %v5553 = vsel %vm2108, %v5517, %v5482
    %v5554 = vmul.f32 %v5518, %v393
    %v5555 = vmul.f32 %v5553, %v397
    %v5556 = vmul.f32 %v5552, %v401
    %v5557 = vmul.f32 %v5551, %v405
    %v5558 = vmul.f32 %v5550, %v409
    %v5559 = vmul.f32 %v5549, %v413
    %v5560 = vmul.f32 %v5548, %v417
    %v5561 = vmul.f32 %v5547, %v421
    %v5562 = vmul.f32 %v5546, %v425
    %v5563 = vmul.f32 %v5545, %v429
    %v5564 = vmul.f32 %v5544, %v433
    %v5565 = vmul.f32 %v5543, %v437
    %v5566 = vmul.f32 %v5542, %v441
    %v5567 = vmul.f32 %v5541, %v445
    %v5568 = vmul.f32 %v5540, %v449
    %v5569 = vmul.f32 %v5539, %v453
    %v5570 = vmul.f32 %v5538, %v457
    %v5571 = vmul.f32 %v5537, %v461
    %v5572 = vmul.f32 %v5536, %v465
    %v5573 = vmul.f32 %v5535, %v469
    %v5574 = vmul.f32 %v5534, %v473
    %v5575 = vmul.f32 %v5533, %v477
    %v5576 = vmul.f32 %v5532, %v481
    %v5577 = vmul.f32 %v5531, %v485
    %v5578 = vmul.f32 %v5530, %v489
    %v5579 = vmul.f32 %v5529, %v493
    %v5580 = vmul.f32 %v5528, %v497
    %v5581 = vmul.f32 %v5527, %v501
    %v5582 = vmul.f32 %v5526, %v505
    %v5583 = vmul.f32 %v5525, %v509
    %v5584 = vmul.f32 %v5524, %v513
    %v5585 = vmul.f32 %v5523, %v517
    %v5586 = vmul.f32 %v5522, %v521
    %v5587 = vmul.f32 %v5521, %v525
    %v5588 = vmul.f32 %v5520, %v529
    %v5589 = vmul.f32 %v5519, %v533
    %v5590 = vpack.c.bf16 %v5555, %v5554
    %v5591 = vpack.c.bf16 %v5557, %v5556
    %v5592 = vpack.c.bf16 %v5559, %v5558
    %v5593 = vpack.c.bf16 %v5561, %v5560
    %v5594 = vpack.c.bf16 %v5563, %v5562
    %v5595 = vpack.c.bf16 %v5565, %v5564
    %v5596 = vpack.c.bf16 %v5567, %v5566
    %v5597 = vpack.c.bf16 %v5569, %v5568
    %v5598 = vpack.c.bf16 %v5571, %v5570
    %v5599 = vpack.c.bf16 %v5573, %v5572
    %v5600 = vpack.c.bf16 %v5575, %v5574
    %v5601 = vpack.c.bf16 %v5577, %v5576
    %v5602 = vpack.c.bf16 %v5579, %v5578
    %v5603 = vpack.c.bf16 %v5581, %v5580
    %v5604 = vpack.c.bf16 %v5583, %v5582
    %v5605 = vpack.c.bf16 %v5585, %v5584
    %v5606 = vpack.c.bf16 %v5587, %v5586
    %v5607 = vpack.c.bf16 %v5589, %v5588
    %v5612 = vunpack.c.l.b16 %v4714
    %v5613 = vunpack.c.l.b16 %v4715
    %v5614 = vunpack.c.l.b16 %v4716
    %v5615 = vunpack.c.l.b16 %v4717
    %v5616 = vpack.c.b16 %v5613, %v5612
    %v5617 = vpack.c.b16 %v5615, %v5614
    %v5621 = vsel %vm1597, %v5590, 0
    %v5624 = vsel %vm1597, %v5591, 0
    %v5627 = vsel %vm1597, %v5592, 0
    %v5630 = vsel %vm1597, %v5593, 0
    %v5633 = vsel %vm1597, %v5594, 0
    %v5636 = vsel %vm1597, %v5595, 0
    %v5639 = vsel %vm1597, %v5596, 0
    %v5642 = vsel %vm1597, %v5597, 0
    %v5645 = vsel %vm1597, %v5598, 0
    %v5648 = vsel %vm1597, %v5599, 0
    %v5651 = vsel %vm1597, %v5600, 0
    %v5654 = vsel %vm1597, %v5601, 0
    %v5657 = vsel %vm1597, %v5602, 0
    %v5660 = vsel %vm1597, %v5603, 0
    %v5663 = vsel %vm1597, %v5604, 0
    %v5666 = vsel %vm1597, %v5605, 0
    %v5669 = vsel %vm1597, %v5606, 0
    %v5672 = vsel %vm1597, %v5607, 0
    %5674 = vmatprep.subr.bf16.mxu0 0
    %5675 = vmatpush1.bf16.msra.mxu0 %v5616
    %5676 = vmatprep.subr.bf16.mxu0 0
    %5677 = vmatpush1.bf16.msra.mxu0 %v5617
    %5678 = vmatprep.subr.bf16.mxu0 0
    %5679 = vmatpush1.bf16.msra.mxu0 0
    %5680 = vmatprep.subr.bf16.mxu0 0
    %5681 = vmatpush1.bf16.msra.mxu0 0
    %5682 = vmatprep.subr.bf16.mxu0 0
    %5683 = vmatpush1.bf16.msra.mxu0 0
    %5684 = vmatprep.subr.bf16.mxu0 0
    %5685 = vmatpush1.bf16.msra.mxu0 0
    %5686 = vmatprep.subr.bf16.mxu0 0
    %5687 = vmatpush1.bf16.msra.mxu0 0
    %5688 = vmatprep.subr.bf16.mxu0 0
    %5689 = vmatpush1.bf16.msra.mxu0 0
    %5690 = vmatprep.subr.bf16.mxu0 0
    %5691 = vmatpush1.bf16.msra.mxu0 0
    %5692 = vmatprep.subr.bf16.mxu0 0
    %5693 = vmatpush1.bf16.msra.mxu0 0
    %5694 = vmatprep.subr.bf16.mxu0 0
    %5695 = vmatpush1.bf16.msra.mxu0 0
    %5696 = vmatprep.subr.bf16.mxu0 0
    %5697 = vmatpush1.bf16.msra.mxu0 0
    %5698 = vmatprep.subr.bf16.mxu0 0
    %5699 = vmatpush1.bf16.msra.mxu0 0
    %5700 = vmatprep.subr.bf16.mxu0 0
    %5701 = vmatpush1.bf16.msra.mxu0 0
    %5702 = vmatprep.subr.bf16.mxu0 0
    %5703 = vmatpush1.bf16.msra.mxu0 0
    %5704 = vmatprep.subr.bf16.mxu0 0
    %5705 = vmatpush1.bf16.msra.mxu0 0
    %5706 = vmatprep.mubr.bf16.mxu0 0
    %5707 = vmatmul.mubr.bf16.gmra.mrb[0].mxu0 %v5621
    %v5708 = vpop.f32.mrb[0].mxu0
    %v5709 = vadd.f32 0.0, %v5708
    %v5710 = vpop.f32.mrb[0].mxu0
    %v5711 = vpop.f32.mrb[0].mxu0
    %v5712 = vadd.f32 0.0, %v5711
    %v5713 = vpop.f32.mrb[0].mxu0
    %5714 = vmatprep.mubr.bf16.mxu0 0
    %5715 = vmatmul.mubr.bf16.gmra.mrb[0].mxu0 %v5624
    %v5716 = vpop.f32.mrb[0].mxu0
    %v5717 = vadd.f32 0.0, %v5716
    %v5718 = vpop.f32.mrb[0].mxu0
    %v5719 = vpop.f32.mrb[0].mxu0
    %v5720 = vadd.f32 0.0, %v5719
    %v5721 = vpop.f32.mrb[0].mxu0
    %5722 = vmatprep.mubr.bf16.mxu0 0
    %5723 = vmatmul.mubr.bf16.gmra.mrb[0].mxu0 %v5627
    %v5724 = vpop.f32.mrb[0].mxu0
    %v5725 = vadd.f32 0.0, %v5724
    %v5726 = vpop.f32.mrb[0].mxu0
    %v5727 = vpop.f32.mrb[0].mxu0
    %v5728 = vadd.f32 0.0, %v5727
    %v5729 = vpop.f32.mrb[0].mxu0
    %5730 = vmatprep.mubr.bf16.mxu0 0
    %5731 = vmatmul.mubr.bf16.gmra.mrb[0].mxu0 %v5630
    %v5732 = vpop.f32.mrb[0].mxu0
    %v5733 = vadd.f32 0.0, %v5732
    %v5734 = vpop.f32.mrb[0].mxu0
    %v5735 = vpop.f32.mrb[0].mxu0
    %v5736 = vadd.f32 0.0, %v5735
    %v5737 = vpop.f32.mrb[0].mxu0
    %5738 = vmatprep.mubr.bf16.mxu0 0
    %5739 = vmatmul.mubr.bf16.gmra.mrb[0].mxu0 %v5633
    %v5740 = vpop.f32.mrb[0].mxu0
    %v5741 = vadd.f32 0.0, %v5740
    %v5742 = vpop.f32.mrb[0].mxu0
    %v5743 = vpop.f32.mrb[0].mxu0
    %v5744 = vadd.f32 0.0, %v5743
    %v5745 = vpop.f32.mrb[0].mxu0
    %5746 = vmatprep.mubr.bf16.mxu0 0
    %5747 = vmatmul.mubr.bf16.gmra.mrb[0].mxu0 %v5636
    %v5748 = vpop.f32.mrb[0].mxu0
    %v5749 = vadd.f32 0.0, %v5748
    %v5750 = vpop.f32.mrb[0].mxu0
    %v5751 = vpop.f32.mrb[0].mxu0
    %v5752 = vadd.f32 0.0, %v5751
    %v5753 = vpop.f32.mrb[0].mxu0
    %5754 = vmatprep.mubr.bf16.mxu0 0
    %5755 = vmatmul.mubr.bf16.gmra.mrb[0].mxu0 %v5639
    %v5756 = vpop.f32.mrb[0].mxu0
    %v5757 = vadd.f32 0.0, %v5756
    %v5758 = vpop.f32.mrb[0].mxu0
    %v5759 = vpop.f32.mrb[0].mxu0
    %v5760 = vadd.f32 0.0, %v5759
    %v5761 = vpop.f32.mrb[0].mxu0
    %5762 = vmatprep.mubr.bf16.mxu0 0
    %5763 = vmatmul.mubr.bf16.gmra.mrb[0].mxu0 %v5642
    %v5764 = vpop.f32.mrb[0].mxu0
    %v5765 = vadd.f32 0.0, %v5764
    %v5766 = vpop.f32.mrb[0].mxu0
    %v5767 = vpop.f32.mrb[0].mxu0
    %v5768 = vadd.f32 0.0, %v5767
    %v5769 = vpop.f32.mrb[0].mxu0
    %5770 = vmatprep.mubr.bf16.mxu0 0
    %5771 = vmatmul.mubr.bf16.gmra.mrb[0].mxu0 %v5645
    %v5772 = vpop.f32.mrb[0].mxu0
    %v5773 = vadd.f32 0.0, %v5772
    %v5774 = vpop.f32.mrb[0].mxu0
    %v5775 = vpop.f32.mrb[0].mxu0
    %v5776 = vadd.f32 0.0, %v5775
    %v5777 = vpop.f32.mrb[0].mxu0
    %5778 = vmatprep.mubr.bf16.mxu0 0
    %5779 = vmatmul.mubr.bf16.gmra.mrb[0].mxu0 %v5648
    %v5780 = vpop.f32.mrb[0].mxu0
    %v5781 = vadd.f32 0.0, %v5780
    %v5782 = vpop.f32.mrb[0].mxu0
    %v5783 = vpop.f32.mrb[0].mxu0
    %v5784 = vadd.f32 0.0, %v5783
    %v5785 = vpop.f32.mrb[0].mxu0
    %5786 = vmatprep.mubr.bf16.mxu0 0
    %5787 = vmatmul.mubr.bf16.gmra.mrb[0].mxu0 %v5651
    %v5788 = vpop.f32.mrb[0].mxu0
    %v5789 = vadd.f32 0.0, %v5788
    %v5790 = vpop.f32.mrb[0].mxu0
    %v5791 = vpop.f32.mrb[0].mxu0
    %v5792 = vadd.f32 0.0, %v5791
    %v5793 = vpop.f32.mrb[0].mxu0
    %5794 = vmatprep.mubr.bf16.mxu0 0
    %5795 = vmatmul.mubr.bf16.gmra.mrb[0].mxu0 %v5654
    %v5796 = vpop.f32.mrb[0].mxu0
    %v5797 = vadd.f32 0.0, %v5796
    %v5798 = vpop.f32.mrb[0].mxu0
    %v5799 = vpop.f32.mrb[0].mxu0
    %v5800 = vadd.f32 0.0, %v5799
    %v5801 = vpop.f32.mrb[0].mxu0
    %5802 = vmatprep.mubr.bf16.mxu0 0
    %5803 = vmatmul.mubr.bf16.gmra.mrb[0].mxu0 %v5657
    %v5804 = vpop.f32.mrb[0].mxu0
    %v5805 = vadd.f32 0.0, %v5804
    %v5806 = vpop.f32.mrb[0].mxu0
    %v5807 = vpop.f32.mrb[0].mxu0
    %v5808 = vadd.f32 0.0, %v5807
    %v5809 = vpop.f32.mrb[0].mxu0
    %5810 = vmatprep.mubr.bf16.mxu0 0
    %5811 = vmatmul.mubr.bf16.gmra.mrb[0].mxu0 %v5660
    %v5812 = vpop.f32.mrb[0].mxu0
    %v5813 = vadd.f32 0.0, %v5812
    %v5814 = vpop.f32.mrb[0].mxu0
    %v5815 = vpop.f32.mrb[0].mxu0
    %v5816 = vadd.f32 0.0, %v5815
    %v5817 = vpop.f32.mrb[0].mxu0
    %5818 = vmatprep.mubr.bf16.mxu0 0
    %5819 = vmatmul.mubr.bf16.gmra.mrb[0].mxu0 %v5663
    %v5820 = vpop.f32.mrb[0].mxu0
    %v5821 = vadd.f32 0.0, %v5820
    %v5822 = vpop.f32.mrb[0].mxu0
    %v5823 = vpop.f32.mrb[0].mxu0
    %v5824 = vadd.f32 0.0, %v5823
    %v5825 = vpop.f32.mrb[0].mxu0
    %5826 = vmatprep.mubr.bf16.mxu0 0
    %5827 = vmatmul.mubr.bf16.gmra.mrb[0].mxu0 %v5666
    %v5828 = vpop.f32.mrb[0].mxu0
    %v5829 = vadd.f32 0.0, %v5828
    %v5830 = vpop.f32.mrb[0].mxu0
    %v5831 = vpop.f32.mrb[0].mxu0
    %v5832 = vadd.f32 0.0, %v5831
    %v5833 = vpop.f32.mrb[0].mxu0
    %5834 = vmatprep.mubr.bf16.mxu0 0
    %5835 = vmatmul.mubr.bf16.gmra.mrb[0].mxu0 %v5669
    %v5836 = vpop.f32.mrb[0].mxu0
    %v5837 = vadd.f32 0.0, %v5836
    %v5838 = vpop.f32.mrb[0].mxu0
    %v5839 = vpop.f32.mrb[0].mxu0
    %v5840 = vadd.f32 0.0, %v5839
    %v5841 = vpop.f32.mrb[0].mxu0
    %5842 = vmatprep.mubr.bf16.mxu0 0
    %5843 = vmatmul.mubr.bf16.gmra.mrb[0].mxu0 %v5672
    %v5844 = vpop.f32.mrb[0].mxu0
    %v5845 = vadd.f32 0.0, %v5844
    %v5846 = vpop.f32.mrb[0].mxu0
    %v5847 = vpop.f32.mrb[0].mxu0
    %v5848 = vadd.f32 0.0, %v5847
    %v5849 = vpop.f32.mrb[0].mxu0
    %5850 = vdwg.mxu0
    %v5851 = vadd.f32 %v5340, %v5709
    %v5852 = vadd.f32 %v5343, %v5712
    %v5853 = vadd.f32 %v5348, %v5717
    %v5854 = vadd.f32 %v5351, %v5720
    %v5855 = vadd.f32 %v5356, %v5725
    %v5856 = vadd.f32 %v5359, %v5728
    %v5857 = vadd.f32 %v5364, %v5733
    %v5858 = vadd.f32 %v5367, %v5736
    %v5859 = vadd.f32 %v5372, %v5741
    %v5860 = vadd.f32 %v5375, %v5744
    %v5861 = vadd.f32 %v5380, %v5749
    %v5862 = vadd.f32 %v5383, %v5752
    %v5863 = vadd.f32 %v5388, %v5757
    %v5864 = vadd.f32 %v5391, %v5760
    %v5865 = vadd.f32 %v5396, %v5765
    %v5866 = vadd.f32 %v5399, %v5768
    %v5867 = vadd.f32 %v5404, %v5773
    %v5868 = vadd.f32 %v5407, %v5776
    %v5869 = vadd.f32 %v5412, %v5781
    %v5870 = vadd.f32 %v5415, %v5784
    %v5871 = vadd.f32 %v5420, %v5789
    %v5872 = vadd.f32 %v5423, %v5792
    %v5873 = vadd.f32 %v5428, %v5797
    %v5874 = vadd.f32 %v5431, %v5800
    %v5875 = vadd.f32 %v5436, %v5805
    %v5876 = vadd.f32 %v5439, %v5808
    %v5877 = vadd.f32 %v5444, %v5813
    %v5878 = vadd.f32 %v5447, %v5816
    %v5879 = vadd.f32 %v5452, %v5821
    %v5880 = vadd.f32 %v5455, %v5824
    %v5881 = vadd.f32 %v5460, %v5829
    %v5882 = vadd.f32 %v5463, %v5832
    %v5883 = vadd.f32 %v5468, %v5837
    %v5884 = vadd.f32 %v5471, %v5840
    %v5885 = vadd.f32 %v5476, %v5845
    %v5886 = vadd.f32 %v5479, %v5848
    %v5887 = vrot.slane %v4670, 7
    %v5888 = vrot.slane %v4671, 7
    %v5889 = vrot.slane %v4672, 7
    %v5890 = vrot.slane %v4673, 7
    %v5891 = vrot.slane %v4674, 7
    %v5892 = vrot.slane %v4675, 7
    %v5893 = vrot.slane %v4676, 7
    %v5894 = vrot.slane %v4677, 7
    %v5895 = vrot.slane %v4678, 7
    %v5896 = vrot.slane %v4679, 7
    %v5897 = vrot.slane %v4680, 7
    %v5898 = vrot.slane %v4681, 7
    %v5899 = vrot.slane %v4682, 7
    %v5900 = vrot.slane %v4683, 7
    %v5901 = vrot.slane %v4684, 7
    %v5902 = vrot.slane %v4685, 7
    %v5903 = vrot.slane %v4686, 7
    %v5904 = vrot.slane %v4687, 7
    %v5905 = vrot.slane %v4688, 7
    %v5906 = vrot.slane %v4689, 7
    %v5907 = vrot.slane %v4690, 7
    %v5908 = vrot.slane %v4691, 7
    %v5909 = vrot.slane %v4692, 7
    %v5910 = vrot.slane %v4693, 7
    %v5911 = vrot.slane %v4694, 7
    %v5912 = vrot.slane %v4695, 7
    %v5913 = vrot.slane %v4696, 7
    %v5914 = vrot.slane %v4697, 7
    %v5915 = vrot.slane %v4698, 7
    %v5916 = vrot.slane %v4699, 7
    %v5917 = vrot.slane %v4700, 7
    %v5918 = vrot.slane %v4701, 7
    %v5919 = vrot.slane %v4702, 7
    %v5920 = vrot.slane %v4703, 7
    %v5921 = vrot.slane %v4704, 7
    %v5922 = vrot.slane %v4705, 7
    %v5923 = vsel %vm2514, %v5921, %v5922
    %v5924 = vsel %vm2514, %v5920, %v5921
    %v5925 = vsel %vm2514, %v5919, %v5920
    %v5926 = vsel %vm2514, %v5918, %v5919
    %v5927 = vsel %vm2514, %v5917, %v5918
    %v5928 = vsel %vm2514, %v5916, %v5917
    %v5929 = vsel %vm2514, %v5915, %v5916
    %v5930 = vsel %vm2514, %v5914, %v5915
    %v5931 = vsel %vm2514, %v5913, %v5914
    %v5932 = vsel %vm2514, %v5912, %v5913
    %v5933 = vsel %vm2514, %v5911, %v5912
    %v5934 = vsel %vm2514, %v5910, %v5911
    %v5935 = vsel %vm2514, %v5909, %v5910
    %v5936 = vsel %vm2514, %v5908, %v5909
    %v5937 = vsel %vm2514, %v5907, %v5908
    %v5938 = vsel %vm2514, %v5906, %v5907
    %v5939 = vsel %vm2514, %v5905, %v5906
    %v5940 = vsel %vm2514, %v5904, %v5905
    %v5941 = vsel %vm2514, %v5903, %v5904
    %v5942 = vsel %vm2514, %v5902, %v5903
    %v5943 = vsel %vm2514, %v5901, %v5902
    %v5944 = vsel %vm2514, %v5900, %v5901
    %v5945 = vsel %vm2514, %v5899, %v5900
    %v5946 = vsel %vm2514, %v5898, %v5899
    %v5947 = vsel %vm2514, %v5897, %v5898
    %v5948 = vsel %vm2514, %v5896, %v5897
    %v5949 = vsel %vm2514, %v5895, %v5896
    %v5950 = vsel %vm2514, %v5894, %v5895
    %v5951 = vsel %vm2514, %v5893, %v5894
    %v5952 = vsel %vm2514, %v5892, %v5893
    %v5953 = vsel %vm2514, %v5891, %v5892
    %v5954 = vsel %vm2514, %v5890, %v5891
    %v5955 = vsel %vm2514, %v5889, %v5890
    %v5956 = vsel %vm2514, %v5888, %v5889
    %v5957 = vsel %vm2514, %v5887, %v5888
    %v5958 = vsel %vm2514, %v5922, %v5887
    %v5959 = vmul.f32 %v5958, %v537
    %v5960 = vmul.f32 %v5957, %v541
    %v5961 = vmul.f32 %v5956, %v545
    %v5962 = vmul.f32 %v5955, %v549
    %v5963 = vmul.f32 %v5954, %v553
    %v5964 = vmul.f32 %v5953, %v557
    %v5965 = vmul.f32 %v5952, %v561
    %v5966 = vmul.f32 %v5951, %v565
    %v5967 = vmul.f32 %v5950, %v569
    %v5968 = vmul.f32 %v5949, %v573
    %v5969 = vmul.f32 %v5948, %v577
    %v5970 = vmul.f32 %v5947, %v581
    %v5971 = vmul.f32 %v5946, %v585
    %v5972 = vmul.f32 %v5945, %v589
    %v5973 = vmul.f32 %v5944, %v593
    %v5974 = vmul.f32 %v5943, %v597
    %v5975 = vmul.f32 %v5942, %v601
    %v5976 = vmul.f32 %v5941, %v605
    %v5977 = vmul.f32 %v5940, %v609
    %v5978 = vmul.f32 %v5939, %v613
    %v5979 = vmul.f32 %v5938, %v617
    %v5980 = vmul.f32 %v5937, %v621
    %v5981 = vmul.f32 %v5936, %v625
    %v5982 = vmul.f32 %v5935, %v629
    %v5983 = vmul.f32 %v5934, %v633
    %v5984 = vmul.f32 %v5933, %v637
    %v5985 = vmul.f32 %v5932, %v641
    %v5986 = vmul.f32 %v5931, %v645
    %v5987 = vmul.f32 %v5930, %v649
    %v5988 = vmul.f32 %v5929, %v653
    %v5989 = vmul.f32 %v5928, %v657
    %v5990 = vmul.f32 %v5927, %v661
    %v5991 = vmul.f32 %v5926, %v665
    %v5992 = vmul.f32 %v5925, %v669
    %v5993 = vmul.f32 %v5924, %v673
    %v5994 = vmul.f32 %v5923, %v677
    %v5995 = vpack.c.bf16 %v5960, %v5959
    %v5996 = vpack.c.bf16 %v5962, %v5961
    %v5997 = vpack.c.bf16 %v5964, %v5963
    %v5998 = vpack.c.bf16 %v5966, %v5965
    %v5999 = vpack.c.bf16 %v5968, %v5967
    %v6000 = vpack.c.bf16 %v5970, %v5969
    %v6001 = vpack.c.bf16 %v5972, %v5971
    %v6002 = vpack.c.bf16 %v5974, %v5973
    %v6003 = vpack.c.bf16 %v5976, %v5975
    %v6004 = vpack.c.bf16 %v5978, %v5977
    %v6005 = vpack.c.bf16 %v5980, %v5979
    %v6006 = vpack.c.bf16 %v5982, %v5981
    %v6007 = vpack.c.bf16 %v5984, %v5983
    %v6008 = vpack.c.bf16 %v5986, %v5985
    %v6009 = vpack.c.bf16 %v5988, %v5987
    %v6010 = vpack.c.bf16 %v5990, %v5989
    %v6011 = vpack.c.bf16 %v5992, %v5991
    %v6012 = vpack.c.bf16 %v5994, %v5993
    %v6017 = vunpack.c.l.b16 %v4718
    %v6018 = vunpack.c.l.b16 %v4719
    %v6019 = vunpack.c.l.b16 %v4720
    %v6020 = vunpack.c.l.b16 %v4721
    %v6021 = vpack.c.b16 %v6018, %v6017
    %v6022 = vpack.c.b16 %v6020, %v6019
    %v6026 = vsel %vm1597, %v5995, 0
    %v6029 = vsel %vm1597, %v5996, 0
    %v6032 = vsel %vm1597, %v5997, 0
    %v6035 = vsel %vm1597, %v5998, 0
    %v6038 = vsel %vm1597, %v5999, 0
    %v6041 = vsel %vm1597, %v6000, 0
    %v6044 = vsel %vm1597, %v6001, 0
    %v6047 = vsel %vm1597, %v6002, 0
    %v6050 = vsel %vm1597, %v6003, 0
    %v6053 = vsel %vm1597, %v6004, 0
    %v6056 = vsel %vm1597, %v6005, 0
    %v6059 = vsel %vm1597, %v6006, 0
    %v6062 = vsel %vm1597, %v6007, 0
    %v6065 = vsel %vm1597, %v6008, 0
    %v6068 = vsel %vm1597, %v6009, 0
    %v6071 = vsel %vm1597, %v6010, 0
    %v6074 = vsel %vm1597, %v6011, 0
    %v6077 = vsel %vm1597, %v6012, 0
    %6079 = vmatprep.subr.bf16.mxu0 0
    %6080 = vmatpush1.bf16.msra.mxu0 %v6021
    %6081 = vmatprep.subr.bf16.mxu0 0
    %6082 = vmatpush1.bf16.msra.mxu0 %v6022
    %6083 = vmatprep.subr.bf16.mxu0 0
    %6084 = vmatpush1.bf16.msra.mxu0 0
    %6085 = vmatprep.subr.bf16.mxu0 0
    %6086 = vmatpush1.bf16.msra.mxu0 0
    %6087 = vmatprep.subr.bf16.mxu0 0
    %6088 = vmatpush1.bf16.msra.mxu0 0
    %6089 = vmatprep.subr.bf16.mxu0 0
    %6090 = vmatpush1.bf16.msra.mxu0 0
    %6091 = vmatprep.subr.bf16.mxu0 0
    %6092 = vmatpush1.bf16.msra.mxu0 0
    %6093 = vmatprep.subr.bf16.mxu0 0
    %6094 = vmatpush1.bf16.msra.mxu0 0
    %6095 = vmatprep.subr.bf16.mxu0 0
    %6096 = vmatpush1.bf16.msra.mxu0 0
    %6097 = vmatprep.subr.bf16.mxu0 0
    %6098 = vmatpush1.bf16.msra.mxu0 0
    %6099 = vmatprep.subr.bf16.mxu0 0
    %6100 = vmatpush1.bf16.msra.mxu0 0
    %6101 = vmatprep.subr.bf16.mxu0 0
    %6102 = vmatpush1.bf16.msra.mxu0 0
    %6103 = vmatprep.subr.bf16.mxu0 0
    %6104 = vmatpush1.bf16.msra.mxu0 0
    %6105 = vmatprep.subr.bf16.mxu0 0
    %6106 = vmatpush1.bf16.msra.mxu0 0
    %6107 = vmatprep.subr.bf16.mxu0 0
    %6108 = vmatpush1.bf16.msra.mxu0 0
    %6109 = vmatprep.subr.bf16.mxu0 0
    %6110 = vmatpush1.bf16.msra.mxu0 0
    %6111 = vmatprep.mubr.bf16.mxu0 0
    %6112 = vmatmul.mubr.bf16.gmra.mrb[0].mxu0 %v6026
    %v6113 = vpop.f32.mrb[0].mxu0
    %v6114 = vadd.f32 0.0, %v6113
    %v6115 = vpop.f32.mrb[0].mxu0
    %v6116 = vpop.f32.mrb[0].mxu0
    %v6117 = vadd.f32 0.0, %v6116
    %v6118 = vpop.f32.mrb[0].mxu0
    %6119 = vmatprep.mubr.bf16.mxu0 0
    %6120 = vmatmul.mubr.bf16.gmra.mrb[0].mxu0 %v6029
    %v6121 = vpop.f32.mrb[0].mxu0
    %v6122 = vadd.f32 0.0, %v6121
    %v6123 = vpop.f32.mrb[0].mxu0
    %v6124 = vpop.f32.mrb[0].mxu0
    %v6125 = vadd.f32 0.0, %v6124
    %v6126 = vpop.f32.mrb[0].mxu0
    %6127 = vmatprep.mubr.bf16.mxu0 0
    %6128 = vmatmul.mubr.bf16.gmra.mrb[0].mxu0 %v6032
    %v6129 = vpop.f32.mrb[0].mxu0
    %v6130 = vadd.f32 0.0, %v6129
    %v6131 = vpop.f32.mrb[0].mxu0
    %v6132 = vpop.f32.mrb[0].mxu0
    %v6133 = vadd.f32 0.0, %v6132
    %v6134 = vpop.f32.mrb[0].mxu0
    %6135 = vmatprep.mubr.bf16.mxu0 0
    %6136 = vmatmul.mubr.bf16.gmra.mrb[0].mxu0 %v6035
    %v6137 = vpop.f32.mrb[0].mxu0
    %v6138 = vadd.f32 0.0, %v6137
    %v6139 = vpop.f32.mrb[0].mxu0
    %v6140 = vpop.f32.mrb[0].mxu0
    %v6141 = vadd.f32 0.0, %v6140
    %v6142 = vpop.f32.mrb[0].mxu0
    %6143 = vmatprep.mubr.bf16.mxu0 0
    %6144 = vmatmul.mubr.bf16.gmra.mrb[0].mxu0 %v6038
    %v6145 = vpop.f32.mrb[0].mxu0
    %v6146 = vadd.f32 0.0, %v6145
    %v6147 = vpop.f32.mrb[0].mxu0
    %v6148 = vpop.f32.mrb[0].mxu0
    %v6149 = vadd.f32 0.0, %v6148
    %v6150 = vpop.f32.mrb[0].mxu0
    %6151 = vmatprep.mubr.bf16.mxu0 0
    %6152 = vmatmul.mubr.bf16.gmra.mrb[0].mxu0 %v6041
    %v6153 = vpop.f32.mrb[0].mxu0
    %v6154 = vadd.f32 0.0, %v6153
    %v6155 = vpop.f32.mrb[0].mxu0
    %v6156 = vpop.f32.mrb[0].mxu0
    %v6157 = vadd.f32 0.0, %v6156
    %v6158 = vpop.f32.mrb[0].mxu0
    %6159 = vmatprep.mubr.bf16.mxu0 0
    %6160 = vmatmul.mubr.bf16.gmra.mrb[0].mxu0 %v6044
    %v6161 = vpop.f32.mrb[0].mxu0
    %v6162 = vadd.f32 0.0, %v6161
    %v6163 = vpop.f32.mrb[0].mxu0
    %v6164 = vpop.f32.mrb[0].mxu0
    %v6165 = vadd.f32 0.0, %v6164
    %v6166 = vpop.f32.mrb[0].mxu0
    %6167 = vmatprep.mubr.bf16.mxu0 0
    %6168 = vmatmul.mubr.bf16.gmra.mrb[0].mxu0 %v6047
    %v6169 = vpop.f32.mrb[0].mxu0
    %v6170 = vadd.f32 0.0, %v6169
    %v6171 = vpop.f32.mrb[0].mxu0
    %v6172 = vpop.f32.mrb[0].mxu0
    %v6173 = vadd.f32 0.0, %v6172
    %v6174 = vpop.f32.mrb[0].mxu0
    %6175 = vmatprep.mubr.bf16.mxu0 0
    %6176 = vmatmul.mubr.bf16.gmra.mrb[0].mxu0 %v6050
    %v6177 = vpop.f32.mrb[0].mxu0
    %v6178 = vadd.f32 0.0, %v6177
    %v6179 = vpop.f32.mrb[0].mxu0
    %v6180 = vpop.f32.mrb[0].mxu0
    %v6181 = vadd.f32 0.0, %v6180
    %v6182 = vpop.f32.mrb[0].mxu0
    %6183 = vmatprep.mubr.bf16.mxu0 0
    %6184 = vmatmul.mubr.bf16.gmra.mrb[0].mxu0 %v6053
    %v6185 = vpop.f32.mrb[0].mxu0
    %v6186 = vadd.f32 0.0, %v6185
    %v6187 = vpop.f32.mrb[0].mxu0
    %v6188 = vpop.f32.mrb[0].mxu0
    %v6189 = vadd.f32 0.0, %v6188
    %v6190 = vpop.f32.mrb[0].mxu0
    %6191 = vmatprep.mubr.bf16.mxu0 0
    %6192 = vmatmul.mubr.bf16.gmra.mrb[0].mxu0 %v6056
    %v6193 = vpop.f32.mrb[0].mxu0
    %v6194 = vadd.f32 0.0, %v6193
    %v6195 = vpop.f32.mrb[0].mxu0
    %v6196 = vpop.f32.mrb[0].mxu0
    %v6197 = vadd.f32 0.0, %v6196
    %v6198 = vpop.f32.mrb[0].mxu0
    %6199 = vmatprep.mubr.bf16.mxu0 0
    %6200 = vmatmul.mubr.bf16.gmra.mrb[0].mxu0 %v6059
    %v6201 = vpop.f32.mrb[0].mxu0
    %v6202 = vadd.f32 0.0, %v6201
    %v6203 = vpop.f32.mrb[0].mxu0
    %v6204 = vpop.f32.mrb[0].mxu0
    %v6205 = vadd.f32 0.0, %v6204
    %v6206 = vpop.f32.mrb[0].mxu0
    %6207 = vmatprep.mubr.bf16.mxu0 0
    %6208 = vmatmul.mubr.bf16.gmra.mrb[0].mxu0 %v6062
    %v6209 = vpop.f32.mrb[0].mxu0
    %v6210 = vadd.f32 0.0, %v6209
    %v6211 = vpop.f32.mrb[0].mxu0
    %v6212 = vpop.f32.mrb[0].mxu0
    %v6213 = vadd.f32 0.0, %v6212
    %v6214 = vpop.f32.mrb[0].mxu0
    %6215 = vmatprep.mubr.bf16.mxu0 0
    %6216 = vmatmul.mubr.bf16.gmra.mrb[0].mxu0 %v6065
    %v6217 = vpop.f32.mrb[0].mxu0
    %v6218 = vadd.f32 0.0, %v6217
    %v6219 = vpop.f32.mrb[0].mxu0
    %v6220 = vpop.f32.mrb[0].mxu0
    %v6221 = vadd.f32 0.0, %v6220
    %v6222 = vpop.f32.mrb[0].mxu0
    %6223 = vmatprep.mubr.bf16.mxu0 0
    %6224 = vmatmul.mubr.bf16.gmra.mrb[0].mxu0 %v6068
    %v6225 = vpop.f32.mrb[0].mxu0
    %v6226 = vadd.f32 0.0, %v6225
    %v6227 = vpop.f32.mrb[0].mxu0
    %v6228 = vpop.f32.mrb[0].mxu0
    %v6229 = vadd.f32 0.0, %v6228
    %v6230 = vpop.f32.mrb[0].mxu0
    %6231 = vmatprep.mubr.bf16.mxu0 0
    %6232 = vmatmul.mubr.bf16.gmra.mrb[0].mxu0 %v6071
    %v6233 = vpop.f32.mrb[0].mxu0
    %v6234 = vadd.f32 0.0, %v6233
    %v6235 = vpop.f32.mrb[0].mxu0
    %v6236 = vpop.f32.mrb[0].mxu0
    %v6237 = vadd.f32 0.0, %v6236
    %v6238 = vpop.f32.mrb[0].mxu0
    %6239 = vmatprep.mubr.bf16.mxu0 0
    %6240 = vmatmul.mubr.bf16.gmra.mrb[0].mxu0 %v6074
    %v6241 = vpop.f32.mrb[0].mxu0
    %v6242 = vadd.f32 0.0, %v6241
    %v6243 = vpop.f32.mrb[0].mxu0
    %v6244 = vpop.f32.mrb[0].mxu0
    %v6245 = vadd.f32 0.0, %v6244
    %v6246 = vpop.f32.mrb[0].mxu0
    %6247 = vmatprep.mubr.bf16.mxu0 0
    %6248 = vmatmul.mubr.bf16.gmra.mrb[0].mxu0 %v6077
    %v6249 = vpop.f32.mrb[0].mxu0
    %v6250 = vadd.f32 0.0, %v6249
    %v6251 = vpop.f32.mrb[0].mxu0
    %v6252 = vpop.f32.mrb[0].mxu0
    %v6253 = vadd.f32 0.0, %v6252
    %v6254 = vpop.f32.mrb[0].mxu0
    %6255 = vdwg.mxu0
    %v6256 = vadd.f32 %v5851, %v6114
    %v6257 = vadd.f32 %v5852, %v6117
    %v6258 = vadd.f32 %v5853, %v6122
    %v6259 = vadd.f32 %v5854, %v6125
    %v6260 = vadd.f32 %v5855, %v6130
    %v6261 = vadd.f32 %v5856, %v6133
    %v6262 = vadd.f32 %v5857, %v6138
    %v6263 = vadd.f32 %v5858, %v6141
    %v6264 = vadd.f32 %v5859, %v6146
    %v6265 = vadd.f32 %v5860, %v6149
    %v6266 = vadd.f32 %v5861, %v6154
    %v6267 = vadd.f32 %v5862, %v6157
    %v6268 = vadd.f32 %v5863, %v6162
    %v6269 = vadd.f32 %v5864, %v6165
    %v6270 = vadd.f32 %v5865, %v6170
    %v6271 = vadd.f32 %v5866, %v6173
    %v6272 = vadd.f32 %v5867, %v6178
    %v6273 = vadd.f32 %v5868, %v6181
    %v6274 = vadd.f32 %v5869, %v6186
    %v6275 = vadd.f32 %v5870, %v6189
    %v6276 = vadd.f32 %v5871, %v6194
    %v6277 = vadd.f32 %v5872, %v6197
    %v6278 = vadd.f32 %v5873, %v6202
    %v6279 = vadd.f32 %v5874, %v6205
    %v6280 = vadd.f32 %v5875, %v6210
    %v6281 = vadd.f32 %v5876, %v6213
    %v6282 = vadd.f32 %v5877, %v6218
    %v6283 = vadd.f32 %v5878, %v6221
    %v6284 = vadd.f32 %v5879, %v6226
    %v6285 = vadd.f32 %v5880, %v6229
    %v6286 = vadd.f32 %v5881, %v6234
    %v6287 = vadd.f32 %v5882, %v6237
    %v6288 = vadd.f32 %v5883, %v6242
    %v6289 = vadd.f32 %v5884, %v6245
    %v6290 = vadd.f32 %v5885, %v6250
    %v6291 = vadd.f32 %v5886, %v6253
    %v6292 = vpack.c.bf16 %v4671, %v4670
    %v6293 = vpack.c.bf16 %v4673, %v4672
    %v6294 = vpack.c.bf16 %v4675, %v4674
    %v6295 = vpack.c.bf16 %v4677, %v4676
    %v6296 = vpack.c.bf16 %v4679, %v4678
    %v6297 = vpack.c.bf16 %v4681, %v4680
    %v6298 = vpack.c.bf16 %v4683, %v4682
    %v6299 = vpack.c.bf16 %v4685, %v4684
    %v6300 = vpack.c.bf16 %v4687, %v4686
    %v6301 = vpack.c.bf16 %v4689, %v4688
    %v6302 = vpack.c.bf16 %v4691, %v4690
    %v6303 = vpack.c.bf16 %v4693, %v4692
    %v6304 = vpack.c.bf16 %v4695, %v4694
    %v6305 = vpack.c.bf16 %v4697, %v4696
    %v6306 = vpack.c.bf16 %v4699, %v4698
    %v6307 = vpack.c.bf16 %v4701, %v4700
    %v6308 = vpack.c.bf16 %v4703, %v4702
    %v6309 = vpack.c.bf16 %v4705, %v4704
    %v6314 = vunpack.c.l.b16 %v4722
    %v6315 = vunpack.c.l.b16 %v4723
    %v6316 = vunpack.c.l.b16 %v4724
    %v6317 = vunpack.c.l.b16 %v4725
    %v6318 = vpack.c.b16 %v6315, %v6314
    %v6319 = vpack.c.b16 %v6317, %v6316
    %v6323 = vsel %vm1597, %v6292, 0
    %v6326 = vsel %vm1597, %v6293, 0
    %v6329 = vsel %vm1597, %v6294, 0
    %v6332 = vsel %vm1597, %v6295, 0
    %v6335 = vsel %vm1597, %v6296, 0
    %v6338 = vsel %vm1597, %v6297, 0
    %v6341 = vsel %vm1597, %v6298, 0
    %v6344 = vsel %vm1597, %v6299, 0
    %v6347 = vsel %vm1597, %v6300, 0
    %v6350 = vsel %vm1597, %v6301, 0
    %v6353 = vsel %vm1597, %v6302, 0
    %v6356 = vsel %vm1597, %v6303, 0
    %v6359 = vsel %vm1597, %v6304, 0
    %v6362 = vsel %vm1597, %v6305, 0
    %v6365 = vsel %vm1597, %v6306, 0
    %v6368 = vsel %vm1597, %v6307, 0
    %v6371 = vsel %vm1597, %v6308, 0
    %v6374 = vsel %vm1597, %v6309, 0
    %6376 = vmatprep.subr.bf16.mxu0 0
    %6377 = vmatpush1.bf16.msra.mxu0 %v6318
    %6378 = vmatprep.subr.bf16.mxu0 0
    %6379 = vmatpush1.bf16.msra.mxu0 %v6319
    %6380 = vmatprep.subr.bf16.mxu0 0
    %6381 = vmatpush1.bf16.msra.mxu0 0
    %6382 = vmatprep.subr.bf16.mxu0 0
    %6383 = vmatpush1.bf16.msra.mxu0 0
    %6384 = vmatprep.subr.bf16.mxu0 0
    %6385 = vmatpush1.bf16.msra.mxu0 0
    %6386 = vmatprep.subr.bf16.mxu0 0
    %6387 = vmatpush1.bf16.msra.mxu0 0
    %6388 = vmatprep.subr.bf16.mxu0 0
    %6389 = vmatpush1.bf16.msra.mxu0 0
    %6390 = vmatprep.subr.bf16.mxu0 0
    %6391 = vmatpush1.bf16.msra.mxu0 0
    %6392 = vmatprep.subr.bf16.mxu0 0
    %6393 = vmatpush1.bf16.msra.mxu0 0
    %6394 = vmatprep.subr.bf16.mxu0 0
    %6395 = vmatpush1.bf16.msra.mxu0 0
    %6396 = vmatprep.subr.bf16.mxu0 0
    %6397 = vmatpush1.bf16.msra.mxu0 0
    %6398 = vmatprep.subr.bf16.mxu0 0
    %6399 = vmatpush1.bf16.msra.mxu0 0
    %6400 = vmatprep.subr.bf16.mxu0 0
    %6401 = vmatpush1.bf16.msra.mxu0 0
    %6402 = vmatprep.subr.bf16.mxu0 0
    %6403 = vmatpush1.bf16.msra.mxu0 0
    %6404 = vmatprep.subr.bf16.mxu0 0
    %6405 = vmatpush1.bf16.msra.mxu0 0
    %6406 = vmatprep.subr.bf16.mxu0 0
    %6407 = vmatpush1.bf16.msra.mxu0 0
    %6408 = vmatprep.mubr.bf16.mxu0 0
    %6409 = vmatmul.mubr.bf16.gmra.mrb[0].mxu0 %v6323
    %v6410 = vpop.f32.mrb[0].mxu0
    %v6411 = vadd.f32 0.0, %v6410
    %v6412 = vpop.f32.mrb[0].mxu0
    %v6413 = vpop.f32.mrb[0].mxu0
    %v6414 = vadd.f32 0.0, %v6413
    %v6415 = vpop.f32.mrb[0].mxu0
    %6416 = vmatprep.mubr.bf16.mxu0 0
    %6417 = vmatmul.mubr.bf16.gmra.mrb[0].mxu0 %v6326
    %v6418 = vpop.f32.mrb[0].mxu0
    %v6419 = vadd.f32 0.0, %v6418
    %v6420 = vpop.f32.mrb[0].mxu0
    %v6421 = vpop.f32.mrb[0].mxu0
    %v6422 = vadd.f32 0.0, %v6421
    %v6423 = vpop.f32.mrb[0].mxu0
    %6424 = vmatprep.mubr.bf16.mxu0 0
    %6425 = vmatmul.mubr.bf16.gmra.mrb[0].mxu0 %v6329
    %v6426 = vpop.f32.mrb[0].mxu0
    %v6427 = vadd.f32 0.0, %v6426
    %v6428 = vpop.f32.mrb[0].mxu0
    %v6429 = vpop.f32.mrb[0].mxu0
    %v6430 = vadd.f32 0.0, %v6429
    %v6431 = vpop.f32.mrb[0].mxu0
    %6432 = vmatprep.mubr.bf16.mxu0 0
    %6433 = vmatmul.mubr.bf16.gmra.mrb[0].mxu0 %v6332
    %v6434 = vpop.f32.mrb[0].mxu0
    %v6435 = vadd.f32 0.0, %v6434
    %v6436 = vpop.f32.mrb[0].mxu0
    %v6437 = vpop.f32.mrb[0].mxu0
    %v6438 = vadd.f32 0.0, %v6437
    %v6439 = vpop.f32.mrb[0].mxu0
    %6440 = vmatprep.mubr.bf16.mxu0 0
    %6441 = vmatmul.mubr.bf16.gmra.mrb[0].mxu0 %v6335
    %v6442 = vpop.f32.mrb[0].mxu0
    %v6443 = vadd.f32 0.0, %v6442
    %v6444 = vpop.f32.mrb[0].mxu0
    %v6445 = vpop.f32.mrb[0].mxu0
    %v6446 = vadd.f32 0.0, %v6445
    %v6447 = vpop.f32.mrb[0].mxu0
    %6448 = vmatprep.mubr.bf16.mxu0 0
    %6449 = vmatmul.mubr.bf16.gmra.mrb[0].mxu0 %v6338
    %v6450 = vpop.f32.mrb[0].mxu0
    %v6451 = vadd.f32 0.0, %v6450
    %v6452 = vpop.f32.mrb[0].mxu0
    %v6453 = vpop.f32.mrb[0].mxu0
    %v6454 = vadd.f32 0.0, %v6453
    %v6455 = vpop.f32.mrb[0].mxu0
    %6456 = vmatprep.mubr.bf16.mxu0 0
    %6457 = vmatmul.mubr.bf16.gmra.mrb[0].mxu0 %v6341
    %v6458 = vpop.f32.mrb[0].mxu0
    %v6459 = vadd.f32 0.0, %v6458
    %v6460 = vpop.f32.mrb[0].mxu0
    %v6461 = vpop.f32.mrb[0].mxu0
    %v6462 = vadd.f32 0.0, %v6461
    %v6463 = vpop.f32.mrb[0].mxu0
    %6464 = vmatprep.mubr.bf16.mxu0 0
    %6465 = vmatmul.mubr.bf16.gmra.mrb[0].mxu0 %v6344
    %v6466 = vpop.f32.mrb[0].mxu0
    %v6467 = vadd.f32 0.0, %v6466
    %v6468 = vpop.f32.mrb[0].mxu0
    %v6469 = vpop.f32.mrb[0].mxu0
    %v6470 = vadd.f32 0.0, %v6469
    %v6471 = vpop.f32.mrb[0].mxu0
    %6472 = vmatprep.mubr.bf16.mxu0 0
    %6473 = vmatmul.mubr.bf16.gmra.mrb[0].mxu0 %v6347
    %v6474 = vpop.f32.mrb[0].mxu0
    %v6475 = vadd.f32 0.0, %v6474
    %v6476 = vpop.f32.mrb[0].mxu0
    %v6477 = vpop.f32.mrb[0].mxu0
    %v6478 = vadd.f32 0.0, %v6477
    %v6479 = vpop.f32.mrb[0].mxu0
    %6480 = vmatprep.mubr.bf16.mxu0 0
    %6481 = vmatmul.mubr.bf16.gmra.mrb[0].mxu0 %v6350
    %v6482 = vpop.f32.mrb[0].mxu0
    %v6483 = vadd.f32 0.0, %v6482
    %v6484 = vpop.f32.mrb[0].mxu0
    %v6485 = vpop.f32.mrb[0].mxu0
    %v6486 = vadd.f32 0.0, %v6485
    %v6487 = vpop.f32.mrb[0].mxu0
    %6488 = vmatprep.mubr.bf16.mxu0 0
    %6489 = vmatmul.mubr.bf16.gmra.mrb[0].mxu0 %v6353
    %v6490 = vpop.f32.mrb[0].mxu0
    %v6491 = vadd.f32 0.0, %v6490
    %v6492 = vpop.f32.mrb[0].mxu0
    %v6493 = vpop.f32.mrb[0].mxu0
    %v6494 = vadd.f32 0.0, %v6493
    %v6495 = vpop.f32.mrb[0].mxu0
    %6496 = vmatprep.mubr.bf16.mxu0 0
    %6497 = vmatmul.mubr.bf16.gmra.mrb[0].mxu0 %v6356
    %v6498 = vpop.f32.mrb[0].mxu0
    %v6499 = vadd.f32 0.0, %v6498
    %v6500 = vpop.f32.mrb[0].mxu0
    %v6501 = vpop.f32.mrb[0].mxu0
    %v6502 = vadd.f32 0.0, %v6501
    %v6503 = vpop.f32.mrb[0].mxu0
    %6504 = vmatprep.mubr.bf16.mxu0 0
    %6505 = vmatmul.mubr.bf16.gmra.mrb[0].mxu0 %v6359
    %v6506 = vpop.f32.mrb[0].mxu0
    %v6507 = vadd.f32 0.0, %v6506
    %v6508 = vpop.f32.mrb[0].mxu0
    %v6509 = vpop.f32.mrb[0].mxu0
    %v6510 = vadd.f32 0.0, %v6509
    %v6511 = vpop.f32.mrb[0].mxu0
    %6512 = vmatprep.mubr.bf16.mxu0 0
    %6513 = vmatmul.mubr.bf16.gmra.mrb[0].mxu0 %v6362
    %v6514 = vpop.f32.mrb[0].mxu0
    %v6515 = vadd.f32 0.0, %v6514
    %v6516 = vpop.f32.mrb[0].mxu0
    %v6517 = vpop.f32.mrb[0].mxu0
    %v6518 = vadd.f32 0.0, %v6517
    %v6519 = vpop.f32.mrb[0].mxu0
    %6520 = vmatprep.mubr.bf16.mxu0 0
    %6521 = vmatmul.mubr.bf16.gmra.mrb[0].mxu0 %v6365
    %v6522 = vpop.f32.mrb[0].mxu0
    %v6523 = vadd.f32 0.0, %v6522
    %v6524 = vpop.f32.mrb[0].mxu0
    %v6525 = vpop.f32.mrb[0].mxu0
    %v6526 = vadd.f32 0.0, %v6525
    %v6527 = vpop.f32.mrb[0].mxu0
    %6528 = vmatprep.mubr.bf16.mxu0 0
    %6529 = vmatmul.mubr.bf16.gmra.mrb[0].mxu0 %v6368
    %v6530 = vpop.f32.mrb[0].mxu0
    %v6531 = vadd.f32 0.0, %v6530
    %v6532 = vpop.f32.mrb[0].mxu0
    %v6533 = vpop.f32.mrb[0].mxu0
    %v6534 = vadd.f32 0.0, %v6533
    %v6535 = vpop.f32.mrb[0].mxu0
    %6536 = vmatprep.mubr.bf16.mxu0 0
    %6537 = vmatmul.mubr.bf16.gmra.mrb[0].mxu0 %v6371
    %v6538 = vpop.f32.mrb[0].mxu0
    %v6539 = vadd.f32 0.0, %v6538
    %v6540 = vpop.f32.mrb[0].mxu0
    %v6541 = vpop.f32.mrb[0].mxu0
    %v6542 = vadd.f32 0.0, %v6541
    %v6543 = vpop.f32.mrb[0].mxu0
    %6544 = vmatprep.mubr.bf16.mxu0 0
    %6545 = vmatmul.mubr.bf16.gmra.mrb[0].mxu0 %v6374
    %v6546 = vpop.f32.mrb[0].mxu0
    %v6547 = vadd.f32 0.0, %v6546
    %v6548 = vpop.f32.mrb[0].mxu0
    %v6549 = vpop.f32.mrb[0].mxu0
    %v6550 = vadd.f32 0.0, %v6549
    %v6551 = vpop.f32.mrb[0].mxu0
    %6552 = vdwg.mxu0
    %v6553 = vadd.f32 %v6256, %v6411
    %v6554 = vadd.f32 %v6257, %v6414
    %v6555 = vadd.f32 %v6258, %v6419
    %v6556 = vadd.f32 %v6259, %v6422
    %v6557 = vadd.f32 %v6260, %v6427
    %v6558 = vadd.f32 %v6261, %v6430
    %v6559 = vadd.f32 %v6262, %v6435
    %v6560 = vadd.f32 %v6263, %v6438
    %v6561 = vadd.f32 %v6264, %v6443
    %v6562 = vadd.f32 %v6265, %v6446
    %v6563 = vadd.f32 %v6266, %v6451
    %v6564 = vadd.f32 %v6267, %v6454
    %v6565 = vadd.f32 %v6268, %v6459
    %v6566 = vadd.f32 %v6269, %v6462
    %v6567 = vadd.f32 %v6270, %v6467
    %v6568 = vadd.f32 %v6271, %v6470
    %v6569 = vadd.f32 %v6272, %v6475
    %v6570 = vadd.f32 %v6273, %v6478
    %v6571 = vadd.f32 %v6274, %v6483
    %v6572 = vadd.f32 %v6275, %v6486
    %v6573 = vadd.f32 %v6276, %v6491
    %v6574 = vadd.f32 %v6277, %v6494
    %v6575 = vadd.f32 %v6278, %v6499
    %v6576 = vadd.f32 %v6279, %v6502
    %v6577 = vadd.f32 %v6280, %v6507
    %v6578 = vadd.f32 %v6281, %v6510
    %v6579 = vadd.f32 %v6282, %v6515
    %v6580 = vadd.f32 %v6283, %v6518
    %v6581 = vadd.f32 %v6284, %v6523
    %v6582 = vadd.f32 %v6285, %v6526
    %v6583 = vadd.f32 %v6286, %v6531
    %v6584 = vadd.f32 %v6287, %v6534
    %v6585 = vadd.f32 %v6288, %v6539
    %v6586 = vadd.f32 %v6289, %v6542
    %v6587 = vadd.f32 %v6290, %v6547
    %v6588 = vadd.f32 %v6291, %v6550
    %v6589 = vrot.slane %v4670, 1
    %v6590 = vrot.slane %v4671, 1
    %v6591 = vrot.slane %v4672, 1
    %v6592 = vrot.slane %v4673, 1
    %v6593 = vrot.slane %v4674, 1
    %v6594 = vrot.slane %v4675, 1
    %v6595 = vrot.slane %v4676, 1
    %v6596 = vrot.slane %v4677, 1
    %v6597 = vrot.slane %v4678, 1
    %v6598 = vrot.slane %v4679, 1
    %v6599 = vrot.slane %v4680, 1
    %v6600 = vrot.slane %v4681, 1
    %v6601 = vrot.slane %v4682, 1
    %v6602 = vrot.slane %v4683, 1
    %v6603 = vrot.slane %v4684, 1
    %v6604 = vrot.slane %v4685, 1
    %v6605 = vrot.slane %v4686, 1
    %v6606 = vrot.slane %v4687, 1
    %v6607 = vrot.slane %v4688, 1
    %v6608 = vrot.slane %v4689, 1
    %v6609 = vrot.slane %v4690, 1
    %v6610 = vrot.slane %v4691, 1
    %v6611 = vrot.slane %v4692, 1
    %v6612 = vrot.slane %v4693, 1
    %v6613 = vrot.slane %v4694, 1
    %v6614 = vrot.slane %v4695, 1
    %v6615 = vrot.slane %v4696, 1
    %v6616 = vrot.slane %v4697, 1
    %v6617 = vrot.slane %v4698, 1
    %v6618 = vrot.slane %v4699, 1
    %v6619 = vrot.slane %v4700, 1
    %v6620 = vrot.slane %v4701, 1
    %v6621 = vrot.slane %v4702, 1
    %v6622 = vrot.slane %v4703, 1
    %v6623 = vrot.slane %v4704, 1
    %v6624 = vrot.slane %v4705, 1
    %v6625 = vsel %vm3217, %v6623, %v6624
    %v6626 = vsel %vm3217, %v6622, %v6623
    %v6627 = vsel %vm3217, %v6621, %v6622
    %v6628 = vsel %vm3217, %v6620, %v6621
    %v6629 = vsel %vm3217, %v6619, %v6620
    %v6630 = vsel %vm3217, %v6618, %v6619
    %v6631 = vsel %vm3217, %v6617, %v6618
    %v6632 = vsel %vm3217, %v6616, %v6617
    %v6633 = vsel %vm3217, %v6615, %v6616
    %v6634 = vsel %vm3217, %v6614, %v6615
    %v6635 = vsel %vm3217, %v6613, %v6614
    %v6636 = vsel %vm3217, %v6612, %v6613
    %v6637 = vsel %vm3217, %v6611, %v6612
    %v6638 = vsel %vm3217, %v6610, %v6611
    %v6639 = vsel %vm3217, %v6609, %v6610
    %v6640 = vsel %vm3217, %v6608, %v6609
    %v6641 = vsel %vm3217, %v6607, %v6608
    %v6642 = vsel %vm3217, %v6606, %v6607
    %v6643 = vsel %vm3217, %v6605, %v6606
    %v6644 = vsel %vm3217, %v6604, %v6605
    %v6645 = vsel %vm3217, %v6603, %v6604
    %v6646 = vsel %vm3217, %v6602, %v6603
    %v6647 = vsel %vm3217, %v6601, %v6602
    %v6648 = vsel %vm3217, %v6600, %v6601
    %v6649 = vsel %vm3217, %v6599, %v6600
    %v6650 = vsel %vm3217, %v6598, %v6599
    %v6651 = vsel %vm3217, %v6597, %v6598
    %v6652 = vsel %vm3217, %v6596, %v6597
    %v6653 = vsel %vm3217, %v6595, %v6596
    %v6654 = vsel %vm3217, %v6594, %v6595
    %v6655 = vsel %vm3217, %v6593, %v6594
    %v6656 = vsel %vm3217, %v6592, %v6593
    %v6657 = vsel %vm3217, %v6591, %v6592
    %v6658 = vsel %vm3217, %v6590, %v6591
    %v6659 = vsel %vm3217, %v6589, %v6590
    %v6660 = vsel %vm3217, %v6624, %v6589
    %v6661 = vmul.f32 %v6659, %v681
    %v6662 = vmul.f32 %v6658, %v685
    %v6663 = vmul.f32 %v6657, %v689
    %v6664 = vmul.f32 %v6656, %v693
    %v6665 = vmul.f32 %v6655, %v697
    %v6666 = vmul.f32 %v6654, %v701
    %v6667 = vmul.f32 %v6653, %v705
    %v6668 = vmul.f32 %v6652, %v709
    %v6669 = vmul.f32 %v6651, %v713
    %v6670 = vmul.f32 %v6650, %v717
    %v6671 = vmul.f32 %v6649, %v721
    %v6672 = vmul.f32 %v6648, %v725
    %v6673 = vmul.f32 %v6647, %v729
    %v6674 = vmul.f32 %v6646, %v733
    %v6675 = vmul.f32 %v6645, %v737
    %v6676 = vmul.f32 %v6644, %v741
    %v6677 = vmul.f32 %v6643, %v745
    %v6678 = vmul.f32 %v6642, %v749
    %v6679 = vmul.f32 %v6641, %v753
    %v6680 = vmul.f32 %v6640, %v757
    %v6681 = vmul.f32 %v6639, %v761
    %v6682 = vmul.f32 %v6638, %v765
    %v6683 = vmul.f32 %v6637, %v769
    %v6684 = vmul.f32 %v6636, %v773
    %v6685 = vmul.f32 %v6635, %v777
    %v6686 = vmul.f32 %v6634, %v781
    %v6687 = vmul.f32 %v6633, %v785
    %v6688 = vmul.f32 %v6632, %v789
    %v6689 = vmul.f32 %v6631, %v793
    %v6690 = vmul.f32 %v6630, %v797
    %v6691 = vmul.f32 %v6629, %v801
    %v6692 = vmul.f32 %v6628, %v805
    %v6693 = vmul.f32 %v6627, %v809
    %v6694 = vmul.f32 %v6626, %v813
    %v6695 = vmul.f32 %v6625, %v817
    %v6696 = vmul.f32 %v6660, %v821
    %v6697 = vpack.c.bf16 %v6662, %v6661
    %v6698 = vpack.c.bf16 %v6664, %v6663
    %v6699 = vpack.c.bf16 %v6666, %v6665
    %v6700 = vpack.c.bf16 %v6668, %v6667
    %v6701 = vpack.c.bf16 %v6670, %v6669
    %v6702 = vpack.c.bf16 %v6672, %v6671
    %v6703 = vpack.c.bf16 %v6674, %v6673
    %v6704 = vpack.c.bf16 %v6676, %v6675
    %v6705 = vpack.c.bf16 %v6678, %v6677
    %v6706 = vpack.c.bf16 %v6680, %v6679
    %v6707 = vpack.c.bf16 %v6682, %v6681
    %v6708 = vpack.c.bf16 %v6684, %v6683
    %v6709 = vpack.c.bf16 %v6686, %v6685
    %v6710 = vpack.c.bf16 %v6688, %v6687
    %v6711 = vpack.c.bf16 %v6690, %v6689
    %v6712 = vpack.c.bf16 %v6692, %v6691
    %v6713 = vpack.c.bf16 %v6694, %v6693
    %v6714 = vpack.c.bf16 %v6696, %v6695
    %v6719 = vunpack.c.l.b16 %v4726
    %v6720 = vunpack.c.l.b16 %v4727
    %v6721 = vunpack.c.l.b16 %v4728
    %v6722 = vunpack.c.l.b16 %v4729
    %v6723 = vpack.c.b16 %v6720, %v6719
    %v6724 = vpack.c.b16 %v6722, %v6721
    %v6728 = vsel %vm1597, %v6697, 0
    %v6731 = vsel %vm1597, %v6698, 0
    %v6734 = vsel %vm1597, %v6699, 0
    %v6737 = vsel %vm1597, %v6700, 0
    %v6740 = vsel %vm1597, %v6701, 0
    %v6743 = vsel %vm1597, %v6702, 0
    %v6746 = vsel %vm1597, %v6703, 0
    %v6749 = vsel %vm1597, %v6704, 0
    %v6752 = vsel %vm1597, %v6705, 0
    %v6755 = vsel %vm1597, %v6706, 0
    %v6758 = vsel %vm1597, %v6707, 0
    %v6761 = vsel %vm1597, %v6708, 0
    %v6764 = vsel %vm1597, %v6709, 0
    %v6767 = vsel %vm1597, %v6710, 0
    %v6770 = vsel %vm1597, %v6711, 0
    %v6773 = vsel %vm1597, %v6712, 0
    %v6776 = vsel %vm1597, %v6713, 0
    %v6779 = vsel %vm1597, %v6714, 0
    %6781 = vmatprep.subr.bf16.mxu0 0
    %6782 = vmatpush1.bf16.msra.mxu0 %v6723
    %6783 = vmatprep.subr.bf16.mxu0 0
    %6784 = vmatpush1.bf16.msra.mxu0 %v6724
    %6785 = vmatprep.subr.bf16.mxu0 0
    %6786 = vmatpush1.bf16.msra.mxu0 0
    %6787 = vmatprep.subr.bf16.mxu0 0
    %6788 = vmatpush1.bf16.msra.mxu0 0
    %6789 = vmatprep.subr.bf16.mxu0 0
    %6790 = vmatpush1.bf16.msra.mxu0 0
    %6791 = vmatprep.subr.bf16.mxu0 0
    %6792 = vmatpush1.bf16.msra.mxu0 0
    %6793 = vmatprep.subr.bf16.mxu0 0
    %6794 = vmatpush1.bf16.msra.mxu0 0
    %6795 = vmatprep.subr.bf16.mxu0 0
    %6796 = vmatpush1.bf16.msra.mxu0 0
    %6797 = vmatprep.subr.bf16.mxu0 0
    %6798 = vmatpush1.bf16.msra.mxu0 0
    %6799 = vmatprep.subr.bf16.mxu0 0
    %6800 = vmatpush1.bf16.msra.mxu0 0
    %6801 = vmatprep.subr.bf16.mxu0 0
    %6802 = vmatpush1.bf16.msra.mxu0 0
    %6803 = vmatprep.subr.bf16.mxu0 0
    %6804 = vmatpush1.bf16.msra.mxu0 0
    %6805 = vmatprep.subr.bf16.mxu0 0
    %6806 = vmatpush1.bf16.msra.mxu0 0
    %6807 = vmatprep.subr.bf16.mxu0 0
    %6808 = vmatpush1.bf16.msra.mxu0 0
    %6809 = vmatprep.subr.bf16.mxu0 0
    %6810 = vmatpush1.bf16.msra.mxu0 0
    %6811 = vmatprep.subr.bf16.mxu0 0
    %6812 = vmatpush1.bf16.msra.mxu0 0
    %6813 = vmatprep.mubr.bf16.mxu0 0
    %6814 = vmatmul.mubr.bf16.gmra.mrb[0].mxu0 %v6728
    %v6815 = vpop.f32.mrb[0].mxu0
    %v6816 = vadd.f32 0.0, %v6815
    %v6817 = vpop.f32.mrb[0].mxu0
    %v6818 = vpop.f32.mrb[0].mxu0
    %v6819 = vadd.f32 0.0, %v6818
    %v6820 = vpop.f32.mrb[0].mxu0
    %6821 = vmatprep.mubr.bf16.mxu0 0
    %6822 = vmatmul.mubr.bf16.gmra.mrb[0].mxu0 %v6731
    %v6823 = vpop.f32.mrb[0].mxu0
    %v6824 = vadd.f32 0.0, %v6823
    %v6825 = vpop.f32.mrb[0].mxu0
    %v6826 = vpop.f32.mrb[0].mxu0
    %v6827 = vadd.f32 0.0, %v6826
    %v6828 = vpop.f32.mrb[0].mxu0
    %6829 = vmatprep.mubr.bf16.mxu0 0
    %6830 = vmatmul.mubr.bf16.gmra.mrb[0].mxu0 %v6734
    %v6831 = vpop.f32.mrb[0].mxu0
    %v6832 = vadd.f32 0.0, %v6831
    %v6833 = vpop.f32.mrb[0].mxu0
    %v6834 = vpop.f32.mrb[0].mxu0
    %v6835 = vadd.f32 0.0, %v6834
    %v6836 = vpop.f32.mrb[0].mxu0
    %6837 = vmatprep.mubr.bf16.mxu0 0
    %6838 = vmatmul.mubr.bf16.gmra.mrb[0].mxu0 %v6737
    %v6839 = vpop.f32.mrb[0].mxu0
    %v6840 = vadd.f32 0.0, %v6839
    %v6841 = vpop.f32.mrb[0].mxu0
    %v6842 = vpop.f32.mrb[0].mxu0
    %v6843 = vadd.f32 0.0, %v6842
    %v6844 = vpop.f32.mrb[0].mxu0
    %6845 = vmatprep.mubr.bf16.mxu0 0
    %6846 = vmatmul.mubr.bf16.gmra.mrb[0].mxu0 %v6740
    %v6847 = vpop.f32.mrb[0].mxu0
    %v6848 = vadd.f32 0.0, %v6847
    %v6849 = vpop.f32.mrb[0].mxu0
    %v6850 = vpop.f32.mrb[0].mxu0
    %v6851 = vadd.f32 0.0, %v6850
    %v6852 = vpop.f32.mrb[0].mxu0
    %6853 = vmatprep.mubr.bf16.mxu0 0
    %6854 = vmatmul.mubr.bf16.gmra.mrb[0].mxu0 %v6743
    %v6855 = vpop.f32.mrb[0].mxu0
    %v6856 = vadd.f32 0.0, %v6855
    %v6857 = vpop.f32.mrb[0].mxu0
    %v6858 = vpop.f32.mrb[0].mxu0
    %v6859 = vadd.f32 0.0, %v6858
    %v6860 = vpop.f32.mrb[0].mxu0
    %6861 = vmatprep.mubr.bf16.mxu0 0
    %6862 = vmatmul.mubr.bf16.gmra.mrb[0].mxu0 %v6746
    %v6863 = vpop.f32.mrb[0].mxu0
    %v6864 = vadd.f32 0.0, %v6863
    %v6865 = vpop.f32.mrb[0].mxu0
    %v6866 = vpop.f32.mrb[0].mxu0
    %v6867 = vadd.f32 0.0, %v6866
    %v6868 = vpop.f32.mrb[0].mxu0
    %6869 = vmatprep.mubr.bf16.mxu0 0
    %6870 = vmatmul.mubr.bf16.gmra.mrb[0].mxu0 %v6749
    %v6871 = vpop.f32.mrb[0].mxu0
    %v6872 = vadd.f32 0.0, %v6871
    %v6873 = vpop.f32.mrb[0].mxu0
    %v6874 = vpop.f32.mrb[0].mxu0
    %v6875 = vadd.f32 0.0, %v6874
    %v6876 = vpop.f32.mrb[0].mxu0
    %6877 = vmatprep.mubr.bf16.mxu0 0
    %6878 = vmatmul.mubr.bf16.gmra.mrb[0].mxu0 %v6752
    %v6879 = vpop.f32.mrb[0].mxu0
    %v6880 = vadd.f32 0.0, %v6879
    %v6881 = vpop.f32.mrb[0].mxu0
    %v6882 = vpop.f32.mrb[0].mxu0
    %v6883 = vadd.f32 0.0, %v6882
    %v6884 = vpop.f32.mrb[0].mxu0
    %6885 = vmatprep.mubr.bf16.mxu0 0
    %6886 = vmatmul.mubr.bf16.gmra.mrb[0].mxu0 %v6755
    %v6887 = vpop.f32.mrb[0].mxu0
    %v6888 = vadd.f32 0.0, %v6887
    %v6889 = vpop.f32.mrb[0].mxu0
    %v6890 = vpop.f32.mrb[0].mxu0
    %v6891 = vadd.f32 0.0, %v6890
    %v6892 = vpop.f32.mrb[0].mxu0
    %6893 = vmatprep.mubr.bf16.mxu0 0
    %6894 = vmatmul.mubr.bf16.gmra.mrb[0].mxu0 %v6758
    %v6895 = vpop.f32.mrb[0].mxu0
    %v6896 = vadd.f32 0.0, %v6895
    %v6897 = vpop.f32.mrb[0].mxu0
    %v6898 = vpop.f32.mrb[0].mxu0
    %v6899 = vadd.f32 0.0, %v6898
    %v6900 = vpop.f32.mrb[0].mxu0
    %6901 = vmatprep.mubr.bf16.mxu0 0
    %6902 = vmatmul.mubr.bf16.gmra.mrb[0].mxu0 %v6761
    %v6903 = vpop.f32.mrb[0].mxu0
    %v6904 = vadd.f32 0.0, %v6903
    %v6905 = vpop.f32.mrb[0].mxu0
    %v6906 = vpop.f32.mrb[0].mxu0
    %v6907 = vadd.f32 0.0, %v6906
    %v6908 = vpop.f32.mrb[0].mxu0
    %6909 = vmatprep.mubr.bf16.mxu0 0
    %6910 = vmatmul.mubr.bf16.gmra.mrb[0].mxu0 %v6764
    %v6911 = vpop.f32.mrb[0].mxu0
    %v6912 = vadd.f32 0.0, %v6911
    %v6913 = vpop.f32.mrb[0].mxu0
    %v6914 = vpop.f32.mrb[0].mxu0
    %v6915 = vadd.f32 0.0, %v6914
    %v6916 = vpop.f32.mrb[0].mxu0
    %6917 = vmatprep.mubr.bf16.mxu0 0
    %6918 = vmatmul.mubr.bf16.gmra.mrb[0].mxu0 %v6767
    %v6919 = vpop.f32.mrb[0].mxu0
    %v6920 = vadd.f32 0.0, %v6919
    %v6921 = vpop.f32.mrb[0].mxu0
    %v6922 = vpop.f32.mrb[0].mxu0
    %v6923 = vadd.f32 0.0, %v6922
    %v6924 = vpop.f32.mrb[0].mxu0
    %6925 = vmatprep.mubr.bf16.mxu0 0
    %6926 = vmatmul.mubr.bf16.gmra.mrb[0].mxu0 %v6770
    %v6927 = vpop.f32.mrb[0].mxu0
    %v6928 = vadd.f32 0.0, %v6927
    %v6929 = vpop.f32.mrb[0].mxu0
    %v6930 = vpop.f32.mrb[0].mxu0
    %v6931 = vadd.f32 0.0, %v6930
    %v6932 = vpop.f32.mrb[0].mxu0
    %6933 = vmatprep.mubr.bf16.mxu0 0
    %6934 = vmatmul.mubr.bf16.gmra.mrb[0].mxu0 %v6773
    %v6935 = vpop.f32.mrb[0].mxu0
    %v6936 = vadd.f32 0.0, %v6935
    %v6937 = vpop.f32.mrb[0].mxu0
    %v6938 = vpop.f32.mrb[0].mxu0
    %v6939 = vadd.f32 0.0, %v6938
    %v6940 = vpop.f32.mrb[0].mxu0
    %6941 = vmatprep.mubr.bf16.mxu0 0
    %6942 = vmatmul.mubr.bf16.gmra.mrb[0].mxu0 %v6776
    %v6943 = vpop.f32.mrb[0].mxu0
    %v6944 = vadd.f32 0.0, %v6943
    %v6945 = vpop.f32.mrb[0].mxu0
    %v6946 = vpop.f32.mrb[0].mxu0
    %v6947 = vadd.f32 0.0, %v6946
    %v6948 = vpop.f32.mrb[0].mxu0
    %6949 = vmatprep.mubr.bf16.mxu0 0
    %6950 = vmatmul.mubr.bf16.gmra.mrb[0].mxu0 %v6779
    %v6951 = vpop.f32.mrb[0].mxu0
    %v6952 = vadd.f32 0.0, %v6951
    %v6953 = vpop.f32.mrb[0].mxu0
    %v6954 = vpop.f32.mrb[0].mxu0
    %v6955 = vadd.f32 0.0, %v6954
    %v6956 = vpop.f32.mrb[0].mxu0
    %6957 = vdwg.mxu0
    %v6958 = vadd.f32 %v6553, %v6816
    %v6959 = vadd.f32 %v6554, %v6819
    %v6960 = vadd.f32 %v6555, %v6824
    %v6961 = vadd.f32 %v6556, %v6827
    %v6962 = vadd.f32 %v6557, %v6832
    %v6963 = vadd.f32 %v6558, %v6835
    %v6964 = vadd.f32 %v6559, %v6840
    %v6965 = vadd.f32 %v6560, %v6843
    %v6966 = vadd.f32 %v6561, %v6848
    %v6967 = vadd.f32 %v6562, %v6851
    %v6968 = vadd.f32 %v6563, %v6856
    %v6969 = vadd.f32 %v6564, %v6859
    %v6970 = vadd.f32 %v6565, %v6864
    %v6971 = vadd.f32 %v6566, %v6867
    %v6972 = vadd.f32 %v6567, %v6872
    %v6973 = vadd.f32 %v6568, %v6875
    %v6974 = vadd.f32 %v6569, %v6880
    %v6975 = vadd.f32 %v6570, %v6883
    %v6976 = vadd.f32 %v6571, %v6888
    %v6977 = vadd.f32 %v6572, %v6891
    %v6978 = vadd.f32 %v6573, %v6896
    %v6979 = vadd.f32 %v6574, %v6899
    %v6980 = vadd.f32 %v6575, %v6904
    %v6981 = vadd.f32 %v6576, %v6907
    %v6982 = vadd.f32 %v6577, %v6912
    %v6983 = vadd.f32 %v6578, %v6915
    %v6984 = vadd.f32 %v6579, %v6920
    %v6985 = vadd.f32 %v6580, %v6923
    %v6986 = vadd.f32 %v6581, %v6928
    %v6987 = vadd.f32 %v6582, %v6931
    %v6988 = vadd.f32 %v6583, %v6936
    %v6989 = vadd.f32 %v6584, %v6939
    %v6990 = vadd.f32 %v6585, %v6944
    %v6991 = vadd.f32 %v6586, %v6947
    %v6992 = vadd.f32 %v6587, %v6952
    %v6993 = vadd.f32 %v6588, %v6955
    %v6994 = vmul.f32 %v4813, %v825
    %v6995 = vmul.f32 %v4812, %v829
    %v6996 = vmul.f32 %v4811, %v833
    %v6997 = vmul.f32 %v4810, %v837
    %v6998 = vmul.f32 %v4809, %v841
    %v6999 = vmul.f32 %v4808, %v845
    %v7000 = vmul.f32 %v4807, %v849
    %v7001 = vmul.f32 %v4806, %v853
    %v7002 = vmul.f32 %v4805, %v857
    %v7003 = vmul.f32 %v4804, %v861
    %v7004 = vmul.f32 %v4803, %v865
    %v7005 = vmul.f32 %v4802, %v869
    %v7006 = vmul.f32 %v4801, %v873
    %v7007 = vmul.f32 %v4800, %v877
    %v7008 = vmul.f32 %v4799, %v881
    %v7009 = vmul.f32 %v4798, %v885
    %v7010 = vmul.f32 %v4797, %v889
    %v7011 = vmul.f32 %v4796, %v893
    %v7012 = vmul.f32 %v4795, %v897
    %v7013 = vmul.f32 %v4794, %v901
    %v7014 = vmul.f32 %v4793, %v905
    %v7015 = vmul.f32 %v4792, %v909
    %v7016 = vmul.f32 %v4791, %v913
    %v7017 = vmul.f32 %v4790, %v917
    %v7018 = vmul.f32 %v4789, %v921
    %v7019 = vmul.f32 %v4788, %v925
    %v7020 = vmul.f32 %v4787, %v929
    %v7021 = vmul.f32 %v4786, %v933
    %v7022 = vmul.f32 %v4785, %v937
    %v7023 = vmul.f32 %v4784, %v941
    %v7024 = vmul.f32 %v4783, %v945
    %v7025 = vmul.f32 %v4782, %v949
    %v7026 = vmul.f32 %v4781, %v953
    %v7027 = vmul.f32 %v4780, %v957
    %v7028 = vmul.f32 %v4815, %v961
    %v7029 = vmul.f32 %v4814, %v965
    %v7030 = vpack.c.bf16 %v6995, %v6994
    %v7031 = vpack.c.bf16 %v6997, %v6996
    %v7032 = vpack.c.bf16 %v6999, %v6998
    %v7033 = vpack.c.bf16 %v7001, %v7000
    %v7034 = vpack.c.bf16 %v7003, %v7002
    %v7035 = vpack.c.bf16 %v7005, %v7004
    %v7036 = vpack.c.bf16 %v7007, %v7006
    %v7037 = vpack.c.bf16 %v7009, %v7008
    %v7038 = vpack.c.bf16 %v7011, %v7010
    %v7039 = vpack.c.bf16 %v7013, %v7012
    %v7040 = vpack.c.bf16 %v7015, %v7014
    %v7041 = vpack.c.bf16 %v7017, %v7016
    %v7042 = vpack.c.bf16 %v7019, %v7018
    %v7043 = vpack.c.bf16 %v7021, %v7020
    %v7044 = vpack.c.bf16 %v7023, %v7022
    %v7045 = vpack.c.bf16 %v7025, %v7024
    %v7046 = vpack.c.bf16 %v7027, %v7026
    %v7047 = vpack.c.bf16 %v7029, %v7028
    %v7052 = vunpack.c.l.b16 %v4730
    %v7053 = vunpack.c.l.b16 %v4731
    %v7054 = vunpack.c.l.b16 %v4732
    %v7055 = vunpack.c.l.b16 %v4733
    %v7056 = vpack.c.b16 %v7053, %v7052
    %v7057 = vpack.c.b16 %v7055, %v7054
    %v7061 = vsel %vm1597, %v7030, 0
    %v7064 = vsel %vm1597, %v7031, 0
    %v7067 = vsel %vm1597, %v7032, 0
    %v7070 = vsel %vm1597, %v7033, 0
    %v7073 = vsel %vm1597, %v7034, 0
    %v7076 = vsel %vm1597, %v7035, 0
    %v7079 = vsel %vm1597, %v7036, 0
    %v7082 = vsel %vm1597, %v7037, 0
    %v7085 = vsel %vm1597, %v7038, 0
    %v7088 = vsel %vm1597, %v7039, 0
    %v7091 = vsel %vm1597, %v7040, 0
    %v7094 = vsel %vm1597, %v7041, 0
    %v7097 = vsel %vm1597, %v7042, 0
    %v7100 = vsel %vm1597, %v7043, 0
    %v7103 = vsel %vm1597, %v7044, 0
    %v7106 = vsel %vm1597, %v7045, 0
    %v7109 = vsel %vm1597, %v7046, 0
    %v7112 = vsel %vm1597, %v7047, 0
    %7114 = vmatprep.subr.bf16.mxu0 0
    %7115 = vmatpush1.bf16.msra.mxu0 %v7056
    %7116 = vmatprep.subr.bf16.mxu0 0
    %7117 = vmatpush1.bf16.msra.mxu0 %v7057
    %7118 = vmatprep.subr.bf16.mxu0 0
    %7119 = vmatpush1.bf16.msra.mxu0 0
    %7120 = vmatprep.subr.bf16.mxu0 0
    %7121 = vmatpush1.bf16.msra.mxu0 0
    %7122 = vmatprep.subr.bf16.mxu0 0
    %7123 = vmatpush1.bf16.msra.mxu0 0
    %7124 = vmatprep.subr.bf16.mxu0 0
    %7125 = vmatpush1.bf16.msra.mxu0 0
    %7126 = vmatprep.subr.bf16.mxu0 0
    %7127 = vmatpush1.bf16.msra.mxu0 0
    %7128 = vmatprep.subr.bf16.mxu0 0
    %7129 = vmatpush1.bf16.msra.mxu0 0
    %7130 = vmatprep.subr.bf16.mxu0 0
    %7131 = vmatpush1.bf16.msra.mxu0 0
    %7132 = vmatprep.subr.bf16.mxu0 0
    %7133 = vmatpush1.bf16.msra.mxu0 0
    %7134 = vmatprep.subr.bf16.mxu0 0
    %7135 = vmatpush1.bf16.msra.mxu0 0
    %7136 = vmatprep.subr.bf16.mxu0 0
    %7137 = vmatpush1.bf16.msra.mxu0 0
    %7138 = vmatprep.subr.bf16.mxu0 0
    %7139 = vmatpush1.bf16.msra.mxu0 0
    %7140 = vmatprep.subr.bf16.mxu0 0
    %7141 = vmatpush1.bf16.msra.mxu0 0
    %7142 = vmatprep.subr.bf16.mxu0 0
    %7143 = vmatpush1.bf16.msra.mxu0 0
    %7144 = vmatprep.subr.bf16.mxu0 0
    %7145 = vmatpush1.bf16.msra.mxu0 0
    %7146 = vmatprep.mubr.bf16.mxu0 0
    %7147 = vmatmul.mubr.bf16.gmra.mrb[0].mxu0 %v7061
    %v7148 = vpop.f32.mrb[0].mxu0
    %v7149 = vadd.f32 0.0, %v7148
    %v7150 = vpop.f32.mrb[0].mxu0
    %v7151 = vpop.f32.mrb[0].mxu0
    %v7152 = vadd.f32 0.0, %v7151
    %v7153 = vpop.f32.mrb[0].mxu0
    %7154 = vmatprep.mubr.bf16.mxu0 0
    %7155 = vmatmul.mubr.bf16.gmra.mrb[0].mxu0 %v7064
    %v7156 = vpop.f32.mrb[0].mxu0
    %v7157 = vadd.f32 0.0, %v7156
    %v7158 = vpop.f32.mrb[0].mxu0
    %v7159 = vpop.f32.mrb[0].mxu0
    %v7160 = vadd.f32 0.0, %v7159
    %v7161 = vpop.f32.mrb[0].mxu0
    %7162 = vmatprep.mubr.bf16.mxu0 0
    %7163 = vmatmul.mubr.bf16.gmra.mrb[0].mxu0 %v7067
    %v7164 = vpop.f32.mrb[0].mxu0
    %v7165 = vadd.f32 0.0, %v7164
    %v7166 = vpop.f32.mrb[0].mxu0
    %v7167 = vpop.f32.mrb[0].mxu0
    %v7168 = vadd.f32 0.0, %v7167
    %v7169 = vpop.f32.mrb[0].mxu0
    %7170 = vmatprep.mubr.bf16.mxu0 0
    %7171 = vmatmul.mubr.bf16.gmra.mrb[0].mxu0 %v7070
    %v7172 = vpop.f32.mrb[0].mxu0
    %v7173 = vadd.f32 0.0, %v7172
    %v7174 = vpop.f32.mrb[0].mxu0
    %v7175 = vpop.f32.mrb[0].mxu0
    %v7176 = vadd.f32 0.0, %v7175
    %v7177 = vpop.f32.mrb[0].mxu0
    %7178 = vmatprep.mubr.bf16.mxu0 0
    %7179 = vmatmul.mubr.bf16.gmra.mrb[0].mxu0 %v7073
    %v7180 = vpop.f32.mrb[0].mxu0
    %v7181 = vadd.f32 0.0, %v7180
    %v7182 = vpop.f32.mrb[0].mxu0
    %v7183 = vpop.f32.mrb[0].mxu0
    %v7184 = vadd.f32 0.0, %v7183
    %v7185 = vpop.f32.mrb[0].mxu0
    %7186 = vmatprep.mubr.bf16.mxu0 0
    %7187 = vmatmul.mubr.bf16.gmra.mrb[0].mxu0 %v7076
    %v7188 = vpop.f32.mrb[0].mxu0
    %v7189 = vadd.f32 0.0, %v7188
    %v7190 = vpop.f32.mrb[0].mxu0
    %v7191 = vpop.f32.mrb[0].mxu0
    %v7192 = vadd.f32 0.0, %v7191
    %v7193 = vpop.f32.mrb[0].mxu0
    %7194 = vmatprep.mubr.bf16.mxu0 0
    %7195 = vmatmul.mubr.bf16.gmra.mrb[0].mxu0 %v7079
    %v7196 = vpop.f32.mrb[0].mxu0
    %v7197 = vadd.f32 0.0, %v7196
    %v7198 = vpop.f32.mrb[0].mxu0
    %v7199 = vpop.f32.mrb[0].mxu0
    %v7200 = vadd.f32 0.0, %v7199
    %v7201 = vpop.f32.mrb[0].mxu0
    %7202 = vmatprep.mubr.bf16.mxu0 0
    %7203 = vmatmul.mubr.bf16.gmra.mrb[0].mxu0 %v7082
    %v7204 = vpop.f32.mrb[0].mxu0
    %v7205 = vadd.f32 0.0, %v7204
    %v7206 = vpop.f32.mrb[0].mxu0
    %v7207 = vpop.f32.mrb[0].mxu0
    %v7208 = vadd.f32 0.0, %v7207
    %v7209 = vpop.f32.mrb[0].mxu0
    %7210 = vmatprep.mubr.bf16.mxu0 0
    %7211 = vmatmul.mubr.bf16.gmra.mrb[0].mxu0 %v7085
    %v7212 = vpop.f32.mrb[0].mxu0
    %v7213 = vadd.f32 0.0, %v7212
    %v7214 = vpop.f32.mrb[0].mxu0
    %v7215 = vpop.f32.mrb[0].mxu0
    %v7216 = vadd.f32 0.0, %v7215
    %v7217 = vpop.f32.mrb[0].mxu0
    %7218 = vmatprep.mubr.bf16.mxu0 0
    %7219 = vmatmul.mubr.bf16.gmra.mrb[0].mxu0 %v7088
    %v7220 = vpop.f32.mrb[0].mxu0
    %v7221 = vadd.f32 0.0, %v7220
    %v7222 = vpop.f32.mrb[0].mxu0
    %v7223 = vpop.f32.mrb[0].mxu0
    %v7224 = vadd.f32 0.0, %v7223
    %v7225 = vpop.f32.mrb[0].mxu0
    %7226 = vmatprep.mubr.bf16.mxu0 0
    %7227 = vmatmul.mubr.bf16.gmra.mrb[0].mxu0 %v7091
    %v7228 = vpop.f32.mrb[0].mxu0
    %v7229 = vadd.f32 0.0, %v7228
    %v7230 = vpop.f32.mrb[0].mxu0
    %v7231 = vpop.f32.mrb[0].mxu0
    %v7232 = vadd.f32 0.0, %v7231
    %v7233 = vpop.f32.mrb[0].mxu0
    %7234 = vmatprep.mubr.bf16.mxu0 0
    %7235 = vmatmul.mubr.bf16.gmra.mrb[0].mxu0 %v7094
    %v7236 = vpop.f32.mrb[0].mxu0
    %v7237 = vadd.f32 0.0, %v7236
    %v7238 = vpop.f32.mrb[0].mxu0
    %v7239 = vpop.f32.mrb[0].mxu0
    %v7240 = vadd.f32 0.0, %v7239
    %v7241 = vpop.f32.mrb[0].mxu0
    %7242 = vmatprep.mubr.bf16.mxu0 0
    %7243 = vmatmul.mubr.bf16.gmra.mrb[0].mxu0 %v7097
    %v7244 = vpop.f32.mrb[0].mxu0
    %v7245 = vadd.f32 0.0, %v7244
    %v7246 = vpop.f32.mrb[0].mxu0
    %v7247 = vpop.f32.mrb[0].mxu0
    %v7248 = vadd.f32 0.0, %v7247
    %v7249 = vpop.f32.mrb[0].mxu0
    %7250 = vmatprep.mubr.bf16.mxu0 0
    %7251 = vmatmul.mubr.bf16.gmra.mrb[0].mxu0 %v7100
    %v7252 = vpop.f32.mrb[0].mxu0
    %v7253 = vadd.f32 0.0, %v7252
    %v7254 = vpop.f32.mrb[0].mxu0
    %v7255 = vpop.f32.mrb[0].mxu0
    %v7256 = vadd.f32 0.0, %v7255
    %v7257 = vpop.f32.mrb[0].mxu0
    %7258 = vmatprep.mubr.bf16.mxu0 0
    %7259 = vmatmul.mubr.bf16.gmra.mrb[0].mxu0 %v7103
    %v7260 = vpop.f32.mrb[0].mxu0
    %v7261 = vadd.f32 0.0, %v7260
    %v7262 = vpop.f32.mrb[0].mxu0
    %v7263 = vpop.f32.mrb[0].mxu0
    %v7264 = vadd.f32 0.0, %v7263
    %v7265 = vpop.f32.mrb[0].mxu0
    %7266 = vmatprep.mubr.bf16.mxu0 0
    %7267 = vmatmul.mubr.bf16.gmra.mrb[0].mxu0 %v7106
    %v7268 = vpop.f32.mrb[0].mxu0
    %v7269 = vadd.f32 0.0, %v7268
    %v7270 = vpop.f32.mrb[0].mxu0
    %v7271 = vpop.f32.mrb[0].mxu0
    %v7272 = vadd.f32 0.0, %v7271
    %v7273 = vpop.f32.mrb[0].mxu0
    %7274 = vmatprep.mubr.bf16.mxu0 0
    %7275 = vmatmul.mubr.bf16.gmra.mrb[0].mxu0 %v7109
    %v7276 = vpop.f32.mrb[0].mxu0
    %v7277 = vadd.f32 0.0, %v7276
    %v7278 = vpop.f32.mrb[0].mxu0
    %v7279 = vpop.f32.mrb[0].mxu0
    %v7280 = vadd.f32 0.0, %v7279
    %v7281 = vpop.f32.mrb[0].mxu0
    %7282 = vmatprep.mubr.bf16.mxu0 0
    %7283 = vmatmul.mubr.bf16.gmra.mrb[0].mxu0 %v7112
    %v7284 = vpop.f32.mrb[0].mxu0
    %v7285 = vadd.f32 0.0, %v7284
    %v7286 = vpop.f32.mrb[0].mxu0
    %v7287 = vpop.f32.mrb[0].mxu0
    %v7288 = vadd.f32 0.0, %v7287
    %v7289 = vpop.f32.mrb[0].mxu0
    %7290 = vdwg.mxu0
    %v7291 = vadd.f32 %v6958, %v7149
    %v7292 = vadd.f32 %v6959, %v7152
    %v7293 = vadd.f32 %v6960, %v7157
    %v7294 = vadd.f32 %v6961, %v7160
    %v7295 = vadd.f32 %v6962, %v7165
    %v7296 = vadd.f32 %v6963, %v7168
    %v7297 = vadd.f32 %v6964, %v7173
    %v7298 = vadd.f32 %v6965, %v7176
    %v7299 = vadd.f32 %v6966, %v7181
    %v7300 = vadd.f32 %v6967, %v7184
    %v7301 = vadd.f32 %v6968, %v7189
    %v7302 = vadd.f32 %v6969, %v7192
    %v7303 = vadd.f32 %v6970, %v7197
    %v7304 = vadd.f32 %v6971, %v7200
    %v7305 = vadd.f32 %v6972, %v7205
    %v7306 = vadd.f32 %v6973, %v7208
    %v7307 = vadd.f32 %v6974, %v7213
    %v7308 = vadd.f32 %v6975, %v7216
    %v7309 = vadd.f32 %v6976, %v7221
    %v7310 = vadd.f32 %v6977, %v7224
    %v7311 = vadd.f32 %v6978, %v7229
    %v7312 = vadd.f32 %v6979, %v7232
    %v7313 = vadd.f32 %v6980, %v7237
    %v7314 = vadd.f32 %v6981, %v7240
    %v7315 = vadd.f32 %v6982, %v7245
    %v7316 = vadd.f32 %v6983, %v7248
    %v7317 = vadd.f32 %v6984, %v7253
    %v7318 = vadd.f32 %v6985, %v7256
    %v7319 = vadd.f32 %v6986, %v7261
    %v7320 = vadd.f32 %v6987, %v7264
    %v7321 = vadd.f32 %v6988, %v7269
    %v7322 = vadd.f32 %v6989, %v7272
    %v7323 = vadd.f32 %v6990, %v7277
    %v7324 = vadd.f32 %v6991, %v7280
    %v7325 = vadd.f32 %v6992, %v7285
    %v7326 = vadd.f32 %v6993, %v7288
    %v7327 = vmul.f32 %v4939, %v969
    %v7328 = vmul.f32 %v4938, %v973
    %v7329 = vmul.f32 %v4937, %v977
    %v7330 = vmul.f32 %v4936, %v981
    %v7331 = vmul.f32 %v4935, %v985
    %v7332 = vmul.f32 %v4934, %v989
    %v7333 = vmul.f32 %v4933, %v993
    %v7334 = vmul.f32 %v4932, %v997
    %v7335 = vmul.f32 %v4931, %v1001
    %v7336 = vmul.f32 %v4930, %v1005
    %v7337 = vmul.f32 %v4929, %v1009
    %v7338 = vmul.f32 %v4928, %v1013
    %v7339 = vmul.f32 %v4927, %v1017
    %v7340 = vmul.f32 %v4926, %v1021
    %v7341 = vmul.f32 %v4925, %v1025
    %v7342 = vmul.f32 %v4924, %v1029
    %v7343 = vmul.f32 %v4923, %v1033
    %v7344 = vmul.f32 %v4922, %v1037
    %v7345 = vmul.f32 %v4921, %v1041
    %v7346 = vmul.f32 %v4920, %v1045
    %v7347 = vmul.f32 %v4919, %v1049
    %v7348 = vmul.f32 %v4918, %v1053
    %v7349 = vmul.f32 %v4917, %v1057
    %v7350 = vmul.f32 %v4916, %v1061
    %v7351 = vmul.f32 %v4915, %v1065
    %v7352 = vmul.f32 %v4914, %v1069
    %v7353 = vmul.f32 %v4913, %v1073
    %v7354 = vmul.f32 %v4912, %v1077
    %v7355 = vmul.f32 %v4911, %v1081
    %v7356 = vmul.f32 %v4910, %v1085
    %v7357 = vmul.f32 %v4909, %v1089
    %v7358 = vmul.f32 %v4908, %v1093
    %v7359 = vmul.f32 %v4907, %v1097
    %v7360 = vmul.f32 %v4906, %v1101
    %v7361 = vmul.f32 %v4941, %v1105
    %v7362 = vmul.f32 %v4940, %v1109
    %v7363 = vpack.c.bf16 %v7328, %v7327
    %v7364 = vpack.c.bf16 %v7330, %v7329
    %v7365 = vpack.c.bf16 %v7332, %v7331
    %v7366 = vpack.c.bf16 %v7334, %v7333
    %v7367 = vpack.c.bf16 %v7336, %v7335
    %v7368 = vpack.c.bf16 %v7338, %v7337
    %v7369 = vpack.c.bf16 %v7340, %v7339
    %v7370 = vpack.c.bf16 %v7342, %v7341
    %v7371 = vpack.c.bf16 %v7344, %v7343
    %v7372 = vpack.c.bf16 %v7346, %v7345
    %v7373 = vpack.c.bf16 %v7348, %v7347
    %v7374 = vpack.c.bf16 %v7350, %v7349
    %v7375 = vpack.c.bf16 %v7352, %v7351
    %v7376 = vpack.c.bf16 %v7354, %v7353
    %v7377 = vpack.c.bf16 %v7356, %v7355
    %v7378 = vpack.c.bf16 %v7358, %v7357
    %v7379 = vpack.c.bf16 %v7360, %v7359
    %v7380 = vpack.c.bf16 %v7362, %v7361
    %v7385 = vunpack.c.l.b16 %v4734
    %v7386 = vunpack.c.l.b16 %v4735
    %v7387 = vunpack.c.l.b16 %v4736
    %v7388 = vunpack.c.l.b16 %v4737
    %v7389 = vpack.c.b16 %v7386, %v7385
    %v7390 = vpack.c.b16 %v7388, %v7387
    %v7394 = vsel %vm1597, %v7363, 0
    %v7397 = vsel %vm1597, %v7364, 0
    %v7400 = vsel %vm1597, %v7365, 0
    %v7403 = vsel %vm1597, %v7366, 0
    %v7406 = vsel %vm1597, %v7367, 0
    %v7409 = vsel %vm1597, %v7368, 0
    %v7412 = vsel %vm1597, %v7369, 0
    %v7415 = vsel %vm1597, %v7370, 0
    %v7418 = vsel %vm1597, %v7371, 0
    %v7421 = vsel %vm1597, %v7372, 0
    %v7424 = vsel %vm1597, %v7373, 0
    %v7427 = vsel %vm1597, %v7374, 0
    %v7430 = vsel %vm1597, %v7375, 0
    %v7433 = vsel %vm1597, %v7376, 0
    %v7436 = vsel %vm1597, %v7377, 0
    %v7439 = vsel %vm1597, %v7378, 0
    %v7442 = vsel %vm1597, %v7379, 0
    %v7445 = vsel %vm1597, %v7380, 0
    %7447 = vmatprep.subr.bf16.mxu0 0
    %7448 = vmatpush1.bf16.msra.mxu0 %v7389
    %7449 = vmatprep.subr.bf16.mxu0 0
    %7450 = vmatpush1.bf16.msra.mxu0 %v7390
    %7451 = vmatprep.subr.bf16.mxu0 0
    %7452 = vmatpush1.bf16.msra.mxu0 0
    %7453 = vmatprep.subr.bf16.mxu0 0
    %7454 = vmatpush1.bf16.msra.mxu0 0
    %7455 = vmatprep.subr.bf16.mxu0 0
    %7456 = vmatpush1.bf16.msra.mxu0 0
    %7457 = vmatprep.subr.bf16.mxu0 0
    %7458 = vmatpush1.bf16.msra.mxu0 0
    %7459 = vmatprep.subr.bf16.mxu0 0
    %7460 = vmatpush1.bf16.msra.mxu0 0
    %7461 = vmatprep.subr.bf16.mxu0 0
    %7462 = vmatpush1.bf16.msra.mxu0 0
    %7463 = vmatprep.subr.bf16.mxu0 0
    %7464 = vmatpush1.bf16.msra.mxu0 0
    %7465 = vmatprep.subr.bf16.mxu0 0
    %7466 = vmatpush1.bf16.msra.mxu0 0
    %7467 = vmatprep.subr.bf16.mxu0 0
    %7468 = vmatpush1.bf16.msra.mxu0 0
    %7469 = vmatprep.subr.bf16.mxu0 0
    %7470 = vmatpush1.bf16.msra.mxu0 0
    %7471 = vmatprep.subr.bf16.mxu0 0
    %7472 = vmatpush1.bf16.msra.mxu0 0
    %7473 = vmatprep.subr.bf16.mxu0 0
    %7474 = vmatpush1.bf16.msra.mxu0 0
    %7475 = vmatprep.subr.bf16.mxu0 0
    %7476 = vmatpush1.bf16.msra.mxu0 0
    %7477 = vmatprep.subr.bf16.mxu0 0
    %7478 = vmatpush1.bf16.msra.mxu0 0
    %7479 = vmatprep.mubr.bf16.mxu0 0
    %7480 = vmatmul.mubr.bf16.gmra.mrb[0].mxu0 %v7394
    %v7481 = vpop.f32.mrb[0].mxu0
    %v7482 = vadd.f32 0.0, %v7481
    %v7483 = vpop.f32.mrb[0].mxu0
    %v7484 = vpop.f32.mrb[0].mxu0
    %v7485 = vadd.f32 0.0, %v7484
    %v7486 = vpop.f32.mrb[0].mxu0
    %7487 = vmatprep.mubr.bf16.mxu0 0
    %7488 = vmatmul.mubr.bf16.gmra.mrb[0].mxu0 %v7397
    %v7489 = vpop.f32.mrb[0].mxu0
    %v7490 = vadd.f32 0.0, %v7489
    %v7491 = vpop.f32.mrb[0].mxu0
    %v7492 = vpop.f32.mrb[0].mxu0
    %v7493 = vadd.f32 0.0, %v7492
    %v7494 = vpop.f32.mrb[0].mxu0
    %7495 = vmatprep.mubr.bf16.mxu0 0
    %7496 = vmatmul.mubr.bf16.gmra.mrb[0].mxu0 %v7400
    %v7497 = vpop.f32.mrb[0].mxu0
    %v7498 = vadd.f32 0.0, %v7497
    %v7499 = vpop.f32.mrb[0].mxu0
    %v7500 = vpop.f32.mrb[0].mxu0
    %v7501 = vadd.f32 0.0, %v7500
    %v7502 = vpop.f32.mrb[0].mxu0
    %7503 = vmatprep.mubr.bf16.mxu0 0
    %7504 = vmatmul.mubr.bf16.gmra.mrb[0].mxu0 %v7403
    %v7505 = vpop.f32.mrb[0].mxu0
    %v7506 = vadd.f32 0.0, %v7505
    %v7507 = vpop.f32.mrb[0].mxu0
    %v7508 = vpop.f32.mrb[0].mxu0
    %v7509 = vadd.f32 0.0, %v7508
    %v7510 = vpop.f32.mrb[0].mxu0
    %7511 = vmatprep.mubr.bf16.mxu0 0
    %7512 = vmatmul.mubr.bf16.gmra.mrb[0].mxu0 %v7406
    %v7513 = vpop.f32.mrb[0].mxu0
    %v7514 = vadd.f32 0.0, %v7513
    %v7515 = vpop.f32.mrb[0].mxu0
    %v7516 = vpop.f32.mrb[0].mxu0
    %v7517 = vadd.f32 0.0, %v7516
    %v7518 = vpop.f32.mrb[0].mxu0
    %7519 = vmatprep.mubr.bf16.mxu0 0
    %7520 = vmatmul.mubr.bf16.gmra.mrb[0].mxu0 %v7409
    %v7521 = vpop.f32.mrb[0].mxu0
    %v7522 = vadd.f32 0.0, %v7521
    %v7523 = vpop.f32.mrb[0].mxu0
    %v7524 = vpop.f32.mrb[0].mxu0
    %v7525 = vadd.f32 0.0, %v7524
    %v7526 = vpop.f32.mrb[0].mxu0
    %7527 = vmatprep.mubr.bf16.mxu0 0
    %7528 = vmatmul.mubr.bf16.gmra.mrb[0].mxu0 %v7412
    %v7529 = vpop.f32.mrb[0].mxu0
    %v7530 = vadd.f32 0.0, %v7529
    %v7531 = vpop.f32.mrb[0].mxu0
    %v7532 = vpop.f32.mrb[0].mxu0
    %v7533 = vadd.f32 0.0, %v7532
    %v7534 = vpop.f32.mrb[0].mxu0
    %7535 = vmatprep.mubr.bf16.mxu0 0
    %7536 = vmatmul.mubr.bf16.gmra.mrb[0].mxu0 %v7415
    %v7537 = vpop.f32.mrb[0].mxu0
    %v7538 = vadd.f32 0.0, %v7537
    %v7539 = vpop.f32.mrb[0].mxu0
    %v7540 = vpop.f32.mrb[0].mxu0
    %v7541 = vadd.f32 0.0, %v7540
    %v7542 = vpop.f32.mrb[0].mxu0
    %7543 = vmatprep.mubr.bf16.mxu0 0
    %7544 = vmatmul.mubr.bf16.gmra.mrb[0].mxu0 %v7418
    %v7545 = vpop.f32.mrb[0].mxu0
    %v7546 = vadd.f32 0.0, %v7545
    %v7547 = vpop.f32.mrb[0].mxu0
    %v7548 = vpop.f32.mrb[0].mxu0
    %v7549 = vadd.f32 0.0, %v7548
    %v7550 = vpop.f32.mrb[0].mxu0
    %7551 = vmatprep.mubr.bf16.mxu0 0
    %7552 = vmatmul.mubr.bf16.gmra.mrb[0].mxu0 %v7421
    %v7553 = vpop.f32.mrb[0].mxu0
    %v7554 = vadd.f32 0.0, %v7553
    %v7555 = vpop.f32.mrb[0].mxu0
    %v7556 = vpop.f32.mrb[0].mxu0
    %v7557 = vadd.f32 0.0, %v7556
    %v7558 = vpop.f32.mrb[0].mxu0
    %7559 = vmatprep.mubr.bf16.mxu0 0
    %7560 = vmatmul.mubr.bf16.gmra.mrb[0].mxu0 %v7424
    %v7561 = vpop.f32.mrb[0].mxu0
    %v7562 = vadd.f32 0.0, %v7561
    %v7563 = vpop.f32.mrb[0].mxu0
    %v7564 = vpop.f32.mrb[0].mxu0
    %v7565 = vadd.f32 0.0, %v7564
    %v7566 = vpop.f32.mrb[0].mxu0
    %7567 = vmatprep.mubr.bf16.mxu0 0
    %7568 = vmatmul.mubr.bf16.gmra.mrb[0].mxu0 %v7427
    %v7569 = vpop.f32.mrb[0].mxu0
    %v7570 = vadd.f32 0.0, %v7569
    %v7571 = vpop.f32.mrb[0].mxu0
    %v7572 = vpop.f32.mrb[0].mxu0
    %v7573 = vadd.f32 0.0, %v7572
    %v7574 = vpop.f32.mrb[0].mxu0
    %7575 = vmatprep.mubr.bf16.mxu0 0
    %7576 = vmatmul.mubr.bf16.gmra.mrb[0].mxu0 %v7430
    %v7577 = vpop.f32.mrb[0].mxu0
    %v7578 = vadd.f32 0.0, %v7577
    %v7579 = vpop.f32.mrb[0].mxu0
    %v7580 = vpop.f32.mrb[0].mxu0
    %v7581 = vadd.f32 0.0, %v7580
    %v7582 = vpop.f32.mrb[0].mxu0
    %7583 = vmatprep.mubr.bf16.mxu0 0
    %7584 = vmatmul.mubr.bf16.gmra.mrb[0].mxu0 %v7433
    %v7585 = vpop.f32.mrb[0].mxu0
    %v7586 = vadd.f32 0.0, %v7585
    %v7587 = vpop.f32.mrb[0].mxu0
    %v7588 = vpop.f32.mrb[0].mxu0
    %v7589 = vadd.f32 0.0, %v7588
    %v7590 = vpop.f32.mrb[0].mxu0
    %7591 = vmatprep.mubr.bf16.mxu0 0
    %7592 = vmatmul.mubr.bf16.gmra.mrb[0].mxu0 %v7436
    %v7593 = vpop.f32.mrb[0].mxu0
    %v7594 = vadd.f32 0.0, %v7593
    %v7595 = vpop.f32.mrb[0].mxu0
    %v7596 = vpop.f32.mrb[0].mxu0
    %v7597 = vadd.f32 0.0, %v7596
    %v7598 = vpop.f32.mrb[0].mxu0
    %7599 = vmatprep.mubr.bf16.mxu0 0
    %7600 = vmatmul.mubr.bf16.gmra.mrb[0].mxu0 %v7439
    %v7601 = vpop.f32.mrb[0].mxu0
    %v7602 = vadd.f32 0.0, %v7601
    %v7603 = vpop.f32.mrb[0].mxu0
    %v7604 = vpop.f32.mrb[0].mxu0
    %v7605 = vadd.f32 0.0, %v7604
    %v7606 = vpop.f32.mrb[0].mxu0
    %7607 = vmatprep.mubr.bf16.mxu0 0
    %7608 = vmatmul.mubr.bf16.gmra.mrb[0].mxu0 %v7442
    %v7609 = vpop.f32.mrb[0].mxu0
    %v7610 = vadd.f32 0.0, %v7609
    %v7611 = vpop.f32.mrb[0].mxu0
    %v7612 = vpop.f32.mrb[0].mxu0
    %v7613 = vadd.f32 0.0, %v7612
    %v7614 = vpop.f32.mrb[0].mxu0
    %7615 = vmatprep.mubr.bf16.mxu0 0
    %7616 = vmatmul.mubr.bf16.gmra.mrb[0].mxu0 %v7445
    %v7617 = vpop.f32.mrb[0].mxu0
    %v7618 = vadd.f32 0.0, %v7617
    %v7619 = vpop.f32.mrb[0].mxu0
    %v7620 = vpop.f32.mrb[0].mxu0
    %v7621 = vadd.f32 0.0, %v7620
    %v7622 = vpop.f32.mrb[0].mxu0
    %7623 = vdwg.mxu0
    %v7624 = vadd.f32 %v7291, %v7482
    %v7625 = vadd.f32 %v7292, %v7485
    %v7626 = vadd.f32 %v7293, %v7490
    %v7627 = vadd.f32 %v7294, %v7493
    %v7628 = vadd.f32 %v7295, %v7498
    %v7629 = vadd.f32 %v7296, %v7501
    %v7630 = vadd.f32 %v7297, %v7506
    %v7631 = vadd.f32 %v7298, %v7509
    %v7632 = vadd.f32 %v7299, %v7514
    %v7633 = vadd.f32 %v7300, %v7517
    %v7634 = vadd.f32 %v7301, %v7522
    %v7635 = vadd.f32 %v7302, %v7525
    %v7636 = vadd.f32 %v7303, %v7530
    %v7637 = vadd.f32 %v7304, %v7533
    %v7638 = vadd.f32 %v7305, %v7538
    %v7639 = vadd.f32 %v7306, %v7541
    %v7640 = vadd.f32 %v7307, %v7546
    %v7641 = vadd.f32 %v7308, %v7549
    %v7642 = vadd.f32 %v7309, %v7554
    %v7643 = vadd.f32 %v7310, %v7557
    %v7644 = vadd.f32 %v7311, %v7562
    %v7645 = vadd.f32 %v7312, %v7565
    %v7646 = vadd.f32 %v7313, %v7570
    %v7647 = vadd.f32 %v7314, %v7573
    %v7648 = vadd.f32 %v7315, %v7578
    %v7649 = vadd.f32 %v7316, %v7581
    %v7650 = vadd.f32 %v7317, %v7586
    %v7651 = vadd.f32 %v7318, %v7589
    %v7652 = vadd.f32 %v7319, %v7594
    %v7653 = vadd.f32 %v7320, %v7597
    %v7654 = vadd.f32 %v7321, %v7602
    %v7655 = vadd.f32 %v7322, %v7605
    %v7656 = vadd.f32 %v7323, %v7610
    %v7657 = vadd.f32 %v7324, %v7613
    %v7658 = vadd.f32 %v7325, %v7618
    %v7659 = vadd.f32 %v7326, %v7621
    %v7660 = vmul.f32 %v5551, %v1113
    %v7661 = vmul.f32 %v5550, %v1117
    %v7662 = vmul.f32 %v5549, %v1121
    %v7663 = vmul.f32 %v5548, %v1125
    %v7664 = vmul.f32 %v5547, %v1129
    %v7665 = vmul.f32 %v5546, %v1133
    %v7666 = vmul.f32 %v5545, %v1137
    %v7667 = vmul.f32 %v5544, %v1141
    %v7668 = vmul.f32 %v5543, %v1145
    %v7669 = vmul.f32 %v5542, %v1149
    %v7670 = vmul.f32 %v5541, %v1153
    %v7671 = vmul.f32 %v5540, %v1157
    %v7672 = vmul.f32 %v5539, %v1161
    %v7673 = vmul.f32 %v5538, %v1165
    %v7674 = vmul.f32 %v5537, %v1169
    %v7675 = vmul.f32 %v5536, %v1173
    %v7676 = vmul.f32 %v5535, %v1177
    %v7677 = vmul.f32 %v5534, %v1181
    %v7678 = vmul.f32 %v5533, %v1185
    %v7679 = vmul.f32 %v5532, %v1189
    %v7680 = vmul.f32 %v5531, %v1193
    %v7681 = vmul.f32 %v5530, %v1197
    %v7682 = vmul.f32 %v5529, %v1201
    %v7683 = vmul.f32 %v5528, %v1205
    %v7684 = vmul.f32 %v5527, %v1209
    %v7685 = vmul.f32 %v5526, %v1213
    %v7686 = vmul.f32 %v5525, %v1217
    %v7687 = vmul.f32 %v5524, %v1221
    %v7688 = vmul.f32 %v5523, %v1225
    %v7689 = vmul.f32 %v5522, %v1229
    %v7690 = vmul.f32 %v5521, %v1233
    %v7691 = vmul.f32 %v5520, %v1237
    %v7692 = vmul.f32 %v5519, %v1241
    %v7693 = vmul.f32 %v5518, %v1245
    %v7694 = vmul.f32 %v5553, %v1249
    %v7695 = vmul.f32 %v5552, %v1253
    %v7696 = vpack.c.bf16 %v7661, %v7660
    %v7697 = vpack.c.bf16 %v7663, %v7662
    %v7698 = vpack.c.bf16 %v7665, %v7664
    %v7699 = vpack.c.bf16 %v7667, %v7666
    %v7700 = vpack.c.bf16 %v7669, %v7668
    %v7701 = vpack.c.bf16 %v7671, %v7670
    %v7702 = vpack.c.bf16 %v7673, %v7672
    %v7703 = vpack.c.bf16 %v7675, %v7674
    %v7704 = vpack.c.bf16 %v7677, %v7676
    %v7705 = vpack.c.bf16 %v7679, %v7678
    %v7706 = vpack.c.bf16 %v7681, %v7680
    %v7707 = vpack.c.bf16 %v7683, %v7682
    %v7708 = vpack.c.bf16 %v7685, %v7684
    %v7709 = vpack.c.bf16 %v7687, %v7686
    %v7710 = vpack.c.bf16 %v7689, %v7688
    %v7711 = vpack.c.bf16 %v7691, %v7690
    %v7712 = vpack.c.bf16 %v7693, %v7692
    %v7713 = vpack.c.bf16 %v7695, %v7694
    %v7718 = vunpack.c.l.b16 %v4738
    %v7719 = vunpack.c.l.b16 %v4739
    %v7720 = vunpack.c.l.b16 %v4740
    %v7721 = vunpack.c.l.b16 %v4741
    %v7722 = vpack.c.b16 %v7719, %v7718
    %v7723 = vpack.c.b16 %v7721, %v7720
    %v7727 = vsel %vm1597, %v7696, 0
    %v7730 = vsel %vm1597, %v7697, 0
    %v7733 = vsel %vm1597, %v7698, 0
    %v7736 = vsel %vm1597, %v7699, 0
    %v7739 = vsel %vm1597, %v7700, 0
    %v7742 = vsel %vm1597, %v7701, 0
    %v7745 = vsel %vm1597, %v7702, 0
    %v7748 = vsel %vm1597, %v7703, 0
    %v7751 = vsel %vm1597, %v7704, 0
    %v7754 = vsel %vm1597, %v7705, 0
    %v7757 = vsel %vm1597, %v7706, 0
    %v7760 = vsel %vm1597, %v7707, 0
    %v7763 = vsel %vm1597, %v7708, 0
    %v7766 = vsel %vm1597, %v7709, 0
    %v7769 = vsel %vm1597, %v7710, 0
    %v7772 = vsel %vm1597, %v7711, 0
    %v7775 = vsel %vm1597, %v7712, 0
    %v7778 = vsel %vm1597, %v7713, 0
    %7780 = vmatprep.subr.bf16.mxu0 0
    %7781 = vmatpush1.bf16.msra.mxu0 %v7722
    %7782 = vmatprep.subr.bf16.mxu0 0
    %7783 = vmatpush1.bf16.msra.mxu0 %v7723
    %7784 = vmatprep.subr.bf16.mxu0 0
    %7785 = vmatpush1.bf16.msra.mxu0 0
    %7786 = vmatprep.subr.bf16.mxu0 0
    %7787 = vmatpush1.bf16.msra.mxu0 0
    %7788 = vmatprep.subr.bf16.mxu0 0
    %7789 = vmatpush1.bf16.msra.mxu0 0
    %7790 = vmatprep.subr.bf16.mxu0 0
    %7791 = vmatpush1.bf16.msra.mxu0 0
    %7792 = vmatprep.subr.bf16.mxu0 0
    %7793 = vmatpush1.bf16.msra.mxu0 0
    %7794 = vmatprep.subr.bf16.mxu0 0
    %7795 = vmatpush1.bf16.msra.mxu0 0
    %7796 = vmatprep.subr.bf16.mxu0 0
    %7797 = vmatpush1.bf16.msra.mxu0 0
    %7798 = vmatprep.subr.bf16.mxu0 0
    %7799 = vmatpush1.bf16.msra.mxu0 0
    %7800 = vmatprep.subr.bf16.mxu0 0
    %7801 = vmatpush1.bf16.msra.mxu0 0
    %7802 = vmatprep.subr.bf16.mxu0 0
    %7803 = vmatpush1.bf16.msra.mxu0 0
    %7804 = vmatprep.subr.bf16.mxu0 0
    %7805 = vmatpush1.bf16.msra.mxu0 0
    %7806 = vmatprep.subr.bf16.mxu0 0
    %7807 = vmatpush1.bf16.msra.mxu0 0
    %7808 = vmatprep.subr.bf16.mxu0 0
    %7809 = vmatpush1.bf16.msra.mxu0 0
    %7810 = vmatprep.subr.bf16.mxu0 0
    %7811 = vmatpush1.bf16.msra.mxu0 0
    %7812 = vmatprep.mubr.bf16.mxu0 0
    %7813 = vmatmul.mubr.bf16.gmra.mrb[0].mxu0 %v7727
    %v7814 = vpop.f32.mrb[0].mxu0
    %v7815 = vadd.f32 0.0, %v7814
    %v7816 = vpop.f32.mrb[0].mxu0
    %v7817 = vpop.f32.mrb[0].mxu0
    %v7818 = vadd.f32 0.0, %v7817
    %v7819 = vpop.f32.mrb[0].mxu0
    %7820 = vmatprep.mubr.bf16.mxu0 0
    %7821 = vmatmul.mubr.bf16.gmra.mrb[0].mxu0 %v7730
    %v7822 = vpop.f32.mrb[0].mxu0
    %v7823 = vadd.f32 0.0, %v7822
    %v7824 = vpop.f32.mrb[0].mxu0
    %v7825 = vpop.f32.mrb[0].mxu0
    %v7826 = vadd.f32 0.0, %v7825
    %v7827 = vpop.f32.mrb[0].mxu0
    %7828 = vmatprep.mubr.bf16.mxu0 0
    %7829 = vmatmul.mubr.bf16.gmra.mrb[0].mxu0 %v7733
    %v7830 = vpop.f32.mrb[0].mxu0
    %v7831 = vadd.f32 0.0, %v7830
    %v7832 = vpop.f32.mrb[0].mxu0
    %v7833 = vpop.f32.mrb[0].mxu0
    %v7834 = vadd.f32 0.0, %v7833
    %v7835 = vpop.f32.mrb[0].mxu0
    %7836 = vmatprep.mubr.bf16.mxu0 0
    %7837 = vmatmul.mubr.bf16.gmra.mrb[0].mxu0 %v7736
    %v7838 = vpop.f32.mrb[0].mxu0
    %v7839 = vadd.f32 0.0, %v7838
    %v7840 = vpop.f32.mrb[0].mxu0
    %v7841 = vpop.f32.mrb[0].mxu0
    %v7842 = vadd.f32 0.0, %v7841
    %v7843 = vpop.f32.mrb[0].mxu0
    %7844 = vmatprep.mubr.bf16.mxu0 0
    %7845 = vmatmul.mubr.bf16.gmra.mrb[0].mxu0 %v7739
    %v7846 = vpop.f32.mrb[0].mxu0
    %v7847 = vadd.f32 0.0, %v7846
    %v7848 = vpop.f32.mrb[0].mxu0
    %v7849 = vpop.f32.mrb[0].mxu0
    %v7850 = vadd.f32 0.0, %v7849
    %v7851 = vpop.f32.mrb[0].mxu0
    %7852 = vmatprep.mubr.bf16.mxu0 0
    %7853 = vmatmul.mubr.bf16.gmra.mrb[0].mxu0 %v7742
    %v7854 = vpop.f32.mrb[0].mxu0
    %v7855 = vadd.f32 0.0, %v7854
    %v7856 = vpop.f32.mrb[0].mxu0
    %v7857 = vpop.f32.mrb[0].mxu0
    %v7858 = vadd.f32 0.0, %v7857
    %v7859 = vpop.f32.mrb[0].mxu0
    %7860 = vmatprep.mubr.bf16.mxu0 0
    %7861 = vmatmul.mubr.bf16.gmra.mrb[0].mxu0 %v7745
    %v7862 = vpop.f32.mrb[0].mxu0
    %v7863 = vadd.f32 0.0, %v7862
    %v7864 = vpop.f32.mrb[0].mxu0
    %v7865 = vpop.f32.mrb[0].mxu0
    %v7866 = vadd.f32 0.0, %v7865
    %v7867 = vpop.f32.mrb[0].mxu0
    %7868 = vmatprep.mubr.bf16.mxu0 0
    %7869 = vmatmul.mubr.bf16.gmra.mrb[0].mxu0 %v7748
    %v7870 = vpop.f32.mrb[0].mxu0
    %v7871 = vadd.f32 0.0, %v7870
    %v7872 = vpop.f32.mrb[0].mxu0
    %v7873 = vpop.f32.mrb[0].mxu0
    %v7874 = vadd.f32 0.0, %v7873
    %v7875 = vpop.f32.mrb[0].mxu0
    %7876 = vmatprep.mubr.bf16.mxu0 0
    %7877 = vmatmul.mubr.bf16.gmra.mrb[0].mxu0 %v7751
    %v7878 = vpop.f32.mrb[0].mxu0
    %v7879 = vadd.f32 0.0, %v7878
    %v7880 = vpop.f32.mrb[0].mxu0
    %v7881 = vpop.f32.mrb[0].mxu0
    %v7882 = vadd.f32 0.0, %v7881
    %v7883 = vpop.f32.mrb[0].mxu0
    %7884 = vmatprep.mubr.bf16.mxu0 0
    %7885 = vmatmul.mubr.bf16.gmra.mrb[0].mxu0 %v7754
    %v7886 = vpop.f32.mrb[0].mxu0
    %v7887 = vadd.f32 0.0, %v7886
    %v7888 = vpop.f32.mrb[0].mxu0
    %v7889 = vpop.f32.mrb[0].mxu0
    %v7890 = vadd.f32 0.0, %v7889
    %v7891 = vpop.f32.mrb[0].mxu0
    %7892 = vmatprep.mubr.bf16.mxu0 0
    %7893 = vmatmul.mubr.bf16.gmra.mrb[0].mxu0 %v7757
    %v7894 = vpop.f32.mrb[0].mxu0
    %v7895 = vadd.f32 0.0, %v7894
    %v7896 = vpop.f32.mrb[0].mxu0
    %v7897 = vpop.f32.mrb[0].mxu0
    %v7898 = vadd.f32 0.0, %v7897
    %v7899 = vpop.f32.mrb[0].mxu0
    %7900 = vmatprep.mubr.bf16.mxu0 0
    %7901 = vmatmul.mubr.bf16.gmra.mrb[0].mxu0 %v7760
    %v7902 = vpop.f32.mrb[0].mxu0
    %v7903 = vadd.f32 0.0, %v7902
    %v7904 = vpop.f32.mrb[0].mxu0
    %v7905 = vpop.f32.mrb[0].mxu0
    %v7906 = vadd.f32 0.0, %v7905
    %v7907 = vpop.f32.mrb[0].mxu0
    %7908 = vmatprep.mubr.bf16.mxu0 0
    %7909 = vmatmul.mubr.bf16.gmra.mrb[0].mxu0 %v7763
    %v7910 = vpop.f32.mrb[0].mxu0
    %v7911 = vadd.f32 0.0, %v7910
    %v7912 = vpop.f32.mrb[0].mxu0
    %v7913 = vpop.f32.mrb[0].mxu0
    %v7914 = vadd.f32 0.0, %v7913
    %v7915 = vpop.f32.mrb[0].mxu0
    %7916 = vmatprep.mubr.bf16.mxu0 0
    %7917 = vmatmul.mubr.bf16.gmra.mrb[0].mxu0 %v7766
    %v7918 = vpop.f32.mrb[0].mxu0
    %v7919 = vadd.f32 0.0, %v7918
    %v7920 = vpop.f32.mrb[0].mxu0
    %v7921 = vpop.f32.mrb[0].mxu0
    %v7922 = vadd.f32 0.0, %v7921
    %v7923 = vpop.f32.mrb[0].mxu0
    %7924 = vmatprep.mubr.bf16.mxu0 0
    %7925 = vmatmul.mubr.bf16.gmra.mrb[0].mxu0 %v7769
    %v7926 = vpop.f32.mrb[0].mxu0
    %v7927 = vadd.f32 0.0, %v7926
    %v7928 = vpop.f32.mrb[0].mxu0
    %v7929 = vpop.f32.mrb[0].mxu0
    %v7930 = vadd.f32 0.0, %v7929
    %v7931 = vpop.f32.mrb[0].mxu0
    %7932 = vmatprep.mubr.bf16.mxu0 0
    %7933 = vmatmul.mubr.bf16.gmra.mrb[0].mxu0 %v7772
    %v7934 = vpop.f32.mrb[0].mxu0
    %v7935 = vadd.f32 0.0, %v7934
    %v7936 = vpop.f32.mrb[0].mxu0
    %v7937 = vpop.f32.mrb[0].mxu0
    %v7938 = vadd.f32 0.0, %v7937
    %v7939 = vpop.f32.mrb[0].mxu0
    %7940 = vmatprep.mubr.bf16.mxu0 0
    %7941 = vmatmul.mubr.bf16.gmra.mrb[0].mxu0 %v7775
    %v7942 = vpop.f32.mrb[0].mxu0
    %v7943 = vadd.f32 0.0, %v7942
    %v7944 = vpop.f32.mrb[0].mxu0
    %v7945 = vpop.f32.mrb[0].mxu0
    %v7946 = vadd.f32 0.0, %v7945
    %v7947 = vpop.f32.mrb[0].mxu0
    %7948 = vmatprep.mubr.bf16.mxu0 0
    %7949 = vmatmul.mubr.bf16.gmra.mrb[0].mxu0 %v7778
    %v7950 = vpop.f32.mrb[0].mxu0
    %v7951 = vadd.f32 0.0, %v7950
    %v7952 = vpop.f32.mrb[0].mxu0
    %v7953 = vpop.f32.mrb[0].mxu0
    %v7954 = vadd.f32 0.0, %v7953
    %v7955 = vpop.f32.mrb[0].mxu0
    %7956 = vdwg.mxu0
    %v7957 = vadd.f32 %v7624, %v7815
    %v7958 = vadd.f32 %v7625, %v7818
    %v7959 = vadd.f32 %v7626, %v7823
    %v7960 = vadd.f32 %v7627, %v7826
    %v7961 = vadd.f32 %v7628, %v7831
    %v7962 = vadd.f32 %v7629, %v7834
    %v7963 = vadd.f32 %v7630, %v7839
    %v7964 = vadd.f32 %v7631, %v7842
    %v7965 = vadd.f32 %v7632, %v7847
    %v7966 = vadd.f32 %v7633, %v7850
    %v7967 = vadd.f32 %v7634, %v7855
    %v7968 = vadd.f32 %v7635, %v7858
    %v7969 = vadd.f32 %v7636, %v7863
    %v7970 = vadd.f32 %v7637, %v7866
    %v7971 = vadd.f32 %v7638, %v7871
    %v7972 = vadd.f32 %v7639, %v7874
    %v7973 = vadd.f32 %v7640, %v7879
    %v7974 = vadd.f32 %v7641, %v7882
    %v7975 = vadd.f32 %v7642, %v7887
    %v7976 = vadd.f32 %v7643, %v7890
    %v7977 = vadd.f32 %v7644, %v7895
    %v7978 = vadd.f32 %v7645, %v7898
    %v7979 = vadd.f32 %v7646, %v7903
    %v7980 = vadd.f32 %v7647, %v7906
    %v7981 = vadd.f32 %v7648, %v7911
    %v7982 = vadd.f32 %v7649, %v7914
    %v7983 = vadd.f32 %v7650, %v7919
    %v7984 = vadd.f32 %v7651, %v7922
    %v7985 = vadd.f32 %v7652, %v7927
    %v7986 = vadd.f32 %v7653, %v7930
    %v7987 = vadd.f32 %v7654, %v7935
    %v7988 = vadd.f32 %v7655, %v7938
    %v7989 = vadd.f32 %v7656, %v7943
    %v7990 = vadd.f32 %v7657, %v7946
    %v7991 = vadd.f32 %v7658, %v7951
    %v7992 = vadd.f32 %v7659, %v7954
    %v7994 = vlaneseq
    %v7995 = vshrl.u32 %v7994, 7
    %v7996 = vsub.s32 0, %v7995
    %v7997 = vrot.slane %v4742, %v7996
    %v7999 = vmul.f32 %v7957, %v7997
    %v8000 = vmul.f32 %v7958, %v7997
    %v8001 = vmul.f32 %v7959, %v7997
    %v8002 = vmul.f32 %v7960, %v7997
    %v8003 = vmul.f32 %v7961, %v7997
    %v8004 = vmul.f32 %v7962, %v7997
    %v8005 = vmul.f32 %v7963, %v7997
    %v8006 = vmul.f32 %v7964, %v7997
    %v8007 = vmul.f32 %v7965, %v7997
    %v8008 = vmul.f32 %v7966, %v7997
    %v8009 = vmul.f32 %v7967, %v7997
    %v8010 = vmul.f32 %v7968, %v7997
    %v8011 = vmul.f32 %v7969, %v7997
    %v8012 = vmul.f32 %v7970, %v7997
    %v8013 = vmul.f32 %v7971, %v7997
    %v8014 = vmul.f32 %v7972, %v7997
    %v8015 = vmul.f32 %v7973, %v7997
    %v8016 = vmul.f32 %v7974, %v7997
    %v8017 = vmul.f32 %v7975, %v7997
    %v8018 = vmul.f32 %v7976, %v7997
    %v8019 = vmul.f32 %v7977, %v7997
    %v8020 = vmul.f32 %v7978, %v7997
    %v8021 = vmul.f32 %v7979, %v7997
    %v8022 = vmul.f32 %v7980, %v7997
    %v8023 = vmul.f32 %v7981, %v7997
    %v8024 = vmul.f32 %v7982, %v7997
    %v8025 = vmul.f32 %v7983, %v7997
    %v8026 = vmul.f32 %v7984, %v7997
    %v8027 = vmul.f32 %v7985, %v7997
    %v8028 = vmul.f32 %v7986, %v7997
    %v8029 = vmul.f32 %v7987, %v7997
    %v8030 = vmul.f32 %v7988, %v7997
    %v8031 = vmul.f32 %v7989, %v7997
    %v8032 = vmul.f32 %v7990, %v7997
    %v8033 = vmul.f32 %v7991, %v7997
    %v8034 = vmul.f32 %v7992, %v7997
    %v8036 = vlaneseq
    %v8037 = vshrl.u32 %v8036, 7
    %v8038 = vsub.s32 0, %v8037
    %v8039 = vrot.slane %v4743, %v8038
    %v8041 = vadd.f32 %v7999, %v8039
    %v8042 = vadd.f32 %v8000, %v8039
    %v8043 = vadd.f32 %v8001, %v8039
    %v8044 = vadd.f32 %v8002, %v8039
    %v8045 = vadd.f32 %v8003, %v8039
    %v8046 = vadd.f32 %v8004, %v8039
    %v8047 = vadd.f32 %v8005, %v8039
    %v8048 = vadd.f32 %v8006, %v8039
    %v8049 = vadd.f32 %v8007, %v8039
    %v8050 = vadd.f32 %v8008, %v8039
    %v8051 = vadd.f32 %v8009, %v8039
    %v8052 = vadd.f32 %v8010, %v8039
    %v8053 = vadd.f32 %v8011, %v8039
    %v8054 = vadd.f32 %v8012, %v8039
    %v8055 = vadd.f32 %v8013, %v8039
    %v8056 = vadd.f32 %v8014, %v8039
    %v8057 = vadd.f32 %v8015, %v8039
    %v8058 = vadd.f32 %v8016, %v8039
    %v8059 = vadd.f32 %v8017, %v8039
    %v8060 = vadd.f32 %v8018, %v8039
    %v8061 = vadd.f32 %v8019, %v8039
    %v8062 = vadd.f32 %v8020, %v8039
    %v8063 = vadd.f32 %v8021, %v8039
    %v8064 = vadd.f32 %v8022, %v8039
    %v8065 = vadd.f32 %v8023, %v8039
    %v8066 = vadd.f32 %v8024, %v8039
    %v8067 = vadd.f32 %v8025, %v8039
    %v8068 = vadd.f32 %v8026, %v8039
    %v8069 = vadd.f32 %v8027, %v8039
    %v8070 = vadd.f32 %v8028, %v8039
    %v8071 = vadd.f32 %v8029, %v8039
    %v8072 = vadd.f32 %v8030, %v8039
    %v8073 = vadd.f32 %v8031, %v8039
    %v8074 = vadd.f32 %v8032, %v8039
    %v8075 = vadd.f32 %v8033, %v8039
    %v8076 = vadd.f32 %v8034, %v8039
    %v8077 = vadd.f32 %v8041, %v4670
    %v8078 = vadd.f32 %v8042, %v4671
    %v8079 = vadd.f32 %v8043, %v4672
    %v8080 = vadd.f32 %v8044, %v4673
    %v8081 = vadd.f32 %v8045, %v4674
    %v8082 = vadd.f32 %v8046, %v4675
    %v8083 = vadd.f32 %v8047, %v4676
    %v8084 = vadd.f32 %v8048, %v4677
    %v8085 = vadd.f32 %v8049, %v4678
    %v8086 = vadd.f32 %v8050, %v4679
    %v8087 = vadd.f32 %v8051, %v4680
    %v8088 = vadd.f32 %v8052, %v4681
    %v8089 = vadd.f32 %v8053, %v4682
    %v8090 = vadd.f32 %v8054, %v4683
    %v8091 = vadd.f32 %v8055, %v4684
    %v8092 = vadd.f32 %v8056, %v4685
    %v8093 = vadd.f32 %v8057, %v4686
    %v8094 = vadd.f32 %v8058, %v4687
    %v8095 = vadd.f32 %v8059, %v4688
    %v8096 = vadd.f32 %v8060, %v4689
    %v8097 = vadd.f32 %v8061, %v4690
    %v8098 = vadd.f32 %v8062, %v4691
    %v8099 = vadd.f32 %v8063, %v4692
    %v8100 = vadd.f32 %v8064, %v4693
    %v8101 = vadd.f32 %v8065, %v4694
    %v8102 = vadd.f32 %v8066, %v4695
    %v8103 = vadd.f32 %v8067, %v4696
    %v8104 = vadd.f32 %v8068, %v4697
    %v8105 = vadd.f32 %v8069, %v4698
    %v8106 = vadd.f32 %v8070, %v4699
    %v8107 = vadd.f32 %v8071, %v4700
    %v8108 = vadd.f32 %v8072, %v4701
    %v8109 = vadd.f32 %v8073, %v4702
    %v8110 = vadd.f32 %v8074, %v4703
    %v8111 = vadd.f32 %v8075, %v4704
    %v8112 = vadd.f32 %v8076, %v4705
    %v8113 = vmax.f32 %v8077, 0.0
    %v8114 = vmax.f32 %v8078, 0.0
    %v8115 = vmax.f32 %v8079, 0.0
    %v8116 = vmax.f32 %v8080, 0.0
    %v8117 = vmax.f32 %v8081, 0.0
    %v8118 = vmax.f32 %v8082, 0.0
    %v8119 = vmax.f32 %v8083, 0.0
    %v8120 = vmax.f32 %v8084, 0.0
    %v8121 = vmax.f32 %v8085, 0.0
    %v8122 = vmax.f32 %v8086, 0.0
    %v8123 = vmax.f32 %v8087, 0.0
    %v8124 = vmax.f32 %v8088, 0.0
    %v8125 = vmax.f32 %v8089, 0.0
    %v8126 = vmax.f32 %v8090, 0.0
    %v8127 = vmax.f32 %v8091, 0.0
    %v8128 = vmax.f32 %v8092, 0.0
    %v8129 = vmax.f32 %v8093, 0.0
    %v8130 = vmax.f32 %v8094, 0.0
    %v8131 = vmax.f32 %v8095, 0.0
    %v8132 = vmax.f32 %v8096, 0.0
    %v8133 = vmax.f32 %v8097, 0.0
    %v8134 = vmax.f32 %v8098, 0.0
    %v8135 = vmax.f32 %v8099, 0.0
    %v8136 = vmax.f32 %v8100, 0.0
    %v8137 = vmax.f32 %v8101, 0.0
    %v8138 = vmax.f32 %v8102, 0.0
    %v8139 = vmax.f32 %v8103, 0.0
    %v8140 = vmax.f32 %v8104, 0.0
    %v8141 = vmax.f32 %v8105, 0.0
    %v8142 = vmax.f32 %v8106, 0.0
    %v8143 = vmax.f32 %v8107, 0.0
    %v8144 = vmax.f32 %v8108, 0.0
    %v8145 = vmax.f32 %v8109, 0.0
    %v8146 = vmax.f32 %v8110, 0.0
    %v8147 = vmax.f32 %v8111, 0.0
    %v8148 = vmax.f32 %v8112, 0.0
    %s8149 = scalar_lea.vmem %s5, 144
    %v8150 = vld [vmem:[%s8149] sm:$0xf]
    %v8151 = vld [vmem:[%s8149 + $0x4] sm:$0xf]
    %v8152 = vld [vmem:[%s8149 + $0x8] sm:$0xf]
    %v8153 = vld [vmem:[%s8149 + $0xc] sm:$0xf]
    %v8154 = vld [vmem:[%s8149 + $0x10] sm:$0xf]
    %v8155 = vld [vmem:[%s8149 + $0x14] sm:$0xf]
    %v8156 = vld [vmem:[%s8149 + $0x18] sm:$0xf]
    %v8157 = vld [vmem:[%s8149 + $0x1c] sm:$0xf]
    %v8158 = vld [vmem:[%s8149 + $0x20] sm:$0xf]
    %v8159 = vld [vmem:[%s8149 + $0x24] sm:$0xf]
    %v8160 = vld [vmem:[%s8149 + $0x28] sm:$0xf]
    %v8161 = vld [vmem:[%s8149 + $0x2c] sm:$0xf]
    %v8162 = vld [vmem:[%s8149 + $0x30] sm:$0xf]
    %v8163 = vld [vmem:[%s8149 + $0x34] sm:$0xf]
    %v8164 = vld [vmem:[%s8149 + $0x38] sm:$0xf]
    %v8165 = vld [vmem:[%s8149 + $0x3c] sm:$0xf]
    %v8166 = vld [vmem:[%s8149 + $0x40] sm:$0xf]
    %v8167 = vld [vmem:[%s8149 + $0x44] sm:$0xf]
    %v8168 = vld [vmem:[%s8149 + $0x48] sm:$0xf]
    %v8169 = vld [vmem:[%s8149 + $0x4c] sm:$0xf]
    %v8170 = vld [vmem:[%s8149 + $0x50] sm:$0xf]
    %v8171 = vld [vmem:[%s8149 + $0x54] sm:$0xf]
    %v8172 = vld [vmem:[%s8149 + $0x58] sm:$0xf]
    %v8173 = vld [vmem:[%s8149 + $0x5c] sm:$0xf]
    %v8174 = vld [vmem:[%s8149 + $0x60] sm:$0xf]
    %v8175 = vld [vmem:[%s8149 + $0x64] sm:$0xf]
    %v8176 = vld [vmem:[%s8149 + $0x68] sm:$0xf]
    %v8177 = vld [vmem:[%s8149 + $0x6c] sm:$0xf]
    %v8178 = vld [vmem:[%s8149 + $0x70] sm:$0xf]
    %v8179 = vld [vmem:[%s8149 + $0x74] sm:$0xf]
    %v8180 = vld [vmem:[%s8149 + $0x78] sm:$0xf]
    %v8181 = vld [vmem:[%s8149 + $0x7c] sm:$0xf]
    %v8182 = vld [vmem:[%s8149 + $0x80] sm:$0xf]
    %v8183 = vld [vmem:[%s8149 + $0x84] sm:$0xf]
    %v8184 = vld [vmem:[%s8149 + $0x88] sm:$0xf]
    %v8185 = vld [vmem:[%s8149 + $0x8c] sm:$0xf]
    %s8186 = scalar_lea.vmem %s6, 1
    %v8187 = vld [vmem:[%s8186] sm:$0x1]
    %s8188 = scalar_lea.vmem %s7, 1
    %v8189 = vld [vmem:[%s8188] sm:$0x1]
    %v8190 = vrot.slane %v8113, 3
    %v8191 = vrot.slane %v8114, 3
    %v8192 = vrot.slane %v8115, 3
    %v8193 = vrot.slane %v8116, 3
    %v8194 = vrot.slane %v8117, 3
    %v8195 = vrot.slane %v8118, 3
    %v8196 = vrot.slane %v8119, 3
    %v8197 = vrot.slane %v8120, 3
    %v8198 = vrot.slane %v8121, 3
    %v8199 = vrot.slane %v8122, 3
    %v8200 = vrot.slane %v8123, 3
    %v8201 = vrot.slane %v8124, 3
    %v8202 = vrot.slane %v8125, 3
    %v8203 = vrot.slane %v8126, 3
    %v8204 = vrot.slane %v8127, 3
    %v8205 = vrot.slane %v8128, 3
    %v8206 = vrot.slane %v8129, 3
    %v8207 = vrot.slane %v8130, 3
    %v8208 = vrot.slane %v8131, 3
    %v8209 = vrot.slane %v8132, 3
    %v8210 = vrot.slane %v8133, 3
    %v8211 = vrot.slane %v8134, 3
    %v8212 = vrot.slane %v8135, 3
    %v8213 = vrot.slane %v8136, 3
    %v8214 = vrot.slane %v8137, 3
    %v8215 = vrot.slane %v8138, 3
    %v8216 = vrot.slane %v8139, 3
    %v8217 = vrot.slane %v8140, 3
    %v8218 = vrot.slane %v8141, 3
    %v8219 = vrot.slane %v8142, 3
    %v8220 = vrot.slane %v8143, 3
    %v8221 = vrot.slane %v8144, 3
    %v8222 = vrot.slane %v8145, 3
    %v8223 = vrot.slane %v8146, 3
    %v8224 = vrot.slane %v8147, 3
    %v8225 = vrot.slane %v8148, 3
    %v8226 = vsel %vm1367, %v8224, %v8225
    %v8227 = vsel %vm1367, %v8223, %v8224
    %v8228 = vsel %vm1367, %v8222, %v8223
    %v8229 = vsel %vm1367, %v8221, %v8222
    %v8230 = vsel %vm1367, %v8220, %v8221
    %v8231 = vsel %vm1367, %v8219, %v8220
    %v8232 = vsel %vm1367, %v8218, %v8219
    %v8233 = vsel %vm1367, %v8217, %v8218
    %v8234 = vsel %vm1367, %v8216, %v8217
    %v8235 = vsel %vm1367, %v8215, %v8216
    %v8236 = vsel %vm1367, %v8214, %v8215
    %v8237 = vsel %vm1367, %v8213, %v8214
    %v8238 = vsel %vm1367, %v8212, %v8213
    %v8239 = vsel %vm1367, %v8211, %v8212
    %v8240 = vsel %vm1367, %v8210, %v8211
    %v8241 = vsel %vm1367, %v8209, %v8210
    %v8242 = vsel %vm1367, %v8208, %v8209
    %v8243 = vsel %vm1367, %v8207, %v8208
    %v8244 = vsel %vm1367, %v8206, %v8207
    %v8245 = vsel %vm1367, %v8205, %v8206
    %v8246 = vsel %vm1367, %v8204, %v8205
    %v8247 = vsel %vm1367, %v8203, %v8204
    %v8248 = vsel %vm1367, %v8202, %v8203
    %v8249 = vsel %vm1367, %v8201, %v8202
    %v8250 = vsel %vm1367, %v8200, %v8201
    %v8251 = vsel %vm1367, %v8199, %v8200
    %v8252 = vsel %vm1367, %v8198, %v8199
    %v8253 = vsel %vm1367, %v8197, %v8198
    %v8254 = vsel %vm1367, %v8196, %v8197
    %v8255 = vsel %vm1367, %v8195, %v8196
    %v8256 = vsel %vm1367, %v8194, %v8195
    %v8257 = vsel %vm1367, %v8193, %v8194
    %v8258 = vsel %vm1367, %v8192, %v8193
    %v8259 = vsel %vm1367, %v8191, %v8192
    %v8260 = vsel %vm1367, %v8190, %v8191
    %v8261 = vsel %vm1367, %v8225, %v8190
    %v8262 = vmul.f32 %v8226, %v70
    %v8263 = vmul.f32 %v8261, %v75
    %v8264 = vmul.f32 %v8260, %v80
    %v8265 = vmul.f32 %v8259, %v85
    %v8266 = vmul.f32 %v8258, %v90
    %v8267 = vmul.f32 %v8257, %v95
    %v8268 = vmul.f32 %v8256, %v100
    %v8269 = vmul.f32 %v8255, %v105
    %v8270 = vmul.f32 %v8254, %v110
    %v8271 = vmul.f32 %v8253, %v115
    %v8272 = vmul.f32 %v8252, %v120
    %v8273 = vmul.f32 %v8251, %v125
    %v8274 = vmul.f32 %v8250, %v130
    %v8275 = vmul.f32 %v8249, %v135
    %v8276 = vmul.f32 %v8248, %v140
    %v8277 = vmul.f32 %v8247, %v145
    %v8278 = vmul.f32 %v8246, %v150
    %v8279 = vmul.f32 %v8245, %v155
    %v8280 = vmul.f32 %v8244, %v160
    %v8281 = vmul.f32 %v8243, %v165
    %v8282 = vmul.f32 %v8242, %v170
    %v8283 = vmul.f32 %v8241, %v175
    %v8284 = vmul.f32 %v8240, %v180
    %v8285 = vmul.f32 %v8239, %v185
    %v8286 = vmul.f32 %v8238, %v190
    %v8287 = vmul.f32 %v8237, %v195
    %v8288 = vmul.f32 %v8236, %v200
    %v8289 = vmul.f32 %v8235, %v205
    %v8290 = vmul.f32 %v8234, %v210
    %v8291 = vmul.f32 %v8233, %v215
    %v8292 = vmul.f32 %v8232, %v220
    %v8293 = vmul.f32 %v8231, %v225
    %v8294 = vmul.f32 %v8230, %v230
    %v8295 = vmul.f32 %v8229, %v235
    %v8296 = vmul.f32 %v8228, %v240
    %v8297 = vmul.f32 %v8227, %v245
    %v8298 = vpack.c.bf16 %v8263, %v8262
    %v8299 = vpack.c.bf16 %v8265, %v8264
    %v8300 = vpack.c.bf16 %v8267, %v8266
    %v8301 = vpack.c.bf16 %v8269, %v8268
    %v8302 = vpack.c.bf16 %v8271, %v8270
    %v8303 = vpack.c.bf16 %v8273, %v8272
    %v8304 = vpack.c.bf16 %v8275, %v8274
    %v8305 = vpack.c.bf16 %v8277, %v8276
    %v8306 = vpack.c.bf16 %v8279, %v8278
    %v8307 = vpack.c.bf16 %v8281, %v8280
    %v8308 = vpack.c.bf16 %v8283, %v8282
    %v8309 = vpack.c.bf16 %v8285, %v8284
    %v8310 = vpack.c.bf16 %v8287, %v8286
    %v8311 = vpack.c.bf16 %v8289, %v8288
    %v8312 = vpack.c.bf16 %v8291, %v8290
    %v8313 = vpack.c.bf16 %v8293, %v8292
    %v8314 = vpack.c.bf16 %v8295, %v8294
    %v8315 = vpack.c.bf16 %v8297, %v8296
    %v8316 = vrot.slane %v8113, 4
    %v8317 = vrot.slane %v8114, 4
    %v8318 = vrot.slane %v8115, 4
    %v8319 = vrot.slane %v8116, 4
    %v8320 = vrot.slane %v8117, 4
    %v8321 = vrot.slane %v8118, 4
    %v8322 = vrot.slane %v8119, 4
    %v8323 = vrot.slane %v8120, 4
    %v8324 = vrot.slane %v8121, 4
    %v8325 = vrot.slane %v8122, 4
    %v8326 = vrot.slane %v8123, 4
    %v8327 = vrot.slane %v8124, 4
    %v8328 = vrot.slane %v8125, 4
    %v8329 = vrot.slane %v8126, 4
    %v8330 = vrot.slane %v8127, 4
    %v8331 = vrot.slane %v8128, 4
    %v8332 = vrot.slane %v8129, 4
    %v8333 = vrot.slane %v8130, 4
    %v8334 = vrot.slane %v8131, 4
    %v8335 = vrot.slane %v8132, 4
    %v8336 = vrot.slane %v8133, 4
    %v8337 = vrot.slane %v8134, 4
    %v8338 = vrot.slane %v8135, 4
    %v8339 = vrot.slane %v8136, 4
    %v8340 = vrot.slane %v8137, 4
    %v8341 = vrot.slane %v8138, 4
    %v8342 = vrot.slane %v8139, 4
    %v8343 = vrot.slane %v8140, 4
    %v8344 = vrot.slane %v8141, 4
    %v8345 = vrot.slane %v8142, 4
    %v8346 = vrot.slane %v8143, 4
    %v8347 = vrot.slane %v8144, 4
    %v8348 = vrot.slane %v8145, 4
    %v8349 = vrot.slane %v8146, 4
    %v8350 = vrot.slane %v8147, 4
    %v8351 = vrot.slane %v8148, 4
    %v8352 = vsel %vm1494, %v8350, %v8351
    %v8353 = vsel %vm1494, %v8349, %v8350
    %v8354 = vsel %vm1494, %v8348, %v8349
    %v8355 = vsel %vm1494, %v8347, %v8348
    %v8356 = vsel %vm1494, %v8346, %v8347
    %v8357 = vsel %vm1494, %v8345, %v8346
    %v8358 = vsel %vm1494, %v8344, %v8345
    %v8359 = vsel %vm1494, %v8343, %v8344
    %v8360 = vsel %vm1494, %v8342, %v8343
    %v8361 = vsel %vm1494, %v8341, %v8342
    %v8362 = vsel %vm1494, %v8340, %v8341
    %v8363 = vsel %vm1494, %v8339, %v8340
    %v8364 = vsel %vm1494, %v8338, %v8339
    %v8365 = vsel %vm1494, %v8337, %v8338
    %v8366 = vsel %vm1494, %v8336, %v8337
    %v8367 = vsel %vm1494, %v8335, %v8336
    %v8368 = vsel %vm1494, %v8334, %v8335
    %v8369 = vsel %vm1494, %v8333, %v8334
    %v8370 = vsel %vm1494, %v8332, %v8333
    %v8371 = vsel %vm1494, %v8331, %v8332
    %v8372 = vsel %vm1494, %v8330, %v8331
    %v8373 = vsel %vm1494, %v8329, %v8330
    %v8374 = vsel %vm1494, %v8328, %v8329
    %v8375 = vsel %vm1494, %v8327, %v8328
    %v8376 = vsel %vm1494, %v8326, %v8327
    %v8377 = vsel %vm1494, %v8325, %v8326
    %v8378 = vsel %vm1494, %v8324, %v8325
    %v8379 = vsel %vm1494, %v8323, %v8324
    %v8380 = vsel %vm1494, %v8322, %v8323
    %v8381 = vsel %vm1494, %v8321, %v8322
    %v8382 = vsel %vm1494, %v8320, %v8321
    %v8383 = vsel %vm1494, %v8319, %v8320
    %v8384 = vsel %vm1494, %v8318, %v8319
    %v8385 = vsel %vm1494, %v8317, %v8318
    %v8386 = vsel %vm1494, %v8316, %v8317
    %v8387 = vsel %vm1494, %v8351, %v8316
    %v8388 = vmul.f32 %v8352, %v249
    %v8389 = vmul.f32 %v8387, %v253
    %v8390 = vmul.f32 %v8386, %v257
    %v8391 = vmul.f32 %v8385, %v261
    %v8392 = vmul.f32 %v8384, %v265
    %v8393 = vmul.f32 %v8383, %v269
    %v8394 = vmul.f32 %v8382, %v273
    %v8395 = vmul.f32 %v8381, %v277
    %v8396 = vmul.f32 %v8380, %v281
    %v8397 = vmul.f32 %v8379, %v285
    %v8398 = vmul.f32 %v8378, %v289
    %v8399 = vmul.f32 %v8377, %v293
    %v8400 = vmul.f32 %v8376, %v297
    %v8401 = vmul.f32 %v8375, %v301
    %v8402 = vmul.f32 %v8374, %v305
    %v8403 = vmul.f32 %v8373, %v309
    %v8404 = vmul.f32 %v8372, %v313
    %v8405 = vmul.f32 %v8371, %v317
    %v8406 = vmul.f32 %v8370, %v321
    %v8407 = vmul.f32 %v8369, %v325
    %v8408 = vmul.f32 %v8368, %v329
    %v8409 = vmul.f32 %v8367, %v333
    %v8410 = vmul.f32 %v8366, %v337
    %v8411 = vmul.f32 %v8365, %v341
    %v8412 = vmul.f32 %v8364, %v345
    %v8413 = vmul.f32 %v8363, %v349
    %v8414 = vmul.f32 %v8362, %v353
    %v8415 = vmul.f32 %v8361, %v357
    %v8416 = vmul.f32 %v8360, %v361
    %v8417 = vmul.f32 %v8359, %v365
    %v8418 = vmul.f32 %v8358, %v369
    %v8419 = vmul.f32 %v8357, %v373
    %v8420 = vmul.f32 %v8356, %v377
    %v8421 = vmul.f32 %v8355, %v381
    %v8422 = vmul.f32 %v8354, %v385
    %v8423 = vmul.f32 %v8353, %v389
    %v8424 = vpack.c.bf16 %v8389, %v8388
    %v8425 = vpack.c.bf16 %v8391, %v8390
    %v8426 = vpack.c.bf16 %v8393, %v8392
    %v8427 = vpack.c.bf16 %v8395, %v8394
    %v8428 = vpack.c.bf16 %v8397, %v8396
    %v8429 = vpack.c.bf16 %v8399, %v8398
    %v8430 = vpack.c.bf16 %v8401, %v8400
    %v8431 = vpack.c.bf16 %v8403, %v8402
    %v8432 = vpack.c.bf16 %v8405, %v8404
    %v8433 = vpack.c.bf16 %v8407, %v8406
    %v8434 = vpack.c.bf16 %v8409, %v8408
    %v8435 = vpack.c.bf16 %v8411, %v8410
    %v8436 = vpack.c.bf16 %v8413, %v8412
    %v8437 = vpack.c.bf16 %v8415, %v8414
    %v8438 = vpack.c.bf16 %v8417, %v8416
    %v8439 = vpack.c.bf16 %v8419, %v8418
    %v8440 = vpack.c.bf16 %v8421, %v8420
    %v8441 = vpack.c.bf16 %v8423, %v8422
    %v8446 = vunpack.c.l.b16 %v8154
    %v8447 = vunpack.c.l.b16 %v8155
    %v8448 = vunpack.c.l.b16 %v8156
    %v8449 = vunpack.c.l.b16 %v8157
    %v8450 = vpack.c.b16 %v8447, %v8446
    %v8451 = vpack.c.b16 %v8449, %v8448
    %v8455 = vsel %vm1597, %v8424, 0
    %v8458 = vsel %vm1597, %v8425, 0
    %v8461 = vsel %vm1597, %v8426, 0
    %v8464 = vsel %vm1597, %v8427, 0
    %v8467 = vsel %vm1597, %v8428, 0
    %v8470 = vsel %vm1597, %v8429, 0
    %v8473 = vsel %vm1597, %v8430, 0
    %v8476 = vsel %vm1597, %v8431, 0
    %v8479 = vsel %vm1597, %v8432, 0
    %v8482 = vsel %vm1597, %v8433, 0
    %v8485 = vsel %vm1597, %v8434, 0
    %v8488 = vsel %vm1597, %v8435, 0
    %v8491 = vsel %vm1597, %v8436, 0
    %v8494 = vsel %vm1597, %v8437, 0
    %v8497 = vsel %vm1597, %v8438, 0
    %v8500 = vsel %vm1597, %v8439, 0
    %v8503 = vsel %vm1597, %v8440, 0
    %v8506 = vsel %vm1597, %v8441, 0
    %8508 = vmatprep.subr.bf16.mxu0 0
    %8509 = vmatpush1.bf16.msra.mxu0 %v8450
    %8510 = vmatprep.subr.bf16.mxu0 0
    %8511 = vmatpush1.bf16.msra.mxu0 %v8451
    %8512 = vmatprep.subr.bf16.mxu0 0
    %8513 = vmatpush1.bf16.msra.mxu0 0
    %8514 = vmatprep.subr.bf16.mxu0 0
    %8515 = vmatpush1.bf16.msra.mxu0 0
    %8516 = vmatprep.subr.bf16.mxu0 0
    %8517 = vmatpush1.bf16.msra.mxu0 0
    %8518 = vmatprep.subr.bf16.mxu0 0
    %8519 = vmatpush1.bf16.msra.mxu0 0
    %8520 = vmatprep.subr.bf16.mxu0 0
    %8521 = vmatpush1.bf16.msra.mxu0 0
    %8522 = vmatprep.subr.bf16.mxu0 0
    %8523 = vmatpush1.bf16.msra.mxu0 0
    %8524 = vmatprep.subr.bf16.mxu0 0
    %8525 = vmatpush1.bf16.msra.mxu0 0
    %8526 = vmatprep.subr.bf16.mxu0 0
    %8527 = vmatpush1.bf16.msra.mxu0 0
    %8528 = vmatprep.subr.bf16.mxu0 0
    %8529 = vmatpush1.bf16.msra.mxu0 0
    %8530 = vmatprep.subr.bf16.mxu0 0
    %8531 = vmatpush1.bf16.msra.mxu0 0
    %8532 = vmatprep.subr.bf16.mxu0 0
    %8533 = vmatpush1.bf16.msra.mxu0 0
    %8534 = vmatprep.subr.bf16.mxu0 0
    %8535 = vmatpush1.bf16.msra.mxu0 0
    %8536 = vmatprep.subr.bf16.mxu0 0
    %8537 = vmatpush1.bf16.msra.mxu0 0
    %8538 = vmatprep.subr.bf16.mxu0 0
    %8539 = vmatpush1.bf16.msra.mxu0 0
    %8540 = vmatprep.mubr.bf16.mxu0 0
    %8541 = vmatmul.mubr.bf16.gmra.mrb[0].mxu0 %v8455
    %v8542 = vpop.f32.mrb[0].mxu0
    %v8543 = vadd.f32 0.0, %v8542
    %v8544 = vpop.f32.mrb[0].mxu0
    %v8545 = vpop.f32.mrb[0].mxu0
    %v8546 = vadd.f32 0.0, %v8545
    %v8547 = vpop.f32.mrb[0].mxu0
    %8548 = vmatprep.mubr.bf16.mxu0 0
    %8549 = vmatmul.mubr.bf16.gmra.mrb[0].mxu0 %v8458
    %v8550 = vpop.f32.mrb[0].mxu0
    %v8551 = vadd.f32 0.0, %v8550
    %v8552 = vpop.f32.mrb[0].mxu0
    %v8553 = vpop.f32.mrb[0].mxu0
    %v8554 = vadd.f32 0.0, %v8553
    %v8555 = vpop.f32.mrb[0].mxu0
    %8556 = vmatprep.mubr.bf16.mxu0 0
    %8557 = vmatmul.mubr.bf16.gmra.mrb[0].mxu0 %v8461
    %v8558 = vpop.f32.mrb[0].mxu0
    %v8559 = vadd.f32 0.0, %v8558
    %v8560 = vpop.f32.mrb[0].mxu0
    %v8561 = vpop.f32.mrb[0].mxu0
    %v8562 = vadd.f32 0.0, %v8561
    %v8563 = vpop.f32.mrb[0].mxu0
    %8564 = vmatprep.mubr.bf16.mxu0 0
    %8565 = vmatmul.mubr.bf16.gmra.mrb[0].mxu0 %v8464
    %v8566 = vpop.f32.mrb[0].mxu0
    %v8567 = vadd.f32 0.0, %v8566
    %v8568 = vpop.f32.mrb[0].mxu0
    %v8569 = vpop.f32.mrb[0].mxu0
    %v8570 = vadd.f32 0.0, %v8569
    %v8571 = vpop.f32.mrb[0].mxu0
    %8572 = vmatprep.mubr.bf16.mxu0 0
    %8573 = vmatmul.mubr.bf16.gmra.mrb[0].mxu0 %v8467
    %v8574 = vpop.f32.mrb[0].mxu0
    %v8575 = vadd.f32 0.0, %v8574
    %v8576 = vpop.f32.mrb[0].mxu0
    %v8577 = vpop.f32.mrb[0].mxu0
    %v8578 = vadd.f32 0.0, %v8577
    %v8579 = vpop.f32.mrb[0].mxu0
    %8580 = vmatprep.mubr.bf16.mxu0 0
    %8581 = vmatmul.mubr.bf16.gmra.mrb[0].mxu0 %v8470
    %v8582 = vpop.f32.mrb[0].mxu0
    %v8583 = vadd.f32 0.0, %v8582
    %v8584 = vpop.f32.mrb[0].mxu0
    %v8585 = vpop.f32.mrb[0].mxu0
    %v8586 = vadd.f32 0.0, %v8585
    %v8587 = vpop.f32.mrb[0].mxu0
    %8588 = vmatprep.mubr.bf16.mxu0 0
    %8589 = vmatmul.mubr.bf16.gmra.mrb[0].mxu0 %v8473
    %v8590 = vpop.f32.mrb[0].mxu0
    %v8591 = vadd.f32 0.0, %v8590
    %v8592 = vpop.f32.mrb[0].mxu0
    %v8593 = vpop.f32.mrb[0].mxu0
    %v8594 = vadd.f32 0.0, %v8593
    %v8595 = vpop.f32.mrb[0].mxu0
    %8596 = vmatprep.mubr.bf16.mxu0 0
    %8597 = vmatmul.mubr.bf16.gmra.mrb[0].mxu0 %v8476
    %v8598 = vpop.f32.mrb[0].mxu0
    %v8599 = vadd.f32 0.0, %v8598
    %v8600 = vpop.f32.mrb[0].mxu0
    %v8601 = vpop.f32.mrb[0].mxu0
    %v8602 = vadd.f32 0.0, %v8601
    %v8603 = vpop.f32.mrb[0].mxu0
    %8604 = vmatprep.mubr.bf16.mxu0 0
    %8605 = vmatmul.mubr.bf16.gmra.mrb[0].mxu0 %v8479
    %v8606 = vpop.f32.mrb[0].mxu0
    %v8607 = vadd.f32 0.0, %v8606
    %v8608 = vpop.f32.mrb[0].mxu0
    %v8609 = vpop.f32.mrb[0].mxu0
    %v8610 = vadd.f32 0.0, %v8609
    %v8611 = vpop.f32.mrb[0].mxu0
    %8612 = vmatprep.mubr.bf16.mxu0 0
    %8613 = vmatmul.mubr.bf16.gmra.mrb[0].mxu0 %v8482
    %v8614 = vpop.f32.mrb[0].mxu0
    %v8615 = vadd.f32 0.0, %v8614
    %v8616 = vpop.f32.mrb[0].mxu0
    %v8617 = vpop.f32.mrb[0].mxu0
    %v8618 = vadd.f32 0.0, %v8617
    %v8619 = vpop.f32.mrb[0].mxu0
    %8620 = vmatprep.mubr.bf16.mxu0 0
    %8621 = vmatmul.mubr.bf16.gmra.mrb[0].mxu0 %v8485
    %v8622 = vpop.f32.mrb[0].mxu0
    %v8623 = vadd.f32 0.0, %v8622
    %v8624 = vpop.f32.mrb[0].mxu0
    %v8625 = vpop.f32.mrb[0].mxu0
    %v8626 = vadd.f32 0.0, %v8625
    %v8627 = vpop.f32.mrb[0].mxu0
    %8628 = vmatprep.mubr.bf16.mxu0 0
    %8629 = vmatmul.mubr.bf16.gmra.mrb[0].mxu0 %v8488
    %v8630 = vpop.f32.mrb[0].mxu0
    %v8631 = vadd.f32 0.0, %v8630
    %v8632 = vpop.f32.mrb[0].mxu0
    %v8633 = vpop.f32.mrb[0].mxu0
    %v8634 = vadd.f32 0.0, %v8633
    %v8635 = vpop.f32.mrb[0].mxu0
    %8636 = vmatprep.mubr.bf16.mxu0 0
    %8637 = vmatmul.mubr.bf16.gmra.mrb[0].mxu0 %v8491
    %v8638 = vpop.f32.mrb[0].mxu0
    %v8639 = vadd.f32 0.0, %v8638
    %v8640 = vpop.f32.mrb[0].mxu0
    %v8641 = vpop.f32.mrb[0].mxu0
    %v8642 = vadd.f32 0.0, %v8641
    %v8643 = vpop.f32.mrb[0].mxu0
    %8644 = vmatprep.mubr.bf16.mxu0 0
    %8645 = vmatmul.mubr.bf16.gmra.mrb[0].mxu0 %v8494
    %v8646 = vpop.f32.mrb[0].mxu0
    %v8647 = vadd.f32 0.0, %v8646
    %v8648 = vpop.f32.mrb[0].mxu0
    %v8649 = vpop.f32.mrb[0].mxu0
    %v8650 = vadd.f32 0.0, %v8649
    %v8651 = vpop.f32.mrb[0].mxu0
    %8652 = vmatprep.mubr.bf16.mxu0 0
    %8653 = vmatmul.mubr.bf16.gmra.mrb[0].mxu0 %v8497
    %v8654 = vpop.f32.mrb[0].mxu0
    %v8655 = vadd.f32 0.0, %v8654
    %v8656 = vpop.f32.mrb[0].mxu0
    %v8657 = vpop.f32.mrb[0].mxu0
    %v8658 = vadd.f32 0.0, %v8657
    %v8659 = vpop.f32.mrb[0].mxu0
    %8660 = vmatprep.mubr.bf16.mxu0 0
    %8661 = vmatmul.mubr.bf16.gmra.mrb[0].mxu0 %v8500
    %v8662 = vpop.f32.mrb[0].mxu0
    %v8663 = vadd.f32 0.0, %v8662
    %v8664 = vpop.f32.mrb[0].mxu0
    %v8665 = vpop.f32.mrb[0].mxu0
    %v8666 = vadd.f32 0.0, %v8665
    %v8667 = vpop.f32.mrb[0].mxu0
    %8668 = vmatprep.mubr.bf16.mxu0 0
    %8669 = vmatmul.mubr.bf16.gmra.mrb[0].mxu0 %v8503
    %v8670 = vpop.f32.mrb[0].mxu0
    %v8671 = vadd.f32 0.0, %v8670
    %v8672 = vpop.f32.mrb[0].mxu0
    %v8673 = vpop.f32.mrb[0].mxu0
    %v8674 = vadd.f32 0.0, %v8673
    %v8675 = vpop.f32.mrb[0].mxu0
    %8676 = vmatprep.mubr.bf16.mxu0 0
    %8677 = vmatmul.mubr.bf16.gmra.mrb[0].mxu0 %v8506
    %v8678 = vpop.f32.mrb[0].mxu0
    %v8679 = vadd.f32 0.0, %v8678
    %v8680 = vpop.f32.mrb[0].mxu0
    %v8681 = vpop.f32.mrb[0].mxu0
    %v8682 = vadd.f32 0.0, %v8681
    %v8683 = vpop.f32.mrb[0].mxu0
    %8684 = vdwg.mxu0
    %v8689 = vunpack.c.l.b16 %v8150
    %v8690 = vunpack.c.l.b16 %v8151
    %v8691 = vunpack.c.l.b16 %v8152
    %v8692 = vunpack.c.l.b16 %v8153
    %v8693 = vpack.c.b16 %v8690, %v8689
    %v8694 = vpack.c.b16 %v8692, %v8691
    %v8698 = vsel %vm1597, %v8298, 0
    %v8701 = vsel %vm1597, %v8299, 0
    %v8704 = vsel %vm1597, %v8300, 0
    %v8707 = vsel %vm1597, %v8301, 0
    %v8710 = vsel %vm1597, %v8302, 0
    %v8713 = vsel %vm1597, %v8303, 0
    %v8716 = vsel %vm1597, %v8304, 0
    %v8719 = vsel %vm1597, %v8305, 0
    %v8722 = vsel %vm1597, %v8306, 0
    %v8725 = vsel %vm1597, %v8307, 0
    %v8728 = vsel %vm1597, %v8308, 0
    %v8731 = vsel %vm1597, %v8309, 0
    %v8734 = vsel %vm1597, %v8310, 0
    %v8737 = vsel %vm1597, %v8311, 0
    %v8740 = vsel %vm1597, %v8312, 0
    %v8743 = vsel %vm1597, %v8313, 0
    %v8746 = vsel %vm1597, %v8314, 0
    %v8749 = vsel %vm1597, %v8315, 0
    %8751 = vmatprep.subr.bf16.mxu0 0
    %8752 = vmatpush1.bf16.msra.mxu0 %v8693
    %8753 = vmatprep.subr.bf16.mxu0 0
    %8754 = vmatpush1.bf16.msra.mxu0 %v8694
    %8755 = vmatprep.subr.bf16.mxu0 0
    %8756 = vmatpush1.bf16.msra.mxu0 0
    %8757 = vmatprep.subr.bf16.mxu0 0
    %8758 = vmatpush1.bf16.msra.mxu0 0
    %8759 = vmatprep.subr.bf16.mxu0 0
    %8760 = vmatpush1.bf16.msra.mxu0 0
    %8761 = vmatprep.subr.bf16.mxu0 0
    %8762 = vmatpush1.bf16.msra.mxu0 0
    %8763 = vmatprep.subr.bf16.mxu0 0
    %8764 = vmatpush1.bf16.msra.mxu0 0
    %8765 = vmatprep.subr.bf16.mxu0 0
    %8766 = vmatpush1.bf16.msra.mxu0 0
    %8767 = vmatprep.subr.bf16.mxu0 0
    %8768 = vmatpush1.bf16.msra.mxu0 0
    %8769 = vmatprep.subr.bf16.mxu0 0
    %8770 = vmatpush1.bf16.msra.mxu0 0
    %8771 = vmatprep.subr.bf16.mxu0 0
    %8772 = vmatpush1.bf16.msra.mxu0 0
    %8773 = vmatprep.subr.bf16.mxu0 0
    %8774 = vmatpush1.bf16.msra.mxu0 0
    %8775 = vmatprep.subr.bf16.mxu0 0
    %8776 = vmatpush1.bf16.msra.mxu0 0
    %8777 = vmatprep.subr.bf16.mxu0 0
    %8778 = vmatpush1.bf16.msra.mxu0 0
    %8779 = vmatprep.subr.bf16.mxu0 0
    %8780 = vmatpush1.bf16.msra.mxu0 0
    %8781 = vmatprep.subr.bf16.mxu0 0
    %8782 = vmatpush1.bf16.msra.mxu0 0
    %8783 = vmatprep.mubr.bf16.mxu0 0
    %8784 = vmatmul.mubr.bf16.gmra.mrb[0].mxu0 %v8698
    %v8785 = vpop.f32.mrb[0].mxu0
    %v8786 = vadd.f32 %v8543, %v8785
    %v8787 = vpop.f32.mrb[0].mxu0
    %v8788 = vpop.f32.mrb[0].mxu0
    %v8789 = vadd.f32 %v8546, %v8788
    %v8790 = vpop.f32.mrb[0].mxu0
    %8791 = vmatprep.mubr.bf16.mxu0 0
    %8792 = vmatmul.mubr.bf16.gmra.mrb[0].mxu0 %v8701
    %v8793 = vpop.f32.mrb[0].mxu0
    %v8794 = vadd.f32 %v8551, %v8793
    %v8795 = vpop.f32.mrb[0].mxu0
    %v8796 = vpop.f32.mrb[0].mxu0
    %v8797 = vadd.f32 %v8554, %v8796
    %v8798 = vpop.f32.mrb[0].mxu0
    %8799 = vmatprep.mubr.bf16.mxu0 0
    %8800 = vmatmul.mubr.bf16.gmra.mrb[0].mxu0 %v8704
    %v8801 = vpop.f32.mrb[0].mxu0
    %v8802 = vadd.f32 %v8559, %v8801
    %v8803 = vpop.f32.mrb[0].mxu0
    %v8804 = vpop.f32.mrb[0].mxu0
    %v8805 = vadd.f32 %v8562, %v8804
    %v8806 = vpop.f32.mrb[0].mxu0
    %8807 = vmatprep.mubr.bf16.mxu0 0
    %8808 = vmatmul.mubr.bf16.gmra.mrb[0].mxu0 %v8707
    %v8809 = vpop.f32.mrb[0].mxu0
    %v8810 = vadd.f32 %v8567, %v8809
    %v8811 = vpop.f32.mrb[0].mxu0
    %v8812 = vpop.f32.mrb[0].mxu0
    %v8813 = vadd.f32 %v8570, %v8812
    %v8814 = vpop.f32.mrb[0].mxu0
    %8815 = vmatprep.mubr.bf16.mxu0 0
    %8816 = vmatmul.mubr.bf16.gmra.mrb[0].mxu0 %v8710
    %v8817 = vpop.f32.mrb[0].mxu0
    %v8818 = vadd.f32 %v8575, %v8817
    %v8819 = vpop.f32.mrb[0].mxu0
    %v8820 = vpop.f32.mrb[0].mxu0
    %v8821 = vadd.f32 %v8578, %v8820
    %v8822 = vpop.f32.mrb[0].mxu0
    %8823 = vmatprep.mubr.bf16.mxu0 0
    %8824 = vmatmul.mubr.bf16.gmra.mrb[0].mxu0 %v8713
    %v8825 = vpop.f32.mrb[0].mxu0
    %v8826 = vadd.f32 %v8583, %v8825
    %v8827 = vpop.f32.mrb[0].mxu0
    %v8828 = vpop.f32.mrb[0].mxu0
    %v8829 = vadd.f32 %v8586, %v8828
    %v8830 = vpop.f32.mrb[0].mxu0
    %8831 = vmatprep.mubr.bf16.mxu0 0
    %8832 = vmatmul.mubr.bf16.gmra.mrb[0].mxu0 %v8716
    %v8833 = vpop.f32.mrb[0].mxu0
    %v8834 = vadd.f32 %v8591, %v8833
    %v8835 = vpop.f32.mrb[0].mxu0
    %v8836 = vpop.f32.mrb[0].mxu0
    %v8837 = vadd.f32 %v8594, %v8836
    %v8838 = vpop.f32.mrb[0].mxu0
    %8839 = vmatprep.mubr.bf16.mxu0 0
    %8840 = vmatmul.mubr.bf16.gmra.mrb[0].mxu0 %v8719
    %v8841 = vpop.f32.mrb[0].mxu0
    %v8842 = vadd.f32 %v8599, %v8841
    %v8843 = vpop.f32.mrb[0].mxu0
    %v8844 = vpop.f32.mrb[0].mxu0
    %v8845 = vadd.f32 %v8602, %v8844
    %v8846 = vpop.f32.mrb[0].mxu0
    %8847 = vmatprep.mubr.bf16.mxu0 0
    %8848 = vmatmul.mubr.bf16.gmra.mrb[0].mxu0 %v8722
    %v8849 = vpop.f32.mrb[0].mxu0
    %v8850 = vadd.f32 %v8607, %v8849
    %v8851 = vpop.f32.mrb[0].mxu0
    %v8852 = vpop.f32.mrb[0].mxu0
    %v8853 = vadd.f32 %v8610, %v8852
    %v8854 = vpop.f32.mrb[0].mxu0
    %8855 = vmatprep.mubr.bf16.mxu0 0
    %8856 = vmatmul.mubr.bf16.gmra.mrb[0].mxu0 %v8725
    %v8857 = vpop.f32.mrb[0].mxu0
    %v8858 = vadd.f32 %v8615, %v8857
    %v8859 = vpop.f32.mrb[0].mxu0
    %v8860 = vpop.f32.mrb[0].mxu0
    %v8861 = vadd.f32 %v8618, %v8860
    %v8862 = vpop.f32.mrb[0].mxu0
    %8863 = vmatprep.mubr.bf16.mxu0 0
    %8864 = vmatmul.mubr.bf16.gmra.mrb[0].mxu0 %v8728
    %v8865 = vpop.f32.mrb[0].mxu0
    %v8866 = vadd.f32 %v8623, %v8865
    %v8867 = vpop.f32.mrb[0].mxu0
    %v8868 = vpop.f32.mrb[0].mxu0
    %v8869 = vadd.f32 %v8626, %v8868
    %v8870 = vpop.f32.mrb[0].mxu0
    %8871 = vmatprep.mubr.bf16.mxu0 0
    %8872 = vmatmul.mubr.bf16.gmra.mrb[0].mxu0 %v8731
    %v8873 = vpop.f32.mrb[0].mxu0
    %v8874 = vadd.f32 %v8631, %v8873
    %v8875 = vpop.f32.mrb[0].mxu0
    %v8876 = vpop.f32.mrb[0].mxu0
    %v8877 = vadd.f32 %v8634, %v8876
    %v8878 = vpop.f32.mrb[0].mxu0
    %8879 = vmatprep.mubr.bf16.mxu0 0
    %8880 = vmatmul.mubr.bf16.gmra.mrb[0].mxu0 %v8734
    %v8881 = vpop.f32.mrb[0].mxu0
    %v8882 = vadd.f32 %v8639, %v8881
    %v8883 = vpop.f32.mrb[0].mxu0
    %v8884 = vpop.f32.mrb[0].mxu0
    %v8885 = vadd.f32 %v8642, %v8884
    %v8886 = vpop.f32.mrb[0].mxu0
    %8887 = vmatprep.mubr.bf16.mxu0 0
    %8888 = vmatmul.mubr.bf16.gmra.mrb[0].mxu0 %v8737
    %v8889 = vpop.f32.mrb[0].mxu0
    %v8890 = vadd.f32 %v8647, %v8889
    %v8891 = vpop.f32.mrb[0].mxu0
    %v8892 = vpop.f32.mrb[0].mxu0
    %v8893 = vadd.f32 %v8650, %v8892
    %v8894 = vpop.f32.mrb[0].mxu0
    %8895 = vmatprep.mubr.bf16.mxu0 0
    %8896 = vmatmul.mubr.bf16.gmra.mrb[0].mxu0 %v8740
    %v8897 = vpop.f32.mrb[0].mxu0
    %v8898 = vadd.f32 %v8655, %v8897
    %v8899 = vpop.f32.mrb[0].mxu0
    %v8900 = vpop.f32.mrb[0].mxu0
    %v8901 = vadd.f32 %v8658, %v8900
    %v8902 = vpop.f32.mrb[0].mxu0
    %8903 = vmatprep.mubr.bf16.mxu0 0
    %8904 = vmatmul.mubr.bf16.gmra.mrb[0].mxu0 %v8743
    %v8905 = vpop.f32.mrb[0].mxu0
    %v8906 = vadd.f32 %v8663, %v8905
    %v8907 = vpop.f32.mrb[0].mxu0
    %v8908 = vpop.f32.mrb[0].mxu0
    %v8909 = vadd.f32 %v8666, %v8908
    %v8910 = vpop.f32.mrb[0].mxu0
    %8911 = vmatprep.mubr.bf16.mxu0 0
    %8912 = vmatmul.mubr.bf16.gmra.mrb[0].mxu0 %v8746
    %v8913 = vpop.f32.mrb[0].mxu0
    %v8914 = vadd.f32 %v8671, %v8913
    %v8915 = vpop.f32.mrb[0].mxu0
    %v8916 = vpop.f32.mrb[0].mxu0
    %v8917 = vadd.f32 %v8674, %v8916
    %v8918 = vpop.f32.mrb[0].mxu0
    %8919 = vmatprep.mubr.bf16.mxu0 0
    %8920 = vmatmul.mubr.bf16.gmra.mrb[0].mxu0 %v8749
    %v8921 = vpop.f32.mrb[0].mxu0
    %v8922 = vadd.f32 %v8679, %v8921
    %v8923 = vpop.f32.mrb[0].mxu0
    %v8924 = vpop.f32.mrb[0].mxu0
    %v8925 = vadd.f32 %v8682, %v8924
    %v8926 = vpop.f32.mrb[0].mxu0
    %8927 = vdwg.mxu0
    %v8928 = vrot.slane %v8113, 5
    %v8929 = vrot.slane %v8114, 5
    %v8930 = vrot.slane %v8115, 5
    %v8931 = vrot.slane %v8116, 5
    %v8932 = vrot.slane %v8117, 5
    %v8933 = vrot.slane %v8118, 5
    %v8934 = vrot.slane %v8119, 5
    %v8935 = vrot.slane %v8120, 5
    %v8936 = vrot.slane %v8121, 5
    %v8937 = vrot.slane %v8122, 5
    %v8938 = vrot.slane %v8123, 5
    %v8939 = vrot.slane %v8124, 5
    %v8940 = vrot.slane %v8125, 5
    %v8941 = vrot.slane %v8126, 5
    %v8942 = vrot.slane %v8127, 5
    %v8943 = vrot.slane %v8128, 5
    %v8944 = vrot.slane %v8129, 5
    %v8945 = vrot.slane %v8130, 5
    %v8946 = vrot.slane %v8131, 5
    %v8947 = vrot.slane %v8132, 5
    %v8948 = vrot.slane %v8133, 5
    %v8949 = vrot.slane %v8134, 5
    %v8950 = vrot.slane %v8135, 5
    %v8951 = vrot.slane %v8136, 5
    %v8952 = vrot.slane %v8137, 5
    %v8953 = vrot.slane %v8138, 5
    %v8954 = vrot.slane %v8139, 5
    %v8955 = vrot.slane %v8140, 5
    %v8956 = vrot.slane %v8141, 5
    %v8957 = vrot.slane %v8142, 5
    %v8958 = vrot.slane %v8143, 5
    %v8959 = vrot.slane %v8144, 5
    %v8960 = vrot.slane %v8145, 5
    %v8961 = vrot.slane %v8146, 5
    %v8962 = vrot.slane %v8147, 5
    %v8963 = vrot.slane %v8148, 5
    %v8964 = vsel %vm2108, %v8962, %v8963
    %v8965 = vsel %vm2108, %v8961, %v8962
    %v8966 = vsel %vm2108, %v8960, %v8961
    %v8967 = vsel %vm2108, %v8959, %v8960
    %v8968 = vsel %vm2108, %v8958, %v8959
    %v8969 = vsel %vm2108, %v8957, %v8958
    %v8970 = vsel %vm2108, %v8956, %v8957
    %v8971 = vsel %vm2108, %v8955, %v8956
    %v8972 = vsel %vm2108, %v8954, %v8955
    %v8973 = vsel %vm2108, %v8953, %v8954
    %v8974 = vsel %vm2108, %v8952, %v8953
    %v8975 = vsel %vm2108, %v8951, %v8952
    %v8976 = vsel %vm2108, %v8950, %v8951
    %v8977 = vsel %vm2108, %v8949, %v8950
    %v8978 = vsel %vm2108, %v8948, %v8949
    %v8979 = vsel %vm2108, %v8947, %v8948
    %v8980 = vsel %vm2108, %v8946, %v8947
    %v8981 = vsel %vm2108, %v8945, %v8946
    %v8982 = vsel %vm2108, %v8944, %v8945
    %v8983 = vsel %vm2108, %v8943, %v8944
    %v8984 = vsel %vm2108, %v8942, %v8943
    %v8985 = vsel %vm2108, %v8941, %v8942
    %v8986 = vsel %vm2108, %v8940, %v8941
    %v8987 = vsel %vm2108, %v8939, %v8940
    %v8988 = vsel %vm2108, %v8938, %v8939
    %v8989 = vsel %vm2108, %v8937, %v8938
    %v8990 = vsel %vm2108, %v8936, %v8937
    %v8991 = vsel %vm2108, %v8935, %v8936
    %v8992 = vsel %vm2108, %v8934, %v8935
    %v8993 = vsel %vm2108, %v8933, %v8934
    %v8994 = vsel %vm2108, %v8932, %v8933
    %v8995 = vsel %vm2108, %v8931, %v8932
    %v8996 = vsel %vm2108, %v8930, %v8931
    %v8997 = vsel %vm2108, %v8929, %v8930
    %v8998 = vsel %vm2108, %v8928, %v8929
    %v8999 = vsel %vm2108, %v8963, %v8928
    %v9000 = vmul.f32 %v8964, %v393
    %v9001 = vmul.f32 %v8999, %v397
    %v9002 = vmul.f32 %v8998, %v401
    %v9003 = vmul.f32 %v8997, %v405
    %v9004 = vmul.f32 %v8996, %v409
    %v9005 = vmul.f32 %v8995, %v413
    %v9006 = vmul.f32 %v8994, %v417
    %v9007 = vmul.f32 %v8993, %v421
    %v9008 = vmul.f32 %v8992, %v425
    %v9009 = vmul.f32 %v8991, %v429
    %v9010 = vmul.f32 %v8990, %v433
    %v9011 = vmul.f32 %v8989, %v437
    %v9012 = vmul.f32 %v8988, %v441
    %v9013 = vmul.f32 %v8987, %v445
    %v9014 = vmul.f32 %v8986, %v449
    %v9015 = vmul.f32 %v8985, %v453
    %v9016 = vmul.f32 %v8984, %v457
    %v9017 = vmul.f32 %v8983, %v461
    %v9018 = vmul.f32 %v8982, %v465
    %v9019 = vmul.f32 %v8981, %v469
    %v9020 = vmul.f32 %v8980, %v473
    %v9021 = vmul.f32 %v8979, %v477
    %v9022 = vmul.f32 %v8978, %v481
    %v9023 = vmul.f32 %v8977, %v485
    %v9024 = vmul.f32 %v8976, %v489
    %v9025 = vmul.f32 %v8975, %v493
    %v9026 = vmul.f32 %v8974, %v497
    %v9027 = vmul.f32 %v8973, %v501
    %v9028 = vmul.f32 %v8972, %v505
    %v9029 = vmul.f32 %v8971, %v509
    %v9030 = vmul.f32 %v8970, %v513
    %v9031 = vmul.f32 %v8969, %v517
    %v9032 = vmul.f32 %v8968, %v521
    %v9033 = vmul.f32 %v8967, %v525
    %v9034 = vmul.f32 %v8966, %v529
    %v9035 = vmul.f32 %v8965, %v533
    %v9036 = vpack.c.bf16 %v9001, %v9000
    %v9037 = vpack.c.bf16 %v9003, %v9002
    %v9038 = vpack.c.bf16 %v9005, %v9004
    %v9039 = vpack.c.bf16 %v9007, %v9006
    %v9040 = vpack.c.bf16 %v9009, %v9008
    %v9041 = vpack.c.bf16 %v9011, %v9010
    %v9042 = vpack.c.bf16 %v9013, %v9012
    %v9043 = vpack.c.bf16 %v9015, %v9014
    %v9044 = vpack.c.bf16 %v9017, %v9016
    %v9045 = vpack.c.bf16 %v9019, %v9018
    %v9046 = vpack.c.bf16 %v9021, %v9020
    %v9047 = vpack.c.bf16 %v9023, %v9022
    %v9048 = vpack.c.bf16 %v9025, %v9024
    %v9049 = vpack.c.bf16 %v9027, %v9026
    %v9050 = vpack.c.bf16 %v9029, %v9028
    %v9051 = vpack.c.bf16 %v9031, %v9030
    %v9052 = vpack.c.bf16 %v9033, %v9032
    %v9053 = vpack.c.bf16 %v9035, %v9034
    %v9058 = vunpack.c.l.b16 %v8158
    %v9059 = vunpack.c.l.b16 %v8159
    %v9060 = vunpack.c.l.b16 %v8160
    %v9061 = vunpack.c.l.b16 %v8161
    %v9062 = vpack.c.b16 %v9059, %v9058
    %v9063 = vpack.c.b16 %v9061, %v9060
    %v9067 = vsel %vm1597, %v9036, 0
    %v9070 = vsel %vm1597, %v9037, 0
    %v9073 = vsel %vm1597, %v9038, 0
    %v9076 = vsel %vm1597, %v9039, 0
    %v9079 = vsel %vm1597, %v9040, 0
    %v9082 = vsel %vm1597, %v9041, 0
    %v9085 = vsel %vm1597, %v9042, 0
    %v9088 = vsel %vm1597, %v9043, 0
    %v9091 = vsel %vm1597, %v9044, 0
    %v9094 = vsel %vm1597, %v9045, 0
    %v9097 = vsel %vm1597, %v9046, 0
    %v9100 = vsel %vm1597, %v9047, 0
    %v9103 = vsel %vm1597, %v9048, 0
    %v9106 = vsel %vm1597, %v9049, 0
    %v9109 = vsel %vm1597, %v9050, 0
    %v9112 = vsel %vm1597, %v9051, 0
    %v9115 = vsel %vm1597, %v9052, 0
    %v9118 = vsel %vm1597, %v9053, 0
    %9120 = vmatprep.subr.bf16.mxu0 0
    %9121 = vmatpush1.bf16.msra.mxu0 %v9062
    %9122 = vmatprep.subr.bf16.mxu0 0
    %9123 = vmatpush1.bf16.msra.mxu0 %v9063
    %9124 = vmatprep.subr.bf16.mxu0 0
    %9125 = vmatpush1.bf16.msra.mxu0 0
    %9126 = vmatprep.subr.bf16.mxu0 0
    %9127 = vmatpush1.bf16.msra.mxu0 0
    %9128 = vmatprep.subr.bf16.mxu0 0
    %9129 = vmatpush1.bf16.msra.mxu0 0
    %9130 = vmatprep.subr.bf16.mxu0 0
    %9131 = vmatpush1.bf16.msra.mxu0 0
    %9132 = vmatprep.subr.bf16.mxu0 0
    %9133 = vmatpush1.bf16.msra.mxu0 0
    %9134 = vmatprep.subr.bf16.mxu0 0
    %9135 = vmatpush1.bf16.msra.mxu0 0
    %9136 = vmatprep.subr.bf16.mxu0 0
    %9137 = vmatpush1.bf16.msra.mxu0 0
    %9138 = vmatprep.subr.bf16.mxu0 0
    %9139 = vmatpush1.bf16.msra.mxu0 0
    %9140 = vmatprep.subr.bf16.mxu0 0
    %9141 = vmatpush1.bf16.msra.mxu0 0
    %9142 = vmatprep.subr.bf16.mxu0 0
    %9143 = vmatpush1.bf16.msra.mxu0 0
    %9144 = vmatprep.subr.bf16.mxu0 0
    %9145 = vmatpush1.bf16.msra.mxu0 0
    %9146 = vmatprep.subr.bf16.mxu0 0
    %9147 = vmatpush1.bf16.msra.mxu0 0
    %9148 = vmatprep.subr.bf16.mxu0 0
    %9149 = vmatpush1.bf16.msra.mxu0 0
    %9150 = vmatprep.subr.bf16.mxu0 0
    %9151 = vmatpush1.bf16.msra.mxu0 0
    %9152 = vmatprep.mubr.bf16.mxu0 0
    %9153 = vmatmul.mubr.bf16.gmra.mrb[0].mxu0 %v9067
    %v9154 = vpop.f32.mrb[0].mxu0
    %v9155 = vadd.f32 0.0, %v9154
    %v9156 = vpop.f32.mrb[0].mxu0
    %v9157 = vpop.f32.mrb[0].mxu0
    %v9158 = vadd.f32 0.0, %v9157
    %v9159 = vpop.f32.mrb[0].mxu0
    %9160 = vmatprep.mubr.bf16.mxu0 0
    %9161 = vmatmul.mubr.bf16.gmra.mrb[0].mxu0 %v9070
    %v9162 = vpop.f32.mrb[0].mxu0
    %v9163 = vadd.f32 0.0, %v9162
    %v9164 = vpop.f32.mrb[0].mxu0
    %v9165 = vpop.f32.mrb[0].mxu0
    %v9166 = vadd.f32 0.0, %v9165
    %v9167 = vpop.f32.mrb[0].mxu0
    %9168 = vmatprep.mubr.bf16.mxu0 0
    %9169 = vmatmul.mubr.bf16.gmra.mrb[0].mxu0 %v9073
    %v9170 = vpop.f32.mrb[0].mxu0
    %v9171 = vadd.f32 0.0, %v9170
    %v9172 = vpop.f32.mrb[0].mxu0
    %v9173 = vpop.f32.mrb[0].mxu0
    %v9174 = vadd.f32 0.0, %v9173
    %v9175 = vpop.f32.mrb[0].mxu0
    %9176 = vmatprep.mubr.bf16.mxu0 0
    %9177 = vmatmul.mubr.bf16.gmra.mrb[0].mxu0 %v9076
    %v9178 = vpop.f32.mrb[0].mxu0
    %v9179 = vadd.f32 0.0, %v9178
    %v9180 = vpop.f32.mrb[0].mxu0
    %v9181 = vpop.f32.mrb[0].mxu0
    %v9182 = vadd.f32 0.0, %v9181
    %v9183 = vpop.f32.mrb[0].mxu0
    %9184 = vmatprep.mubr.bf16.mxu0 0
    %9185 = vmatmul.mubr.bf16.gmra.mrb[0].mxu0 %v9079
    %v9186 = vpop.f32.mrb[0].mxu0
    %v9187 = vadd.f32 0.0, %v9186
    %v9188 = vpop.f32.mrb[0].mxu0
    %v9189 = vpop.f32.mrb[0].mxu0
    %v9190 = vadd.f32 0.0, %v9189
    %v9191 = vpop.f32.mrb[0].mxu0
    %9192 = vmatprep.mubr.bf16.mxu0 0
    %9193 = vmatmul.mubr.bf16.gmra.mrb[0].mxu0 %v9082
    %v9194 = vpop.f32.mrb[0].mxu0
    %v9195 = vadd.f32 0.0, %v9194
    %v9196 = vpop.f32.mrb[0].mxu0
    %v9197 = vpop.f32.mrb[0].mxu0
    %v9198 = vadd.f32 0.0, %v9197
    %v9199 = vpop.f32.mrb[0].mxu0
    %9200 = vmatprep.mubr.bf16.mxu0 0
    %9201 = vmatmul.mubr.bf16.gmra.mrb[0].mxu0 %v9085
    %v9202 = vpop.f32.mrb[0].mxu0
    %v9203 = vadd.f32 0.0, %v9202
    %v9204 = vpop.f32.mrb[0].mxu0
    %v9205 = vpop.f32.mrb[0].mxu0
    %v9206 = vadd.f32 0.0, %v9205
    %v9207 = vpop.f32.mrb[0].mxu0
    %9208 = vmatprep.mubr.bf16.mxu0 0
    %9209 = vmatmul.mubr.bf16.gmra.mrb[0].mxu0 %v9088
    %v9210 = vpop.f32.mrb[0].mxu0
    %v9211 = vadd.f32 0.0, %v9210
    %v9212 = vpop.f32.mrb[0].mxu0
    %v9213 = vpop.f32.mrb[0].mxu0
    %v9214 = vadd.f32 0.0, %v9213
    %v9215 = vpop.f32.mrb[0].mxu0
    %9216 = vmatprep.mubr.bf16.mxu0 0
    %9217 = vmatmul.mubr.bf16.gmra.mrb[0].mxu0 %v9091
    %v9218 = vpop.f32.mrb[0].mxu0
    %v9219 = vadd.f32 0.0, %v9218
    %v9220 = vpop.f32.mrb[0].mxu0
    %v9221 = vpop.f32.mrb[0].mxu0
    %v9222 = vadd.f32 0.0, %v9221
    %v9223 = vpop.f32.mrb[0].mxu0
    %9224 = vmatprep.mubr.bf16.mxu0 0
    %9225 = vmatmul.mubr.bf16.gmra.mrb[0].mxu0 %v9094
    %v9226 = vpop.f32.mrb[0].mxu0
    %v9227 = vadd.f32 0.0, %v9226
    %v9228 = vpop.f32.mrb[0].mxu0
    %v9229 = vpop.f32.mrb[0].mxu0
    %v9230 = vadd.f32 0.0, %v9229
    %v9231 = vpop.f32.mrb[0].mxu0
    %9232 = vmatprep.mubr.bf16.mxu0 0
    %9233 = vmatmul.mubr.bf16.gmra.mrb[0].mxu0 %v9097
    %v9234 = vpop.f32.mrb[0].mxu0
    %v9235 = vadd.f32 0.0, %v9234
    %v9236 = vpop.f32.mrb[0].mxu0
    %v9237 = vpop.f32.mrb[0].mxu0
    %v9238 = vadd.f32 0.0, %v9237
    %v9239 = vpop.f32.mrb[0].mxu0
    %9240 = vmatprep.mubr.bf16.mxu0 0
    %9241 = vmatmul.mubr.bf16.gmra.mrb[0].mxu0 %v9100
    %v9242 = vpop.f32.mrb[0].mxu0
    %v9243 = vadd.f32 0.0, %v9242
    %v9244 = vpop.f32.mrb[0].mxu0
    %v9245 = vpop.f32.mrb[0].mxu0
    %v9246 = vadd.f32 0.0, %v9245
    %v9247 = vpop.f32.mrb[0].mxu0
    %9248 = vmatprep.mubr.bf16.mxu0 0
    %9249 = vmatmul.mubr.bf16.gmra.mrb[0].mxu0 %v9103
    %v9250 = vpop.f32.mrb[0].mxu0
    %v9251 = vadd.f32 0.0, %v9250
    %v9252 = vpop.f32.mrb[0].mxu0
    %v9253 = vpop.f32.mrb[0].mxu0
    %v9254 = vadd.f32 0.0, %v9253
    %v9255 = vpop.f32.mrb[0].mxu0
    %9256 = vmatprep.mubr.bf16.mxu0 0
    %9257 = vmatmul.mubr.bf16.gmra.mrb[0].mxu0 %v9106
    %v9258 = vpop.f32.mrb[0].mxu0
    %v9259 = vadd.f32 0.0, %v9258
    %v9260 = vpop.f32.mrb[0].mxu0
    %v9261 = vpop.f32.mrb[0].mxu0
    %v9262 = vadd.f32 0.0, %v9261
    %v9263 = vpop.f32.mrb[0].mxu0
    %9264 = vmatprep.mubr.bf16.mxu0 0
    %9265 = vmatmul.mubr.bf16.gmra.mrb[0].mxu0 %v9109
    %v9266 = vpop.f32.mrb[0].mxu0
    %v9267 = vadd.f32 0.0, %v9266
    %v9268 = vpop.f32.mrb[0].mxu0
    %v9269 = vpop.f32.mrb[0].mxu0
    %v9270 = vadd.f32 0.0, %v9269
    %v9271 = vpop.f32.mrb[0].mxu0
    %9272 = vmatprep.mubr.bf16.mxu0 0
    %9273 = vmatmul.mubr.bf16.gmra.mrb[0].mxu0 %v9112
    %v9274 = vpop.f32.mrb[0].mxu0
    %v9275 = vadd.f32 0.0, %v9274
    %v9276 = vpop.f32.mrb[0].mxu0
    %v9277 = vpop.f32.mrb[0].mxu0
    %v9278 = vadd.f32 0.0, %v9277
    %v9279 = vpop.f32.mrb[0].mxu0
    %9280 = vmatprep.mubr.bf16.mxu0 0
    %9281 = vmatmul.mubr.bf16.gmra.mrb[0].mxu0 %v9115
    %v9282 = vpop.f32.mrb[0].mxu0
    %v9283 = vadd.f32 0.0, %v9282
    %v9284 = vpop.f32.mrb[0].mxu0
    %v9285 = vpop.f32.mrb[0].mxu0
    %v9286 = vadd.f32 0.0, %v9285
    %v9287 = vpop.f32.mrb[0].mxu0
    %9288 = vmatprep.mubr.bf16.mxu0 0
    %9289 = vmatmul.mubr.bf16.gmra.mrb[0].mxu0 %v9118
    %v9290 = vpop.f32.mrb[0].mxu0
    %v9291 = vadd.f32 0.0, %v9290
    %v9292 = vpop.f32.mrb[0].mxu0
    %v9293 = vpop.f32.mrb[0].mxu0
    %v9294 = vadd.f32 0.0, %v9293
    %v9295 = vpop.f32.mrb[0].mxu0
    %9296 = vdwg.mxu0
    %v9297 = vadd.f32 %v8786, %v9155
    %v9298 = vadd.f32 %v8789, %v9158
    %v9299 = vadd.f32 %v8794, %v9163
    %v9300 = vadd.f32 %v8797, %v9166
    %v9301 = vadd.f32 %v8802, %v9171
    %v9302 = vadd.f32 %v8805, %v9174
    %v9303 = vadd.f32 %v8810, %v9179
    %v9304 = vadd.f32 %v8813, %v9182
    %v9305 = vadd.f32 %v8818, %v9187
    %v9306 = vadd.f32 %v8821, %v9190
    %v9307 = vadd.f32 %v8826, %v9195
    %v9308 = vadd.f32 %v8829, %v9198
    %v9309 = vadd.f32 %v8834, %v9203
    %v9310 = vadd.f32 %v8837, %v9206
    %v9311 = vadd.f32 %v8842, %v9211
    %v9312 = vadd.f32 %v8845, %v9214
    %v9313 = vadd.f32 %v8850, %v9219
    %v9314 = vadd.f32 %v8853, %v9222
    %v9315 = vadd.f32 %v8858, %v9227
    %v9316 = vadd.f32 %v8861, %v9230
    %v9317 = vadd.f32 %v8866, %v9235
    %v9318 = vadd.f32 %v8869, %v9238
    %v9319 = vadd.f32 %v8874, %v9243
    %v9320 = vadd.f32 %v8877, %v9246
    %v9321 = vadd.f32 %v8882, %v9251
    %v9322 = vadd.f32 %v8885, %v9254
    %v9323 = vadd.f32 %v8890, %v9259
    %v9324 = vadd.f32 %v8893, %v9262
    %v9325 = vadd.f32 %v8898, %v9267
    %v9326 = vadd.f32 %v8901, %v9270
    %v9327 = vadd.f32 %v8906, %v9275
    %v9328 = vadd.f32 %v8909, %v9278
    %v9329 = vadd.f32 %v8914, %v9283
    %v9330 = vadd.f32 %v8917, %v9286
    %v9331 = vadd.f32 %v8922, %v9291
    %v9332 = vadd.f32 %v8925, %v9294
    %v9333 = vrot.slane %v8113, 7
    %v9334 = vrot.slane %v8114, 7
    %v9335 = vrot.slane %v8115, 7
    %v9336 = vrot.slane %v8116, 7
    %v9337 = vrot.slane %v8117, 7
    %v9338 = vrot.slane %v8118, 7
    %v9339 = vrot.slane %v8119, 7
    %v9340 = vrot.slane %v8120, 7
    %v9341 = vrot.slane %v8121, 7
    %v9342 = vrot.slane %v8122, 7
    %v9343 = vrot.slane %v8123, 7
    %v9344 = vrot.slane %v8124, 7
    %v9345 = vrot.slane %v8125, 7
    %v9346 = vrot.slane %v8126, 7
    %v9347 = vrot.slane %v8127, 7
    %v9348 = vrot.slane %v8128, 7
    %v9349 = vrot.slane %v8129, 7
    %v9350 = vrot.slane %v8130, 7
    %v9351 = vrot.slane %v8131, 7
    %v9352 = vrot.slane %v8132, 7
    %v9353 = vrot.slane %v8133, 7
    %v9354 = vrot.slane %v8134, 7
    %v9355 = vrot.slane %v8135, 7
    %v9356 = vrot.slane %v8136, 7
    %v9357 = vrot.slane %v8137, 7
    %v9358 = vrot.slane %v8138, 7
    %v9359 = vrot.slane %v8139, 7
    %v9360 = vrot.slane %v8140, 7
    %v9361 = vrot.slane %v8141, 7
    %v9362 = vrot.slane %v8142, 7
    %v9363 = vrot.slane %v8143, 7
    %v9364 = vrot.slane %v8144, 7
    %v9365 = vrot.slane %v8145, 7
    %v9366 = vrot.slane %v8146, 7
    %v9367 = vrot.slane %v8147, 7
    %v9368 = vrot.slane %v8148, 7
    %v9369 = vsel %vm2514, %v9367, %v9368
    %v9370 = vsel %vm2514, %v9366, %v9367
    %v9371 = vsel %vm2514, %v9365, %v9366
    %v9372 = vsel %vm2514, %v9364, %v9365
    %v9373 = vsel %vm2514, %v9363, %v9364
    %v9374 = vsel %vm2514, %v9362, %v9363
    %v9375 = vsel %vm2514, %v9361, %v9362
    %v9376 = vsel %vm2514, %v9360, %v9361
    %v9377 = vsel %vm2514, %v9359, %v9360
    %v9378 = vsel %vm2514, %v9358, %v9359
    %v9379 = vsel %vm2514, %v9357, %v9358
    %v9380 = vsel %vm2514, %v9356, %v9357
    %v9381 = vsel %vm2514, %v9355, %v9356
    %v9382 = vsel %vm2514, %v9354, %v9355
    %v9383 = vsel %vm2514, %v9353, %v9354
    %v9384 = vsel %vm2514, %v9352, %v9353
    %v9385 = vsel %vm2514, %v9351, %v9352
    %v9386 = vsel %vm2514, %v9350, %v9351
    %v9387 = vsel %vm2514, %v9349, %v9350
    %v9388 = vsel %vm2514, %v9348, %v9349
    %v9389 = vsel %vm2514, %v9347, %v9348
    %v9390 = vsel %vm2514, %v9346, %v9347
    %v9391 = vsel %vm2514, %v9345, %v9346
    %v9392 = vsel %vm2514, %v9344, %v9345
    %v9393 = vsel %vm2514, %v9343, %v9344
    %v9394 = vsel %vm2514, %v9342, %v9343
    %v9395 = vsel %vm2514, %v9341, %v9342
    %v9396 = vsel %vm2514, %v9340, %v9341
    %v9397 = vsel %vm2514, %v9339, %v9340
    %v9398 = vsel %vm2514, %v9338, %v9339
    %v9399 = vsel %vm2514, %v9337, %v9338
    %v9400 = vsel %vm2514, %v9336, %v9337
    %v9401 = vsel %vm2514, %v9335, %v9336
    %v9402 = vsel %vm2514, %v9334, %v9335
    %v9403 = vsel %vm2514, %v9333, %v9334
    %v9404 = vsel %vm2514, %v9368, %v9333
    %v9405 = vmul.f32 %v9404, %v537
    %v9406 = vmul.f32 %v9403, %v541
    %v9407 = vmul.f32 %v9402, %v545
    %v9408 = vmul.f32 %v9401, %v549
    %v9409 = vmul.f32 %v9400, %v553
    %v9410 = vmul.f32 %v9399, %v557
    %v9411 = vmul.f32 %v9398, %v561
    %v9412 = vmul.f32 %v9397, %v565
    %v9413 = vmul.f32 %v9396, %v569
    %v9414 = vmul.f32 %v9395, %v573
    %v9415 = vmul.f32 %v9394, %v577
    %v9416 = vmul.f32 %v9393, %v581
    %v9417 = vmul.f32 %v9392, %v585
    %v9418 = vmul.f32 %v9391, %v589
    %v9419 = vmul.f32 %v9390, %v593
    %v9420 = vmul.f32 %v9389, %v597
    %v9421 = vmul.f32 %v9388, %v601
    %v9422 = vmul.f32 %v9387, %v605
    %v9423 = vmul.f32 %v9386, %v609
    %v9424 = vmul.f32 %v9385, %v613
    %v9425 = vmul.f32 %v9384, %v617
    %v9426 = vmul.f32 %v9383, %v621
    %v9427 = vmul.f32 %v9382, %v625
    %v9428 = vmul.f32 %v9381, %v629
    %v9429 = vmul.f32 %v9380, %v633
    %v9430 = vmul.f32 %v9379, %v637
    %v9431 = vmul.f32 %v9378, %v641
    %v9432 = vmul.f32 %v9377, %v645
    %v9433 = vmul.f32 %v9376, %v649
    %v9434 = vmul.f32 %v9375, %v653
    %v9435 = vmul.f32 %v9374, %v657
    %v9436 = vmul.f32 %v9373, %v661
    %v9437 = vmul.f32 %v9372, %v665
    %v9438 = vmul.f32 %v9371, %v669
    %v9439 = vmul.f32 %v9370, %v673
    %v9440 = vmul.f32 %v9369, %v677
    %v9441 = vpack.c.bf16 %v9406, %v9405
    %v9442 = vpack.c.bf16 %v9408, %v9407
    %v9443 = vpack.c.bf16 %v9410, %v9409
    %v9444 = vpack.c.bf16 %v9412, %v9411
    %v9445 = vpack.c.bf16 %v9414, %v9413
    %v9446 = vpack.c.bf16 %v9416, %v9415
    %v9447 = vpack.c.bf16 %v9418, %v9417
    %v9448 = vpack.c.bf16 %v9420, %v9419
    %v9449 = vpack.c.bf16 %v9422, %v9421
    %v9450 = vpack.c.bf16 %v9424, %v9423
    %v9451 = vpack.c.bf16 %v9426, %v9425
    %v9452 = vpack.c.bf16 %v9428, %v9427
    %v9453 = vpack.c.bf16 %v9430, %v9429
    %v9454 = vpack.c.bf16 %v9432, %v9431
    %v9455 = vpack.c.bf16 %v9434, %v9433
    %v9456 = vpack.c.bf16 %v9436, %v9435
    %v9457 = vpack.c.bf16 %v9438, %v9437
    %v9458 = vpack.c.bf16 %v9440, %v9439
    %v9463 = vunpack.c.l.b16 %v8162
    %v9464 = vunpack.c.l.b16 %v8163
    %v9465 = vunpack.c.l.b16 %v8164
    %v9466 = vunpack.c.l.b16 %v8165
    %v9467 = vpack.c.b16 %v9464, %v9463
    %v9468 = vpack.c.b16 %v9466, %v9465
    %v9472 = vsel %vm1597, %v9441, 0
    %v9475 = vsel %vm1597, %v9442, 0
    %v9478 = vsel %vm1597, %v9443, 0
    %v9481 = vsel %vm1597, %v9444, 0
    %v9484 = vsel %vm1597, %v9445, 0
    %v9487 = vsel %vm1597, %v9446, 0
    %v9490 = vsel %vm1597, %v9447, 0
    %v9493 = vsel %vm1597, %v9448, 0
    %v9496 = vsel %vm1597, %v9449, 0
    %v9499 = vsel %vm1597, %v9450, 0
    %v9502 = vsel %vm1597, %v9451, 0
    %v9505 = vsel %vm1597, %v9452, 0
    %v9508 = vsel %vm1597, %v9453, 0
    %v9511 = vsel %vm1597, %v9454, 0
    %v9514 = vsel %vm1597, %v9455, 0
    %v9517 = vsel %vm1597, %v9456, 0
    %v9520 = vsel %vm1597, %v9457, 0
    %v9523 = vsel %vm1597, %v9458, 0
    %9525 = vmatprep.subr.bf16.mxu0 0
    %9526 = vmatpush1.bf16.msra.mxu0 %v9467
    %9527 = vmatprep.subr.bf16.mxu0 0
    %9528 = vmatpush1.bf16.msra.mxu0 %v9468
    %9529 = vmatprep.subr.bf16.mxu0 0
    %9530 = vmatpush1.bf16.msra.mxu0 0
    %9531 = vmatprep.subr.bf16.mxu0 0
    %9532 = vmatpush1.bf16.msra.mxu0 0
    %9533 = vmatprep.subr.bf16.mxu0 0
    %9534 = vmatpush1.bf16.msra.mxu0 0
    %9535 = vmatprep.subr.bf16.mxu0 0
    %9536 = vmatpush1.bf16.msra.mxu0 0
    %9537 = vmatprep.subr.bf16.mxu0 0
    %9538 = vmatpush1.bf16.msra.mxu0 0
    %9539 = vmatprep.subr.bf16.mxu0 0
    %9540 = vmatpush1.bf16.msra.mxu0 0
    %9541 = vmatprep.subr.bf16.mxu0 0
    %9542 = vmatpush1.bf16.msra.mxu0 0
    %9543 = vmatprep.subr.bf16.mxu0 0
    %9544 = vmatpush1.bf16.msra.mxu0 0
    %9545 = vmatprep.subr.bf16.mxu0 0
    %9546 = vmatpush1.bf16.msra.mxu0 0
    %9547 = vmatprep.subr.bf16.mxu0 0
    %9548 = vmatpush1.bf16.msra.mxu0 0
    %9549 = vmatprep.subr.bf16.mxu0 0
    %9550 = vmatpush1.bf16.msra.mxu0 0
    %9551 = vmatprep.subr.bf16.mxu0 0
    %9552 = vmatpush1.bf16.msra.mxu0 0
    %9553 = vmatprep.subr.bf16.mxu0 0
    %9554 = vmatpush1.bf16.msra.mxu0 0
    %9555 = vmatprep.subr.bf16.mxu0 0
    %9556 = vmatpush1.bf16.msra.mxu0 0
    %9557 = vmatprep.mubr.bf16.mxu0 0
    %9558 = vmatmul.mubr.bf16.gmra.mrb[0].mxu0 %v9472
    %v9559 = vpop.f32.mrb[0].mxu0
    %v9560 = vadd.f32 0.0, %v9559
    %v9561 = vpop.f32.mrb[0].mxu0
    %v9562 = vpop.f32.mrb[0].mxu0
    %v9563 = vadd.f32 0.0, %v9562
    %v9564 = vpop.f32.mrb[0].mxu0
    %9565 = vmatprep.mubr.bf16.mxu0 0
    %9566 = vmatmul.mubr.bf16.gmra.mrb[0].mxu0 %v9475
    %v9567 = vpop.f32.mrb[0].mxu0
    %v9568 = vadd.f32 0.0, %v9567
    %v9569 = vpop.f32.mrb[0].mxu0
    %v9570 = vpop.f32.mrb[0].mxu0
    %v9571 = vadd.f32 0.0, %v9570
    %v9572 = vpop.f32.mrb[0].mxu0
    %9573 = vmatprep.mubr.bf16.mxu0 0
    %9574 = vmatmul.mubr.bf16.gmra.mrb[0].mxu0 %v9478
    %v9575 = vpop.f32.mrb[0].mxu0
    %v9576 = vadd.f32 0.0, %v9575
    %v9577 = vpop.f32.mrb[0].mxu0
    %v9578 = vpop.f32.mrb[0].mxu0
    %v9579 = vadd.f32 0.0, %v9578
    %v9580 = vpop.f32.mrb[0].mxu0
    %9581 = vmatprep.mubr.bf16.mxu0 0
    %9582 = vmatmul.mubr.bf16.gmra.mrb[0].mxu0 %v9481
    %v9583 = vpop.f32.mrb[0].mxu0
    %v9584 = vadd.f32 0.0, %v9583
    %v9585 = vpop.f32.mrb[0].mxu0
    %v9586 = vpop.f32.mrb[0].mxu0
    %v9587 = vadd.f32 0.0, %v9586
    %v9588 = vpop.f32.mrb[0].mxu0
    %9589 = vmatprep.mubr.bf16.mxu0 0
    %9590 = vmatmul.mubr.bf16.gmra.mrb[0].mxu0 %v9484
    %v9591 = vpop.f32.mrb[0].mxu0
    %v9592 = vadd.f32 0.0, %v9591
    %v9593 = vpop.f32.mrb[0].mxu0
    %v9594 = vpop.f32.mrb[0].mxu0
    %v9595 = vadd.f32 0.0, %v9594
    %v9596 = vpop.f32.mrb[0].mxu0
    %9597 = vmatprep.mubr.bf16.mxu0 0
    %9598 = vmatmul.mubr.bf16.gmra.mrb[0].mxu0 %v9487
    %v9599 = vpop.f32.mrb[0].mxu0
    %v9600 = vadd.f32 0.0, %v9599
    %v9601 = vpop.f32.mrb[0].mxu0
    %v9602 = vpop.f32.mrb[0].mxu0
    %v9603 = vadd.f32 0.0, %v9602
    %v9604 = vpop.f32.mrb[0].mxu0
    %9605 = vmatprep.mubr.bf16.mxu0 0
    %9606 = vmatmul.mubr.bf16.gmra.mrb[0].mxu0 %v9490
    %v9607 = vpop.f32.mrb[0].mxu0
    %v9608 = vadd.f32 0.0, %v9607
    %v9609 = vpop.f32.mrb[0].mxu0
    %v9610 = vpop.f32.mrb[0].mxu0
    %v9611 = vadd.f32 0.0, %v9610
    %v9612 = vpop.f32.mrb[0].mxu0
    %9613 = vmatprep.mubr.bf16.mxu0 0
    %9614 = vmatmul.mubr.bf16.gmra.mrb[0].mxu0 %v9493
    %v9615 = vpop.f32.mrb[0].mxu0
    %v9616 = vadd.f32 0.0, %v9615
    %v9617 = vpop.f32.mrb[0].mxu0
    %v9618 = vpop.f32.mrb[0].mxu0
    %v9619 = vadd.f32 0.0, %v9618
    %v9620 = vpop.f32.mrb[0].mxu0
    %9621 = vmatprep.mubr.bf16.mxu0 0
    %9622 = vmatmul.mubr.bf16.gmra.mrb[0].mxu0 %v9496
    %v9623 = vpop.f32.mrb[0].mxu0
    %v9624 = vadd.f32 0.0, %v9623
    %v9625 = vpop.f32.mrb[0].mxu0
    %v9626 = vpop.f32.mrb[0].mxu0
    %v9627 = vadd.f32 0.0, %v9626
    %v9628 = vpop.f32.mrb[0].mxu0
    %9629 = vmatprep.mubr.bf16.mxu0 0
    %9630 = vmatmul.mubr.bf16.gmra.mrb[0].mxu0 %v9499
    %v9631 = vpop.f32.mrb[0].mxu0
    %v9632 = vadd.f32 0.0, %v9631
    %v9633 = vpop.f32.mrb[0].mxu0
    %v9634 = vpop.f32.mrb[0].mxu0
    %v9635 = vadd.f32 0.0, %v9634
    %v9636 = vpop.f32.mrb[0].mxu0
    %9637 = vmatprep.mubr.bf16.mxu0 0
    %9638 = vmatmul.mubr.bf16.gmra.mrb[0].mxu0 %v9502
    %v9639 = vpop.f32.mrb[0].mxu0
    %v9640 = vadd.f32 0.0, %v9639
    %v9641 = vpop.f32.mrb[0].mxu0
    %v9642 = vpop.f32.mrb[0].mxu0
    %v9643 = vadd.f32 0.0, %v9642
    %v9644 = vpop.f32.mrb[0].mxu0
    %9645 = vmatprep.mubr.bf16.mxu0 0
    %9646 = vmatmul.mubr.bf16.gmra.mrb[0].mxu0 %v9505
    %v9647 = vpop.f32.mrb[0].mxu0
    %v9648 = vadd.f32 0.0, %v9647
    %v9649 = vpop.f32.mrb[0].mxu0
    %v9650 = vpop.f32.mrb[0].mxu0
    %v9651 = vadd.f32 0.0, %v9650
    %v9652 = vpop.f32.mrb[0].mxu0
    %9653 = vmatprep.mubr.bf16.mxu0 0
    %9654 = vmatmul.mubr.bf16.gmra.mrb[0].mxu0 %v9508
    %v9655 = vpop.f32.mrb[0].mxu0
    %v9656 = vadd.f32 0.0, %v9655
    %v9657 = vpop.f32.mrb[0].mxu0
    %v9658 = vpop.f32.mrb[0].mxu0
    %v9659 = vadd.f32 0.0, %v9658
    %v9660 = vpop.f32.mrb[0].mxu0
    %9661 = vmatprep.mubr.bf16.mxu0 0
    %9662 = vmatmul.mubr.bf16.gmra.mrb[0].mxu0 %v9511
    %v9663 = vpop.f32.mrb[0].mxu0
    %v9664 = vadd.f32 0.0, %v9663
    %v9665 = vpop.f32.mrb[0].mxu0
    %v9666 = vpop.f32.mrb[0].mxu0
    %v9667 = vadd.f32 0.0, %v9666
    %v9668 = vpop.f32.mrb[0].mxu0
    %9669 = vmatprep.mubr.bf16.mxu0 0
    %9670 = vmatmul.mubr.bf16.gmra.mrb[0].mxu0 %v9514
    %v9671 = vpop.f32.mrb[0].mxu0
    %v9672 = vadd.f32 0.0, %v9671
    %v9673 = vpop.f32.mrb[0].mxu0
    %v9674 = vpop.f32.mrb[0].mxu0
    %v9675 = vadd.f32 0.0, %v9674
    %v9676 = vpop.f32.mrb[0].mxu0
    %9677 = vmatprep.mubr.bf16.mxu0 0
    %9678 = vmatmul.mubr.bf16.gmra.mrb[0].mxu0 %v9517
    %v9679 = vpop.f32.mrb[0].mxu0
    %v9680 = vadd.f32 0.0, %v9679
    %v9681 = vpop.f32.mrb[0].mxu0
    %v9682 = vpop.f32.mrb[0].mxu0
    %v9683 = vadd.f32 0.0, %v9682
    %v9684 = vpop.f32.mrb[0].mxu0
    %9685 = vmatprep.mubr.bf16.mxu0 0
    %9686 = vmatmul.mubr.bf16.gmra.mrb[0].mxu0 %v9520
    %v9687 = vpop.f32.mrb[0].mxu0
    %v9688 = vadd.f32 0.0, %v9687
    %v9689 = vpop.f32.mrb[0].mxu0
    %v9690 = vpop.f32.mrb[0].mxu0
    %v9691 = vadd.f32 0.0, %v9690
    %v9692 = vpop.f32.mrb[0].mxu0
    %9693 = vmatprep.mubr.bf16.mxu0 0
    %9694 = vmatmul.mubr.bf16.gmra.mrb[0].mxu0 %v9523
    %v9695 = vpop.f32.mrb[0].mxu0
    %v9696 = vadd.f32 0.0, %v9695
    %v9697 = vpop.f32.mrb[0].mxu0
    %v9698 = vpop.f32.mrb[0].mxu0
    %v9699 = vadd.f32 0.0, %v9698
    %v9700 = vpop.f32.mrb[0].mxu0
    %9701 = vdwg.mxu0
    %v9702 = vadd.f32 %v9297, %v9560
    %v9703 = vadd.f32 %v9298, %v9563
    %v9704 = vadd.f32 %v9299, %v9568
    %v9705 = vadd.f32 %v9300, %v9571
    %v9706 = vadd.f32 %v9301, %v9576
    %v9707 = vadd.f32 %v9302, %v9579
    %v9708 = vadd.f32 %v9303, %v9584
    %v9709 = vadd.f32 %v9304, %v9587
    %v9710 = vadd.f32 %v9305, %v9592
    %v9711 = vadd.f32 %v9306, %v9595
    %v9712 = vadd.f32 %v9307, %v9600
    %v9713 = vadd.f32 %v9308, %v9603
    %v9714 = vadd.f32 %v9309, %v9608
    %v9715 = vadd.f32 %v9310, %v9611
    %v9716 = vadd.f32 %v9311, %v9616
    %v9717 = vadd.f32 %v9312, %v9619
    %v9718 = vadd.f32 %v9313, %v9624
    %v9719 = vadd.f32 %v9314, %v9627
    %v9720 = vadd.f32 %v9315, %v9632
    %v9721 = vadd.f32 %v9316, %v9635
    %v9722 = vadd.f32 %v9317, %v9640
    %v9723 = vadd.f32 %v9318, %v9643
    %v9724 = vadd.f32 %v9319, %v9648
    %v9725 = vadd.f32 %v9320, %v9651
    %v9726 = vadd.f32 %v9321, %v9656
    %v9727 = vadd.f32 %v9322, %v9659
    %v9728 = vadd.f32 %v9323, %v9664
    %v9729 = vadd.f32 %v9324, %v9667
    %v9730 = vadd.f32 %v9325, %v9672
    %v9731 = vadd.f32 %v9326, %v9675
    %v9732 = vadd.f32 %v9327, %v9680
    %v9733 = vadd.f32 %v9328, %v9683
    %v9734 = vadd.f32 %v9329, %v9688
    %v9735 = vadd.f32 %v9330, %v9691
    %v9736 = vadd.f32 %v9331, %v9696
    %v9737 = vadd.f32 %v9332, %v9699
    %v9738 = vpack.c.bf16 %v8114, %v8113
    %v9739 = vpack.c.bf16 %v8116, %v8115
    %v9740 = vpack.c.bf16 %v8118, %v8117
    %v9741 = vpack.c.bf16 %v8120, %v8119
    %v9742 = vpack.c.bf16 %v8122, %v8121
    %v9743 = vpack.c.bf16 %v8124, %v8123
    %v9744 = vpack.c.bf16 %v8126, %v8125
    %v9745 = vpack.c.bf16 %v8128, %v8127
    %v9746 = vpack.c.bf16 %v8130, %v8129
    %v9747 = vpack.c.bf16 %v8132, %v8131
    %v9748 = vpack.c.bf16 %v8134, %v8133
    %v9749 = vpack.c.bf16 %v8136, %v8135
    %v9750 = vpack.c.bf16 %v8138, %v8137
    %v9751 = vpack.c.bf16 %v8140, %v8139
    %v9752 = vpack.c.bf16 %v8142, %v8141
    %v9753 = vpack.c.bf16 %v8144, %v8143
    %v9754 = vpack.c.bf16 %v8146, %v8145
    %v9755 = vpack.c.bf16 %v8148, %v8147
    %v9760 = vunpack.c.l.b16 %v8166
    %v9761 = vunpack.c.l.b16 %v8167
    %v9762 = vunpack.c.l.b16 %v8168
    %v9763 = vunpack.c.l.b16 %v8169
    %v9764 = vpack.c.b16 %v9761, %v9760
    %v9765 = vpack.c.b16 %v9763, %v9762
    %v9769 = vsel %vm1597, %v9738, 0
    %v9772 = vsel %vm1597, %v9739, 0
    %v9775 = vsel %vm1597, %v9740, 0
    %v9778 = vsel %vm1597, %v9741, 0
    %v9781 = vsel %vm1597, %v9742, 0
    %v9784 = vsel %vm1597, %v9743, 0
    %v9787 = vsel %vm1597, %v9744, 0
    %v9790 = vsel %vm1597, %v9745, 0
    %v9793 = vsel %vm1597, %v9746, 0
    %v9796 = vsel %vm1597, %v9747, 0
    %v9799 = vsel %vm1597, %v9748, 0
    %v9802 = vsel %vm1597, %v9749, 0
    %v9805 = vsel %vm1597, %v9750, 0
    %v9808 = vsel %vm1597, %v9751, 0
    %v9811 = vsel %vm1597, %v9752, 0
    %v9814 = vsel %vm1597, %v9753, 0
    %v9817 = vsel %vm1597, %v9754, 0
    %v9820 = vsel %vm1597, %v9755, 0
    %9822 = vmatprep.subr.bf16.mxu0 0
    %9823 = vmatpush1.bf16.msra.mxu0 %v9764
    %9824 = vmatprep.subr.bf16.mxu0 0
    %9825 = vmatpush1.bf16.msra.mxu0 %v9765
    %9826 = vmatprep.subr.bf16.mxu0 0
    %9827 = vmatpush1.bf16.msra.mxu0 0
    %9828 = vmatprep.subr.bf16.mxu0 0
    %9829 = vmatpush1.bf16.msra.mxu0 0
    %9830 = vmatprep.subr.bf16.mxu0 0
    %9831 = vmatpush1.bf16.msra.mxu0 0
    %9832 = vmatprep.subr.bf16.mxu0 0
    %9833 = vmatpush1.bf16.msra.mxu0 0
    %9834 = vmatprep.subr.bf16.mxu0 0
    %9835 = vmatpush1.bf16.msra.mxu0 0
    %9836 = vmatprep.subr.bf16.mxu0 0
    %9837 = vmatpush1.bf16.msra.mxu0 0
    %9838 = vmatprep.subr.bf16.mxu0 0
    %9839 = vmatpush1.bf16.msra.mxu0 0
    %9840 = vmatprep.subr.bf16.mxu0 0
    %9841 = vmatpush1.bf16.msra.mxu0 0
    %9842 = vmatprep.subr.bf16.mxu0 0
    %9843 = vmatpush1.bf16.msra.mxu0 0
    %9844 = vmatprep.subr.bf16.mxu0 0
    %9845 = vmatpush1.bf16.msra.mxu0 0
    %9846 = vmatprep.subr.bf16.mxu0 0
    %9847 = vmatpush1.bf16.msra.mxu0 0
    %9848 = vmatprep.subr.bf16.mxu0 0
    %9849 = vmatpush1.bf16.msra.mxu0 0
    %9850 = vmatprep.subr.bf16.mxu0 0
    %9851 = vmatpush1.bf16.msra.mxu0 0
    %9852 = vmatprep.subr.bf16.mxu0 0
    %9853 = vmatpush1.bf16.msra.mxu0 0
    %9854 = vmatprep.mubr.bf16.mxu0 0
    %9855 = vmatmul.mubr.bf16.gmra.mrb[0].mxu0 %v9769
    %v9856 = vpop.f32.mrb[0].mxu0
    %v9857 = vadd.f32 0.0, %v9856
    %v9858 = vpop.f32.mrb[0].mxu0
    %v9859 = vpop.f32.mrb[0].mxu0
    %v9860 = vadd.f32 0.0, %v9859
    %v9861 = vpop.f32.mrb[0].mxu0
    %9862 = vmatprep.mubr.bf16.mxu0 0
    %9863 = vmatmul.mubr.bf16.gmra.mrb[0].mxu0 %v9772
    %v9864 = vpop.f32.mrb[0].mxu0
    %v9865 = vadd.f32 0.0, %v9864
    %v9866 = vpop.f32.mrb[0].mxu0
    %v9867 = vpop.f32.mrb[0].mxu0
    %v9868 = vadd.f32 0.0, %v9867
    %v9869 = vpop.f32.mrb[0].mxu0
    %9870 = vmatprep.mubr.bf16.mxu0 0
    %9871 = vmatmul.mubr.bf16.gmra.mrb[0].mxu0 %v9775
    %v9872 = vpop.f32.mrb[0].mxu0
    %v9873 = vadd.f32 0.0, %v9872
    %v9874 = vpop.f32.mrb[0].mxu0
    %v9875 = vpop.f32.mrb[0].mxu0
    %v9876 = vadd.f32 0.0, %v9875
    %v9877 = vpop.f32.mrb[0].mxu0
    %9878 = vmatprep.mubr.bf16.mxu0 0
    %9879 = vmatmul.mubr.bf16.gmra.mrb[0].mxu0 %v9778
    %v9880 = vpop.f32.mrb[0].mxu0
    %v9881 = vadd.f32 0.0, %v9880
    %v9882 = vpop.f32.mrb[0].mxu0
    %v9883 = vpop.f32.mrb[0].mxu0
    %v9884 = vadd.f32 0.0, %v9883
    %v9885 = vpop.f32.mrb[0].mxu0
    %9886 = vmatprep.mubr.bf16.mxu0 0
    %9887 = vmatmul.mubr.bf16.gmra.mrb[0].mxu0 %v9781
    %v9888 = vpop.f32.mrb[0].mxu0
    %v9889 = vadd.f32 0.0, %v9888
    %v9890 = vpop.f32.mrb[0].mxu0
    %v9891 = vpop.f32.mrb[0].mxu0
    %v9892 = vadd.f32 0.0, %v9891
    %v9893 = vpop.f32.mrb[0].mxu0
    %9894 = vmatprep.mubr.bf16.mxu0 0
    %9895 = vmatmul.mubr.bf16.gmra.mrb[0].mxu0 %v9784
    %v9896 = vpop.f32.mrb[0].mxu0
    %v9897 = vadd.f32 0.0, %v9896
    %v9898 = vpop.f32.mrb[0].mxu0
    %v9899 = vpop.f32.mrb[0].mxu0
    %v9900 = vadd.f32 0.0, %v9899
    %v9901 = vpop.f32.mrb[0].mxu0
    %9902 = vmatprep.mubr.bf16.mxu0 0
    %9903 = vmatmul.mubr.bf16.gmra.mrb[0].mxu0 %v9787
    %v9904 = vpop.f32.mrb[0].mxu0
    %v9905 = vadd.f32 0.0, %v9904
    %v9906 = vpop.f32.mrb[0].mxu0
    %v9907 = vpop.f32.mrb[0].mxu0
    %v9908 = vadd.f32 0.0, %v9907
    %v9909 = vpop.f32.mrb[0].mxu0
    %9910 = vmatprep.mubr.bf16.mxu0 0
    %9911 = vmatmul.mubr.bf16.gmra.mrb[0].mxu0 %v9790
    %v9912 = vpop.f32.mrb[0].mxu0
    %v9913 = vadd.f32 0.0, %v9912
    %v9914 = vpop.f32.mrb[0].mxu0
    %v9915 = vpop.f32.mrb[0].mxu0
    %v9916 = vadd.f32 0.0, %v9915
    %v9917 = vpop.f32.mrb[0].mxu0
    %9918 = vmatprep.mubr.bf16.mxu0 0
    %9919 = vmatmul.mubr.bf16.gmra.mrb[0].mxu0 %v9793
    %v9920 = vpop.f32.mrb[0].mxu0
    %v9921 = vadd.f32 0.0, %v9920
    %v9922 = vpop.f32.mrb[0].mxu0
    %v9923 = vpop.f32.mrb[0].mxu0
    %v9924 = vadd.f32 0.0, %v9923
    %v9925 = vpop.f32.mrb[0].mxu0
    %9926 = vmatprep.mubr.bf16.mxu0 0
    %9927 = vmatmul.mubr.bf16.gmra.mrb[0].mxu0 %v9796
    %v9928 = vpop.f32.mrb[0].mxu0
    %v9929 = vadd.f32 0.0, %v9928
    %v9930 = vpop.f32.mrb[0].mxu0
    %v9931 = vpop.f32.mrb[0].mxu0
    %v9932 = vadd.f32 0.0, %v9931
    %v9933 = vpop.f32.mrb[0].mxu0
    %9934 = vmatprep.mubr.bf16.mxu0 0
    %9935 = vmatmul.mubr.bf16.gmra.mrb[0].mxu0 %v9799
    %v9936 = vpop.f32.mrb[0].mxu0
    %v9937 = vadd.f32 0.0, %v9936
    %v9938 = vpop.f32.mrb[0].mxu0
    %v9939 = vpop.f32.mrb[0].mxu0
    %v9940 = vadd.f32 0.0, %v9939
    %v9941 = vpop.f32.mrb[0].mxu0
    %9942 = vmatprep.mubr.bf16.mxu0 0
    %9943 = vmatmul.mubr.bf16.gmra.mrb[0].mxu0 %v9802
    %v9944 = vpop.f32.mrb[0].mxu0
    %v9945 = vadd.f32 0.0, %v9944
    %v9946 = vpop.f32.mrb[0].mxu0
    %v9947 = vpop.f32.mrb[0].mxu0
    %v9948 = vadd.f32 0.0, %v9947
    %v9949 = vpop.f32.mrb[0].mxu0
    %9950 = vmatprep.mubr.bf16.mxu0 0
    %9951 = vmatmul.mubr.bf16.gmra.mrb[0].mxu0 %v9805
    %v9952 = vpop.f32.mrb[0].mxu0
    %v9953 = vadd.f32 0.0, %v9952
    %v9954 = vpop.f32.mrb[0].mxu0
    %v9955 = vpop.f32.mrb[0].mxu0
    %v9956 = vadd.f32 0.0, %v9955
    %v9957 = vpop.f32.mrb[0].mxu0
    %9958 = vmatprep.mubr.bf16.mxu0 0
    %9959 = vmatmul.mubr.bf16.gmra.mrb[0].mxu0 %v9808
    %v9960 = vpop.f32.mrb[0].mxu0
    %v9961 = vadd.f32 0.0, %v9960
    %v9962 = vpop.f32.mrb[0].mxu0
    %v9963 = vpop.f32.mrb[0].mxu0
    %v9964 = vadd.f32 0.0, %v9963
    %v9965 = vpop.f32.mrb[0].mxu0
    %9966 = vmatprep.mubr.bf16.mxu0 0
    %9967 = vmatmul.mubr.bf16.gmra.mrb[0].mxu0 %v9811
    %v9968 = vpop.f32.mrb[0].mxu0
    %v9969 = vadd.f32 0.0, %v9968
    %v9970 = vpop.f32.mrb[0].mxu0
    %v9971 = vpop.f32.mrb[0].mxu0
    %v9972 = vadd.f32 0.0, %v9971
    %v9973 = vpop.f32.mrb[0].mxu0
    %9974 = vmatprep.mubr.bf16.mxu0 0
    %9975 = vmatmul.mubr.bf16.gmra.mrb[0].mxu0 %v9814
    %v9976 = vpop.f32.mrb[0].mxu0
    %v9977 = vadd.f32 0.0, %v9976
    %v9978 = vpop.f32.mrb[0].mxu0
    %v9979 = vpop.f32.mrb[0].mxu0
    %v9980 = vadd.f32 0.0, %v9979
    %v9981 = vpop.f32.mrb[0].mxu0
    %9982 = vmatprep.mubr.bf16.mxu0 0
    %9983 = vmatmul.mubr.bf16.gmra.mrb[0].mxu0 %v9817
    %v9984 = vpop.f32.mrb[0].mxu0
    %v9985 = vadd.f32 0.0, %v9984
    %v9986 = vpop.f32.mrb[0].mxu0
    %v9987 = vpop.f32.mrb[0].mxu0
    %v9988 = vadd.f32 0.0, %v9987
    %v9989 = vpop.f32.mrb[0].mxu0
    %9990 = vmatprep.mubr.bf16.mxu0 0
    %9991 = vmatmul.mubr.bf16.gmra.mrb[0].mxu0 %v9820
    %v9992 = vpop.f32.mrb[0].mxu0
    %v9993 = vadd.f32 0.0, %v9992
    %v9994 = vpop.f32.mrb[0].mxu0
    %v9995 = vpop.f32.mrb[0].mxu0
    %v9996 = vadd.f32 0.0, %v9995
    %v9997 = vpop.f32.mrb[0].mxu0
    %9998 = vdwg.mxu0
    %v9999 = vadd.f32 %v9702, %v9857
    %v10000 = vadd.f32 %v9703, %v9860
    %v10001 = vadd.f32 %v9704, %v9865
    %v10002 = vadd.f32 %v9705, %v9868
    %v10003 = vadd.f32 %v9706, %v9873
    %v10004 = vadd.f32 %v9707, %v9876
    %v10005 = vadd.f32 %v9708, %v9881
    %v10006 = vadd.f32 %v9709, %v9884
    %v10007 = vadd.f32 %v9710, %v9889
    %v10008 = vadd.f32 %v9711, %v9892
    %v10009 = vadd.f32 %v9712, %v9897
    %v10010 = vadd.f32 %v9713, %v9900
    %v10011 = vadd.f32 %v9714, %v9905
    %v10012 = vadd.f32 %v9715, %v9908
    %v10013 = vadd.f32 %v9716, %v9913
    %v10014 = vadd.f32 %v9717, %v9916
    %v10015 = vadd.f32 %v9718, %v9921
    %v10016 = vadd.f32 %v9719, %v9924
    %v10017 = vadd.f32 %v9720, %v9929
    %v10018 = vadd.f32 %v9721, %v9932
    %v10019 = vadd.f32 %v9722, %v9937
    %v10020 = vadd.f32 %v9723, %v9940
    %v10021 = vadd.f32 %v9724, %v9945
    %v10022 = vadd.f32 %v9725, %v9948
    %v10023 = vadd.f32 %v9726, %v9953
    %v10024 = vadd.f32 %v9727, %v9956
    %v10025 = vadd.f32 %v9728, %v9961
    %v10026 = vadd.f32 %v9729, %v9964
    %v10027 = vadd.f32 %v9730, %v9969
    %v10028 = vadd.f32 %v9731, %v9972
    %v10029 = vadd.f32 %v9732, %v9977
    %v10030 = vadd.f32 %v9733, %v9980
    %v10031 = vadd.f32 %v9734, %v9985
    %v10032 = vadd.f32 %v9735, %v9988
    %v10033 = vadd.f32 %v9736, %v9993
    %v10034 = vadd.f32 %v9737, %v9996
    %v10035 = vrot.slane %v8113, 1
    %v10036 = vrot.slane %v8114, 1
    %v10037 = vrot.slane %v8115, 1
    %v10038 = vrot.slane %v8116, 1
    %v10039 = vrot.slane %v8117, 1
    %v10040 = vrot.slane %v8118, 1
    %v10041 = vrot.slane %v8119, 1
    %v10042 = vrot.slane %v8120, 1
    %v10043 = vrot.slane %v8121, 1
    %v10044 = vrot.slane %v8122, 1
    %v10045 = vrot.slane %v8123, 1
    %v10046 = vrot.slane %v8124, 1
    %v10047 = vrot.slane %v8125, 1
    %v10048 = vrot.slane %v8126, 1
    %v10049 = vrot.slane %v8127, 1
    %v10050 = vrot.slane %v8128, 1
    %v10051 = vrot.slane %v8129, 1
    %v10052 = vrot.slane %v8130, 1
    %v10053 = vrot.slane %v8131, 1
    %v10054 = vrot.slane %v8132, 1
    %v10055 = vrot.slane %v8133, 1
    %v10056 = vrot.slane %v8134, 1
    %v10057 = vrot.slane %v8135, 1
    %v10058 = vrot.slane %v8136, 1
    %v10059 = vrot.slane %v8137, 1
    %v10060 = vrot.slane %v8138, 1
    %v10061 = vrot.slane %v8139, 1
    %v10062 = vrot.slane %v8140, 1
    %v10063 = vrot.slane %v8141, 1
    %v10064 = vrot.slane %v8142, 1
    %v10065 = vrot.slane %v8143, 1
    %v10066 = vrot.slane %v8144, 1
    %v10067 = vrot.slane %v8145, 1
    %v10068 = vrot.slane %v8146, 1
    %v10069 = vrot.slane %v8147, 1
    %v10070 = vrot.slane %v8148, 1
    %v10071 = vsel %vm3217, %v10069, %v10070
    %v10072 = vsel %vm3217, %v10068, %v10069
    %v10073 = vsel %vm3217, %v10067, %v10068
    %v10074 = vsel %vm3217, %v10066, %v10067
    %v10075 = vsel %vm3217, %v10065, %v10066
    %v10076 = vsel %vm3217, %v10064, %v10065
    %v10077 = vsel %vm3217, %v10063, %v10064
    %v10078 = vsel %vm3217, %v10062, %v10063
    %v10079 = vsel %vm3217, %v10061, %v10062
    %v10080 = vsel %vm3217, %v10060, %v10061
    %v10081 = vsel %vm3217, %v10059, %v10060
    %v10082 = vsel %vm3217, %v10058, %v10059
    %v10083 = vsel %vm3217, %v10057, %v10058
    %v10084 = vsel %vm3217, %v10056, %v10057
    %v10085 = vsel %vm3217, %v10055, %v10056
    %v10086 = vsel %vm3217, %v10054, %v10055
    %v10087 = vsel %vm3217, %v10053, %v10054
    %v10088 = vsel %vm3217, %v10052, %v10053
    %v10089 = vsel %vm3217, %v10051, %v10052
    %v10090 = vsel %vm3217, %v10050, %v10051
    %v10091 = vsel %vm3217, %v10049, %v10050
    %v10092 = vsel %vm3217, %v10048, %v10049
    %v10093 = vsel %vm3217, %v10047, %v10048
    %v10094 = vsel %vm3217, %v10046, %v10047
    %v10095 = vsel %vm3217, %v10045, %v10046
    %v10096 = vsel %vm3217, %v10044, %v10045
    %v10097 = vsel %vm3217, %v10043, %v10044
    %v10098 = vsel %vm3217, %v10042, %v10043
    %v10099 = vsel %vm3217, %v10041, %v10042
    %v10100 = vsel %vm3217, %v10040, %v10041
    %v10101 = vsel %vm3217, %v10039, %v10040
    %v10102 = vsel %vm3217, %v10038, %v10039
    %v10103 = vsel %vm3217, %v10037, %v10038
    %v10104 = vsel %vm3217, %v10036, %v10037
    %v10105 = vsel %vm3217, %v10035, %v10036
    %v10106 = vsel %vm3217, %v10070, %v10035
    %v10107 = vmul.f32 %v10105, %v681
    %v10108 = vmul.f32 %v10104, %v685
    %v10109 = vmul.f32 %v10103, %v689
    %v10110 = vmul.f32 %v10102, %v693
    %v10111 = vmul.f32 %v10101, %v697
    %v10112 = vmul.f32 %v10100, %v701
    %v10113 = vmul.f32 %v10099, %v705
    %v10114 = vmul.f32 %v10098, %v709
    %v10115 = vmul.f32 %v10097, %v713
    %v10116 = vmul.f32 %v10096, %v717
    %v10117 = vmul.f32 %v10095, %v721
    %v10118 = vmul.f32 %v10094, %v725
    %v10119 = vmul.f32 %v10093, %v729
    %v10120 = vmul.f32 %v10092, %v733
    %v10121 = vmul.f32 %v10091, %v737
    %v10122 = vmul.f32 %v10090, %v741
    %v10123 = vmul.f32 %v10089, %v745
    %v10124 = vmul.f32 %v10088, %v749
    %v10125 = vmul.f32 %v10087, %v753
    %v10126 = vmul.f32 %v10086, %v757
    %v10127 = vmul.f32 %v10085, %v761
    %v10128 = vmul.f32 %v10084, %v765
    %v10129 = vmul.f32 %v10083, %v769
    %v10130 = vmul.f32 %v10082, %v773
    %v10131 = vmul.f32 %v10081, %v777
    %v10132 = vmul.f32 %v10080, %v781
    %v10133 = vmul.f32 %v10079, %v785
    %v10134 = vmul.f32 %v10078, %v789
    %v10135 = vmul.f32 %v10077, %v793
    %v10136 = vmul.f32 %v10076, %v797
    %v10137 = vmul.f32 %v10075, %v801
    %v10138 = vmul.f32 %v10074, %v805
    %v10139 = vmul.f32 %v10073, %v809
    %v10140 = vmul.f32 %v10072, %v813
    %v10141 = vmul.f32 %v10071, %v817
    %v10142 = vmul.f32 %v10106, %v821
    %v10143 = vpack.c.bf16 %v10108, %v10107
    %v10144 = vpack.c.bf16 %v10110, %v10109
    %v10145 = vpack.c.bf16 %v10112, %v10111
    %v10146 = vpack.c.bf16 %v10114, %v10113
    %v10147 = vpack.c.bf16 %v10116, %v10115
    %v10148 = vpack.c.bf16 %v10118, %v10117
    %v10149 = vpack.c.bf16 %v10120, %v10119
    %v10150 = vpack.c.bf16 %v10122, %v10121
    %v10151 = vpack.c.bf16 %v10124, %v10123
    %v10152 = vpack.c.bf16 %v10126, %v10125
    %v10153 = vpack.c.bf16 %v10128, %v10127
    %v10154 = vpack.c.bf16 %v10130, %v10129
    %v10155 = vpack.c.bf16 %v10132, %v10131
    %v10156 = vpack.c.bf16 %v10134, %v10133
    %v10157 = vpack.c.bf16 %v10136, %v10135
    %v10158 = vpack.c.bf16 %v10138, %v10137
    %v10159 = vpack.c.bf16 %v10140, %v10139
    %v10160 = vpack.c.bf16 %v10142, %v10141
    %v10165 = vunpack.c.l.b16 %v8170
    %v10166 = vunpack.c.l.b16 %v8171
    %v10167 = vunpack.c.l.b16 %v8172
    %v10168 = vunpack.c.l.b16 %v8173
    %v10169 = vpack.c.b16 %v10166, %v10165
    %v10170 = vpack.c.b16 %v10168, %v10167
    %v10174 = vsel %vm1597, %v10143, 0
    %v10177 = vsel %vm1597, %v10144, 0
    %v10180 = vsel %vm1597, %v10145, 0
    %v10183 = vsel %vm1597, %v10146, 0
    %v10186 = vsel %vm1597, %v10147, 0
    %v10189 = vsel %vm1597, %v10148, 0
    %v10192 = vsel %vm1597, %v10149, 0
    %v10195 = vsel %vm1597, %v10150, 0
    %v10198 = vsel %vm1597, %v10151, 0
    %v10201 = vsel %vm1597, %v10152, 0
    %v10204 = vsel %vm1597, %v10153, 0
    %v10207 = vsel %vm1597, %v10154, 0
    %v10210 = vsel %vm1597, %v10155, 0
    %v10213 = vsel %vm1597, %v10156, 0
    %v10216 = vsel %vm1597, %v10157, 0
    %v10219 = vsel %vm1597, %v10158, 0
    %v10222 = vsel %vm1597, %v10159, 0
    %v10225 = vsel %vm1597, %v10160, 0
    %10227 = vmatprep.subr.bf16.mxu0 0
    %10228 = vmatpush1.bf16.msra.mxu0 %v10169
    %10229 = vmatprep.subr.bf16.mxu0 0
    %10230 = vmatpush1.bf16.msra.mxu0 %v10170
    %10231 = vmatprep.subr.bf16.mxu0 0
    %10232 = vmatpush1.bf16.msra.mxu0 0
    %10233 = vmatprep.subr.bf16.mxu0 0
    %10234 = vmatpush1.bf16.msra.mxu0 0
    %10235 = vmatprep.subr.bf16.mxu0 0
    %10236 = vmatpush1.bf16.msra.mxu0 0
    %10237 = vmatprep.subr.bf16.mxu0 0
    %10238 = vmatpush1.bf16.msra.mxu0 0
    %10239 = vmatprep.subr.bf16.mxu0 0
    %10240 = vmatpush1.bf16.msra.mxu0 0
    %10241 = vmatprep.subr.bf16.mxu0 0
    %10242 = vmatpush1.bf16.msra.mxu0 0
    %10243 = vmatprep.subr.bf16.mxu0 0
    %10244 = vmatpush1.bf16.msra.mxu0 0
    %10245 = vmatprep.subr.bf16.mxu0 0
    %10246 = vmatpush1.bf16.msra.mxu0 0
    %10247 = vmatprep.subr.bf16.mxu0 0
    %10248 = vmatpush1.bf16.msra.mxu0 0
    %10249 = vmatprep.subr.bf16.mxu0 0
    %10250 = vmatpush1.bf16.msra.mxu0 0
    %10251 = vmatprep.subr.bf16.mxu0 0
    %10252 = vmatpush1.bf16.msra.mxu0 0
    %10253 = vmatprep.subr.bf16.mxu0 0
    %10254 = vmatpush1.bf16.msra.mxu0 0
    %10255 = vmatprep.subr.bf16.mxu0 0
    %10256 = vmatpush1.bf16.msra.mxu0 0
    %10257 = vmatprep.subr.bf16.mxu0 0
    %10258 = vmatpush1.bf16.msra.mxu0 0
    %10259 = vmatprep.mubr.bf16.mxu0 0
    %10260 = vmatmul.mubr.bf16.gmra.mrb[0].mxu0 %v10174
    %v10261 = vpop.f32.mrb[0].mxu0
    %v10262 = vadd.f32 0.0, %v10261
    %v10263 = vpop.f32.mrb[0].mxu0
    %v10264 = vpop.f32.mrb[0].mxu0
    %v10265 = vadd.f32 0.0, %v10264
    %v10266 = vpop.f32.mrb[0].mxu0
    %10267 = vmatprep.mubr.bf16.mxu0 0
    %10268 = vmatmul.mubr.bf16.gmra.mrb[0].mxu0 %v10177
    %v10269 = vpop.f32.mrb[0].mxu0
    %v10270 = vadd.f32 0.0, %v10269
    %v10271 = vpop.f32.mrb[0].mxu0
    %v10272 = vpop.f32.mrb[0].mxu0
    %v10273 = vadd.f32 0.0, %v10272
    %v10274 = vpop.f32.mrb[0].mxu0
    %10275 = vmatprep.mubr.bf16.mxu0 0
    %10276 = vmatmul.mubr.bf16.gmra.mrb[0].mxu0 %v10180
    %v10277 = vpop.f32.mrb[0].mxu0
    %v10278 = vadd.f32 0.0, %v10277
    %v10279 = vpop.f32.mrb[0].mxu0
    %v10280 = vpop.f32.mrb[0].mxu0
    %v10281 = vadd.f32 0.0, %v10280
    %v10282 = vpop.f32.mrb[0].mxu0
    %10283 = vmatprep.mubr.bf16.mxu0 0
    %10284 = vmatmul.mubr.bf16.gmra.mrb[0].mxu0 %v10183
    %v10285 = vpop.f32.mrb[0].mxu0
    %v10286 = vadd.f32 0.0, %v10285
    %v10287 = vpop.f32.mrb[0].mxu0
    %v10288 = vpop.f32.mrb[0].mxu0
    %v10289 = vadd.f32 0.0, %v10288
    %v10290 = vpop.f32.mrb[0].mxu0
    %10291 = vmatprep.mubr.bf16.mxu0 0
    %10292 = vmatmul.mubr.bf16.gmra.mrb[0].mxu0 %v10186
    %v10293 = vpop.f32.mrb[0].mxu0
    %v10294 = vadd.f32 0.0, %v10293
    %v10295 = vpop.f32.mrb[0].mxu0
    %v10296 = vpop.f32.mrb[0].mxu0
    %v10297 = vadd.f32 0.0, %v10296
    %v10298 = vpop.f32.mrb[0].mxu0
    %10299 = vmatprep.mubr.bf16.mxu0 0
    %10300 = vmatmul.mubr.bf16.gmra.mrb[0].mxu0 %v10189
    %v10301 = vpop.f32.mrb[0].mxu0
    %v10302 = vadd.f32 0.0, %v10301
    %v10303 = vpop.f32.mrb[0].mxu0
    %v10304 = vpop.f32.mrb[0].mxu0
    %v10305 = vadd.f32 0.0, %v10304
    %v10306 = vpop.f32.mrb[0].mxu0
    %10307 = vmatprep.mubr.bf16.mxu0 0
    %10308 = vmatmul.mubr.bf16.gmra.mrb[0].mxu0 %v10192
    %v10309 = vpop.f32.mrb[0].mxu0
    %v10310 = vadd.f32 0.0, %v10309
    %v10311 = vpop.f32.mrb[0].mxu0
    %v10312 = vpop.f32.mrb[0].mxu0
    %v10313 = vadd.f32 0.0, %v10312
    %v10314 = vpop.f32.mrb[0].mxu0
    %10315 = vmatprep.mubr.bf16.mxu0 0
    %10316 = vmatmul.mubr.bf16.gmra.mrb[0].mxu0 %v10195
    %v10317 = vpop.f32.mrb[0].mxu0
    %v10318 = vadd.f32 0.0, %v10317
    %v10319 = vpop.f32.mrb[0].mxu0
    %v10320 = vpop.f32.mrb[0].mxu0
    %v10321 = vadd.f32 0.0, %v10320
    %v10322 = vpop.f32.mrb[0].mxu0
    %10323 = vmatprep.mubr.bf16.mxu0 0
    %10324 = vmatmul.mubr.bf16.gmra.mrb[0].mxu0 %v10198
    %v10325 = vpop.f32.mrb[0].mxu0
    %v10326 = vadd.f32 0.0, %v10325
    %v10327 = vpop.f32.mrb[0].mxu0
    %v10328 = vpop.f32.mrb[0].mxu0
    %v10329 = vadd.f32 0.0, %v10328
    %v10330 = vpop.f32.mrb[0].mxu0
    %10331 = vmatprep.mubr.bf16.mxu0 0
    %10332 = vmatmul.mubr.bf16.gmra.mrb[0].mxu0 %v10201
    %v10333 = vpop.f32.mrb[0].mxu0
    %v10334 = vadd.f32 0.0, %v10333
    %v10335 = vpop.f32.mrb[0].mxu0
    %v10336 = vpop.f32.mrb[0].mxu0
    %v10337 = vadd.f32 0.0, %v10336
    %v10338 = vpop.f32.mrb[0].mxu0
    %10339 = vmatprep.mubr.bf16.mxu0 0
    %10340 = vmatmul.mubr.bf16.gmra.mrb[0].mxu0 %v10204
    %v10341 = vpop.f32.mrb[0].mxu0
    %v10342 = vadd.f32 0.0, %v10341
    %v10343 = vpop.f32.mrb[0].mxu0
    %v10344 = vpop.f32.mrb[0].mxu0
    %v10345 = vadd.f32 0.0, %v10344
    %v10346 = vpop.f32.mrb[0].mxu0
    %10347 = vmatprep.mubr.bf16.mxu0 0
    %10348 = vmatmul.mubr.bf16.gmra.mrb[0].mxu0 %v10207
    %v10349 = vpop.f32.mrb[0].mxu0
    %v10350 = vadd.f32 0.0, %v10349
    %v10351 = vpop.f32.mrb[0].mxu0
    %v10352 = vpop.f32.mrb[0].mxu0
    %v10353 = vadd.f32 0.0, %v10352
    %v10354 = vpop.f32.mrb[0].mxu0
    %10355 = vmatprep.mubr.bf16.mxu0 0
    %10356 = vmatmul.mubr.bf16.gmra.mrb[0].mxu0 %v10210
    %v10357 = vpop.f32.mrb[0].mxu0
    %v10358 = vadd.f32 0.0, %v10357
    %v10359 = vpop.f32.mrb[0].mxu0
    %v10360 = vpop.f32.mrb[0].mxu0
    %v10361 = vadd.f32 0.0, %v10360
    %v10362 = vpop.f32.mrb[0].mxu0
    %10363 = vmatprep.mubr.bf16.mxu0 0
    %10364 = vmatmul.mubr.bf16.gmra.mrb[0].mxu0 %v10213
    %v10365 = vpop.f32.mrb[0].mxu0
    %v10366 = vadd.f32 0.0, %v10365
    %v10367 = vpop.f32.mrb[0].mxu0
    %v10368 = vpop.f32.mrb[0].mxu0
    %v10369 = vadd.f32 0.0, %v10368
    %v10370 = vpop.f32.mrb[0].mxu0
    %10371 = vmatprep.mubr.bf16.mxu0 0
    %10372 = vmatmul.mubr.bf16.gmra.mrb[0].mxu0 %v10216
    %v10373 = vpop.f32.mrb[0].mxu0
    %v10374 = vadd.f32 0.0, %v10373
    %v10375 = vpop.f32.mrb[0].mxu0
    %v10376 = vpop.f32.mrb[0].mxu0
    %v10377 = vadd.f32 0.0, %v10376
    %v10378 = vpop.f32.mrb[0].mxu0
    %10379 = vmatprep.mubr.bf16.mxu0 0
    %10380 = vmatmul.mubr.bf16.gmra.mrb[0].mxu0 %v10219
    %v10381 = vpop.f32.mrb[0].mxu0
    %v10382 = vadd.f32 0.0, %v10381
    %v10383 = vpop.f32.mrb[0].mxu0
    %v10384 = vpop.f32.mrb[0].mxu0
    %v10385 = vadd.f32 0.0, %v10384
    %v10386 = vpop.f32.mrb[0].mxu0
    %10387 = vmatprep.mubr.bf16.mxu0 0
    %10388 = vmatmul.mubr.bf16.gmra.mrb[0].mxu0 %v10222
    %v10389 = vpop.f32.mrb[0].mxu0
    %v10390 = vadd.f32 0.0, %v10389
    %v10391 = vpop.f32.mrb[0].mxu0
    %v10392 = vpop.f32.mrb[0].mxu0
    %v10393 = vadd.f32 0.0, %v10392
    %v10394 = vpop.f32.mrb[0].mxu0
    %10395 = vmatprep.mubr.bf16.mxu0 0
    %10396 = vmatmul.mubr.bf16.gmra.mrb[0].mxu0 %v10225
    %v10397 = vpop.f32.mrb[0].mxu0
    %v10398 = vadd.f32 0.0, %v10397
    %v10399 = vpop.f32.mrb[0].mxu0
    %v10400 = vpop.f32.mrb[0].mxu0
    %v10401 = vadd.f32 0.0, %v10400
    %v10402 = vpop.f32.mrb[0].mxu0
    %10403 = vdwg.mxu0
    %v10404 = vadd.f32 %v9999, %v10262
    %v10405 = vadd.f32 %v10000, %v10265
    %v10406 = vadd.f32 %v10001, %v10270
    %v10407 = vadd.f32 %v10002, %v10273
    %v10408 = vadd.f32 %v10003, %v10278
    %v10409 = vadd.f32 %v10004, %v10281
    %v10410 = vadd.f32 %v10005, %v10286
    %v10411 = vadd.f32 %v10006, %v10289
    %v10412 = vadd.f32 %v10007, %v10294
    %v10413 = vadd.f32 %v10008, %v10297
    %v10414 = vadd.f32 %v10009, %v10302
    %v10415 = vadd.f32 %v10010, %v10305
    %v10416 = vadd.f32 %v10011, %v10310
    %v10417 = vadd.f32 %v10012, %v10313
    %v10418 = vadd.f32 %v10013, %v10318
    %v10419 = vadd.f32 %v10014, %v10321
    %v10420 = vadd.f32 %v10015, %v10326
    %v10421 = vadd.f32 %v10016, %v10329
    %v10422 = vadd.f32 %v10017, %v10334
    %v10423 = vadd.f32 %v10018, %v10337
    %v10424 = vadd.f32 %v10019, %v10342
    %v10425 = vadd.f32 %v10020, %v10345
    %v10426 = vadd.f32 %v10021, %v10350
    %v10427 = vadd.f32 %v10022, %v10353
    %v10428 = vadd.f32 %v10023, %v10358
    %v10429 = vadd.f32 %v10024, %v10361
    %v10430 = vadd.f32 %v10025, %v10366
    %v10431 = vadd.f32 %v10026, %v10369
    %v10432 = vadd.f32 %v10027, %v10374
    %v10433 = vadd.f32 %v10028, %v10377
    %v10434 = vadd.f32 %v10029, %v10382
    %v10435 = vadd.f32 %v10030, %v10385
    %v10436 = vadd.f32 %v10031, %v10390
    %v10437 = vadd.f32 %v10032, %v10393
    %v10438 = vadd.f32 %v10033, %v10398
    %v10439 = vadd.f32 %v10034, %v10401
    %v10440 = vmul.f32 %v8259, %v825
    %v10441 = vmul.f32 %v8258, %v829
    %v10442 = vmul.f32 %v8257, %v833
    %v10443 = vmul.f32 %v8256, %v837
    %v10444 = vmul.f32 %v8255, %v841
    %v10445 = vmul.f32 %v8254, %v845
    %v10446 = vmul.f32 %v8253, %v849
    %v10447 = vmul.f32 %v8252, %v853
    %v10448 = vmul.f32 %v8251, %v857
    %v10449 = vmul.f32 %v8250, %v861
    %v10450 = vmul.f32 %v8249, %v865
    %v10451 = vmul.f32 %v8248, %v869
    %v10452 = vmul.f32 %v8247, %v873
    %v10453 = vmul.f32 %v8246, %v877
    %v10454 = vmul.f32 %v8245, %v881
    %v10455 = vmul.f32 %v8244, %v885
    %v10456 = vmul.f32 %v8243, %v889
    %v10457 = vmul.f32 %v8242, %v893
    %v10458 = vmul.f32 %v8241, %v897
    %v10459 = vmul.f32 %v8240, %v901
    %v10460 = vmul.f32 %v8239, %v905
    %v10461 = vmul.f32 %v8238, %v909
    %v10462 = vmul.f32 %v8237, %v913
    %v10463 = vmul.f32 %v8236, %v917
    %v10464 = vmul.f32 %v8235, %v921
    %v10465 = vmul.f32 %v8234, %v925
    %v10466 = vmul.f32 %v8233, %v929
    %v10467 = vmul.f32 %v8232, %v933
    %v10468 = vmul.f32 %v8231, %v937
    %v10469 = vmul.f32 %v8230, %v941
    %v10470 = vmul.f32 %v8229, %v945
    %v10471 = vmul.f32 %v8228, %v949
    %v10472 = vmul.f32 %v8227, %v953
    %v10473 = vmul.f32 %v8226, %v957
    %v10474 = vmul.f32 %v8261, %v961
    %v10475 = vmul.f32 %v8260, %v965
    %v10476 = vpack.c.bf16 %v10441, %v10440
    %v10477 = vpack.c.bf16 %v10443, %v10442
    %v10478 = vpack.c.bf16 %v10445, %v10444
    %v10479 = vpack.c.bf16 %v10447, %v10446
    %v10480 = vpack.c.bf16 %v10449, %v10448
    %v10481 = vpack.c.bf16 %v10451, %v10450
    %v10482 = vpack.c.bf16 %v10453, %v10452
    %v10483 = vpack.c.bf16 %v10455, %v10454
    %v10484 = vpack.c.bf16 %v10457, %v10456
    %v10485 = vpack.c.bf16 %v10459, %v10458
    %v10486 = vpack.c.bf16 %v10461, %v10460
    %v10487 = vpack.c.bf16 %v10463, %v10462
    %v10488 = vpack.c.bf16 %v10465, %v10464
    %v10489 = vpack.c.bf16 %v10467, %v10466
    %v10490 = vpack.c.bf16 %v10469, %v10468
    %v10491 = vpack.c.bf16 %v10471, %v10470
    %v10492 = vpack.c.bf16 %v10473, %v10472
    %v10493 = vpack.c.bf16 %v10475, %v10474
    %v10498 = vunpack.c.l.b16 %v8174
    %v10499 = vunpack.c.l.b16 %v8175
    %v10500 = vunpack.c.l.b16 %v8176
    %v10501 = vunpack.c.l.b16 %v8177
    %v10502 = vpack.c.b16 %v10499, %v10498
    %v10503 = vpack.c.b16 %v10501, %v10500
    %v10507 = vsel %vm1597, %v10476, 0
    %v10510 = vsel %vm1597, %v10477, 0
    %v10513 = vsel %vm1597, %v10478, 0
    %v10516 = vsel %vm1597, %v10479, 0
    %v10519 = vsel %vm1597, %v10480, 0
    %v10522 = vsel %vm1597, %v10481, 0
    %v10525 = vsel %vm1597, %v10482, 0
    %v10528 = vsel %vm1597, %v10483, 0
    %v10531 = vsel %vm1597, %v10484, 0
    %v10534 = vsel %vm1597, %v10485, 0
    %v10537 = vsel %vm1597, %v10486, 0
    %v10540 = vsel %vm1597, %v10487, 0
    %v10543 = vsel %vm1597, %v10488, 0
    %v10546 = vsel %vm1597, %v10489, 0
    %v10549 = vsel %vm1597, %v10490, 0
    %v10552 = vsel %vm1597, %v10491, 0
    %v10555 = vsel %vm1597, %v10492, 0
    %v10558 = vsel %vm1597, %v10493, 0
    %10560 = vmatprep.subr.bf16.mxu0 0
    %10561 = vmatpush1.bf16.msra.mxu0 %v10502
    %10562 = vmatprep.subr.bf16.mxu0 0
    %10563 = vmatpush1.bf16.msra.mxu0 %v10503
    %10564 = vmatprep.subr.bf16.mxu0 0
    %10565 = vmatpush1.bf16.msra.mxu0 0
    %10566 = vmatprep.subr.bf16.mxu0 0
    %10567 = vmatpush1.bf16.msra.mxu0 0
    %10568 = vmatprep.subr.bf16.mxu0 0
    %10569 = vmatpush1.bf16.msra.mxu0 0
    %10570 = vmatprep.subr.bf16.mxu0 0
    %10571 = vmatpush1.bf16.msra.mxu0 0
    %10572 = vmatprep.subr.bf16.mxu0 0
    %10573 = vmatpush1.bf16.msra.mxu0 0
    %10574 = vmatprep.subr.bf16.mxu0 0
    %10575 = vmatpush1.bf16.msra.mxu0 0
    %10576 = vmatprep.subr.bf16.mxu0 0
    %10577 = vmatpush1.bf16.msra.mxu0 0
    %10578 = vmatprep.subr.bf16.mxu0 0
    %10579 = vmatpush1.bf16.msra.mxu0 0
    %10580 = vmatprep.subr.bf16.mxu0 0
    %10581 = vmatpush1.bf16.msra.mxu0 0
    %10582 = vmatprep.subr.bf16.mxu0 0
    %10583 = vmatpush1.bf16.msra.mxu0 0
    %10584 = vmatprep.subr.bf16.mxu0 0
    %10585 = vmatpush1.bf16.msra.mxu0 0
    %10586 = vmatprep.subr.bf16.mxu0 0
    %10587 = vmatpush1.bf16.msra.mxu0 0
    %10588 = vmatprep.subr.bf16.mxu0 0
    %10589 = vmatpush1.bf16.msra.mxu0 0
    %10590 = vmatprep.subr.bf16.mxu0 0
    %10591 = vmatpush1.bf16.msra.mxu0 0
    %10592 = vmatprep.mubr.bf16.mxu0 0
    %10593 = vmatmul.mubr.bf16.gmra.mrb[0].mxu0 %v10507
    %v10594 = vpop.f32.mrb[0].mxu0
    %v10595 = vadd.f32 0.0, %v10594
    %v10596 = vpop.f32.mrb[0].mxu0
    %v10597 = vpop.f32.mrb[0].mxu0
    %v10598 = vadd.f32 0.0, %v10597
    %v10599 = vpop.f32.mrb[0].mxu0
    %10600 = vmatprep.mubr.bf16.mxu0 0
    %10601 = vmatmul.mubr.bf16.gmra.mrb[0].mxu0 %v10510
    %v10602 = vpop.f32.mrb[0].mxu0
    %v10603 = vadd.f32 0.0, %v10602
    %v10604 = vpop.f32.mrb[0].mxu0
    %v10605 = vpop.f32.mrb[0].mxu0
    %v10606 = vadd.f32 0.0, %v10605
    %v10607 = vpop.f32.mrb[0].mxu0
    %10608 = vmatprep.mubr.bf16.mxu0 0
    %10609 = vmatmul.mubr.bf16.gmra.mrb[0].mxu0 %v10513
    %v10610 = vpop.f32.mrb[0].mxu0
    %v10611 = vadd.f32 0.0, %v10610
    %v10612 = vpop.f32.mrb[0].mxu0
    %v10613 = vpop.f32.mrb[0].mxu0
    %v10614 = vadd.f32 0.0, %v10613
    %v10615 = vpop.f32.mrb[0].mxu0
    %10616 = vmatprep.mubr.bf16.mxu0 0
    %10617 = vmatmul.mubr.bf16.gmra.mrb[0].mxu0 %v10516
    %v10618 = vpop.f32.mrb[0].mxu0
    %v10619 = vadd.f32 0.0, %v10618
    %v10620 = vpop.f32.mrb[0].mxu0
    %v10621 = vpop.f32.mrb[0].mxu0
    %v10622 = vadd.f32 0.0, %v10621
    %v10623 = vpop.f32.mrb[0].mxu0
    %10624 = vmatprep.mubr.bf16.mxu0 0
    %10625 = vmatmul.mubr.bf16.gmra.mrb[0].mxu0 %v10519
    %v10626 = vpop.f32.mrb[0].mxu0
    %v10627 = vadd.f32 0.0, %v10626
    %v10628 = vpop.f32.mrb[0].mxu0
    %v10629 = vpop.f32.mrb[0].mxu0
    %v10630 = vadd.f32 0.0, %v10629
    %v10631 = vpop.f32.mrb[0].mxu0
    %10632 = vmatprep.mubr.bf16.mxu0 0
    %10633 = vmatmul.mubr.bf16.gmra.mrb[0].mxu0 %v10522
    %v10634 = vpop.f32.mrb[0].mxu0
    %v10635 = vadd.f32 0.0, %v10634
    %v10636 = vpop.f32.mrb[0].mxu0
    %v10637 = vpop.f32.mrb[0].mxu0
    %v10638 = vadd.f32 0.0, %v10637
    %v10639 = vpop.f32.mrb[0].mxu0
    %10640 = vmatprep.mubr.bf16.mxu0 0
    %10641 = vmatmul.mubr.bf16.gmra.mrb[0].mxu0 %v10525
    %v10642 = vpop.f32.mrb[0].mxu0
    %v10643 = vadd.f32 0.0, %v10642
    %v10644 = vpop.f32.mrb[0].mxu0
    %v10645 = vpop.f32.mrb[0].mxu0
    %v10646 = vadd.f32 0.0, %v10645
    %v10647 = vpop.f32.mrb[0].mxu0
    %10648 = vmatprep.mubr.bf16.mxu0 0
    %10649 = vmatmul.mubr.bf16.gmra.mrb[0].mxu0 %v10528
    %v10650 = vpop.f32.mrb[0].mxu0
    %v10651 = vadd.f32 0.0, %v10650
    %v10652 = vpop.f32.mrb[0].mxu0
    %v10653 = vpop.f32.mrb[0].mxu0
    %v10654 = vadd.f32 0.0, %v10653
    %v10655 = vpop.f32.mrb[0].mxu0
    %10656 = vmatprep.mubr.bf16.mxu0 0
    %10657 = vmatmul.mubr.bf16.gmra.mrb[0].mxu0 %v10531
    %v10658 = vpop.f32.mrb[0].mxu0
    %v10659 = vadd.f32 0.0, %v10658
    %v10660 = vpop.f32.mrb[0].mxu0
    %v10661 = vpop.f32.mrb[0].mxu0
    %v10662 = vadd.f32 0.0, %v10661
    %v10663 = vpop.f32.mrb[0].mxu0
    %10664 = vmatprep.mubr.bf16.mxu0 0
    %10665 = vmatmul.mubr.bf16.gmra.mrb[0].mxu0 %v10534
    %v10666 = vpop.f32.mrb[0].mxu0
    %v10667 = vadd.f32 0.0, %v10666
    %v10668 = vpop.f32.mrb[0].mxu0
    %v10669 = vpop.f32.mrb[0].mxu0
    %v10670 = vadd.f32 0.0, %v10669
    %v10671 = vpop.f32.mrb[0].mxu0
    %10672 = vmatprep.mubr.bf16.mxu0 0
    %10673 = vmatmul.mubr.bf16.gmra.mrb[0].mxu0 %v10537
    %v10674 = vpop.f32.mrb[0].mxu0
    %v10675 = vadd.f32 0.0, %v10674
    %v10676 = vpop.f32.mrb[0].mxu0
    %v10677 = vpop.f32.mrb[0].mxu0
    %v10678 = vadd.f32 0.0, %v10677
    %v10679 = vpop.f32.mrb[0].mxu0
    %10680 = vmatprep.mubr.bf16.mxu0 0
    %10681 = vmatmul.mubr.bf16.gmra.mrb[0].mxu0 %v10540
    %v10682 = vpop.f32.mrb[0].mxu0
    %v10683 = vadd.f32 0.0, %v10682
    %v10684 = vpop.f32.mrb[0].mxu0
    %v10685 = vpop.f32.mrb[0].mxu0
    %v10686 = vadd.f32 0.0, %v10685
    %v10687 = vpop.f32.mrb[0].mxu0
    %10688 = vmatprep.mubr.bf16.mxu0 0
    %10689 = vmatmul.mubr.bf16.gmra.mrb[0].mxu0 %v10543
    %v10690 = vpop.f32.mrb[0].mxu0
    %v10691 = vadd.f32 0.0, %v10690
    %v10692 = vpop.f32.mrb[0].mxu0
    %v10693 = vpop.f32.mrb[0].mxu0
    %v10694 = vadd.f32 0.0, %v10693
    %v10695 = vpop.f32.mrb[0].mxu0
    %10696 = vmatprep.mubr.bf16.mxu0 0
    %10697 = vmatmul.mubr.bf16.gmra.mrb[0].mxu0 %v10546
    %v10698 = vpop.f32.mrb[0].mxu0
    %v10699 = vadd.f32 0.0, %v10698
    %v10700 = vpop.f32.mrb[0].mxu0
    %v10701 = vpop.f32.mrb[0].mxu0
    %v10702 = vadd.f32 0.0, %v10701
    %v10703 = vpop.f32.mrb[0].mxu0
    %10704 = vmatprep.mubr.bf16.mxu0 0
    %10705 = vmatmul.mubr.bf16.gmra.mrb[0].mxu0 %v10549
    %v10706 = vpop.f32.mrb[0].mxu0
    %v10707 = vadd.f32 0.0, %v10706
    %v10708 = vpop.f32.mrb[0].mxu0
    %v10709 = vpop.f32.mrb[0].mxu0
    %v10710 = vadd.f32 0.0, %v10709
    %v10711 = vpop.f32.mrb[0].mxu0
    %10712 = vmatprep.mubr.bf16.mxu0 0
    %10713 = vmatmul.mubr.bf16.gmra.mrb[0].mxu0 %v10552
    %v10714 = vpop.f32.mrb[0].mxu0
    %v10715 = vadd.f32 0.0, %v10714
    %v10716 = vpop.f32.mrb[0].mxu0
    %v10717 = vpop.f32.mrb[0].mxu0
    %v10718 = vadd.f32 0.0, %v10717
    %v10719 = vpop.f32.mrb[0].mxu0
    %10720 = vmatprep.mubr.bf16.mxu0 0
    %10721 = vmatmul.mubr.bf16.gmra.mrb[0].mxu0 %v10555
    %v10722 = vpop.f32.mrb[0].mxu0
    %v10723 = vadd.f32 0.0, %v10722
    %v10724 = vpop.f32.mrb[0].mxu0
    %v10725 = vpop.f32.mrb[0].mxu0
    %v10726 = vadd.f32 0.0, %v10725
    %v10727 = vpop.f32.mrb[0].mxu0
    %10728 = vmatprep.mubr.bf16.mxu0 0
    %10729 = vmatmul.mubr.bf16.gmra.mrb[0].mxu0 %v10558
    %v10730 = vpop.f32.mrb[0].mxu0
    %v10731 = vadd.f32 0.0, %v10730
    %v10732 = vpop.f32.mrb[0].mxu0
    %v10733 = vpop.f32.mrb[0].mxu0
    %v10734 = vadd.f32 0.0, %v10733
    %v10735 = vpop.f32.mrb[0].mxu0
    %10736 = vdwg.mxu0
    %v10737 = vadd.f32 %v10404, %v10595
    %v10738 = vadd.f32 %v10405, %v10598
    %v10739 = vadd.f32 %v10406, %v10603
    %v10740 = vadd.f32 %v10407, %v10606
    %v10741 = vadd.f32 %v10408, %v10611
    %v10742 = vadd.f32 %v10409, %v10614
    %v10743 = vadd.f32 %v10410, %v10619
    %v10744 = vadd.f32 %v10411, %v10622
    %v10745 = vadd.f32 %v10412, %v10627
    %v10746 = vadd.f32 %v10413, %v10630
    %v10747 = vadd.f32 %v10414, %v10635
    %v10748 = vadd.f32 %v10415, %v10638
    %v10749 = vadd.f32 %v10416, %v10643
    %v10750 = vadd.f32 %v10417, %v10646
    %v10751 = vadd.f32 %v10418, %v10651
    %v10752 = vadd.f32 %v10419, %v10654
    %v10753 = vadd.f32 %v10420, %v10659
    %v10754 = vadd.f32 %v10421, %v10662
    %v10755 = vadd.f32 %v10422, %v10667
    %v10756 = vadd.f32 %v10423, %v10670
    %v10757 = vadd.f32 %v10424, %v10675
    %v10758 = vadd.f32 %v10425, %v10678
    %v10759 = vadd.f32 %v10426, %v10683
    %v10760 = vadd.f32 %v10427, %v10686
    %v10761 = vadd.f32 %v10428, %v10691
    %v10762 = vadd.f32 %v10429, %v10694
    %v10763 = vadd.f32 %v10430, %v10699
    %v10764 = vadd.f32 %v10431, %v10702
    %v10765 = vadd.f32 %v10432, %v10707
    %v10766 = vadd.f32 %v10433, %v10710
    %v10767 = vadd.f32 %v10434, %v10715
    %v10768 = vadd.f32 %v10435, %v10718
    %v10769 = vadd.f32 %v10436, %v10723
    %v10770 = vadd.f32 %v10437, %v10726
    %v10771 = vadd.f32 %v10438, %v10731
    %v10772 = vadd.f32 %v10439, %v10734
    %v10773 = vmul.f32 %v8385, %v969
    %v10774 = vmul.f32 %v8384, %v973
    %v10775 = vmul.f32 %v8383, %v977
    %v10776 = vmul.f32 %v8382, %v981
    %v10777 = vmul.f32 %v8381, %v985
    %v10778 = vmul.f32 %v8380, %v989
    %v10779 = vmul.f32 %v8379, %v993
    %v10780 = vmul.f32 %v8378, %v997
    %v10781 = vmul.f32 %v8377, %v1001
    %v10782 = vmul.f32 %v8376, %v1005
    %v10783 = vmul.f32 %v8375, %v1009
    %v10784 = vmul.f32 %v8374, %v1013
    %v10785 = vmul.f32 %v8373, %v1017
    %v10786 = vmul.f32 %v8372, %v1021
    %v10787 = vmul.f32 %v8371, %v1025
    %v10788 = vmul.f32 %v8370, %v1029
    %v10789 = vmul.f32 %v8369, %v1033
    %v10790 = vmul.f32 %v8368, %v1037
    %v10791 = vmul.f32 %v8367, %v1041
    %v10792 = vmul.f32 %v8366, %v1045
    %v10793 = vmul.f32 %v8365, %v1049
    %v10794 = vmul.f32 %v8364, %v1053
    %v10795 = vmul.f32 %v8363, %v1057
    %v10796 = vmul.f32 %v8362, %v1061
    %v10797 = vmul.f32 %v8361, %v1065
    %v10798 = vmul.f32 %v8360, %v1069
    %v10799 = vmul.f32 %v8359, %v1073
    %v10800 = vmul.f32 %v8358, %v1077
    %v10801 = vmul.f32 %v8357, %v1081
    %v10802 = vmul.f32 %v8356, %v1085
    %v10803 = vmul.f32 %v8355, %v1089
    %v10804 = vmul.f32 %v8354, %v1093
    %v10805 = vmul.f32 %v8353, %v1097
    %v10806 = vmul.f32 %v8352, %v1101
    %v10807 = vmul.f32 %v8387, %v1105
    %v10808 = vmul.f32 %v8386, %v1109
    %v10809 = vpack.c.bf16 %v10774, %v10773
    %v10810 = vpack.c.bf16 %v10776, %v10775
    %v10811 = vpack.c.bf16 %v10778, %v10777
    %v10812 = vpack.c.bf16 %v10780, %v10779
    %v10813 = vpack.c.bf16 %v10782, %v10781
    %v10814 = vpack.c.bf16 %v10784, %v10783
    %v10815 = vpack.c.bf16 %v10786, %v10785
    %v10816 = vpack.c.bf16 %v10788, %v10787
    %v10817 = vpack.c.bf16 %v10790, %v10789
    %v10818 = vpack.c.bf16 %v10792, %v10791
    %v10819 = vpack.c.bf16 %v10794, %v10793
    %v10820 = vpack.c.bf16 %v10796, %v10795
    %v10821 = vpack.c.bf16 %v10798, %v10797
    %v10822 = vpack.c.bf16 %v10800, %v10799
    %v10823 = vpack.c.bf16 %v10802, %v10801
    %v10824 = vpack.c.bf16 %v10804, %v10803
    %v10825 = vpack.c.bf16 %v10806, %v10805
    %v10826 = vpack.c.bf16 %v10808, %v10807
    %v10831 = vunpack.c.l.b16 %v8178
    %v10832 = vunpack.c.l.b16 %v8179
    %v10833 = vunpack.c.l.b16 %v8180
    %v10834 = vunpack.c.l.b16 %v8181
    %v10835 = vpack.c.b16 %v10832, %v10831
    %v10836 = vpack.c.b16 %v10834, %v10833
    %v10840 = vsel %vm1597, %v10809, 0
    %v10843 = vsel %vm1597, %v10810, 0
    %v10846 = vsel %vm1597, %v10811, 0
    %v10849 = vsel %vm1597, %v10812, 0
    %v10852 = vsel %vm1597, %v10813, 0
    %v10855 = vsel %vm1597, %v10814, 0
    %v10858 = vsel %vm1597, %v10815, 0
    %v10861 = vsel %vm1597, %v10816, 0
    %v10864 = vsel %vm1597, %v10817, 0
    %v10867 = vsel %vm1597, %v10818, 0
    %v10870 = vsel %vm1597, %v10819, 0
    %v10873 = vsel %vm1597, %v10820, 0
    %v10876 = vsel %vm1597, %v10821, 0
    %v10879 = vsel %vm1597, %v10822, 0
    %v10882 = vsel %vm1597, %v10823, 0
    %v10885 = vsel %vm1597, %v10824, 0
    %v10888 = vsel %vm1597, %v10825, 0
    %v10891 = vsel %vm1597, %v10826, 0
    %10893 = vmatprep.subr.bf16.mxu0 0
    %10894 = vmatpush1.bf16.msra.mxu0 %v10835
    %10895 = vmatprep.subr.bf16.mxu0 0
    %10896 = vmatpush1.bf16.msra.mxu0 %v10836
    %10897 = vmatprep.subr.bf16.mxu0 0
    %10898 = vmatpush1.bf16.msra.mxu0 0
    %10899 = vmatprep.subr.bf16.mxu0 0
    %10900 = vmatpush1.bf16.msra.mxu0 0
    %10901 = vmatprep.subr.bf16.mxu0 0
    %10902 = vmatpush1.bf16.msra.mxu0 0
    %10903 = vmatprep.subr.bf16.mxu0 0
    %10904 = vmatpush1.bf16.msra.mxu0 0
    %10905 = vmatprep.subr.bf16.mxu0 0
    %10906 = vmatpush1.bf16.msra.mxu0 0
    %10907 = vmatprep.subr.bf16.mxu0 0
    %10908 = vmatpush1.bf16.msra.mxu0 0
    %10909 = vmatprep.subr.bf16.mxu0 0
    %10910 = vmatpush1.bf16.msra.mxu0 0
    %10911 = vmatprep.subr.bf16.mxu0 0
    %10912 = vmatpush1.bf16.msra.mxu0 0
    %10913 = vmatprep.subr.bf16.mxu0 0
    %10914 = vmatpush1.bf16.msra.mxu0 0
    %10915 = vmatprep.subr.bf16.mxu0 0
    %10916 = vmatpush1.bf16.msra.mxu0 0
    %10917 = vmatprep.subr.bf16.mxu0 0
    %10918 = vmatpush1.bf16.msra.mxu0 0
    %10919 = vmatprep.subr.bf16.mxu0 0
    %10920 = vmatpush1.bf16.msra.mxu0 0
    %10921 = vmatprep.subr.bf16.mxu0 0
    %10922 = vmatpush1.bf16.msra.mxu0 0
    %10923 = vmatprep.subr.bf16.mxu0 0
    %10924 = vmatpush1.bf16.msra.mxu0 0
    %10925 = vmatprep.mubr.bf16.mxu0 0
    %10926 = vmatmul.mubr.bf16.gmra.mrb[0].mxu0 %v10840
    %v10927 = vpop.f32.mrb[0].mxu0
    %v10928 = vadd.f32 0.0, %v10927
    %v10929 = vpop.f32.mrb[0].mxu0
    %v10930 = vpop.f32.mrb[0].mxu0
    %v10931 = vadd.f32 0.0, %v10930
    %v10932 = vpop.f32.mrb[0].mxu0
    %10933 = vmatprep.mubr.bf16.mxu0 0
    %10934 = vmatmul.mubr.bf16.gmra.mrb[0].mxu0 %v10843
    %v10935 = vpop.f32.mrb[0].mxu0
    %v10936 = vadd.f32 0.0, %v10935
    %v10937 = vpop.f32.mrb[0].mxu0
    %v10938 = vpop.f32.mrb[0].mxu0
    %v10939 = vadd.f32 0.0, %v10938
    %v10940 = vpop.f32.mrb[0].mxu0
    %10941 = vmatprep.mubr.bf16.mxu0 0
    %10942 = vmatmul.mubr.bf16.gmra.mrb[0].mxu0 %v10846
    %v10943 = vpop.f32.mrb[0].mxu0
    %v10944 = vadd.f32 0.0, %v10943
    %v10945 = vpop.f32.mrb[0].mxu0
    %v10946 = vpop.f32.mrb[0].mxu0
    %v10947 = vadd.f32 0.0, %v10946
    %v10948 = vpop.f32.mrb[0].mxu0
    %10949 = vmatprep.mubr.bf16.mxu0 0
    %10950 = vmatmul.mubr.bf16.gmra.mrb[0].mxu0 %v10849
    %v10951 = vpop.f32.mrb[0].mxu0
    %v10952 = vadd.f32 0.0, %v10951
    %v10953 = vpop.f32.mrb[0].mxu0
    %v10954 = vpop.f32.mrb[0].mxu0
    %v10955 = vadd.f32 0.0, %v10954
    %v10956 = vpop.f32.mrb[0].mxu0
    %10957 = vmatprep.mubr.bf16.mxu0 0
    %10958 = vmatmul.mubr.bf16.gmra.mrb[0].mxu0 %v10852
    %v10959 = vpop.f32.mrb[0].mxu0
    %v10960 = vadd.f32 0.0, %v10959
    %v10961 = vpop.f32.mrb[0].mxu0
    %v10962 = vpop.f32.mrb[0].mxu0
    %v10963 = vadd.f32 0.0, %v10962
    %v10964 = vpop.f32.mrb[0].mxu0
    %10965 = vmatprep.mubr.bf16.mxu0 0
    %10966 = vmatmul.mubr.bf16.gmra.mrb[0].mxu0 %v10855
    %v10967 = vpop.f32.mrb[0].mxu0
    %v10968 = vadd.f32 0.0, %v10967
    %v10969 = vpop.f32.mrb[0].mxu0
    %v10970 = vpop.f32.mrb[0].mxu0
    %v10971 = vadd.f32 0.0, %v10970
    %v10972 = vpop.f32.mrb[0].mxu0
    %10973 = vmatprep.mubr.bf16.mxu0 0
    %10974 = vmatmul.mubr.bf16.gmra.mrb[0].mxu0 %v10858
    %v10975 = vpop.f32.mrb[0].mxu0
    %v10976 = vadd.f32 0.0, %v10975
    %v10977 = vpop.f32.mrb[0].mxu0
    %v10978 = vpop.f32.mrb[0].mxu0
    %v10979 = vadd.f32 0.0, %v10978
    %v10980 = vpop.f32.mrb[0].mxu0
    %10981 = vmatprep.mubr.bf16.mxu0 0
    %10982 = vmatmul.mubr.bf16.gmra.mrb[0].mxu0 %v10861
    %v10983 = vpop.f32.mrb[0].mxu0
    %v10984 = vadd.f32 0.0, %v10983
    %v10985 = vpop.f32.mrb[0].mxu0
    %v10986 = vpop.f32.mrb[0].mxu0
    %v10987 = vadd.f32 0.0, %v10986
    %v10988 = vpop.f32.mrb[0].mxu0
    %10989 = vmatprep.mubr.bf16.mxu0 0
    %10990 = vmatmul.mubr.bf16.gmra.mrb[0].mxu0 %v10864
    %v10991 = vpop.f32.mrb[0].mxu0
    %v10992 = vadd.f32 0.0, %v10991
    %v10993 = vpop.f32.mrb[0].mxu0
    %v10994 = vpop.f32.mrb[0].mxu0
    %v10995 = vadd.f32 0.0, %v10994
    %v10996 = vpop.f32.mrb[0].mxu0
    %10997 = vmatprep.mubr.bf16.mxu0 0
    %10998 = vmatmul.mubr.bf16.gmra.mrb[0].mxu0 %v10867
    %v10999 = vpop.f32.mrb[0].mxu0
    %v11000 = vadd.f32 0.0, %v10999
    %v11001 = vpop.f32.mrb[0].mxu0
    %v11002 = vpop.f32.mrb[0].mxu0
    %v11003 = vadd.f32 0.0, %v11002
    %v11004 = vpop.f32.mrb[0].mxu0
    %11005 = vmatprep.mubr.bf16.mxu0 0
    %11006 = vmatmul.mubr.bf16.gmra.mrb[0].mxu0 %v10870
    %v11007 = vpop.f32.mrb[0].mxu0
    %v11008 = vadd.f32 0.0, %v11007
    %v11009 = vpop.f32.mrb[0].mxu0
    %v11010 = vpop.f32.mrb[0].mxu0
    %v11011 = vadd.f32 0.0, %v11010
    %v11012 = vpop.f32.mrb[0].mxu0
    %11013 = vmatprep.mubr.bf16.mxu0 0
    %11014 = vmatmul.mubr.bf16.gmra.mrb[0].mxu0 %v10873
    %v11015 = vpop.f32.mrb[0].mxu0
    %v11016 = vadd.f32 0.0, %v11015
    %v11017 = vpop.f32.mrb[0].mxu0
    %v11018 = vpop.f32.mrb[0].mxu0
    %v11019 = vadd.f32 0.0, %v11018
    %v11020 = vpop.f32.mrb[0].mxu0
    %11021 = vmatprep.mubr.bf16.mxu0 0
    %11022 = vmatmul.mubr.bf16.gmra.mrb[0].mxu0 %v10876
    %v11023 = vpop.f32.mrb[0].mxu0
    %v11024 = vadd.f32 0.0, %v11023
    %v11025 = vpop.f32.mrb[0].mxu0
    %v11026 = vpop.f32.mrb[0].mxu0
    %v11027 = vadd.f32 0.0, %v11026
    %v11028 = vpop.f32.mrb[0].mxu0
    %11029 = vmatprep.mubr.bf16.mxu0 0
    %11030 = vmatmul.mubr.bf16.gmra.mrb[0].mxu0 %v10879
    %v11031 = vpop.f32.mrb[0].mxu0
    %v11032 = vadd.f32 0.0, %v11031
    %v11033 = vpop.f32.mrb[0].mxu0
    %v11034 = vpop.f32.mrb[0].mxu0
    %v11035 = vadd.f32 0.0, %v11034
    %v11036 = vpop.f32.mrb[0].mxu0
    %11037 = vmatprep.mubr.bf16.mxu0 0
    %11038 = vmatmul.mubr.bf16.gmra.mrb[0].mxu0 %v10882
    %v11039 = vpop.f32.mrb[0].mxu0
    %v11040 = vadd.f32 0.0, %v11039
    %v11041 = vpop.f32.mrb[0].mxu0
    %v11042 = vpop.f32.mrb[0].mxu0
    %v11043 = vadd.f32 0.0, %v11042
    %v11044 = vpop.f32.mrb[0].mxu0
    %11045 = vmatprep.mubr.bf16.mxu0 0
    %11046 = vmatmul.mubr.bf16.gmra.mrb[0].mxu0 %v10885
    %v11047 = vpop.f32.mrb[0].mxu0
    %v11048 = vadd.f32 0.0, %v11047
    %v11049 = vpop.f32.mrb[0].mxu0
    %v11050 = vpop.f32.mrb[0].mxu0
    %v11051 = vadd.f32 0.0, %v11050
    %v11052 = vpop.f32.mrb[0].mxu0
    %11053 = vmatprep.mubr.bf16.mxu0 0
    %11054 = vmatmul.mubr.bf16.gmra.mrb[0].mxu0 %v10888
    %v11055 = vpop.f32.mrb[0].mxu0
    %v11056 = vadd.f32 0.0, %v11055
    %v11057 = vpop.f32.mrb[0].mxu0
    %v11058 = vpop.f32.mrb[0].mxu0
    %v11059 = vadd.f32 0.0, %v11058
    %v11060 = vpop.f32.mrb[0].mxu0
    %11061 = vmatprep.mubr.bf16.mxu0 0
    %11062 = vmatmul.mubr.bf16.gmra.mrb[0].mxu0 %v10891
    %v11063 = vpop.f32.mrb[0].mxu0
    %v11064 = vadd.f32 0.0, %v11063
    %v11065 = vpop.f32.mrb[0].mxu0
    %v11066 = vpop.f32.mrb[0].mxu0
    %v11067 = vadd.f32 0.0, %v11066
    %v11068 = vpop.f32.mrb[0].mxu0
    %11069 = vdwg.mxu0
    %v11070 = vadd.f32 %v10737, %v10928
    %v11071 = vadd.f32 %v10738, %v10931
    %v11072 = vadd.f32 %v10739, %v10936
    %v11073 = vadd.f32 %v10740, %v10939
    %v11074 = vadd.f32 %v10741, %v10944
    %v11075 = vadd.f32 %v10742, %v10947
    %v11076 = vadd.f32 %v10743, %v10952
    %v11077 = vadd.f32 %v10744, %v10955
    %v11078 = vadd.f32 %v10745, %v10960
    %v11079 = vadd.f32 %v10746, %v10963
    %v11080 = vadd.f32 %v10747, %v10968
    %v11081 = vadd.f32 %v10748, %v10971
    %v11082 = vadd.f32 %v10749, %v10976
    %v11083 = vadd.f32 %v10750, %v10979
    %v11084 = vadd.f32 %v10751, %v10984
    %v11085 = vadd.f32 %v10752, %v10987
    %v11086 = vadd.f32 %v10753, %v10992
    %v11087 = vadd.f32 %v10754, %v10995
    %v11088 = vadd.f32 %v10755, %v11000
    %v11089 = vadd.f32 %v10756, %v11003
    %v11090 = vadd.f32 %v10757, %v11008
    %v11091 = vadd.f32 %v10758, %v11011
    %v11092 = vadd.f32 %v10759, %v11016
    %v11093 = vadd.f32 %v10760, %v11019
    %v11094 = vadd.f32 %v10761, %v11024
    %v11095 = vadd.f32 %v10762, %v11027
    %v11096 = vadd.f32 %v10763, %v11032
    %v11097 = vadd.f32 %v10764, %v11035
    %v11098 = vadd.f32 %v10765, %v11040
    %v11099 = vadd.f32 %v10766, %v11043
    %v11100 = vadd.f32 %v10767, %v11048
    %v11101 = vadd.f32 %v10768, %v11051
    %v11102 = vadd.f32 %v10769, %v11056
    %v11103 = vadd.f32 %v10770, %v11059
    %v11104 = vadd.f32 %v10771, %v11064
    %v11105 = vadd.f32 %v10772, %v11067
    %v11106 = vmul.f32 %v8997, %v1113
    %v11107 = vmul.f32 %v8996, %v1117
    %v11108 = vmul.f32 %v8995, %v1121
    %v11109 = vmul.f32 %v8994, %v1125
    %v11110 = vmul.f32 %v8993, %v1129
    %v11111 = vmul.f32 %v8992, %v1133
    %v11112 = vmul.f32 %v8991, %v1137
    %v11113 = vmul.f32 %v8990, %v1141
    %v11114 = vmul.f32 %v8989, %v1145
    %v11115 = vmul.f32 %v8988, %v1149
    %v11116 = vmul.f32 %v8987, %v1153
    %v11117 = vmul.f32 %v8986, %v1157
    %v11118 = vmul.f32 %v8985, %v1161
    %v11119 = vmul.f32 %v8984, %v1165
    %v11120 = vmul.f32 %v8983, %v1169
    %v11121 = vmul.f32 %v8982, %v1173
    %v11122 = vmul.f32 %v8981, %v1177
    %v11123 = vmul.f32 %v8980, %v1181
    %v11124 = vmul.f32 %v8979, %v1185
    %v11125 = vmul.f32 %v8978, %v1189
    %v11126 = vmul.f32 %v8977, %v1193
    %v11127 = vmul.f32 %v8976, %v1197
    %v11128 = vmul.f32 %v8975, %v1201
    %v11129 = vmul.f32 %v8974, %v1205
    %v11130 = vmul.f32 %v8973, %v1209
    %v11131 = vmul.f32 %v8972, %v1213
    %v11132 = vmul.f32 %v8971, %v1217
    %v11133 = vmul.f32 %v8970, %v1221
    %v11134 = vmul.f32 %v8969, %v1225
    %v11135 = vmul.f32 %v8968, %v1229
    %v11136 = vmul.f32 %v8967, %v1233
    %v11137 = vmul.f32 %v8966, %v1237
    %v11138 = vmul.f32 %v8965, %v1241
    %v11139 = vmul.f32 %v8964, %v1245
    %v11140 = vmul.f32 %v8999, %v1249
    %v11141 = vmul.f32 %v8998, %v1253
    %v11142 = vpack.c.bf16 %v11107, %v11106
    %v11143 = vpack.c.bf16 %v11109, %v11108
    %v11144 = vpack.c.bf16 %v11111, %v11110
    %v11145 = vpack.c.bf16 %v11113, %v11112
    %v11146 = vpack.c.bf16 %v11115, %v11114
    %v11147 = vpack.c.bf16 %v11117, %v11116
    %v11148 = vpack.c.bf16 %v11119, %v11118
    %v11149 = vpack.c.bf16 %v11121, %v11120
    %v11150 = vpack.c.bf16 %v11123, %v11122
    %v11151 = vpack.c.bf16 %v11125, %v11124
    %v11152 = vpack.c.bf16 %v11127, %v11126
    %v11153 = vpack.c.bf16 %v11129, %v11128
    %v11154 = vpack.c.bf16 %v11131, %v11130
    %v11155 = vpack.c.bf16 %v11133, %v11132
    %v11156 = vpack.c.bf16 %v11135, %v11134
    %v11157 = vpack.c.bf16 %v11137, %v11136
    %v11158 = vpack.c.bf16 %v11139, %v11138
    %v11159 = vpack.c.bf16 %v11141, %v11140
    %v11164 = vunpack.c.l.b16 %v8182
    %v11165 = vunpack.c.l.b16 %v8183
    %v11166 = vunpack.c.l.b16 %v8184
    %v11167 = vunpack.c.l.b16 %v8185
    %v11168 = vpack.c.b16 %v11165, %v11164
    %v11169 = vpack.c.b16 %v11167, %v11166
    %v11173 = vsel %vm1597, %v11142, 0
    %v11176 = vsel %vm1597, %v11143, 0
    %v11179 = vsel %vm1597, %v11144, 0
    %v11182 = vsel %vm1597, %v11145, 0
    %v11185 = vsel %vm1597, %v11146, 0
    %v11188 = vsel %vm1597, %v11147, 0
    %v11191 = vsel %vm1597, %v11148, 0
    %v11194 = vsel %vm1597, %v11149, 0
    %v11197 = vsel %vm1597, %v11150, 0
    %v11200 = vsel %vm1597, %v11151, 0
    %v11203 = vsel %vm1597, %v11152, 0
    %v11206 = vsel %vm1597, %v11153, 0
    %v11209 = vsel %vm1597, %v11154, 0
    %v11212 = vsel %vm1597, %v11155, 0
    %v11215 = vsel %vm1597, %v11156, 0
    %v11218 = vsel %vm1597, %v11157, 0
    %v11221 = vsel %vm1597, %v11158, 0
    %v11224 = vsel %vm1597, %v11159, 0
    %11226 = vmatprep.subr.bf16.mxu0 0
    %11227 = vmatpush1.bf16.msra.mxu0 %v11168
    %11228 = vmatprep.subr.bf16.mxu0 0
    %11229 = vmatpush1.bf16.msra.mxu0 %v11169
    %11230 = vmatprep.subr.bf16.mxu0 0
    %11231 = vmatpush1.bf16.msra.mxu0 0
    %11232 = vmatprep.subr.bf16.mxu0 0
    %11233 = vmatpush1.bf16.msra.mxu0 0
    %11234 = vmatprep.subr.bf16.mxu0 0
    %11235 = vmatpush1.bf16.msra.mxu0 0
    %11236 = vmatprep.subr.bf16.mxu0 0
    %11237 = vmatpush1.bf16.msra.mxu0 0
    %11238 = vmatprep.subr.bf16.mxu0 0
    %11239 = vmatpush1.bf16.msra.mxu0 0
    %11240 = vmatprep.subr.bf16.mxu0 0
    %11241 = vmatpush1.bf16.msra.mxu0 0
    %11242 = vmatprep.subr.bf16.mxu0 0
    %11243 = vmatpush1.bf16.msra.mxu0 0
    %11244 = vmatprep.subr.bf16.mxu0 0
    %11245 = vmatpush1.bf16.msra.mxu0 0
    %11246 = vmatprep.subr.bf16.mxu0 0
    %11247 = vmatpush1.bf16.msra.mxu0 0
    %11248 = vmatprep.subr.bf16.mxu0 0
    %11249 = vmatpush1.bf16.msra.mxu0 0
    %11250 = vmatprep.subr.bf16.mxu0 0
    %11251 = vmatpush1.bf16.msra.mxu0 0
    %11252 = vmatprep.subr.bf16.mxu0 0
    %11253 = vmatpush1.bf16.msra.mxu0 0
    %11254 = vmatprep.subr.bf16.mxu0 0
    %11255 = vmatpush1.bf16.msra.mxu0 0
    %11256 = vmatprep.subr.bf16.mxu0 0
    %11257 = vmatpush1.bf16.msra.mxu0 0
    %11258 = vmatprep.mubr.bf16.mxu0 0
    %11259 = vmatmul.mubr.bf16.gmra.mrb[0].mxu0 %v11173
    %v11260 = vpop.f32.mrb[0].mxu0
    %v11261 = vadd.f32 0.0, %v11260
    %v11262 = vpop.f32.mrb[0].mxu0
    %v11263 = vpop.f32.mrb[0].mxu0
    %v11264 = vadd.f32 0.0, %v11263
    %v11265 = vpop.f32.mrb[0].mxu0
    %11266 = vmatprep.mubr.bf16.mxu0 0
    %11267 = vmatmul.mubr.bf16.gmra.mrb[0].mxu0 %v11176
    %v11268 = vpop.f32.mrb[0].mxu0
    %v11269 = vadd.f32 0.0, %v11268
    %v11270 = vpop.f32.mrb[0].mxu0
    %v11271 = vpop.f32.mrb[0].mxu0
    %v11272 = vadd.f32 0.0, %v11271
    %v11273 = vpop.f32.mrb[0].mxu0
    %11274 = vmatprep.mubr.bf16.mxu0 0
    %11275 = vmatmul.mubr.bf16.gmra.mrb[0].mxu0 %v11179
    %v11276 = vpop.f32.mrb[0].mxu0
    %v11277 = vadd.f32 0.0, %v11276
    %v11278 = vpop.f32.mrb[0].mxu0
    %v11279 = vpop.f32.mrb[0].mxu0
    %v11280 = vadd.f32 0.0, %v11279
    %v11281 = vpop.f32.mrb[0].mxu0
    %11282 = vmatprep.mubr.bf16.mxu0 0
    %11283 = vmatmul.mubr.bf16.gmra.mrb[0].mxu0 %v11182
    %v11284 = vpop.f32.mrb[0].mxu0
    %v11285 = vadd.f32 0.0, %v11284
    %v11286 = vpop.f32.mrb[0].mxu0
    %v11287 = vpop.f32.mrb[0].mxu0
    %v11288 = vadd.f32 0.0, %v11287
    %v11289 = vpop.f32.mrb[0].mxu0
    %11290 = vmatprep.mubr.bf16.mxu0 0
    %11291 = vmatmul.mubr.bf16.gmra.mrb[0].mxu0 %v11185
    %v11292 = vpop.f32.mrb[0].mxu0
    %v11293 = vadd.f32 0.0, %v11292
    %v11294 = vpop.f32.mrb[0].mxu0
    %v11295 = vpop.f32.mrb[0].mxu0
    %v11296 = vadd.f32 0.0, %v11295
    %v11297 = vpop.f32.mrb[0].mxu0
    %11298 = vmatprep.mubr.bf16.mxu0 0
    %11299 = vmatmul.mubr.bf16.gmra.mrb[0].mxu0 %v11188
    %v11300 = vpop.f32.mrb[0].mxu0
    %v11301 = vadd.f32 0.0, %v11300
    %v11302 = vpop.f32.mrb[0].mxu0
    %v11303 = vpop.f32.mrb[0].mxu0
    %v11304 = vadd.f32 0.0, %v11303
    %v11305 = vpop.f32.mrb[0].mxu0
    %11306 = vmatprep.mubr.bf16.mxu0 0
    %11307 = vmatmul.mubr.bf16.gmra.mrb[0].mxu0 %v11191
    %v11308 = vpop.f32.mrb[0].mxu0
    %v11309 = vadd.f32 0.0, %v11308
    %v11310 = vpop.f32.mrb[0].mxu0
    %v11311 = vpop.f32.mrb[0].mxu0
    %v11312 = vadd.f32 0.0, %v11311
    %v11313 = vpop.f32.mrb[0].mxu0
    %11314 = vmatprep.mubr.bf16.mxu0 0
    %11315 = vmatmul.mubr.bf16.gmra.mrb[0].mxu0 %v11194
    %v11316 = vpop.f32.mrb[0].mxu0
    %v11317 = vadd.f32 0.0, %v11316
    %v11318 = vpop.f32.mrb[0].mxu0
    %v11319 = vpop.f32.mrb[0].mxu0
    %v11320 = vadd.f32 0.0, %v11319
    %v11321 = vpop.f32.mrb[0].mxu0
    %11322 = vmatprep.mubr.bf16.mxu0 0
    %11323 = vmatmul.mubr.bf16.gmra.mrb[0].mxu0 %v11197
    %v11324 = vpop.f32.mrb[0].mxu0
    %v11325 = vadd.f32 0.0, %v11324
    %v11326 = vpop.f32.mrb[0].mxu0
    %v11327 = vpop.f32.mrb[0].mxu0
    %v11328 = vadd.f32 0.0, %v11327
    %v11329 = vpop.f32.mrb[0].mxu0
    %11330 = vmatprep.mubr.bf16.mxu0 0
    %11331 = vmatmul.mubr.bf16.gmra.mrb[0].mxu0 %v11200
    %v11332 = vpop.f32.mrb[0].mxu0
    %v11333 = vadd.f32 0.0, %v11332
    %v11334 = vpop.f32.mrb[0].mxu0
    %v11335 = vpop.f32.mrb[0].mxu0
    %v11336 = vadd.f32 0.0, %v11335
    %v11337 = vpop.f32.mrb[0].mxu0
    %11338 = vmatprep.mubr.bf16.mxu0 0
    %11339 = vmatmul.mubr.bf16.gmra.mrb[0].mxu0 %v11203
    %v11340 = vpop.f32.mrb[0].mxu0
    %v11341 = vadd.f32 0.0, %v11340
    %v11342 = vpop.f32.mrb[0].mxu0
    %v11343 = vpop.f32.mrb[0].mxu0
    %v11344 = vadd.f32 0.0, %v11343
    %v11345 = vpop.f32.mrb[0].mxu0
    %11346 = vmatprep.mubr.bf16.mxu0 0
    %11347 = vmatmul.mubr.bf16.gmra.mrb[0].mxu0 %v11206
    %v11348 = vpop.f32.mrb[0].mxu0
    %v11349 = vadd.f32 0.0, %v11348
    %v11350 = vpop.f32.mrb[0].mxu0
    %v11351 = vpop.f32.mrb[0].mxu0
    %v11352 = vadd.f32 0.0, %v11351
    %v11353 = vpop.f32.mrb[0].mxu0
    %11354 = vmatprep.mubr.bf16.mxu0 0
    %11355 = vmatmul.mubr.bf16.gmra.mrb[0].mxu0 %v11209
    %v11356 = vpop.f32.mrb[0].mxu0
    %v11357 = vadd.f32 0.0, %v11356
    %v11358 = vpop.f32.mrb[0].mxu0
    %v11359 = vpop.f32.mrb[0].mxu0
    %v11360 = vadd.f32 0.0, %v11359
    %v11361 = vpop.f32.mrb[0].mxu0
    %11362 = vmatprep.mubr.bf16.mxu0 0
    %11363 = vmatmul.mubr.bf16.gmra.mrb[0].mxu0 %v11212
    %v11364 = vpop.f32.mrb[0].mxu0
    %v11365 = vadd.f32 0.0, %v11364
    %v11366 = vpop.f32.mrb[0].mxu0
    %v11367 = vpop.f32.mrb[0].mxu0
    %v11368 = vadd.f32 0.0, %v11367
    %v11369 = vpop.f32.mrb[0].mxu0
    %11370 = vmatprep.mubr.bf16.mxu0 0
    %11371 = vmatmul.mubr.bf16.gmra.mrb[0].mxu0 %v11215
    %v11372 = vpop.f32.mrb[0].mxu0
    %v11373 = vadd.f32 0.0, %v11372
    %v11374 = vpop.f32.mrb[0].mxu0
    %v11375 = vpop.f32.mrb[0].mxu0
    %v11376 = vadd.f32 0.0, %v11375
    %v11377 = vpop.f32.mrb[0].mxu0
    %11378 = vmatprep.mubr.bf16.mxu0 0
    %11379 = vmatmul.mubr.bf16.gmra.mrb[0].mxu0 %v11218
    %v11380 = vpop.f32.mrb[0].mxu0
    %v11381 = vadd.f32 0.0, %v11380
    %v11382 = vpop.f32.mrb[0].mxu0
    %v11383 = vpop.f32.mrb[0].mxu0
    %v11384 = vadd.f32 0.0, %v11383
    %v11385 = vpop.f32.mrb[0].mxu0
    %11386 = vmatprep.mubr.bf16.mxu0 0
    %11387 = vmatmul.mubr.bf16.gmra.mrb[0].mxu0 %v11221
    %v11388 = vpop.f32.mrb[0].mxu0
    %v11389 = vadd.f32 0.0, %v11388
    %v11390 = vpop.f32.mrb[0].mxu0
    %v11391 = vpop.f32.mrb[0].mxu0
    %v11392 = vadd.f32 0.0, %v11391
    %v11393 = vpop.f32.mrb[0].mxu0
    %11394 = vmatprep.mubr.bf16.mxu0 0
    %11395 = vmatmul.mubr.bf16.gmra.mrb[0].mxu0 %v11224
    %v11396 = vpop.f32.mrb[0].mxu0
    %v11397 = vadd.f32 0.0, %v11396
    %v11398 = vpop.f32.mrb[0].mxu0
    %v11399 = vpop.f32.mrb[0].mxu0
    %v11400 = vadd.f32 0.0, %v11399
    %v11401 = vpop.f32.mrb[0].mxu0
    %11402 = vdwg.mxu0
    %v11403 = vadd.f32 %v11070, %v11261
    %v11404 = vadd.f32 %v11071, %v11264
    %v11405 = vadd.f32 %v11072, %v11269
    %v11406 = vadd.f32 %v11073, %v11272
    %v11407 = vadd.f32 %v11074, %v11277
    %v11408 = vadd.f32 %v11075, %v11280
    %v11409 = vadd.f32 %v11076, %v11285
    %v11410 = vadd.f32 %v11077, %v11288
    %v11411 = vadd.f32 %v11078, %v11293
    %v11412 = vadd.f32 %v11079, %v11296
    %v11413 = vadd.f32 %v11080, %v11301
    %v11414 = vadd.f32 %v11081, %v11304
    %v11415 = vadd.f32 %v11082, %v11309
    %v11416 = vadd.f32 %v11083, %v11312
    %v11417 = vadd.f32 %v11084, %v11317
    %v11418 = vadd.f32 %v11085, %v11320
    %v11419 = vadd.f32 %v11086, %v11325
    %v11420 = vadd.f32 %v11087, %v11328
    %v11421 = vadd.f32 %v11088, %v11333
    %v11422 = vadd.f32 %v11089, %v11336
    %v11423 = vadd.f32 %v11090, %v11341
    %v11424 = vadd.f32 %v11091, %v11344
    %v11425 = vadd.f32 %v11092, %v11349
    %v11426 = vadd.f32 %v11093, %v11352
    %v11427 = vadd.f32 %v11094, %v11357
    %v11428 = vadd.f32 %v11095, %v11360
    %v11429 = vadd.f32 %v11096, %v11365
    %v11430 = vadd.f32 %v11097, %v11368
    %v11431 = vadd.f32 %v11098, %v11373
    %v11432 = vadd.f32 %v11099, %v11376
    %v11433 = vadd.f32 %v11100, %v11381
    %v11434 = vadd.f32 %v11101, %v11384
    %v11435 = vadd.f32 %v11102, %v11389
    %v11436 = vadd.f32 %v11103, %v11392
    %v11437 = vadd.f32 %v11104, %v11397
    %v11438 = vadd.f32 %v11105, %v11400
    %v11440 = vlaneseq
    %v11441 = vshrl.u32 %v11440, 7
    %v11442 = vsub.s32 0, %v11441
    %v11443 = vrot.slane %v8187, %v11442
    %v11445 = vmul.f32 %v11403, %v11443
    %v11446 = vmul.f32 %v11404, %v11443
    %v11447 = vmul.f32 %v11405, %v11443
    %v11448 = vmul.f32 %v11406, %v11443
    %v11449 = vmul.f32 %v11407, %v11443
    %v11450 = vmul.f32 %v11408, %v11443
    %v11451 = vmul.f32 %v11409, %v11443
    %v11452 = vmul.f32 %v11410, %v11443
    %v11453 = vmul.f32 %v11411, %v11443
    %v11454 = vmul.f32 %v11412, %v11443
    %v11455 = vmul.f32 %v11413, %v11443
    %v11456 = vmul.f32 %v11414, %v11443
    %v11457 = vmul.f32 %v11415, %v11443
    %v11458 = vmul.f32 %v11416, %v11443
    %v11459 = vmul.f32 %v11417, %v11443
    %v11460 = vmul.f32 %v11418, %v11443
    %v11461 = vmul.f32 %v11419, %v11443
    %v11462 = vmul.f32 %v11420, %v11443
    %v11463 = vmul.f32 %v11421, %v11443
    %v11464 = vmul.f32 %v11422, %v11443
    %v11465 = vmul.f32 %v11423, %v11443
    %v11466 = vmul.f32 %v11424, %v11443
    %v11467 = vmul.f32 %v11425, %v11443
    %v11468 = vmul.f32 %v11426, %v11443
    %v11469 = vmul.f32 %v11427, %v11443
    %v11470 = vmul.f32 %v11428, %v11443
    %v11471 = vmul.f32 %v11429, %v11443
    %v11472 = vmul.f32 %v11430, %v11443
    %v11473 = vmul.f32 %v11431, %v11443
    %v11474 = vmul.f32 %v11432, %v11443
    %v11475 = vmul.f32 %v11433, %v11443
    %v11476 = vmul.f32 %v11434, %v11443
    %v11477 = vmul.f32 %v11435, %v11443
    %v11478 = vmul.f32 %v11436, %v11443
    %v11479 = vmul.f32 %v11437, %v11443
    %v11480 = vmul.f32 %v11438, %v11443
    %v11482 = vlaneseq
    %v11483 = vshrl.u32 %v11482, 7
    %v11484 = vsub.s32 0, %v11483
    %v11485 = vrot.slane %v8189, %v11484
    %v11487 = vadd.f32 %v11445, %v11485
    %v11488 = vadd.f32 %v11446, %v11485
    %v11489 = vadd.f32 %v11447, %v11485
    %v11490 = vadd.f32 %v11448, %v11485
    %v11491 = vadd.f32 %v11449, %v11485
    %v11492 = vadd.f32 %v11450, %v11485
    %v11493 = vadd.f32 %v11451, %v11485
    %v11494 = vadd.f32 %v11452, %v11485
    %v11495 = vadd.f32 %v11453, %v11485
    %v11496 = vadd.f32 %v11454, %v11485
    %v11497 = vadd.f32 %v11455, %v11485
    %v11498 = vadd.f32 %v11456, %v11485
    %v11499 = vadd.f32 %v11457, %v11485
    %v11500 = vadd.f32 %v11458, %v11485
    %v11501 = vadd.f32 %v11459, %v11485
    %v11502 = vadd.f32 %v11460, %v11485
    %v11503 = vadd.f32 %v11461, %v11485
    %v11504 = vadd.f32 %v11462, %v11485
    %v11505 = vadd.f32 %v11463, %v11485
    %v11506 = vadd.f32 %v11464, %v11485
    %v11507 = vadd.f32 %v11465, %v11485
    %v11508 = vadd.f32 %v11466, %v11485
    %v11509 = vadd.f32 %v11467, %v11485
    %v11510 = vadd.f32 %v11468, %v11485
    %v11511 = vadd.f32 %v11469, %v11485
    %v11512 = vadd.f32 %v11470, %v11485
    %v11513 = vadd.f32 %v11471, %v11485
    %v11514 = vadd.f32 %v11472, %v11485
    %v11515 = vadd.f32 %v11473, %v11485
    %v11516 = vadd.f32 %v11474, %v11485
    %v11517 = vadd.f32 %v11475, %v11485
    %v11518 = vadd.f32 %v11476, %v11485
    %v11519 = vadd.f32 %v11477, %v11485
    %v11520 = vadd.f32 %v11478, %v11485
    %v11521 = vadd.f32 %v11479, %v11485
    %v11522 = vadd.f32 %v11480, %v11485
    %v11523 = vadd.f32 %v11487, %v8113
    %v11524 = vadd.f32 %v11488, %v8114
    %v11525 = vadd.f32 %v11489, %v8115
    %v11526 = vadd.f32 %v11490, %v8116
    %v11527 = vadd.f32 %v11491, %v8117
    %v11528 = vadd.f32 %v11492, %v8118
    %v11529 = vadd.f32 %v11493, %v8119
    %v11530 = vadd.f32 %v11494, %v8120
    %v11531 = vadd.f32 %v11495, %v8121
    %v11532 = vadd.f32 %v11496, %v8122
    %v11533 = vadd.f32 %v11497, %v8123
    %v11534 = vadd.f32 %v11498, %v8124
    %v11535 = vadd.f32 %v11499, %v8125
    %v11536 = vadd.f32 %v11500, %v8126
    %v11537 = vadd.f32 %v11501, %v8127
    %v11538 = vadd.f32 %v11502, %v8128
    %v11539 = vadd.f32 %v11503, %v8129
    %v11540 = vadd.f32 %v11504, %v8130
    %v11541 = vadd.f32 %v11505, %v8131
    %v11542 = vadd.f32 %v11506, %v8132
    %v11543 = vadd.f32 %v11507, %v8133
    %v11544 = vadd.f32 %v11508, %v8134
    %v11545 = vadd.f32 %v11509, %v8135
    %v11546 = vadd.f32 %v11510, %v8136
    %v11547 = vadd.f32 %v11511, %v8137
    %v11548 = vadd.f32 %v11512, %v8138
    %v11549 = vadd.f32 %v11513, %v8139
    %v11550 = vadd.f32 %v11514, %v8140
    %v11551 = vadd.f32 %v11515, %v8141
    %v11552 = vadd.f32 %v11516, %v8142
    %v11553 = vadd.f32 %v11517, %v8143
    %v11554 = vadd.f32 %v11518, %v8144
    %v11555 = vadd.f32 %v11519, %v8145
    %v11556 = vadd.f32 %v11520, %v8146
    %v11557 = vadd.f32 %v11521, %v8147
    %v11558 = vadd.f32 %v11522, %v8148
    %v11559 = vmax.f32 %v11523, 0.0
    %v11560 = vmax.f32 %v11524, 0.0
    %v11561 = vmax.f32 %v11525, 0.0
    %v11562 = vmax.f32 %v11526, 0.0
    %v11563 = vmax.f32 %v11527, 0.0
    %v11564 = vmax.f32 %v11528, 0.0
    %v11565 = vmax.f32 %v11529, 0.0
    %v11566 = vmax.f32 %v11530, 0.0
    %v11567 = vmax.f32 %v11531, 0.0
    %v11568 = vmax.f32 %v11532, 0.0
    %v11569 = vmax.f32 %v11533, 0.0
    %v11570 = vmax.f32 %v11534, 0.0
    %v11571 = vmax.f32 %v11535, 0.0
    %v11572 = vmax.f32 %v11536, 0.0
    %v11573 = vmax.f32 %v11537, 0.0
    %v11574 = vmax.f32 %v11538, 0.0
    %v11575 = vmax.f32 %v11539, 0.0
    %v11576 = vmax.f32 %v11540, 0.0
    %v11577 = vmax.f32 %v11541, 0.0
    %v11578 = vmax.f32 %v11542, 0.0
    %v11579 = vmax.f32 %v11543, 0.0
    %v11580 = vmax.f32 %v11544, 0.0
    %v11581 = vmax.f32 %v11545, 0.0
    %v11582 = vmax.f32 %v11546, 0.0
    %v11583 = vmax.f32 %v11547, 0.0
    %v11584 = vmax.f32 %v11548, 0.0
    %v11585 = vmax.f32 %v11549, 0.0
    %v11586 = vmax.f32 %v11550, 0.0
    %v11587 = vmax.f32 %v11551, 0.0
    %v11588 = vmax.f32 %v11552, 0.0
    %v11589 = vmax.f32 %v11553, 0.0
    %v11590 = vmax.f32 %v11554, 0.0
    %v11591 = vmax.f32 %v11555, 0.0
    %v11592 = vmax.f32 %v11556, 0.0
    %v11593 = vmax.f32 %v11557, 0.0
    %v11594 = vmax.f32 %v11558, 0.0
    %v11595 = vsel %vm1597, %v11559, -inf
    %v11596 = vsel %vm1597, %v11560, -inf
    %v11597 = vsel %vm1597, %v11561, -inf
    %v11598 = vsel %vm1597, %v11562, -inf
    %v11599 = vsel %vm1597, %v11563, -inf
    %v11600 = vmax.f32 %v11595, %v11599
    %v11601 = vsel %vm1597, %v11564, -inf
    %v11602 = vmax.f32 %v11596, %v11601
    %v11603 = vsel %vm1597, %v11565, -inf
    %v11604 = vmax.f32 %v11597, %v11603
    %v11605 = vsel %vm1597, %v11566, -inf
    %v11606 = vmax.f32 %v11598, %v11605
    %v11607 = vsel %vm1597, %v11567, -inf
    %v11608 = vmax.f32 %v11600, %v11607
    %v11609 = vsel %vm1597, %v11568, -inf
    %v11610 = vmax.f32 %v11602, %v11609
    %v11611 = vsel %vm1597, %v11569, -inf
    %v11612 = vmax.f32 %v11604, %v11611
    %v11613 = vsel %vm1597, %v11570, -inf
    %v11614 = vmax.f32 %v11606, %v11613
    %v11615 = vsel %vm1597, %v11571, -inf
    %v11616 = vmax.f32 %v11608, %v11615
    %v11617 = vsel %vm1597, %v11572, -inf
    %v11618 = vmax.f32 %v11610, %v11617
    %v11619 = vsel %vm1597, %v11573, -inf
    %v11620 = vmax.f32 %v11612, %v11619
    %v11621 = vsel %vm1597, %v11574, -inf
    %v11622 = vmax.f32 %v11614, %v11621
    %v11623 = vsel %vm1597, %v11575, -inf
    %v11624 = vmax.f32 %v11616, %v11623
    %v11625 = vsel %vm1597, %v11576, -inf
    %v11626 = vmax.f32 %v11618, %v11625
    %v11627 = vmax.f32 %v11624, %v11626
    %v11628 = vmax.f32 %v11620, %v11622
    %v11629 = vmax.f32 %v11627, %v11628
    %v11630 = vrot.slane %v11629, 4
    %v11631 = vmax.f32 %v11629, %v11630
    %v11632 = vrot.slane %v11631, 2
    %v11633 = vmax.f32 %v11631, %v11632
    %v11634 = vrot.slane %v11633, 1
    %v11635 = vmax.f32 %v11633, %v11634
    %vm11636 = vcmask 253952
    %11637 = vst.msk [vmem:[#allocation2] sm:$0x1] %vm11636, %v11635
    %v11638 = vsel %vm1597, %v11577, -inf
    %v11639 = vsel %vm1597, %v11578, -inf
    %v11640 = vsel %vm1597, %v11579, -inf
    %v11641 = vsel %vm1597, %v11580, -inf
    %v11642 = vsel %vm1597, %v11581, -inf
    %v11643 = vmax.f32 %v11638, %v11642
    %v11644 = vsel %vm1597, %v11582, -inf
    %v11645 = vmax.f32 %v11639, %v11644
    %v11646 = vsel %vm1597, %v11583, -inf
    %v11647 = vmax.f32 %v11640, %v11646
    %v11648 = vsel %vm1597, %v11584, -inf
    %v11649 = vmax.f32 %v11641, %v11648
    %v11650 = vsel %vm1597, %v11585, -inf
    %v11651 = vmax.f32 %v11643, %v11650
    %v11652 = vsel %vm1597, %v11586, -inf
    %v11653 = vmax.f32 %v11645, %v11652
    %v11654 = vsel %vm1597, %v11587, -inf
    %v11655 = vmax.f32 %v11647, %v11654
    %v11656 = vsel %vm1597, %v11588, -inf
    %v11657 = vmax.f32 %v11649, %v11656
    %v11658 = vsel %vm1597, %v11589, -inf
    %v11659 = vmax.f32 %v11651, %v11658
    %v11660 = vsel %vm1597, %v11590, -inf
    %v11661 = vmax.f32 %v11653, %v11660
    %v11662 = vsel %vm1597, %v11591, -inf
    %v11663 = vmax.f32 %v11655, %v11662
    %v11664 = vsel %vm1597, %v11592, -inf
    %v11665 = vmax.f32 %v11657, %v11664
    %v11666 = vsel %vm1597, %v11593, -inf
    %v11667 = vmax.f32 %v11659, %v11666
    %v11668 = vsel %vm1597, %v11594, -inf
    %v11669 = vmax.f32 %v11661, %v11668
    %v11670 = vmax.f32 %v11667, %v11669
    %v11671 = vmax.f32 %v11663, %v11665
    %v11672 = vmax.f32 %v11670, %v11671
    %v11673 = vrot.slane %v11672, 4
    %v11674 = vmax.f32 %v11672, %v11673
    %v11675 = vrot.slane %v11674, 2
    %v11676 = vmax.f32 %v11674, %v11675
    %v11677 = vrot.slane %v11676, 1
    %v11678 = vmax.f32 %v11676, %v11677
    %11679 = vst.msk [vmem:[#allocation2 + $0x1] sm:$0x1] %vm11636, %v11678
    // Predicated region
    $region34: #{tpu_custom_call.1} parent=1 // pred_check
      _
    $region35: #{tpu_custom_call.1} parent=1 // pred_check_branch
      %11681 = sbr.rel (0) target = $region37
    $region36: #{tpu_custom_call.1} parent=1 // pred_region
      %s11683 = ssub.s32 32, 32
      %11684 = vsyncadd [#allocation3], %s11683
      %s11686 = sshll.u32 [#allocation2], 4
      %s11687 = int_to_ptr.vmem [resolvable:$true] %s11686
      %11689 = dma.vmem_to_hbm [thread:$0]  %s11687, 32, %s8, [#allocation3]
    $region37: #{tpu_custom_call.1} parent=1 // pred_fallthru
      _
    // Predicated region
    $region38: #{tpu_custom_call.1} parent=1 // pred_check
      _
    $region39: #{tpu_custom_call.1} parent=1 // pred_check_branch
      %11691 = sbr.rel (0) target = $region41
    $region40: #{tpu_custom_call.1} parent=1 // pred_region
      %11692 = dma.done [#allocation3], 32
    $region41: #{tpu_custom_call.1} parent=1 // pred_fallthru
      _
    %11693 = vsyncpa [#allocation3], 1

</llo_original>
